<compile_context>
chip_gen: v5e
topology: v5e:2x2
jax: 0.10.0
libtpu: 0.0.40
codegen_flags: <defaults>
</compile_context>

<pallas_src>
import functools

import jax
import jax.numpy as jnp
from jax import lax
from jax.experimental import pallas as pl
from jax.experimental.pallas import tpu as pltpu

EPS = 1e-5
_PAR = pltpu.CompilerParams(dimension_semantics=("parallel",))


# ----------------------------------------------------------------------------
# Pallas kernels — lane-dense (H, W*C) layout, everything kept in vregs
# ----------------------------------------------------------------------------
def _res_block_kernel(*refs, n_in):
    """Fused pre-activation bottleneck for one image.

    The first `n_in` refs are summed in the prologue (fused merge adds); the
    sum is both the BN1 input and the identity skip.
    x -> relu(BN1) -> 1x1 -> relu(BN2) -> 3x3(pad=1) -> relu(BN3) -> 1x1 -> +x
    """
    x_refs = refs[:n_in]
    (s1, b1, w1, s2, b2, su, sd, wc0, wc1, wc2, s3, b3, w3) = refs[n_in:n_in + 13]
    o_ref = refs[n_in + 13]

    xf = x_refs[0][...].astype(jnp.float32)                   # (H, W*C)
    for r in x_refs[1:]:
        xf = xf + r[...].astype(jnp.float32)

    # BN1 + ReLU + 1x1 (C -> C4, block-diagonal over W)  [MXU, K = W*C]
    h = jnp.maximum(xf * s1[...] + b1[...], 0.0)
    h = jnp.dot(h.astype(jnp.bfloat16), w1[...],
                preferred_element_type=jnp.float32)           # (H, W*C4)
    # BN2 + ReLU
    h = jnp.maximum(h * s2[...] + b2[...], 0.0)
    hb = h.astype(jnp.bfloat16)

    # 3x3 conv, padding=1: +/-1 row shifts via (H,H) shift matrices, then one
    # banded (W*C4, W*C4) matmul per kernel row dy (boundary zeros built into
    # the band structure / shift matrices — no padded scratch, no masks).
    up = jnp.dot(su[...], hb, preferred_element_type=jnp.float32).astype(jnp.bfloat16)
    dn = jnp.dot(sd[...], hb, preferred_element_type=jnp.float32).astype(jnp.bfloat16)
    conv = (jnp.dot(up, wc0[...], preferred_element_type=jnp.float32)
            + jnp.dot(hb, wc1[...], preferred_element_type=jnp.float32)
            + jnp.dot(dn, wc2[...], preferred_element_type=jnp.float32))

    # BN3 + ReLU + 1x1 (C4 -> C) + identity skip
    h3 = jnp.maximum(conv * s3[...] + b3[...], 0.0)
    out = jnp.dot(h3.astype(jnp.bfloat16), w3[...],
                  preferred_element_type=jnp.float32) + xf
    o_ref[...] = out.astype(o_ref.dtype)                      # lane-dense store


def _mask_apply_kernel(feat_ref, up_ref, s1, b1, w1, s2, b2, w2, o_ref):
    """a = feat + up; m = sigmoid(1x1(relu(BN(1x1(relu(BN(a))))))); out = m*feat + feat."""
    f = feat_ref[...].astype(jnp.float32)
    a = f + up_ref[...].astype(jnp.float32)
    h = jnp.maximum(a * s1[...] + b1[...], 0.0)
    h = jnp.dot(h.astype(jnp.bfloat16), w1[...], preferred_element_type=jnp.float32)
    h = jnp.maximum(h * s2[...] + b2[...], 0.0)
    h = jnp.dot(h.astype(jnp.bfloat16), w2[...], preferred_element_type=jnp.float32)
    m = jax.nn.sigmoid(h)
    o_ref[...] = (m * f + f).astype(o_ref.dtype)


# ----------------------------------------------------------------------------
# Host-side weight packing for the lane-dense layout
# ----------------------------------------------------------------------------
def _pack_block_params(p, h, w):
    """Tile BN affines to (1, W*C*) and expand weights to block-diag / banded."""
    c, c4 = p['w1'].shape
    f32 = jnp.float32
    eye_w = jnp.eye(w, dtype=f32)
    pk = {
        's1': jnp.tile(p['s1'], w).reshape(1, w * c),
        'b1': jnp.tile(p['b1'], w).reshape(1, w * c),
        's2': jnp.tile(p['s2'], w).reshape(1, w * c4),
        'b2': jnp.tile(p['b2'], w).reshape(1, w * c4),
        's3': jnp.tile(p['s3'], w).reshape(1, w * c4),
        'b3': jnp.tile(p['b3'], w).reshape(1, w * c4),
        # 1x1 convs as block-diagonal matmuls on the (H, W*C) slab.
        'w1': jnp.kron(eye_w, p['w1'].astype(f32)).astype(jnp.bfloat16),
        'w3': jnp.kron(eye_w, p['w3'].astype(f32)).astype(jnp.bfloat16),
        # Row-shift matrices for the 3x3 conv's dy = -1 / +1 taps.
        'su': jnp.eye(h, k=-1, dtype=jnp.bfloat16),   # (su @ x)[r] = x[r-1]
        'sd': jnp.eye(h, k=1, dtype=jnp.bfloat16),    # (sd @ x)[r] = x[r+1]
    }
    # Banded matrices encoding the dx = -1/0/+1 taps for each conv row dy.
    for dy in range(3):
        wb = jnp.zeros((w * c4, w * c4), f32)
        for dx in range(3):
            shift = jnp.eye(w, k=-(dx - 1), dtype=f32)
            wb = wb + jnp.kron(shift, p['w2'][dy, dx].astype(f32))
        pk[f'wc{dy}'] = wb.astype(jnp.bfloat16)
    return pk


def _pack_mask_params(mp, w):
    c = mp['w1'].shape[0]
    eye_w = jnp.eye(w, dtype=jnp.float32)
    return dict(
        s1=jnp.tile(mp['s1'], w).reshape(1, w * c),
        b1=jnp.tile(mp['b1'], w).reshape(1, w * c),
        s2=jnp.tile(mp['s2'], w).reshape(1, w * c),
        b2=jnp.tile(mp['b2'], w).reshape(1, w * c),
        w1=jnp.kron(eye_w, mp['w1'].astype(jnp.float32)).astype(jnp.bfloat16),
        w2=jnp.kron(eye_w, mp['w2'].astype(jnp.float32)).astype(jnp.bfloat16),
    )


# ----------------------------------------------------------------------------
# pallas_call wrappers
# ----------------------------------------------------------------------------
def _const_spec(a):
    return pl.BlockSpec(a.shape, lambda i: (0, 0))


def residual_block(x, p, extras=()):
    """ResidualBlockDeepBN (shared weights), NHWC; `extras` are summed with x in-kernel."""
    n, h, w, c = x.shape
    wc = w * c
    pk = _pack_block_params(p, h, w)
    params = [pk['s1'], pk['b1'], pk['w1'], pk['s2'], pk['b2'],
              pk['su'], pk['sd'], pk['wc0'], pk['wc1'], pk['wc2'],
              pk['s3'], pk['b3'], pk['w3']]
    xs = [x.reshape(n, h, wc)] + [e.reshape(n, h, wc) for e in extras]
    x_spec = pl.BlockSpec((None, h, wc), lambda i: (i, 0, 0))
    out = pl.pallas_call(
        functools.partial(_res_block_kernel, n_in=len(xs)),
        out_shape=jax.ShapeDtypeStruct((n, h, wc), x.dtype),
        grid=(n,),
        in_specs=[x_spec] * len(xs) + [_const_spec(a) for a in params],
        out_specs=pl.BlockSpec((None, h, wc), lambda i: (i, 0, 0)),
        compiler_params=_PAR,
    )(*xs, *params)
    return out.reshape(n, h, w, c)


def mask_and_apply(feat, up_att, mp):
    """out = sigmoid(mask(feat + up_att)) * feat + feat (the add is fused in-kernel)."""
    n, h, w, c = feat.shape
    wc = w * c
    pk = _pack_mask_params(mp, w)
    params = [pk['s1'], pk['b1'], pk['w1'], pk['s2'], pk['b2'], pk['w2']]
    out = pl.pallas_call(
        _mask_apply_kernel,
        out_shape=jax.ShapeDtypeStruct((n, h, wc), feat.dtype),
        grid=(n,),
        in_specs=[pl.BlockSpec((None, h, wc), lambda i: (i, 0, 0))] * 2
                 + [_const_spec(a) for a in params],
        out_specs=pl.BlockSpec((None, h, wc), lambda i: (i, 0, 0)),
        compiler_params=_PAR,
    )(feat.reshape(n, h, wc), up_att.reshape(n, h, wc), *params)
    return out.reshape(n, h, w, c)


# ----------------------------------------------------------------------------
# XLA glue (fusion-friendly, gather-free)
# ----------------------------------------------------------------------------
def max_pool_3x3_s2_p1(x):
    """MaxPool2d(kernel=3, stride=2, padding=1), NHWC — pairwise max tree."""
    n, h, w, c = x.shape
    ho, wo = (h - 1) // 2 + 1, (w - 1) // 2 + 1
    xp = jnp.pad(x, ((0, 0), (1, 1), (1, 1), (0, 0)), constant_values=-jnp.inf)
    out = None
    for dy in range(3):
        for dx in range(3):
            v = lax.slice(xp, (0, dy, dx, 0),
                          (n, dy + 2 * ho - 1, dx + 2 * wo - 1, c),
                          (1, 2, 2, 1))
            out = v if out is None else jnp.maximum(out, v)
    return out


def upsample2x_bilinear(x):
    """nn.Upsample(scale_factor=2, mode='bilinear', align_corners=False), NHWC."""
    def up_axis(v, axis):
        length = v.shape[axis]
        first = lax.slice_in_dim(v, 0, 1, axis=axis)
        last = lax.slice_in_dim(v, length - 1, length, axis=axis)
        prev = jnp.concatenate(
            [first, lax.slice_in_dim(v, 0, length - 1, axis=axis)], axis=axis)
        nxt = jnp.concatenate(
            [lax.slice_in_dim(v, 1, length, axis=axis), last], axis=axis)
        even = 0.75 * v + 0.25 * prev
        odd = 0.75 * v + 0.25 * nxt
        inter = jnp.stack([even, odd], axis=axis + 1)
        new_shape = v.shape[:axis] + (2 * length,) + v.shape[axis + 1:]
        return inter.reshape(new_shape)

    return up_axis(up_axis(x, 1), 2)


# ----------------------------------------------------------------------------
# Forward pass (matches the PyTorch module's op order exactly)
# ----------------------------------------------------------------------------
def attention_module_stage1(x_nchw, rp, mp):
    x = jnp.transpose(x_nchw, (0, 2, 3, 1)).astype(jnp.bfloat16)   # NCHW -> NHWC

    attention = residual_block(max_pool_3x3_s2_p1(x), rp)
    trunk = residual_block(max_pool_3x3_s2_p1(attention), rp)

    tb1 = residual_block(max_pool_3x3_s2_p1(trunk), rp)
    tb1 = residual_block(tb1, rp)
    tb2 = residual_block(trunk, rp)
    # trunk = rb(upsample(tb1) + trunk + tb2)  -- merge adds fused in-kernel
    trunk = residual_block(trunk, rp, extras=(upsample2x_bilinear(tb1), tb2))

    ab1 = residual_block(attention, rp)
    # attention = rb(upsample(trunk) + ab1 + attention)  -- fused in-kernel
    attention = residual_block(attention, rp,
                               extras=(upsample2x_bilinear(trunk), ab1))

    out = residual_block(x, rp)
    out = residual_block(out, rp)
    # attention = out + up(attention); mask; mask*out + out  (fused in-kernel)
    out = mask_and_apply(out, upsample2x_bilinear(attention), mp)

    return jnp.transpose(out, (0, 3, 1, 2)).astype(jnp.float32)    # -> NCHW


# ----------------------------------------------------------------------------
# Deterministic parameter initialization (inference-mode BN exactly folded)
# ----------------------------------------------------------------------------
def _bn_fold(key, c):
    k1, k2, k3, k4 = jax.random.split(key, 4)
    gamma = 1.0 + 0.1 * jax.random.normal(k1, (c,))
    beta = 0.1 * jax.random.normal(k2, (c,))
    mean = 0.1 * jax.random.normal(k3, (c,))
    var = 1.0 + 0.1 * jax.random.uniform(k4, (c,))
    scale = gamma / jnp.sqrt(var + EPS)
    shift = beta - mean * scale
    return scale.astype(jnp.float32), shift.astype(jnp.float32)


def init_residual_block(key, c):
    c4 = max(c // 4, 1)
    ks = jax.random.split(key, 6)
    s1, b1 = _bn_fold(ks[0], c)
    w1 = (jax.random.normal(ks[1], (c, c4)) / jnp.sqrt(c)).astype(jnp.bfloat16)
    s2, b2 = _bn_fold(ks[2], c4)
    # 3x3 conv weight layout (dy, dx, Cin, Cout).  NOTE: a real PyTorch weight
    # of shape (Cout, Cin, 3, 3) must be transposed with (2, 3, 1, 0).
    w2 = (jax.random.normal(ks[3], (3, 3, c4, c4))
          / jnp.sqrt(9 * c4)).astype(jnp.bfloat16)
    s3, b3 = _bn_fold(ks[4], c4)
    w3 = (jax.random.normal(ks[5], (c4, c)) / jnp.sqrt(c4)).astype(jnp.bfloat16)
    return dict(s1=s1, b1=b1, w1=w1, s2=s2, b2=b2, w2=w2, s3=s3, b3=b3, w3=w3)


def init_mask(key, c):
    ks = jax.random.split(key, 4)
    s1, b1 = _bn_fold(ks[0], c)
    w1 = (jax.random.normal(ks[1], (c, c)) / jnp.sqrt(c)).astype(jnp.bfloat16)
    s2, b2 = _bn_fold(ks[2], c)
    w2 = (jax.random.normal(ks[3], (c, c)) / jnp.sqrt(c)).astype(jnp.bfloat16)
    return dict(s1=s1, b1=b1, w1=w1, s2=s2, b2=b2, w2=w2)


# ----------------------------------------------------------------------------
if __name__ == "__main__":
    key = jax.random.PRNGKey(0)
    k_rb, k_mask, k_x = jax.random.split(key, 3)

    N, C, H, W = 2, 16, 16, 16        # spatial must survive 3 poolings (16->8->4->2)
    rb_params = init_residual_block(k_rb, C)
    mask_params = init_mask(k_mask, C)

    x = jax.random.normal(k_x, (N, C, H, W), dtype=jnp.float32)  # NCHW input

    fwd = jax.jit(attention_module_stage1)
    y = fwd(x, rb_params, mask_params)
    jax.block_until_ready(y)
    assert y.shape == (N, C, H, W)
    assert bool(jnp.all(jnp.isfinite(y)))
    print("KERNEL_OK")
</pallas_src>

<mosaic_0001>
module attributes {stable_mosaic.version = 11 : i64} {
  func.func @_res_block_kernel(%arg0: i32, %arg1: memref<1x8x128xbf16, #tpu.memory_space<vmem>>, %arg2: memref<1x128xf32, #tpu.memory_space<vmem>>, %arg3: memref<1x128xf32, #tpu.memory_space<vmem>>, %arg4: memref<128x32xbf16, #tpu.memory_space<vmem>>, %arg5: memref<1x32xf32, #tpu.memory_space<vmem>>, %arg6: memref<1x32xf32, #tpu.memory_space<vmem>>, %arg7: memref<8x8xbf16, #tpu.memory_space<vmem>>, %arg8: memref<8x8xbf16, #tpu.memory_space<vmem>>, %arg9: memref<32x32xbf16, #tpu.memory_space<vmem>>, %arg10: memref<32x32xbf16, #tpu.memory_space<vmem>>, %arg11: memref<32x32xbf16, #tpu.memory_space<vmem>>, %arg12: memref<1x32xf32, #tpu.memory_space<vmem>>, %arg13: memref<1x32xf32, #tpu.memory_space<vmem>>, %arg14: memref<32x128xbf16, #tpu.memory_space<vmem>>, %arg15: memref<1x8x128xbf16, #tpu.memory_space<vmem>>) attributes {dimension_semantics = [#tpu.dimension_semantics<parallel>], iteration_bounds = array<i64: 2>, scalar_prefetch = 0 : i64, scratch_operands = 0 : i64, tpu.core_type = #tpu.core_type<tc>, window_params = [{transform_indices = @transform_0, window_bounds = array<i64: 1, 8, 128>}, {pipeline_mode = #tpu.pipeline_mode<synchronous>, transform_indices = @transform_1, window_bounds = array<i64: 1, 128>}, {pipeline_mode = #tpu.pipeline_mode<synchronous>, transform_indices = @transform_2, window_bounds = array<i64: 1, 128>}, {pipeline_mode = #tpu.pipeline_mode<synchronous>, transform_indices = @transform_3, window_bounds = array<i64: 128, 32>}, {pipeline_mode = #tpu.pipeline_mode<synchronous>, transform_indices = @transform_4, window_bounds = array<i64: 1, 32>}, {pipeline_mode = #tpu.pipeline_mode<synchronous>, transform_indices = @transform_5, window_bounds = array<i64: 1, 32>}, {pipeline_mode = #tpu.pipeline_mode<synchronous>, transform_indices = @transform_6, window_bounds = array<i64: 8, 8>}, {pipeline_mode = #tpu.pipeline_mode<synchronous>, transform_indices = @transform_7, window_bounds = array<i64: 8, 8>}, {pipeline_mode = #tpu.pipeline_mode<synchronous>, transform_indices = @transform_8, window_bounds = array<i64: 32, 32>}, {pipeline_mode = #tpu.pipeline_mode<synchronous>, transform_indices = @transform_9, window_bounds = array<i64: 32, 32>}, {pipeline_mode = #tpu.pipeline_mode<synchronous>, transform_indices = @transform_10, window_bounds = array<i64: 32, 32>}, {pipeline_mode = #tpu.pipeline_mode<synchronous>, transform_indices = @transform_11, window_bounds = array<i64: 1, 32>}, {pipeline_mode = #tpu.pipeline_mode<synchronous>, transform_indices = @transform_12, window_bounds = array<i64: 1, 32>}, {pipeline_mode = #tpu.pipeline_mode<synchronous>, transform_indices = @transform_13, window_bounds = array<i64: 32, 128>}, {transform_indices = @transform_14, window_bounds = array<i64: 1, 8, 128>}]} {
    %c0 = arith.constant 0 : index
    %c0_0 = arith.constant 0 : index
    %c0_1 = arith.constant 0 : index
    %0 = vector.load %arg1[%c0, %c0_0, %c0_1] : memref<1x8x128xbf16, #tpu.memory_space<vmem>>, vector<1x8x128xbf16>
    %1 = vector.shape_cast %0 : vector<1x8x128xbf16> to vector<8x128xbf16>
    %2 = arith.extf %1 : vector<8x128xbf16> to vector<8x128xf32>
    %c0_2 = arith.constant 0 : index
    %c0_3 = arith.constant 0 : index
    %3 = vector.load %arg2[%c0_2, %c0_3] : memref<1x128xf32, #tpu.memory_space<vmem>>, vector<1x128xf32>
    %4 = vector.broadcast %3 : vector<1x128xf32> to vector<8x128xf32>
    %5 = arith.mulf %2, %4 : vector<8x128xf32>
    %c0_4 = arith.constant 0 : index
    %c0_5 = arith.constant 0 : index
    %6 = vector.load %arg3[%c0_4, %c0_5] : memref<1x128xf32, #tpu.memory_space<vmem>>, vector<1x128xf32>
    %7 = vector.broadcast %6 : vector<1x128xf32> to vector<8x128xf32>
    %8 = arith.addf %5, %7 : vector<8x128xf32>
    %cst = arith.constant 0.000000e+00 : f32
    %9 = vector.broadcast %cst : f32 to vector<8x128xf32>
    %10 = arith.maximumf %8, %9 : vector<8x128xf32>
    %11 = arith.truncf %10 : vector<8x128xf32> to vector<8x128xbf16>
    %c0_6 = arith.constant 0 : index
    %c0_7 = arith.constant 0 : index
    %12 = vector.load %arg4[%c0_6, %c0_7] : memref<128x32xbf16, #tpu.memory_space<vmem>>, vector<128x32xbf16>
    %cst_8 = arith.constant dense<0.000000e+00> : vector<8x32xf32>
    %13 = tpu.matmul %11, %12, %cst_8 {dimension_numbers = #tpu.dot_dimension_numbers<[1], [0], [0], [1], [0, 0, 1, 1], [], []>} : vector<8x128xbf16>, vector<128x32xbf16>, vector<8x32xf32> -> vector<8x32xf32>
    %c0_9 = arith.constant 0 : index
    %c0_10 = arith.constant 0 : index
    %14 = vector.load %arg5[%c0_9, %c0_10] : memref<1x32xf32, #tpu.memory_space<vmem>>, vector<1x32xf32>
    %15 = vector.broadcast %14 : vector<1x32xf32> to vector<8x32xf32>
    %16 = arith.mulf %13, %15 : vector<8x32xf32>
    %c0_11 = arith.constant 0 : index
    %c0_12 = arith.constant 0 : index
    %17 = vector.load %arg6[%c0_11, %c0_12] : memref<1x32xf32, #tpu.memory_space<vmem>>, vector<1x32xf32>
    %18 = vector.broadcast %17 : vector<1x32xf32> to vector<8x32xf32>
    %19 = arith.addf %16, %18 : vector<8x32xf32>
    %cst_13 = arith.constant 0.000000e+00 : f32
    %20 = vector.broadcast %cst_13 : f32 to vector<8x32xf32>
    %21 = arith.maximumf %19, %20 : vector<8x32xf32>
    %22 = arith.truncf %21 : vector<8x32xf32> to vector<8x32xbf16>
    %c0_14 = arith.constant 0 : index
    %c0_15 = arith.constant 0 : index
    %23 = vector.load %arg7[%c0_14, %c0_15] : memref<8x8xbf16, #tpu.memory_space<vmem>>, vector<8x8xbf16>
    %cst_16 = arith.constant dense<0.000000e+00> : vector<8x32xf32>
    %24 = tpu.matmul %23, %22, %cst_16 {dimension_numbers = #tpu.dot_dimension_numbers<[1], [0], [0], [1], [0, 0, 1, 1], [], []>} : vector<8x8xbf16>, vector<8x32xbf16>, vector<8x32xf32> -> vector<8x32xf32>
    %25 = arith.truncf %24 : vector<8x32xf32> to vector<8x32xbf16>
    %c0_17 = arith.constant 0 : index
    %c0_18 = arith.constant 0 : index
    %26 = vector.load %arg8[%c0_17, %c0_18] : memref<8x8xbf16, #tpu.memory_space<vmem>>, vector<8x8xbf16>
    %cst_19 = arith.constant dense<0.000000e+00> : vector<8x32xf32>
    %27 = tpu.matmul %26, %22, %cst_19 {dimension_numbers = #tpu.dot_dimension_numbers<[1], [0], [0], [1], [0, 0, 1, 1], [], []>} : vector<8x8xbf16>, vector<8x32xbf16>, vector<8x32xf32> -> vector<8x32xf32>
    %28 = arith.truncf %27 : vector<8x32xf32> to vector<8x32xbf16>
    %c0_20 = arith.constant 0 : index
    %c0_21 = arith.constant 0 : index
    %29 = vector.load %arg9[%c0_20, %c0_21] : memref<32x32xbf16, #tpu.memory_space<vmem>>, vector<32x32xbf16>
    %cst_22 = arith.constant dense<0.000000e+00> : vector<8x32xf32>
    %30 = tpu.matmul %25, %29, %cst_22 {dimension_numbers = #tpu.dot_dimension_numbers<[1], [0], [0], [1], [0, 0, 1, 1], [], []>} : vector<8x32xbf16>, vector<32x32xbf16>, vector<8x32xf32> -> vector<8x32xf32>
    %c0_23 = arith.constant 0 : index
    %c0_24 = arith.constant 0 : index
    %31 = vector.load %arg10[%c0_23, %c0_24] : memref<32x32xbf16, #tpu.memory_space<vmem>>, vector<32x32xbf16>
    %cst_25 = arith.constant dense<0.000000e+00> : vector<8x32xf32>
    %32 = tpu.matmul %22, %31, %cst_25 {dimension_numbers = #tpu.dot_dimension_numbers<[1], [0], [0], [1], [0, 0, 1, 1], [], []>} : vector<8x32xbf16>, vector<32x32xbf16>, vector<8x32xf32> -> vector<8x32xf32>
    %33 = arith.addf %30, %32 : vector<8x32xf32>
    %c0_26 = arith.constant 0 : index
    %c0_27 = arith.constant 0 : index
    %34 = vector.load %arg11[%c0_26, %c0_27] : memref<32x32xbf16, #tpu.memory_space<vmem>>, vector<32x32xbf16>
    %cst_28 = arith.constant dense<0.000000e+00> : vector<8x32xf32>
    %35 = tpu.matmul %28, %34, %cst_28 {dimension_numbers = #tpu.dot_dimension_numbers<[1], [0], [0], [1], [0, 0, 1, 1], [], []>} : vector<8x32xbf16>, vector<32x32xbf16>, vector<8x32xf32> -> vector<8x32xf32>
    %36 = arith.addf %33, %35 : vector<8x32xf32>
    %c0_29 = arith.constant 0 : index
    %c0_30 = arith.constant 0 : index
    %37 = vector.load %arg12[%c0_29, %c0_30] : memref<1x32xf32, #tpu.memory_space<vmem>>, vector<1x32xf32>
    %38 = vector.broadcast %37 : vector<1x32xf32> to vector<8x32xf32>
    %39 = arith.mulf %36, %38 : vector<8x32xf32>
    %c0_31 = arith.constant 0 : index
    %c0_32 = arith.constant 0 : index
    %40 = vector.load %arg13[%c0_31, %c0_32] : memref<1x32xf32, #tpu.memory_space<vmem>>, vector<1x32xf32>
    %41 = vector.broadcast %40 : vector<1x32xf32> to vector<8x32xf32>
    %42 = arith.addf %39, %41 : vector<8x32xf32>
    %cst_33 = arith.constant 0.000000e+00 : f32
    %43 = vector.broadcast %cst_33 : f32 to vector<8x32xf32>
    %44 = arith.maximumf %42, %43 : vector<8x32xf32>
    %45 = arith.truncf %44 : vector<8x32xf32> to vector<8x32xbf16>
    %c0_34 = arith.constant 0 : index
    %c0_35 = arith.constant 0 : index
    %46 = vector.load %arg14[%c0_34, %c0_35] : memref<32x128xbf16, #tpu.memory_space<vmem>>, vector<32x128xbf16>
    %cst_36 = arith.constant dense<0.000000e+00> : vector<8x128xf32>
    %47 = tpu.matmul %45, %46, %cst_36 {dimension_numbers = #tpu.dot_dimension_numbers<[1], [0], [0], [1], [0, 0, 1, 1], [], []>} : vector<8x32xbf16>, vector<32x128xbf16>, vector<8x128xf32> -> vector<8x128xf32>
    %48 = arith.addf %47, %2 : vector<8x128xf32>
    %49 = arith.truncf %48 : vector<8x128xf32> to vector<8x128xbf16>
    %c0_37 = arith.constant 0 : index
    %c0_38 = arith.constant 0 : index
    %c0_39 = arith.constant 0 : index
    %50 = vector.load %arg15[%c0_37, %c0_38, %c0_39] : memref<1x8x128xbf16, #tpu.memory_space<vmem>>, vector<1x8x128xbf16>
    %51 = vector.shape_cast %50 : vector<1x8x128xbf16> to vector<8x128xbf16>
    %52 = vector.shape_cast %49 : vector<8x128xbf16> to vector<1x8x128xbf16>
    tpu.vector_store %arg15[%c0_37, %c0_38, %c0_39], %52 {strides = array<i32>} : memref<1x8x128xbf16, #tpu.memory_space<vmem>>, vector<1x8x128xbf16>,
    return
  }
  func.func @transform_0(%arg0: i32) -> (i32, i32, i32) {
    %c0_i32 = arith.constant 0 : i32
    %c0_i32_0 = arith.constant 0 : i32
    %c0_i32_1 = arith.constant 0 : i32
    return %arg0, %c0_i32, %c0_i32_0 : i32, i32, i32
  }
  func.func @transform_1(%arg0: i32) -> (i32, i32) {
    %c0_i32 = arith.constant 0 : i32
    %c0_i32_0 = arith.constant 0 : i32
    %c0_i32_1 = arith.constant 0 : i32
    return %c0_i32, %c0_i32_0 : i32, i32
  }
  func.func @transform_2(%arg0: i32) -> (i32, i32) {
    %c0_i32 = arith.constant 0 : i32
    %c0_i32_0 = arith.constant 0 : i32
    %c0_i32_1 = arith.constant 0 : i32
    return %c0_i32, %c0_i32_0 : i32, i32
  }
  func.func @transform_3(%arg0: i32) -> (i32, i32) {
    %c0_i32 = arith.constant 0 : i32
    %c0_i32_0 = arith.constant 0 : i32
    %c0_i32_1 = arith.constant 0 : i32
    return %c0_i32, %c0_i32_0 : i32, i32
  }
  func.func @transform_4(%arg0: i32) -> (i32, i32) {
    %c0_i32 = arith.constant 0 : i32
    %c0_i32_0 = arith.constant 0 : i32
    %c0_i32_1 = arith.constant 0 : i32
    return %c0_i32, %c0_i32_0 : i32, i32
  }
  func.func @transform_5(%arg0: i32) -> (i32, i32) {
    %c0_i32 = arith.constant 0 : i32
    %c0_i32_0 = arith.constant 0 : i32
    %c0_i32_1 = arith.constant 0 : i32
    return %c0_i32, %c0_i32_0 : i32, i32
  }
  func.func @transform_6(%arg0: i32) -> (i32, i32) {
    %c0_i32 = arith.constant 0 : i32
    %c0_i32_0 = arith.constant 0 : i32
    %c0_i32_1 = arith.constant 0 : i32
    return %c0_i32, %c0_i32_0 : i32, i32
  }
  func.func @transform_7(%arg0: i32) -> (i32, i32) {
    %c0_i32 = arith.constant 0 : i32
    %c0_i32_0 = arith.constant 0 : i32
    %c0_i32_1 = arith.constant 0 : i32
    return %c0_i32, %c0_i32_0 : i32, i32
  }
  func.func @transform_8(%arg0: i32) -> (i32, i32) {
    %c0_i32 = arith.constant 0 : i32
    %c0_i32_0 = arith.constant 0 : i32
    %c0_i32_1 = arith.constant 0 : i32
    return %c0_i32, %c0_i32_0 : i32, i32
  }
  func.func @transform_9(%arg0: i32) -> (i32, i32) {
    %c0_i32 = arith.constant 0 : i32
    %c0_i32_0 = arith.constant 0 : i32
    %c0_i32_1 = arith.constant 0 : i32
    return %c0_i32, %c0_i32_0 : i32, i32
  }
  func.func @transform_10(%arg0: i32) -> (i32, i32) {
    %c0_i32 = arith.constant 0 : i32
    %c0_i32_0 = arith.constant 0 : i32
    %c0_i32_1 = arith.constant 0 : i32
    return %c0_i32, %c0_i32_0 : i32, i32
  }
  func.func @transform_11(%arg0: i32) -> (i32, i32) {
    %c0_i32 = arith.constant 0 : i32
    %c0_i32_0 = arith.constant 0 : i32
    %c0_i32_1 = arith.constant 0 : i32
    return %c0_i32, %c0_i32_0 : i32, i32
  }
  func.func @transform_12(%arg0: i32) -> (i32, i32) {
    %c0_i32 = arith.constant 0 : i32
    %c0_i32_0 = arith.constant 0 : i32
    %c0_i32_1 = arith.constant 0 : i32
    return %c0_i32, %c0_i32_0 : i32, i32
  }
  func.func @transform_13(%arg0: i32) -> (i32, i32) {
    %c0_i32 = arith.constant 0 : i32
    %c0_i32_0 = arith.constant 0 : i32
    %c0_i32_1 = arith.constant 0 : i32
    return %c0_i32, %c0_i32_0 : i32, i32
  }
  func.func @transform_14(%arg0: i32) -> (i32, i32, i32) {
    %c0_i32 = arith.constant 0 : i32
    %c0_i32_0 = arith.constant 0 : i32
    %c0_i32_1 = arith.constant 0 : i32
    return %arg0, %c0_i32, %c0_i32_0 : i32, i32, i32
  }
}

module attributes {stable_mosaic.version = 11 : i64} {
  func.func @_res_block_kernel(%arg0: i32, %arg1: memref<1x4x64xbf16, #tpu.memory_space<vmem>>, %arg2: memref<1x64xf32, #tpu.memory_space<vmem>>, %arg3: memref<1x64xf32, #tpu.memory_space<vmem>>, %arg4: memref<64x16xbf16, #tpu.memory_space<vmem>>, %arg5: memref<1x16xf32, #tpu.memory_space<vmem>>, %arg6: memref<1x16xf32, #tpu.memory_space<vmem>>, %arg7: memref<4x4xbf16, #tpu.memory_space<vmem>>, %arg8: memref<4x4xbf16, #tpu.memory_space<vmem>>, %arg9: memref<16x16xbf16, #tpu.memory_space<vmem>>, %arg10: memref<16x16xbf16, #tpu.memory_space<vmem>>, %arg11: memref<16x16xbf16, #tpu.memory_space<vmem>>, %arg12: memref<1x16xf32, #tpu.memory_space<vmem>>, %arg13: memref<1x16xf32, #tpu.memory_space<vmem>>, %arg14: memref<16x64xbf16, #tpu.memory_space<vmem>>, %arg15: memref<1x4x64xbf16, #tpu.memory_space<vmem>>) attributes {dimension_semantics = [#tpu.dimension_semantics<parallel>], iteration_bounds = array<i64: 2>, scalar_prefetch = 0 : i64, scratch_operands = 0 : i64, tpu.core_type = #tpu.core_type<tc>, window_params = [{transform_indices = @transform_0, window_bounds = array<i64: 1, 4, 64>}, {pipeline_mode = #tpu.pipeline_mode<synchronous>, transform_indices = @transform_1, window_bounds = array<i64: 1, 64>}, {pipeline_mode = #tpu.pipeline_mode<synchronous>, transform_indices = @transform_2, window_bounds = array<i64: 1, 64>}, {pipeline_mode = #tpu.pipeline_mode<synchronous>, transform_indices = @transform_3, window_bounds = array<i64: 64, 16>}, {pipeline_mode = #tpu.pipeline_mode<synchronous>, transform_indices = @transform_4, window_bounds = array<i64: 1, 16>}, {pipeline_mode = #tpu.pipeline_mode<synchronous>, transform_indices = @transform_5, window_bounds = array<i64: 1, 16>}, {pipeline_mode = #tpu.pipeline_mode<synchronous>, transform_indices = @transform_6, window_bounds = array<i64: 4, 4>}, {pipeline_mode = #tpu.pipeline_mode<synchronous>, transform_indices = @transform_7, window_bounds = array<i64: 4, 4>}, {pipeline_mode = #tpu.pipeline_mode<synchronous>, transform_indices = @transform_8, window_bounds = array<i64: 16, 16>}, {pipeline_mode = #tpu.pipeline_mode<synchronous>, transform_indices = @transform_9, window_bounds = array<i64: 16, 16>}, {pipeline_mode = #tpu.pipeline_mode<synchronous>, transform_indices = @transform_10, window_bounds = array<i64: 16, 16>}, {pipeline_mode = #tpu.pipeline_mode<synchronous>, transform_indices = @transform_11, window_bounds = array<i64: 1, 16>}, {pipeline_mode = #tpu.pipeline_mode<synchronous>, transform_indices = @transform_12, window_bounds = array<i64: 1, 16>}, {pipeline_mode = #tpu.pipeline_mode<synchronous>, transform_indices = @transform_13, window_bounds = array<i64: 16, 64>}, {transform_indices = @transform_14, window_bounds = array<i64: 1, 4, 64>}]} {
    %c0 = arith.constant 0 : index
    %c0_0 = arith.constant 0 : index
    %c0_1 = arith.constant 0 : index
    %0 = vector.load %arg1[%c0, %c0_0, %c0_1] : memref<1x4x64xbf16, #tpu.memory_space<vmem>>, vector<1x4x64xbf16>
    %1 = vector.shape_cast %0 : vector<1x4x64xbf16> to vector<4x64xbf16>
    %2 = arith.extf %1 : vector<4x64xbf16> to vector<4x64xf32>
    %c0_2 = arith.constant 0 : index
    %c0_3 = arith.constant 0 : index
    %3 = vector.load %arg2[%c0_2, %c0_3] : memref<1x64xf32, #tpu.memory_space<vmem>>, vector<1x64xf32>
    %4 = vector.broadcast %3 : vector<1x64xf32> to vector<4x64xf32>
    %5 = arith.mulf %2, %4 : vector<4x64xf32>
    %c0_4 = arith.constant 0 : index
    %c0_5 = arith.constant 0 : index
    %6 = vector.load %arg3[%c0_4, %c0_5] : memref<1x64xf32, #tpu.memory_space<vmem>>, vector<1x64xf32>
    %7 = vector.broadcast %6 : vector<1x64xf32> to vector<4x64xf32>
    %8 = arith.addf %5, %7 : vector<4x64xf32>
    %cst = arith.constant 0.000000e+00 : f32
    %9 = vector.broadcast %cst : f32 to vector<4x64xf32>
    %10 = arith.maximumf %8, %9 : vector<4x64xf32>
    %11 = arith.truncf %10 : vector<4x64xf32> to vector<4x64xbf16>
    %c0_6 = arith.constant 0 : index
    %c0_7 = arith.constant 0 : index
    %12 = vector.load %arg4[%c0_6, %c0_7] : memref<64x16xbf16, #tpu.memory_space<vmem>>, vector<64x16xbf16>
    %cst_8 = arith.constant dense<0.000000e+00> : vector<4x16xf32>
    %13 = tpu.matmul %11, %12, %cst_8 {dimension_numbers = #tpu.dot_dimension_numbers<[1], [0], [0], [1], [0, 0, 1, 1], [], []>} : vector<4x64xbf16>, vector<64x16xbf16>, vector<4x16xf32> -> vector<4x16xf32>
    %c0_9 = arith.constant 0 : index
    %c0_10 = arith.constant 0 : index
    %14 = vector.load %arg5[%c0_9, %c0_10] : memref<1x16xf32, #tpu.memory_space<vmem>>, vector<1x16xf32>
    %15 = vector.broadcast %14 : vector<1x16xf32> to vector<4x16xf32>
    %16 = arith.mulf %13, %15 : vector<4x16xf32>
    %c0_11 = arith.constant 0 : index
    %c0_12 = arith.constant 0 : index
    %17 = vector.load %arg6[%c0_11, %c0_12] : memref<1x16xf32, #tpu.memory_space<vmem>>, vector<1x16xf32>
    %18 = vector.broadcast %17 : vector<1x16xf32> to vector<4x16xf32>
    %19 = arith.addf %16, %18 : vector<4x16xf32>
    %cst_13 = arith.constant 0.000000e+00 : f32
    %20 = vector.broadcast %cst_13 : f32 to vector<4x16xf32>
    %21 = arith.maximumf %19, %20 : vector<4x16xf32>
    %22 = arith.truncf %21 : vector<4x16xf32> to vector<4x16xbf16>
    %c0_14 = arith.constant 0 : index
    %c0_15 = arith.constant 0 : index
    %23 = vector.load %arg7[%c0_14, %c0_15] : memref<4x4xbf16, #tpu.memory_space<vmem>>, vector<4x4xbf16>
    %cst_16 = arith.constant dense<0.000000e+00> : vector<4x16xf32>
    %24 = tpu.matmul %23, %22, %cst_16 {dimension_numbers = #tpu.dot_dimension_numbers<[1], [0], [0], [1], [0, 0, 1, 1], [], []>} : vector<4x4xbf16>, vector<4x16xbf16>, vector<4x16xf32> -> vector<4x16xf32>
    %25 = arith.truncf %24 : vector<4x16xf32> to vector<4x16xbf16>
    %c0_17 = arith.constant 0 : index
    %c0_18 = arith.constant 0 : index
    %26 = vector.load %arg8[%c0_17, %c0_18] : memref<4x4xbf16, #tpu.memory_space<vmem>>, vector<4x4xbf16>
    %cst_19 = arith.constant dense<0.000000e+00> : vector<4x16xf32>
    %27 = tpu.matmul %26, %22, %cst_19 {dimension_numbers = #tpu.dot_dimension_numbers<[1], [0], [0], [1], [0, 0, 1, 1], [], []>} : vector<4x4xbf16>, vector<4x16xbf16>, vector<4x16xf32> -> vector<4x16xf32>
    %28 = arith.truncf %27 : vector<4x16xf32> to vector<4x16xbf16>
    %c0_20 = arith.constant 0 : index
    %c0_21 = arith.constant 0 : index
    %29 = vector.load %arg9[%c0_20, %c0_21] : memref<16x16xbf16, #tpu.memory_space<vmem>>, vector<16x16xbf16>
    %cst_22 = arith.constant dense<0.000000e+00> : vector<4x16xf32>
    %30 = tpu.matmul %25, %29, %cst_22 {dimension_numbers = #tpu.dot_dimension_numbers<[1], [0], [0], [1], [0, 0, 1, 1], [], []>} : vector<4x16xbf16>, vector<16x16xbf16>, vector<4x16xf32> -> vector<4x16xf32>
    %c0_23 = arith.constant 0 : index
    %c0_24 = arith.constant 0 : index
    %31 = vector.load %arg10[%c0_23, %c0_24] : memref<16x16xbf16, #tpu.memory_space<vmem>>, vector<16x16xbf16>
    %cst_25 = arith.constant dense<0.000000e+00> : vector<4x16xf32>
    %32 = tpu.matmul %22, %31, %cst_25 {dimension_numbers = #tpu.dot_dimension_numbers<[1], [0], [0], [1], [0, 0, 1, 1], [], []>} : vector<4x16xbf16>, vector<16x16xbf16>, vector<4x16xf32> -> vector<4x16xf32>
    %33 = arith.addf %30, %32 : vector<4x16xf32>
    %c0_26 = arith.constant 0 : index
    %c0_27 = arith.constant 0 : index
    %34 = vector.load %arg11[%c0_26, %c0_27] : memref<16x16xbf16, #tpu.memory_space<vmem>>, vector<16x16xbf16>
    %cst_28 = arith.constant dense<0.000000e+00> : vector<4x16xf32>
    %35 = tpu.matmul %28, %34, %cst_28 {dimension_numbers = #tpu.dot_dimension_numbers<[1], [0], [0], [1], [0, 0, 1, 1], [], []>} : vector<4x16xbf16>, vector<16x16xbf16>, vector<4x16xf32> -> vector<4x16xf32>
    %36 = arith.addf %33, %35 : vector<4x16xf32>
    %c0_29 = arith.constant 0 : index
    %c0_30 = arith.constant 0 : index
    %37 = vector.load %arg12[%c0_29, %c0_30] : memref<1x16xf32, #tpu.memory_space<vmem>>, vector<1x16xf32>
    %38 = vector.broadcast %37 : vector<1x16xf32> to vector<4x16xf32>
    %39 = arith.mulf %36, %38 : vector<4x16xf32>
    %c0_31 = arith.constant 0 : index
    %c0_32 = arith.constant 0 : index
    %40 = vector.load %arg13[%c0_31, %c0_32] : memref<1x16xf32, #tpu.memory_space<vmem>>, vector<1x16xf32>
    %41 = vector.broadcast %40 : vector<1x16xf32> to vector<4x16xf32>
    %42 = arith.addf %39, %41 : vector<4x16xf32>
    %cst_33 = arith.constant 0.000000e+00 : f32
    %43 = vector.broadcast %cst_33 : f32 to vector<4x16xf32>
    %44 = arith.maximumf %42, %43 : vector<4x16xf32>
    %45 = arith.truncf %44 : vector<4x16xf32> to vector<4x16xbf16>
    %c0_34 = arith.constant 0 : index
    %c0_35 = arith.constant 0 : index
    %46 = vector.load %arg14[%c0_34, %c0_35] : memref<16x64xbf16, #tpu.memory_space<vmem>>, vector<16x64xbf16>
    %cst_36 = arith.constant dense<0.000000e+00> : vector<4x64xf32>
    %47 = tpu.matmul %45, %46, %cst_36 {dimension_numbers = #tpu.dot_dimension_numbers<[1], [0], [0], [1], [0, 0, 1, 1], [], []>} : vector<4x16xbf16>, vector<16x64xbf16>, vector<4x64xf32> -> vector<4x64xf32>
    %48 = arith.addf %47, %2 : vector<4x64xf32>
    %49 = arith.truncf %48 : vector<4x64xf32> to vector<4x64xbf16>
    %c0_37 = arith.constant 0 : index
    %c0_38 = arith.constant 0 : index
    %c0_39 = arith.constant 0 : index
    %50 = vector.load %arg15[%c0_37, %c0_38, %c0_39] : memref<1x4x64xbf16, #tpu.memory_space<vmem>>, vector<1x4x64xbf16>
    %51 = vector.shape_cast %50 : vector<1x4x64xbf16> to vector<4x64xbf16>
    %52 = vector.shape_cast %49 : vector<4x64xbf16> to vector<1x4x64xbf16>
    tpu.vector_store %arg15[%c0_37, %c0_38, %c0_39], %52 {strides = array<i32>} : memref<1x4x64xbf16, #tpu.memory_space<vmem>>, vector<1x4x64xbf16>,
    return
  }
  func.func @transform_0(%arg0: i32) -> (i32, i32, i32) {
    %c0_i32 = arith.constant 0 : i32
    %c0_i32_0 = arith.constant 0 : i32
    %c0_i32_1 = arith.constant 0 : i32
    return %arg0, %c0_i32, %c0_i32_0 : i32, i32, i32
  }
  func.func @transform_1(%arg0: i32) -> (i32, i32) {
    %c0_i32 = arith.constant 0 : i32
    %c0_i32_0 = arith.constant 0 : i32
    %c0_i32_1 = arith.constant 0 : i32
    return %c0_i32, %c0_i32_0 : i32, i32
  }
  func.func @transform_2(%arg0: i32) -> (i32, i32) {
    %c0_i32 = arith.constant 0 : i32
    %c0_i32_0 = arith.constant 0 : i32
    %c0_i32_1 = arith.constant 0 : i32
    return %c0_i32, %c0_i32_0 : i32, i32
  }
  func.func @transform_3(%arg0: i32) -> (i32, i32) {
    %c0_i32 = arith.constant 0 : i32
    %c0_i32_0 = arith.constant 0 : i32
    %c0_i32_1 = arith.constant 0 : i32
    return %c0_i32, %c0_i32_0 : i32, i32
  }
  func.func @transform_4(%arg0: i32) -> (i32, i32) {
    %c0_i32 = arith.constant 0 : i32
    %c0_i32_0 = arith.constant 0 : i32
    %c0_i32_1 = arith.constant 0 : i32
    return %c0_i32, %c0_i32_0 : i32, i32
  }
  func.func @transform_5(%arg0: i32) -> (i32, i32) {
    %c0_i32 = arith.constant 0 : i32
    %c0_i32_0 = arith.constant 0 : i32
    %c0_i32_1 = arith.constant 0 : i32
    return %c0_i32, %c0_i32_0 : i32, i32
  }
  func.func @transform_6(%arg0: i32) -> (i32, i32) {
    %c0_i32 = arith.constant 0 : i32
    %c0_i32_0 = arith.constant 0 : i32
    %c0_i32_1 = arith.constant 0 : i32
    return %c0_i32, %c0_i32_0 : i32, i32
  }
  func.func @transform_7(%arg0: i32) -> (i32, i32) {
    %c0_i32 = arith.constant 0 : i32
    %c0_i32_0 = arith.constant 0 : i32
    %c0_i32_1 = arith.constant 0 : i32
    return %c0_i32, %c0_i32_0 : i32, i32
  }
  func.func @transform_8(%arg0: i32) -> (i32, i32) {
    %c0_i32 = arith.constant 0 : i32
    %c0_i32_0 = arith.constant 0 : i32
    %c0_i32_1 = arith.constant 0 : i32
    return %c0_i32, %c0_i32_0 : i32, i32
  }
  func.func @transform_9(%arg0: i32) -> (i32, i32) {
    %c0_i32 = arith.constant 0 : i32
    %c0_i32_0 = arith.constant 0 : i32
    %c0_i32_1 = arith.constant 0 : i32
    return %c0_i32, %c0_i32_0 : i32, i32
  }
  func.func @transform_10(%arg0: i32) -> (i32, i32) {
    %c0_i32 = arith.constant 0 : i32
    %c0_i32_0 = arith.constant 0 : i32
    %c0_i32_1 = arith.constant 0 : i32
    return %c0_i32, %c0_i32_0 : i32, i32
  }
  func.func @transform_11(%arg0: i32) -> (i32, i32) {
    %c0_i32 = arith.constant 0 : i32
    %c0_i32_0 = arith.constant 0 : i32
    %c0_i32_1 = arith.constant 0 : i32
    return %c0_i32, %c0_i32_0 : i32, i32
  }
  func.func @transform_12(%arg0: i32) -> (i32, i32) {
    %c0_i32 = arith.constant 0 : i32
    %c0_i32_0 = arith.constant 0 : i32
    %c0_i32_1 = arith.constant 0 : i32
    return %c0_i32, %c0_i32_0 : i32, i32
  }
  func.func @transform_13(%arg0: i32) -> (i32, i32) {
    %c0_i32 = arith.constant 0 : i32
    %c0_i32_0 = arith.constant 0 : i32
    %c0_i32_1 = arith.constant 0 : i32
    return %c0_i32, %c0_i32_0 : i32, i32
  }
  func.func @transform_14(%arg0: i32) -> (i32, i32, i32) {
    %c0_i32 = arith.constant 0 : i32
    %c0_i32_0 = arith.constant 0 : i32
    %c0_i32_1 = arith.constant 0 : i32
    return %arg0, %c0_i32, %c0_i32_0 : i32, i32, i32
  }
}

module attributes {stable_mosaic.version = 11 : i64} {
  func.func @_res_block_kernel(%arg0: i32, %arg1: memref<1x2x32xbf16, #tpu.memory_space<vmem>>, %arg2: memref<1x32xf32, #tpu.memory_space<vmem>>, %arg3: memref<1x32xf32, #tpu.memory_space<vmem>>, %arg4: memref<32x8xbf16, #tpu.memory_space<vmem>>, %arg5: memref<1x8xf32, #tpu.memory_space<vmem>>, %arg6: memref<1x8xf32, #tpu.memory_space<vmem>>, %arg7: memref<2x2xbf16, #tpu.memory_space<vmem>>, %arg8: memref<2x2xbf16, #tpu.memory_space<vmem>>, %arg9: memref<8x8xbf16, #tpu.memory_space<vmem>>, %arg10: memref<8x8xbf16, #tpu.memory_space<vmem>>, %arg11: memref<8x8xbf16, #tpu.memory_space<vmem>>, %arg12: memref<1x8xf32, #tpu.memory_space<vmem>>, %arg13: memref<1x8xf32, #tpu.memory_space<vmem>>, %arg14: memref<8x32xbf16, #tpu.memory_space<vmem>>, %arg15: memref<1x2x32xbf16, #tpu.memory_space<vmem>>) attributes {dimension_semantics = [#tpu.dimension_semantics<parallel>], iteration_bounds = array<i64: 2>, scalar_prefetch = 0 : i64, scratch_operands = 0 : i64, tpu.core_type = #tpu.core_type<tc>, window_params = [{transform_indices = @transform_0, window_bounds = array<i64: 1, 2, 32>}, {pipeline_mode = #tpu.pipeline_mode<synchronous>, transform_indices = @transform_1, window_bounds = array<i64: 1, 32>}, {pipeline_mode = #tpu.pipeline_mode<synchronous>, transform_indices = @transform_2, window_bounds = array<i64: 1, 32>}, {pipeline_mode = #tpu.pipeline_mode<synchronous>, transform_indices = @transform_3, window_bounds = array<i64: 32, 8>}, {pipeline_mode = #tpu.pipeline_mode<synchronous>, transform_indices = @transform_4, window_bounds = array<i64: 1, 8>}, {pipeline_mode = #tpu.pipeline_mode<synchronous>, transform_indices = @transform_5, window_bounds = array<i64: 1, 8>}, {pipeline_mode = #tpu.pipeline_mode<synchronous>, transform_indices = @transform_6, window_bounds = array<i64: 2, 2>}, {pipeline_mode = #tpu.pipeline_mode<synchronous>, transform_indices = @transform_7, window_bounds = array<i64: 2, 2>}, {pipeline_mode = #tpu.pipeline_mode<synchronous>, transform_indices = @transform_8, window_bounds = array<i64: 8, 8>}, {pipeline_mode = #tpu.pipeline_mode<synchronous>, transform_indices = @transform_9, window_bounds = array<i64: 8, 8>}, {pipeline_mode = #tpu.pipeline_mode<synchronous>, transform_indices = @transform_10, window_bounds = array<i64: 8, 8>}, {pipeline_mode = #tpu.pipeline_mode<synchronous>, transform_indices = @transform_11, window_bounds = array<i64: 1, 8>}, {pipeline_mode = #tpu.pipeline_mode<synchronous>, transform_indices = @transform_12, window_bounds = array<i64: 1, 8>}, {pipeline_mode = #tpu.pipeline_mode<synchronous>, transform_indices = @transform_13, window_bounds = array<i64: 8, 32>}, {transform_indices = @transform_14, window_bounds = array<i64: 1, 2, 32>}]} {
    %c0 = arith.constant 0 : index
    %c0_0 = arith.constant 0 : index
    %c0_1 = arith.constant 0 : index
    %0 = vector.load %arg1[%c0, %c0_0, %c0_1] : memref<1x2x32xbf16, #tpu.memory_space<vmem>>, vector<1x2x32xbf16>
    %1 = vector.shape_cast %0 : vector<1x2x32xbf16> to vector<2x32xbf16>
    %2 = arith.extf %1 : vector<2x32xbf16> to vector<2x32xf32>
    %c0_2 = arith.constant 0 : index
    %c0_3 = arith.constant 0 : index
    %3 = vector.load %arg2[%c0_2, %c0_3] : memref<1x32xf32, #tpu.memory_space<vmem>>, vector<1x32xf32>
    %4 = vector.broadcast %3 : vector<1x32xf32> to vector<2x32xf32>
    %5 = arith.mulf %2, %4 : vector<2x32xf32>
    %c0_4 = arith.constant 0 : index
    %c0_5 = arith.constant 0 : index
    %6 = vector.load %arg3[%c0_4, %c0_5] : memref<1x32xf32, #tpu.memory_space<vmem>>, vector<1x32xf32>
    %7 = vector.broadcast %6 : vector<1x32xf32> to vector<2x32xf32>
    %8 = arith.addf %5, %7 : vector<2x32xf32>
    %cst = arith.constant 0.000000e+00 : f32
    %9 = vector.broadcast %cst : f32 to vector<2x32xf32>
    %10 = arith.maximumf %8, %9 : vector<2x32xf32>
    %11 = arith.truncf %10 : vector<2x32xf32> to vector<2x32xbf16>
    %c0_6 = arith.constant 0 : index
    %c0_7 = arith.constant 0 : index
    %12 = vector.load %arg4[%c0_6, %c0_7] : memref<32x8xbf16, #tpu.memory_space<vmem>>, vector<32x8xbf16>
    %cst_8 = arith.constant dense<0.000000e+00> : vector<2x8xf32>
    %13 = tpu.matmul %11, %12, %cst_8 {dimension_numbers = #tpu.dot_dimension_numbers<[1], [0], [0], [1], [0, 0, 1, 1], [], []>} : vector<2x32xbf16>, vector<32x8xbf16>, vector<2x8xf32> -> vector<2x8xf32>
    %c0_9 = arith.constant 0 : index
    %c0_10 = arith.constant 0 : index
    %14 = vector.load %arg5[%c0_9, %c0_10] : memref<1x8xf32, #tpu.memory_space<vmem>>, vector<1x8xf32>
    %15 = vector.broadcast %14 : vector<1x8xf32> to vector<2x8xf32>
    %16 = arith.mulf %13, %15 : vector<2x8xf32>
    %c0_11 = arith.constant 0 : index
    %c0_12 = arith.constant 0 : index
    %17 = vector.load %arg6[%c0_11, %c0_12] : memref<1x8xf32, #tpu.memory_space<vmem>>, vector<1x8xf32>
    %18 = vector.broadcast %17 : vector<1x8xf32> to vector<2x8xf32>
    %19 = arith.addf %16, %18 : vector<2x8xf32>
    %cst_13 = arith.constant 0.000000e+00 : f32
    %20 = vector.broadcast %cst_13 : f32 to vector<2x8xf32>
    %21 = arith.maximumf %19, %20 : vector<2x8xf32>
    %22 = arith.truncf %21 : vector<2x8xf32> to vector<2x8xbf16>
    %c0_14 = arith.constant 0 : index
    %c0_15 = arith.constant 0 : index
    %23 = vector.load %arg7[%c0_14, %c0_15] : memref<2x2xbf16, #tpu.memory_space<vmem>>, vector<2x2xbf16>
    %cst_16 = arith.constant dense<0.000000e+00> : vector<2x8xf32>
    %24 = tpu.matmul %23, %22, %cst_16 {dimension_numbers = #tpu.dot_dimension_numbers<[1], [0], [0], [1], [0, 0, 1, 1], [], []>} : vector<2x2xbf16>, vector<2x8xbf16>, vector<2x8xf32> -> vector<2x8xf32>
    %25 = arith.truncf %24 : vector<2x8xf32> to vector<2x8xbf16>
    %c0_17 = arith.constant 0 : index
    %c0_18 = arith.constant 0 : index
    %26 = vector.load %arg8[%c0_17, %c0_18] : memref<2x2xbf16, #tpu.memory_space<vmem>>, vector<2x2xbf16>
    %cst_19 = arith.constant dense<0.000000e+00> : vector<2x8xf32>
    %27 = tpu.matmul %26, %22, %cst_19 {dimension_numbers = #tpu.dot_dimension_numbers<[1], [0], [0], [1], [0, 0, 1, 1], [], []>} : vector<2x2xbf16>, vector<2x8xbf16>, vector<2x8xf32> -> vector<2x8xf32>
    %28 = arith.truncf %27 : vector<2x8xf32> to vector<2x8xbf16>
    %c0_20 = arith.constant 0 : index
    %c0_21 = arith.constant 0 : index
    %29 = vector.load %arg9[%c0_20, %c0_21] : memref<8x8xbf16, #tpu.memory_space<vmem>>, vector<8x8xbf16>
    %cst_22 = arith.constant dense<0.000000e+00> : vector<2x8xf32>
    %30 = tpu.matmul %25, %29, %cst_22 {dimension_numbers = #tpu.dot_dimension_numbers<[1], [0], [0], [1], [0, 0, 1, 1], [], []>} : vector<2x8xbf16>, vector<8x8xbf16>, vector<2x8xf32> -> vector<2x8xf32>
    %c0_23 = arith.constant 0 : index
    %c0_24 = arith.constant 0 : index
    %31 = vector.load %arg10[%c0_23, %c0_24] : memref<8x8xbf16, #tpu.memory_space<vmem>>, vector<8x8xbf16>
    %cst_25 = arith.constant dense<0.000000e+00> : vector<2x8xf32>
    %32 = tpu.matmul %22, %31, %cst_25 {dimension_numbers = #tpu.dot_dimension_numbers<[1], [0], [0], [1], [0, 0, 1, 1], [], []>} : vector<2x8xbf16>, vector<8x8xbf16>, vector<2x8xf32> -> vector<2x8xf32>
    %33 = arith.addf %30, %32 : vector<2x8xf32>
    %c0_26 = arith.constant 0 : index
    %c0_27 = arith.constant 0 : index
    %34 = vector.load %arg11[%c0_26, %c0_27] : memref<8x8xbf16, #tpu.memory_space<vmem>>, vector<8x8xbf16>
    %cst_28 = arith.constant dense<0.000000e+00> : vector<2x8xf32>
    %35 = tpu.matmul %28, %34, %cst_28 {dimension_numbers = #tpu.dot_dimension_numbers<[1], [0], [0], [1], [0, 0, 1, 1], [], []>} : vector<2x8xbf16>, vector<8x8xbf16>, vector<2x8xf32> -> vector<2x8xf32>
    %36 = arith.addf %33, %35 : vector<2x8xf32>
    %c0_29 = arith.constant 0 : index
    %c0_30 = arith.constant 0 : index
    %37 = vector.load %arg12[%c0_29, %c0_30] : memref<1x8xf32, #tpu.memory_space<vmem>>, vector<1x8xf32>
    %38 = vector.broadcast %37 : vector<1x8xf32> to vector<2x8xf32>
    %39 = arith.mulf %36, %38 : vector<2x8xf32>
    %c0_31 = arith.constant 0 : index
    %c0_32 = arith.constant 0 : index
    %40 = vector.load %arg13[%c0_31, %c0_32] : memref<1x8xf32, #tpu.memory_space<vmem>>, vector<1x8xf32>
    %41 = vector.broadcast %40 : vector<1x8xf32> to vector<2x8xf32>
    %42 = arith.addf %39, %41 : vector<2x8xf32>
    %cst_33 = arith.constant 0.000000e+00 : f32
    %43 = vector.broadcast %cst_33 : f32 to vector<2x8xf32>
    %44 = arith.maximumf %42, %43 : vector<2x8xf32>
    %45 = arith.truncf %44 : vector<2x8xf32> to vector<2x8xbf16>
    %c0_34 = arith.constant 0 : index
    %c0_35 = arith.constant 0 : index
    %46 = vector.load %arg14[%c0_34, %c0_35] : memref<8x32xbf16, #tpu.memory_space<vmem>>, vector<8x32xbf16>
    %cst_36 = arith.constant dense<0.000000e+00> : vector<2x32xf32>
    %47 = tpu.matmul %45, %46, %cst_36 {dimension_numbers = #tpu.dot_dimension_numbers<[1], [0], [0], [1], [0, 0, 1, 1], [], []>} : vector<2x8xbf16>, vector<8x32xbf16>, vector<2x32xf32> -> vector<2x32xf32>
    %48 = arith.addf %47, %2 : vector<2x32xf32>
    %49 = arith.truncf %48 : vector<2x32xf32> to vector<2x32xbf16>
    %c0_37 = arith.constant 0 : index
    %c0_38 = arith.constant 0 : index
    %c0_39 = arith.constant 0 : index
    %50 = vector.load %arg15[%c0_37, %c0_38, %c0_39] : memref<1x2x32xbf16, #tpu.memory_space<vmem>>, vector<1x2x32xbf16>
    %51 = vector.shape_cast %50 : vector<1x2x32xbf16> to vector<2x32xbf16>
    %52 = vector.shape_cast %49 : vector<2x32xbf16> to vector<1x2x32xbf16>
    tpu.vector_store %arg15[%c0_37, %c0_38, %c0_39], %52 {strides = array<i32>} : memref<1x2x32xbf16, #tpu.memory_space<vmem>>, vector<1x2x32xbf16>,
    return
  }
  func.func @transform_0(%arg0: i32) -> (i32, i32, i32) {
    %c0_i32 = arith.constant 0 : i32
    %c0_i32_0 = arith.constant 0 : i32
    %c0_i32_1 = arith.constant 0 : i32
    return %arg0, %c0_i32, %c0_i32_0 : i32, i32, i32
  }
  func.func @transform_1(%arg0: i32) -> (i32, i32) {
    %c0_i32 = arith.constant 0 : i32
    %c0_i32_0 = arith.constant 0 : i32
    %c0_i32_1 = arith.constant 0 : i32
    return %c0_i32, %c0_i32_0 : i32, i32
  }
  func.func @transform_2(%arg0: i32) -> (i32, i32) {
    %c0_i32 = arith.constant 0 : i32
    %c0_i32_0 = arith.constant 0 : i32
    %c0_i32_1 = arith.constant 0 : i32
    return %c0_i32, %c0_i32_0 : i32, i32
  }
  func.func @transform_3(%arg0: i32) -> (i32, i32) {
    %c0_i32 = arith.constant 0 : i32
    %c0_i32_0 = arith.constant 0 : i32
    %c0_i32_1 = arith.constant 0 : i32
    return %c0_i32, %c0_i32_0 : i32, i32
  }
  func.func @transform_4(%arg0: i32) -> (i32, i32) {
    %c0_i32 = arith.constant 0 : i32
    %c0_i32_0 = arith.constant 0 : i32
    %c0_i32_1 = arith.constant 0 : i32
    return %c0_i32, %c0_i32_0 : i32, i32
  }
  func.func @transform_5(%arg0: i32) -> (i32, i32) {
    %c0_i32 = arith.constant 0 : i32
    %c0_i32_0 = arith.constant 0 : i32
    %c0_i32_1 = arith.constant 0 : i32
    return %c0_i32, %c0_i32_0 : i32, i32
  }
  func.func @transform_6(%arg0: i32) -> (i32, i32) {
    %c0_i32 = arith.constant 0 : i32
    %c0_i32_0 = arith.constant 0 : i32
    %c0_i32_1 = arith.constant 0 : i32
    return %c0_i32, %c0_i32_0 : i32, i32
  }
  func.func @transform_7(%arg0: i32) -> (i32, i32) {
    %c0_i32 = arith.constant 0 : i32
    %c0_i32_0 = arith.constant 0 : i32
    %c0_i32_1 = arith.constant 0 : i32
    return %c0_i32, %c0_i32_0 : i32, i32
  }
  func.func @transform_8(%arg0: i32) -> (i32, i32) {
    %c0_i32 = arith.constant 0 : i32
    %c0_i32_0 = arith.constant 0 : i32
    %c0_i32_1 = arith.constant 0 : i32
    return %c0_i32, %c0_i32_0 : i32, i32
  }
  func.func @transform_9(%arg0: i32) -> (i32, i32) {
    %c0_i32 = arith.constant 0 : i32
    %c0_i32_0 = arith.constant 0 : i32
    %c0_i32_1 = arith.constant 0 : i32
    return %c0_i32, %c0_i32_0 : i32, i32
  }
  func.func @transform_10(%arg0: i32) -> (i32, i32) {
    %c0_i32 = arith.constant 0 : i32
    %c0_i32_0 = arith.constant 0 : i32
    %c0_i32_1 = arith.constant 0 : i32
    return %c0_i32, %c0_i32_0 : i32, i32
  }
  func.func @transform_11(%arg0: i32) -> (i32, i32) {
    %c0_i32 = arith.constant 0 : i32
    %c0_i32_0 = arith.constant 0 : i32
    %c0_i32_1 = arith.constant 0 : i32
    return %c0_i32, %c0_i32_0 : i32, i32
  }
  func.func @transform_12(%arg0: i32) -> (i32, i32) {
    %c0_i32 = arith.constant 0 : i32
    %c0_i32_0 = arith.constant 0 : i32
    %c0_i32_1 = arith.constant 0 : i32
    return %c0_i32, %c0_i32_0 : i32, i32
  }
  func.func @transform_13(%arg0: i32) -> (i32, i32) {
    %c0_i32 = arith.constant 0 : i32
    %c0_i32_0 = arith.constant 0 : i32
    %c0_i32_1 = arith.constant 0 : i32
    return %c0_i32, %c0_i32_0 : i32, i32
  }
  func.func @transform_14(%arg0: i32) -> (i32, i32, i32) {
    %c0_i32 = arith.constant 0 : i32
    %c0_i32_0 = arith.constant 0 : i32
    %c0_i32_1 = arith.constant 0 : i32
    return %arg0, %c0_i32, %c0_i32_0 : i32, i32, i32
  }
}

module attributes {stable_mosaic.version = 11 : i64} {
  func.func @_res_block_kernel(%arg0: i32, %arg1: memref<1x4x64xbf16, #tpu.memory_space<vmem>>, %arg2: memref<1x4x64xbf16, #tpu.memory_space<vmem>>, %arg3: memref<1x4x64xbf16, #tpu.memory_space<vmem>>, %arg4: memref<1x64xf32, #tpu.memory_space<vmem>>, %arg5: memref<1x64xf32, #tpu.memory_space<vmem>>, %arg6: memref<64x16xbf16, #tpu.memory_space<vmem>>, %arg7: memref<1x16xf32, #tpu.memory_space<vmem>>, %arg8: memref<1x16xf32, #tpu.memory_space<vmem>>, %arg9: memref<4x4xbf16, #tpu.memory_space<vmem>>, %arg10: memref<4x4xbf16, #tpu.memory_space<vmem>>, %arg11: memref<16x16xbf16, #tpu.memory_space<vmem>>, %arg12: memref<16x16xbf16, #tpu.memory_space<vmem>>, %arg13: memref<16x16xbf16, #tpu.memory_space<vmem>>, %arg14: memref<1x16xf32, #tpu.memory_space<vmem>>, %arg15: memref<1x16xf32, #tpu.memory_space<vmem>>, %arg16: memref<16x64xbf16, #tpu.memory_space<vmem>>, %arg17: memref<1x4x64xbf16, #tpu.memory_space<vmem>>) attributes {dimension_semantics = [#tpu.dimension_semantics<parallel>], iteration_bounds = array<i64: 2>, scalar_prefetch = 0 : i64, scratch_operands = 0 : i64, tpu.core_type = #tpu.core_type<tc>, window_params = [{transform_indices = @transform_0, window_bounds = array<i64: 1, 4, 64>}, {transform_indices = @transform_1, window_bounds = array<i64: 1, 4, 64>}, {transform_indices = @transform_2, window_bounds = array<i64: 1, 4, 64>}, {pipeline_mode = #tpu.pipeline_mode<synchronous>, transform_indices = @transform_3, window_bounds = array<i64: 1, 64>}, {pipeline_mode = #tpu.pipeline_mode<synchronous>, transform_indices = @transform_4, window_bounds = array<i64: 1, 64>}, {pipeline_mode = #tpu.pipeline_mode<synchronous>, transform_indices = @transform_5, window_bounds = array<i64: 64, 16>}, {pipeline_mode = #tpu.pipeline_mode<synchronous>, transform_indices = @transform_6, window_bounds = array<i64: 1, 16>}, {pipeline_mode = #tpu.pipeline_mode<synchronous>, transform_indices = @transform_7, window_bounds = array<i64: 1, 16>}, {pipeline_mode = #tpu.pipeline_mode<synchronous>, transform_indices = @transform_8, window_bounds = array<i64: 4, 4>}, {pipeline_mode = #tpu.pipeline_mode<synchronous>, transform_indices = @transform_9, window_bounds = array<i64: 4, 4>}, {pipeline_mode = #tpu.pipeline_mode<synchronous>, transform_indices = @transform_10, window_bounds = array<i64: 16, 16>}, {pipeline_mode = #tpu.pipeline_mode<synchronous>, transform_indices = @transform_11, window_bounds = array<i64: 16, 16>}, {pipeline_mode = #tpu.pipeline_mode<synchronous>, transform_indices = @transform_12, window_bounds = array<i64: 16, 16>}, {pipeline_mode = #tpu.pipeline_mode<synchronous>, transform_indices = @transform_13, window_bounds = array<i64: 1, 16>}, {pipeline_mode = #tpu.pipeline_mode<synchronous>, transform_indices = @transform_14, window_bounds = array<i64: 1, 16>}, {pipeline_mode = #tpu.pipeline_mode<synchronous>, transform_indices = @transform_15, window_bounds = array<i64: 16, 64>}, {transform_indices = @transform_16, window_bounds = array<i64: 1, 4, 64>}]} {
    %c0 = arith.constant 0 : index
    %c0_0 = arith.constant 0 : index
    %c0_1 = arith.constant 0 : index
    %0 = vector.load %arg1[%c0, %c0_0, %c0_1] : memref<1x4x64xbf16, #tpu.memory_space<vmem>>, vector<1x4x64xbf16>
    %1 = vector.shape_cast %0 : vector<1x4x64xbf16> to vector<4x64xbf16>
    %2 = arith.extf %1 : vector<4x64xbf16> to vector<4x64xf32>
    %c0_2 = arith.constant 0 : index
    %c0_3 = arith.constant 0 : index
    %c0_4 = arith.constant 0 : index
    %3 = vector.load %arg2[%c0_2, %c0_3, %c0_4] : memref<1x4x64xbf16, #tpu.memory_space<vmem>>, vector<1x4x64xbf16>
    %4 = vector.shape_cast %3 : vector<1x4x64xbf16> to vector<4x64xbf16>
    %5 = arith.extf %4 : vector<4x64xbf16> to vector<4x64xf32>
    %6 = arith.addf %2, %5 : vector<4x64xf32>
    %c0_5 = arith.constant 0 : index
    %c0_6 = arith.constant 0 : index
    %c0_7 = arith.constant 0 : index
    %7 = vector.load %arg3[%c0_5, %c0_6, %c0_7] : memref<1x4x64xbf16, #tpu.memory_space<vmem>>, vector<1x4x64xbf16>
    %8 = vector.shape_cast %7 : vector<1x4x64xbf16> to vector<4x64xbf16>
    %9 = arith.extf %8 : vector<4x64xbf16> to vector<4x64xf32>
    %10 = arith.addf %6, %9 : vector<4x64xf32>
    %c0_8 = arith.constant 0 : index
    %c0_9 = arith.constant 0 : index
    %11 = vector.load %arg4[%c0_8, %c0_9] : memref<1x64xf32, #tpu.memory_space<vmem>>, vector<1x64xf32>
    %12 = vector.broadcast %11 : vector<1x64xf32> to vector<4x64xf32>
    %13 = arith.mulf %10, %12 : vector<4x64xf32>
    %c0_10 = arith.constant 0 : index
    %c0_11 = arith.constant 0 : index
    %14 = vector.load %arg5[%c0_10, %c0_11] : memref<1x64xf32, #tpu.memory_space<vmem>>, vector<1x64xf32>
    %15 = vector.broadcast %14 : vector<1x64xf32> to vector<4x64xf32>
    %16 = arith.addf %13, %15 : vector<4x64xf32>
    %cst = arith.constant 0.000000e+00 : f32
    %17 = vector.broadcast %cst : f32 to vector<4x64xf32>
    %18 = arith.maximumf %16, %17 : vector<4x64xf32>
    %19 = arith.truncf %18 : vector<4x64xf32> to vector<4x64xbf16>
    %c0_12 = arith.constant 0 : index
    %c0_13 = arith.constant 0 : index
    %20 = vector.load %arg6[%c0_12, %c0_13] : memref<64x16xbf16, #tpu.memory_space<vmem>>, vector<64x16xbf16>
    %cst_14 = arith.constant dense<0.000000e+00> : vector<4x16xf32>
    %21 = tpu.matmul %19, %20, %cst_14 {dimension_numbers = #tpu.dot_dimension_numbers<[1], [0], [0], [1], [0, 0, 1, 1], [], []>} : vector<4x64xbf16>, vector<64x16xbf16>, vector<4x16xf32> -> vector<4x16xf32>
    %c0_15 = arith.constant 0 : index
    %c0_16 = arith.constant 0 : index
    %22 = vector.load %arg7[%c0_15, %c0_16] : memref<1x16xf32, #tpu.memory_space<vmem>>, vector<1x16xf32>
    %23 = vector.broadcast %22 : vector<1x16xf32> to vector<4x16xf32>
    %24 = arith.mulf %21, %23 : vector<4x16xf32>
    %c0_17 = arith.constant 0 : index
    %c0_18 = arith.constant 0 : index
    %25 = vector.load %arg8[%c0_17, %c0_18] : memref<1x16xf32, #tpu.memory_space<vmem>>, vector<1x16xf32>
    %26 = vector.broadcast %25 : vector<1x16xf32> to vector<4x16xf32>
    %27 = arith.addf %24, %26 : vector<4x16xf32>
    %cst_19 = arith.constant 0.000000e+00 : f32
    %28 = vector.broadcast %cst_19 : f32 to vector<4x16xf32>
    %29 = arith.maximumf %27, %28 : vector<4x16xf32>
    %30 = arith.truncf %29 : vector<4x16xf32> to vector<4x16xbf16>
    %c0_20 = arith.constant 0 : index
    %c0_21 = arith.constant 0 : index
    %31 = vector.load %arg9[%c0_20, %c0_21] : memref<4x4xbf16, #tpu.memory_space<vmem>>, vector<4x4xbf16>
    %cst_22 = arith.constant dense<0.000000e+00> : vector<4x16xf32>
    %32 = tpu.matmul %31, %30, %cst_22 {dimension_numbers = #tpu.dot_dimension_numbers<[1], [0], [0], [1], [0, 0, 1, 1], [], []>} : vector<4x4xbf16>, vector<4x16xbf16>, vector<4x16xf32> -> vector<4x16xf32>
    %33 = arith.truncf %32 : vector<4x16xf32> to vector<4x16xbf16>
    %c0_23 = arith.constant 0 : index
    %c0_24 = arith.constant 0 : index
    %34 = vector.load %arg10[%c0_23, %c0_24] : memref<4x4xbf16, #tpu.memory_space<vmem>>, vector<4x4xbf16>
    %cst_25 = arith.constant dense<0.000000e+00> : vector<4x16xf32>
    %35 = tpu.matmul %34, %30, %cst_25 {dimension_numbers = #tpu.dot_dimension_numbers<[1], [0], [0], [1], [0, 0, 1, 1], [], []>} : vector<4x4xbf16>, vector<4x16xbf16>, vector<4x16xf32> -> vector<4x16xf32>
    %36 = arith.truncf %35 : vector<4x16xf32> to vector<4x16xbf16>
    %c0_26 = arith.constant 0 : index
    %c0_27 = arith.constant 0 : index
    %37 = vector.load %arg11[%c0_26, %c0_27] : memref<16x16xbf16, #tpu.memory_space<vmem>>, vector<16x16xbf16>
    %cst_28 = arith.constant dense<0.000000e+00> : vector<4x16xf32>
    %38 = tpu.matmul %33, %37, %cst_28 {dimension_numbers = #tpu.dot_dimension_numbers<[1], [0], [0], [1], [0, 0, 1, 1], [], []>} : vector<4x16xbf16>, vector<16x16xbf16>, vector<4x16xf32> -> vector<4x16xf32>
    %c0_29 = arith.constant 0 : index
    %c0_30 = arith.constant 0 : index
    %39 = vector.load %arg12[%c0_29, %c0_30] : memref<16x16xbf16, #tpu.memory_space<vmem>>, vector<16x16xbf16>
    %cst_31 = arith.constant dense<0.000000e+00> : vector<4x16xf32>
    %40 = tpu.matmul %30, %39, %cst_31 {dimension_numbers = #tpu.dot_dimension_numbers<[1], [0], [0], [1], [0, 0, 1, 1], [], []>} : vector<4x16xbf16>, vector<16x16xbf16>, vector<4x16xf32> -> vector<4x16xf32>
    %41 = arith.addf %38, %40 : vector<4x16xf32>
    %c0_32 = arith.constant 0 : index
    %c0_33 = arith.constant 0 : index
    %42 = vector.load %arg13[%c0_32, %c0_33] : memref<16x16xbf16, #tpu.memory_space<vmem>>, vector<16x16xbf16>
    %cst_34 = arith.constant dense<0.000000e+00> : vector<4x16xf32>
    %43 = tpu.matmul %36, %42, %cst_34 {dimension_numbers = #tpu.dot_dimension_numbers<[1], [0], [0], [1], [0, 0, 1, 1], [], []>} : vector<4x16xbf16>, vector<16x16xbf16>, vector<4x16xf32> -> vector<4x16xf32>
    %44 = arith.addf %41, %43 : vector<4x16xf32>
    %c0_35 = arith.constant 0 : index
    %c0_36 = arith.constant 0 : index
    %45 = vector.load %arg14[%c0_35, %c0_36] : memref<1x16xf32, #tpu.memory_space<vmem>>, vector<1x16xf32>
    %46 = vector.broadcast %45 : vector<1x16xf32> to vector<4x16xf32>
    %47 = arith.mulf %44, %46 : vector<4x16xf32>
    %c0_37 = arith.constant 0 : index
    %c0_38 = arith.constant 0 : index
    %48 = vector.load %arg15[%c0_37, %c0_38] : memref<1x16xf32, #tpu.memory_space<vmem>>, vector<1x16xf32>
    %49 = vector.broadcast %48 : vector<1x16xf32> to vector<4x16xf32>
    %50 = arith.addf %47, %49 : vector<4x16xf32>
    %cst_39 = arith.constant 0.000000e+00 : f32
    %51 = vector.broadcast %cst_39 : f32 to vector<4x16xf32>
    %52 = arith.maximumf %50, %51 : vector<4x16xf32>
    %53 = arith.truncf %52 : vector<4x16xf32> to vector<4x16xbf16>
    %c0_40 = arith.constant 0 : index
    %c0_41 = arith.constant 0 : index
    %54 = vector.load %arg16[%c0_40, %c0_41] : memref<16x64xbf16, #tpu.memory_space<vmem>>, vector<16x64xbf16>
    %cst_42 = arith.constant dense<0.000000e+00> : vector<4x64xf32>
    %55 = tpu.matmul %53, %54, %cst_42 {dimension_numbers = #tpu.dot_dimension_numbers<[1], [0], [0], [1], [0, 0, 1, 1], [], []>} : vector<4x16xbf16>, vector<16x64xbf16>, vector<4x64xf32> -> vector<4x64xf32>
    %56 = arith.addf %55, %10 : vector<4x64xf32>
    %57 = arith.truncf %56 : vector<4x64xf32> to vector<4x64xbf16>
    %c0_43 = arith.constant 0 : index
    %c0_44 = arith.constant 0 : index
    %c0_45 = arith.constant 0 : index
    %58 = vector.load %arg17[%c0_43, %c0_44, %c0_45] : memref<1x4x64xbf16, #tpu.memory_space<vmem>>, vector<1x4x64xbf16>
    %59 = vector.shape_cast %58 : vector<1x4x64xbf16> to vector<4x64xbf16>
    %60 = vector.shape_cast %57 : vector<4x64xbf16> to vector<1x4x64xbf16>
    tpu.vector_store %arg17[%c0_43, %c0_44, %c0_45], %60 {strides = array<i32>} : memref<1x4x64xbf16, #tpu.memory_space<vmem>>, vector<1x4x64xbf16>,
    return
  }
  func.func @transform_0(%arg0: i32) -> (i32, i32, i32) {
    %c0_i32 = arith.constant 0 : i32
    %c0_i32_0 = arith.constant 0 : i32
    %c0_i32_1 = arith.constant 0 : i32
    return %arg0, %c0_i32, %c0_i32_0 : i32, i32, i32
  }
  func.func @transform_1(%arg0: i32) -> (i32, i32, i32) {
    %c0_i32 = arith.constant 0 : i32
    %c0_i32_0 = arith.constant 0 : i32
    %c0_i32_1 = arith.constant 0 : i32
    return %arg0, %c0_i32, %c0_i32_0 : i32, i32, i32
  }
  func.func @transform_2(%arg0: i32) -> (i32, i32, i32) {
    %c0_i32 = arith.constant 0 : i32
    %c0_i32_0 = arith.constant 0 : i32
    %c0_i32_1 = arith.constant 0 : i32
    return %arg0, %c0_i32, %c0_i32_0 : i32, i32, i32
  }
  func.func @transform_3(%arg0: i32) -> (i32, i32) {
    %c0_i32 = arith.constant 0 : i32
    %c0_i32_0 = arith.constant 0 : i32
    %c0_i32_1 = arith.constant 0 : i32
    return %c0_i32, %c0_i32_0 : i32, i32
  }
  func.func @transform_4(%arg0: i32) -> (i32, i32) {
    %c0_i32 = arith.constant 0 : i32
    %c0_i32_0 = arith.constant 0 : i32
    %c0_i32_1 = arith.constant 0 : i32
    return %c0_i32, %c0_i32_0 : i32, i32
  }
  func.func @transform_5(%arg0: i32) -> (i32, i32) {
    %c0_i32 = arith.constant 0 : i32
    %c0_i32_0 = arith.constant 0 : i32
    %c0_i32_1 = arith.constant 0 : i32
    return %c0_i32, %c0_i32_0 : i32, i32
  }
  func.func @transform_6(%arg0: i32) -> (i32, i32) {
    %c0_i32 = arith.constant 0 : i32
    %c0_i32_0 = arith.constant 0 : i32
    %c0_i32_1 = arith.constant 0 : i32
    return %c0_i32, %c0_i32_0 : i32, i32
  }
  func.func @transform_7(%arg0: i32) -> (i32, i32) {
    %c0_i32 = arith.constant 0 : i32
    %c0_i32_0 = arith.constant 0 : i32
    %c0_i32_1 = arith.constant 0 : i32
    return %c0_i32, %c0_i32_0 : i32, i32
  }
  func.func @transform_8(%arg0: i32) -> (i32, i32) {
    %c0_i32 = arith.constant 0 : i32
    %c0_i32_0 = arith.constant 0 : i32
    %c0_i32_1 = arith.constant 0 : i32
    return %c0_i32, %c0_i32_0 : i32, i32
  }
  func.func @transform_9(%arg0: i32) -> (i32, i32) {
    %c0_i32 = arith.constant 0 : i32
    %c0_i32_0 = arith.constant 0 : i32
    %c0_i32_1 = arith.constant 0 : i32
    return %c0_i32, %c0_i32_0 : i32, i32
  }
  func.func @transform_10(%arg0: i32) -> (i32, i32) {
    %c0_i32 = arith.constant 0 : i32
    %c0_i32_0 = arith.constant 0 : i32
    %c0_i32_1 = arith.constant 0 : i32
    return %c0_i32, %c0_i32_0 : i32, i32
  }
  func.func @transform_11(%arg0: i32) -> (i32, i32) {
    %c0_i32 = arith.constant 0 : i32
    %c0_i32_0 = arith.constant 0 : i32
    %c0_i32_1 = arith.constant 0 : i32
    return %c0_i32, %c0_i32_0 : i32, i32
  }
  func.func @transform_12(%arg0: i32) -> (i32, i32) {
    %c0_i32 = arith.constant 0 : i32
    %c0_i32_0 = arith.constant 0 : i32
    %c0_i32_1 = arith.constant 0 : i32
    return %c0_i32, %c0_i32_0 : i32, i32
  }
  func.func @transform_13(%arg0: i32) -> (i32, i32) {
    %c0_i32 = arith.constant 0 : i32
    %c0_i32_0 = arith.constant 0 : i32
    %c0_i32_1 = arith.constant 0 : i32
    return %c0_i32, %c0_i32_0 : i32, i32
  }
  func.func @transform_14(%arg0: i32) -> (i32, i32) {
    %c0_i32 = arith.constant 0 : i32
    %c0_i32_0 = arith.constant 0 : i32
    %c0_i32_1 = arith.constant 0 : i32
    return %c0_i32, %c0_i32_0 : i32, i32
  }
  func.func @transform_15(%arg0: i32) -> (i32, i32) {
    %c0_i32 = arith.constant 0 : i32
    %c0_i32_0 = arith.constant 0 : i32
    %c0_i32_1 = arith.constant 0 : i32
    return %c0_i32, %c0_i32_0 : i32, i32
  }
  func.func @transform_16(%arg0: i32) -> (i32, i32, i32) {
    %c0_i32 = arith.constant 0 : i32
    %c0_i32_0 = arith.constant 0 : i32
    %c0_i32_1 = arith.constant 0 : i32
    return %arg0, %c0_i32, %c0_i32_0 : i32, i32, i32
  }
}

module attributes {stable_mosaic.version = 11 : i64} {
  func.func @_res_block_kernel(%arg0: i32, %arg1: memref<1x8x128xbf16, #tpu.memory_space<vmem>>, %arg2: memref<1x8x128xbf16, #tpu.memory_space<vmem>>, %arg3: memref<1x8x128xbf16, #tpu.memory_space<vmem>>, %arg4: memref<1x128xf32, #tpu.memory_space<vmem>>, %arg5: memref<1x128xf32, #tpu.memory_space<vmem>>, %arg6: memref<128x32xbf16, #tpu.memory_space<vmem>>, %arg7: memref<1x32xf32, #tpu.memory_space<vmem>>, %arg8: memref<1x32xf32, #tpu.memory_space<vmem>>, %arg9: memref<8x8xbf16, #tpu.memory_space<vmem>>, %arg10: memref<8x8xbf16, #tpu.memory_space<vmem>>, %arg11: memref<32x32xbf16, #tpu.memory_space<vmem>>, %arg12: memref<32x32xbf16, #tpu.memory_space<vmem>>, %arg13: memref<32x32xbf16, #tpu.memory_space<vmem>>, %arg14: memref<1x32xf32, #tpu.memory_space<vmem>>, %arg15: memref<1x32xf32, #tpu.memory_space<vmem>>, %arg16: memref<32x128xbf16, #tpu.memory_space<vmem>>, %arg17: memref<1x8x128xbf16, #tpu.memory_space<vmem>>) attributes {dimension_semantics = [#tpu.dimension_semantics<parallel>], iteration_bounds = array<i64: 2>, scalar_prefetch = 0 : i64, scratch_operands = 0 : i64, tpu.core_type = #tpu.core_type<tc>, window_params = [{transform_indices = @transform_0, window_bounds = array<i64: 1, 8, 128>}, {transform_indices = @transform_1, window_bounds = array<i64: 1, 8, 128>}, {transform_indices = @transform_2, window_bounds = array<i64: 1, 8, 128>}, {pipeline_mode = #tpu.pipeline_mode<synchronous>, transform_indices = @transform_3, window_bounds = array<i64: 1, 128>}, {pipeline_mode = #tpu.pipeline_mode<synchronous>, transform_indices = @transform_4, window_bounds = array<i64: 1, 128>}, {pipeline_mode = #tpu.pipeline_mode<synchronous>, transform_indices = @transform_5, window_bounds = array<i64: 128, 32>}, {pipeline_mode = #tpu.pipeline_mode<synchronous>, transform_indices = @transform_6, window_bounds = array<i64: 1, 32>}, {pipeline_mode = #tpu.pipeline_mode<synchronous>, transform_indices = @transform_7, window_bounds = array<i64: 1, 32>}, {pipeline_mode = #tpu.pipeline_mode<synchronous>, transform_indices = @transform_8, window_bounds = array<i64: 8, 8>}, {pipeline_mode = #tpu.pipeline_mode<synchronous>, transform_indices = @transform_9, window_bounds = array<i64: 8, 8>}, {pipeline_mode = #tpu.pipeline_mode<synchronous>, transform_indices = @transform_10, window_bounds = array<i64: 32, 32>}, {pipeline_mode = #tpu.pipeline_mode<synchronous>, transform_indices = @transform_11, window_bounds = array<i64: 32, 32>}, {pipeline_mode = #tpu.pipeline_mode<synchronous>, transform_indices = @transform_12, window_bounds = array<i64: 32, 32>}, {pipeline_mode = #tpu.pipeline_mode<synchronous>, transform_indices = @transform_13, window_bounds = array<i64: 1, 32>}, {pipeline_mode = #tpu.pipeline_mode<synchronous>, transform_indices = @transform_14, window_bounds = array<i64: 1, 32>}, {pipeline_mode = #tpu.pipeline_mode<synchronous>, transform_indices = @transform_15, window_bounds = array<i64: 32, 128>}, {transform_indices = @transform_16, window_bounds = array<i64: 1, 8, 128>}]} {
    %c0 = arith.constant 0 : index
    %c0_0 = arith.constant 0 : index
    %c0_1 = arith.constant 0 : index
    %0 = vector.load %arg1[%c0, %c0_0, %c0_1] : memref<1x8x128xbf16, #tpu.memory_space<vmem>>, vector<1x8x128xbf16>
    %1 = vector.shape_cast %0 : vector<1x8x128xbf16> to vector<8x128xbf16>
    %2 = arith.extf %1 : vector<8x128xbf16> to vector<8x128xf32>
    %c0_2 = arith.constant 0 : index
    %c0_3 = arith.constant 0 : index
    %c0_4 = arith.constant 0 : index
    %3 = vector.load %arg2[%c0_2, %c0_3, %c0_4] : memref<1x8x128xbf16, #tpu.memory_space<vmem>>, vector<1x8x128xbf16>
    %4 = vector.shape_cast %3 : vector<1x8x128xbf16> to vector<8x128xbf16>
    %5 = arith.extf %4 : vector<8x128xbf16> to vector<8x128xf32>
    %6 = arith.addf %2, %5 : vector<8x128xf32>
    %c0_5 = arith.constant 0 : index
    %c0_6 = arith.constant 0 : index
    %c0_7 = arith.constant 0 : index
    %7 = vector.load %arg3[%c0_5, %c0_6, %c0_7] : memref<1x8x128xbf16, #tpu.memory_space<vmem>>, vector<1x8x128xbf16>
    %8 = vector.shape_cast %7 : vector<1x8x128xbf16> to vector<8x128xbf16>
    %9 = arith.extf %8 : vector<8x128xbf16> to vector<8x128xf32>
    %10 = arith.addf %6, %9 : vector<8x128xf32>
    %c0_8 = arith.constant 0 : index
    %c0_9 = arith.constant 0 : index
    %11 = vector.load %arg4[%c0_8, %c0_9] : memref<1x128xf32, #tpu.memory_space<vmem>>, vector<1x128xf32>
    %12 = vector.broadcast %11 : vector<1x128xf32> to vector<8x128xf32>
    %13 = arith.mulf %10, %12 : vector<8x128xf32>
    %c0_10 = arith.constant 0 : index
    %c0_11 = arith.constant 0 : index
    %14 = vector.load %arg5[%c0_10, %c0_11] : memref<1x128xf32, #tpu.memory_space<vmem>>, vector<1x128xf32>
    %15 = vector.broadcast %14 : vector<1x128xf32> to vector<8x128xf32>
    %16 = arith.addf %13, %15 : vector<8x128xf32>
    %cst = arith.constant 0.000000e+00 : f32
    %17 = vector.broadcast %cst : f32 to vector<8x128xf32>
    %18 = arith.maximumf %16, %17 : vector<8x128xf32>
    %19 = arith.truncf %18 : vector<8x128xf32> to vector<8x128xbf16>
    %c0_12 = arith.constant 0 : index
    %c0_13 = arith.constant 0 : index
    %20 = vector.load %arg6[%c0_12, %c0_13] : memref<128x32xbf16, #tpu.memory_space<vmem>>, vector<128x32xbf16>
    %cst_14 = arith.constant dense<0.000000e+00> : vector<8x32xf32>
    %21 = tpu.matmul %19, %20, %cst_14 {dimension_numbers = #tpu.dot_dimension_numbers<[1], [0], [0], [1], [0, 0, 1, 1], [], []>} : vector<8x128xbf16>, vector<128x32xbf16>, vector<8x32xf32> -> vector<8x32xf32>
    %c0_15 = arith.constant 0 : index
    %c0_16 = arith.constant 0 : index
    %22 = vector.load %arg7[%c0_15, %c0_16] : memref<1x32xf32, #tpu.memory_space<vmem>>, vector<1x32xf32>
    %23 = vector.broadcast %22 : vector<1x32xf32> to vector<8x32xf32>
    %24 = arith.mulf %21, %23 : vector<8x32xf32>
    %c0_17 = arith.constant 0 : index
    %c0_18 = arith.constant 0 : index
    %25 = vector.load %arg8[%c0_17, %c0_18] : memref<1x32xf32, #tpu.memory_space<vmem>>, vector<1x32xf32>
    %26 = vector.broadcast %25 : vector<1x32xf32> to vector<8x32xf32>
    %27 = arith.addf %24, %26 : vector<8x32xf32>
    %cst_19 = arith.constant 0.000000e+00 : f32
    %28 = vector.broadcast %cst_19 : f32 to vector<8x32xf32>
    %29 = arith.maximumf %27, %28 : vector<8x32xf32>
    %30 = arith.truncf %29 : vector<8x32xf32> to vector<8x32xbf16>
    %c0_20 = arith.constant 0 : index
    %c0_21 = arith.constant 0 : index
    %31 = vector.load %arg9[%c0_20, %c0_21] : memref<8x8xbf16, #tpu.memory_space<vmem>>, vector<8x8xbf16>
    %cst_22 = arith.constant dense<0.000000e+00> : vector<8x32xf32>
    %32 = tpu.matmul %31, %30, %cst_22 {dimension_numbers = #tpu.dot_dimension_numbers<[1], [0], [0], [1], [0, 0, 1, 1], [], []>} : vector<8x8xbf16>, vector<8x32xbf16>, vector<8x32xf32> -> vector<8x32xf32>
    %33 = arith.truncf %32 : vector<8x32xf32> to vector<8x32xbf16>
    %c0_23 = arith.constant 0 : index
    %c0_24 = arith.constant 0 : index
    %34 = vector.load %arg10[%c0_23, %c0_24] : memref<8x8xbf16, #tpu.memory_space<vmem>>, vector<8x8xbf16>
    %cst_25 = arith.constant dense<0.000000e+00> : vector<8x32xf32>
    %35 = tpu.matmul %34, %30, %cst_25 {dimension_numbers = #tpu.dot_dimension_numbers<[1], [0], [0], [1], [0, 0, 1, 1], [], []>} : vector<8x8xbf16>, vector<8x32xbf16>, vector<8x32xf32> -> vector<8x32xf32>
    %36 = arith.truncf %35 : vector<8x32xf32> to vector<8x32xbf16>
    %c0_26 = arith.constant 0 : index
    %c0_27 = arith.constant 0 : index
    %37 = vector.load %arg11[%c0_26, %c0_27] : memref<32x32xbf16, #tpu.memory_space<vmem>>, vector<32x32xbf16>
    %cst_28 = arith.constant dense<0.000000e+00> : vector<8x32xf32>
    %38 = tpu.matmul %33, %37, %cst_28 {dimension_numbers = #tpu.dot_dimension_numbers<[1], [0], [0], [1], [0, 0, 1, 1], [], []>} : vector<8x32xbf16>, vector<32x32xbf16>, vector<8x32xf32> -> vector<8x32xf32>
    %c0_29 = arith.constant 0 : index
    %c0_30 = arith.constant 0 : index
    %39 = vector.load %arg12[%c0_29, %c0_30] : memref<32x32xbf16, #tpu.memory_space<vmem>>, vector<32x32xbf16>
    %cst_31 = arith.constant dense<0.000000e+00> : vector<8x32xf32>
    %40 = tpu.matmul %30, %39, %cst_31 {dimension_numbers = #tpu.dot_dimension_numbers<[1], [0], [0], [1], [0, 0, 1, 1], [], []>} : vector<8x32xbf16>, vector<32x32xbf16>, vector<8x32xf32> -> vector<8x32xf32>
    %41 = arith.addf %38, %40 : vector<8x32xf32>
    %c0_32 = arith.constant 0 : index
    %c0_33 = arith.constant 0 : index
    %42 = vector.load %arg13[%c0_32, %c0_33] : memref<32x32xbf16, #tpu.memory_space<vmem>>, vector<32x32xbf16>
    %cst_34 = arith.constant dense<0.000000e+00> : vector<8x32xf32>
    %43 = tpu.matmul %36, %42, %cst_34 {dimension_numbers = #tpu.dot_dimension_numbers<[1], [0], [0], [1], [0, 0, 1, 1], [], []>} : vector<8x32xbf16>, vector<32x32xbf16>, vector<8x32xf32> -> vector<8x32xf32>
    %44 = arith.addf %41, %43 : vector<8x32xf32>
    %c0_35 = arith.constant 0 : index
    %c0_36 = arith.constant 0 : index
    %45 = vector.load %arg14[%c0_35, %c0_36] : memref<1x32xf32, #tpu.memory_space<vmem>>, vector<1x32xf32>
    %46 = vector.broadcast %45 : vector<1x32xf32> to vector<8x32xf32>
    %47 = arith.mulf %44, %46 : vector<8x32xf32>
    %c0_37 = arith.constant 0 : index
    %c0_38 = arith.constant 0 : index
    %48 = vector.load %arg15[%c0_37, %c0_38] : memref<1x32xf32, #tpu.memory_space<vmem>>, vector<1x32xf32>
    %49 = vector.broadcast %48 : vector<1x32xf32> to vector<8x32xf32>
    %50 = arith.addf %47, %49 : vector<8x32xf32>
    %cst_39 = arith.constant 0.000000e+00 : f32
    %51 = vector.broadcast %cst_39 : f32 to vector<8x32xf32>
    %52 = arith.maximumf %50, %51 : vector<8x32xf32>
    %53 = arith.truncf %52 : vector<8x32xf32> to vector<8x32xbf16>
    %c0_40 = arith.constant 0 : index
    %c0_41 = arith.constant 0 : index
    %54 = vector.load %arg16[%c0_40, %c0_41] : memref<32x128xbf16, #tpu.memory_space<vmem>>, vector<32x128xbf16>
    %cst_42 = arith.constant dense<0.000000e+00> : vector<8x128xf32>
    %55 = tpu.matmul %53, %54, %cst_42 {dimension_numbers = #tpu.dot_dimension_numbers<[1], [0], [0], [1], [0, 0, 1, 1], [], []>} : vector<8x32xbf16>, vector<32x128xbf16>, vector<8x128xf32> -> vector<8x128xf32>
    %56 = arith.addf %55, %10 : vector<8x128xf32>
    %57 = arith.truncf %56 : vector<8x128xf32> to vector<8x128xbf16>
    %c0_43 = arith.constant 0 : index
    %c0_44 = arith.constant 0 : index
    %c0_45 = arith.constant 0 : index
    %58 = vector.load %arg17[%c0_43, %c0_44, %c0_45] : memref<1x8x128xbf16, #tpu.memory_space<vmem>>, vector<1x8x128xbf16>
    %59 = vector.shape_cast %58 : vector<1x8x128xbf16> to vector<8x128xbf16>
    %60 = vector.shape_cast %57 : vector<8x128xbf16> to vector<1x8x128xbf16>
    tpu.vector_store %arg17[%c0_43, %c0_44, %c0_45], %60 {strides = array<i32>} : memref<1x8x128xbf16, #tpu.memory_space<vmem>>, vector<1x8x128xbf16>,
    return
  }
  func.func @transform_0(%arg0: i32) -> (i32, i32, i32) {
    %c0_i32 = arith.constant 0 : i32
    %c0_i32_0 = arith.constant 0 : i32
    %c0_i32_1 = arith.constant 0 : i32
    return %arg0, %c0_i32, %c0_i32_0 : i32, i32, i32
  }
  func.func @transform_1(%arg0: i32) -> (i32, i32, i32) {
    %c0_i32 = arith.constant 0 : i32
    %c0_i32_0 = arith.constant 0 : i32
    %c0_i32_1 = arith.constant 0 : i32
    return %arg0, %c0_i32, %c0_i32_0 : i32, i32, i32
  }
  func.func @transform_2(%arg0: i32) -> (i32, i32, i32) {
    %c0_i32 = arith.constant 0 : i32
    %c0_i32_0 = arith.constant 0 : i32
    %c0_i32_1 = arith.constant 0 : i32
    return %arg0, %c0_i32, %c0_i32_0 : i32, i32, i32
  }
  func.func @transform_3(%arg0: i32) -> (i32, i32) {
    %c0_i32 = arith.constant 0 : i32
    %c0_i32_0 = arith.constant 0 : i32
    %c0_i32_1 = arith.constant 0 : i32
    return %c0_i32, %c0_i32_0 : i32, i32
  }
  func.func @transform_4(%arg0: i32) -> (i32, i32) {
    %c0_i32 = arith.constant 0 : i32
    %c0_i32_0 = arith.constant 0 : i32
    %c0_i32_1 = arith.constant 0 : i32
    return %c0_i32, %c0_i32_0 : i32, i32
  }
  func.func @transform_5(%arg0: i32) -> (i32, i32) {
    %c0_i32 = arith.constant 0 : i32
    %c0_i32_0 = arith.constant 0 : i32
    %c0_i32_1 = arith.constant 0 : i32
    return %c0_i32, %c0_i32_0 : i32, i32
  }
  func.func @transform_6(%arg0: i32) -> (i32, i32) {
    %c0_i32 = arith.constant 0 : i32
    %c0_i32_0 = arith.constant 0 : i32
    %c0_i32_1 = arith.constant 0 : i32
    return %c0_i32, %c0_i32_0 : i32, i32
  }
  func.func @transform_7(%arg0: i32) -> (i32, i32) {
    %c0_i32 = arith.constant 0 : i32
    %c0_i32_0 = arith.constant 0 : i32
    %c0_i32_1 = arith.constant 0 : i32
    return %c0_i32, %c0_i32_0 : i32, i32
  }
  func.func @transform_8(%arg0: i32) -> (i32, i32) {
    %c0_i32 = arith.constant 0 : i32
    %c0_i32_0 = arith.constant 0 : i32
    %c0_i32_1 = arith.constant 0 : i32
    return %c0_i32, %c0_i32_0 : i32, i32
  }
  func.func @transform_9(%arg0: i32) -> (i32, i32) {
    %c0_i32 = arith.constant 0 : i32
    %c0_i32_0 = arith.constant 0 : i32
    %c0_i32_1 = arith.constant 0 : i32
    return %c0_i32, %c0_i32_0 : i32, i32
  }
  func.func @transform_10(%arg0: i32) -> (i32, i32) {
    %c0_i32 = arith.constant 0 : i32
    %c0_i32_0 = arith.constant 0 : i32
    %c0_i32_1 = arith.constant 0 : i32
    return %c0_i32, %c0_i32_0 : i32, i32
  }
  func.func @transform_11(%arg0: i32) -> (i32, i32) {
    %c0_i32 = arith.constant 0 : i32
    %c0_i32_0 = arith.constant 0 : i32
    %c0_i32_1 = arith.constant 0 : i32
    return %c0_i32, %c0_i32_0 : i32, i32
  }
  func.func @transform_12(%arg0: i32) -> (i32, i32) {
    %c0_i32 = arith.constant 0 : i32
    %c0_i32_0 = arith.constant 0 : i32
    %c0_i32_1 = arith.constant 0 : i32
    return %c0_i32, %c0_i32_0 : i32, i32
  }
  func.func @transform_13(%arg0: i32) -> (i32, i32) {
    %c0_i32 = arith.constant 0 : i32
    %c0_i32_0 = arith.constant 0 : i32
    %c0_i32_1 = arith.constant 0 : i32
    return %c0_i32, %c0_i32_0 : i32, i32
  }
  func.func @transform_14(%arg0: i32) -> (i32, i32) {
    %c0_i32 = arith.constant 0 : i32
    %c0_i32_0 = arith.constant 0 : i32
    %c0_i32_1 = arith.constant 0 : i32
    return %c0_i32, %c0_i32_0 : i32, i32
  }
  func.func @transform_15(%arg0: i32) -> (i32, i32) {
    %c0_i32 = arith.constant 0 : i32
    %c0_i32_0 = arith.constant 0 : i32
    %c0_i32_1 = arith.constant 0 : i32
    return %c0_i32, %c0_i32_0 : i32, i32
  }
  func.func @transform_16(%arg0: i32) -> (i32, i32, i32) {
    %c0_i32 = arith.constant 0 : i32
    %c0_i32_0 = arith.constant 0 : i32
    %c0_i32_1 = arith.constant 0 : i32
    return %arg0, %c0_i32, %c0_i32_0 : i32, i32, i32
  }
}

module attributes {stable_mosaic.version = 11 : i64} {
  func.func @_res_block_kernel(%arg0: i32, %arg1: memref<1x16x256xbf16, #tpu.memory_space<vmem>>, %arg2: memref<1x256xf32, #tpu.memory_space<vmem>>, %arg3: memref<1x256xf32, #tpu.memory_space<vmem>>, %arg4: memref<256x64xbf16, #tpu.memory_space<vmem>>, %arg5: memref<1x64xf32, #tpu.memory_space<vmem>>, %arg6: memref<1x64xf32, #tpu.memory_space<vmem>>, %arg7: memref<16x16xbf16, #tpu.memory_space<vmem>>, %arg8: memref<16x16xbf16, #tpu.memory_space<vmem>>, %arg9: memref<64x64xbf16, #tpu.memory_space<vmem>>, %arg10: memref<64x64xbf16, #tpu.memory_space<vmem>>, %arg11: memref<64x64xbf16, #tpu.memory_space<vmem>>, %arg12: memref<1x64xf32, #tpu.memory_space<vmem>>, %arg13: memref<1x64xf32, #tpu.memory_space<vmem>>, %arg14: memref<64x256xbf16, #tpu.memory_space<vmem>>, %arg15: memref<1x16x256xbf16, #tpu.memory_space<vmem>>) attributes {dimension_semantics = [#tpu.dimension_semantics<parallel>], iteration_bounds = array<i64: 2>, scalar_prefetch = 0 : i64, scratch_operands = 0 : i64, tpu.core_type = #tpu.core_type<tc>, window_params = [{transform_indices = @transform_0, window_bounds = array<i64: 1, 16, 256>}, {pipeline_mode = #tpu.pipeline_mode<synchronous>, transform_indices = @transform_1, window_bounds = array<i64: 1, 256>}, {pipeline_mode = #tpu.pipeline_mode<synchronous>, transform_indices = @transform_2, window_bounds = array<i64: 1, 256>}, {pipeline_mode = #tpu.pipeline_mode<synchronous>, transform_indices = @transform_3, window_bounds = array<i64: 256, 64>}, {pipeline_mode = #tpu.pipeline_mode<synchronous>, transform_indices = @transform_4, window_bounds = array<i64: 1, 64>}, {pipeline_mode = #tpu.pipeline_mode<synchronous>, transform_indices = @transform_5, window_bounds = array<i64: 1, 64>}, {pipeline_mode = #tpu.pipeline_mode<synchronous>, transform_indices = @transform_6, window_bounds = array<i64: 16, 16>}, {pipeline_mode = #tpu.pipeline_mode<synchronous>, transform_indices = @transform_7, window_bounds = array<i64: 16, 16>}, {pipeline_mode = #tpu.pipeline_mode<synchronous>, transform_indices = @transform_8, window_bounds = array<i64: 64, 64>}, {pipeline_mode = #tpu.pipeline_mode<synchronous>, transform_indices = @transform_9, window_bounds = array<i64: 64, 64>}, {pipeline_mode = #tpu.pipeline_mode<synchronous>, transform_indices = @transform_10, window_bounds = array<i64: 64, 64>}, {pipeline_mode = #tpu.pipeline_mode<synchronous>, transform_indices = @transform_11, window_bounds = array<i64: 1, 64>}, {pipeline_mode = #tpu.pipeline_mode<synchronous>, transform_indices = @transform_12, window_bounds = array<i64: 1, 64>}, {pipeline_mode = #tpu.pipeline_mode<synchronous>, transform_indices = @transform_13, window_bounds = array<i64: 64, 256>}, {transform_indices = @transform_14, window_bounds = array<i64: 1, 16, 256>}]} {
    %c0 = arith.constant 0 : index
    %c0_0 = arith.constant 0 : index
    %c0_1 = arith.constant 0 : index
    %0 = vector.load %arg1[%c0, %c0_0, %c0_1] : memref<1x16x256xbf16, #tpu.memory_space<vmem>>, vector<1x16x256xbf16>
    %1 = vector.shape_cast %0 : vector<1x16x256xbf16> to vector<16x256xbf16>
    %2 = arith.extf %1 : vector<16x256xbf16> to vector<16x256xf32>
    %c0_2 = arith.constant 0 : index
    %c0_3 = arith.constant 0 : index
    %3 = vector.load %arg2[%c0_2, %c0_3] : memref<1x256xf32, #tpu.memory_space<vmem>>, vector<1x256xf32>
    %4 = vector.broadcast %3 : vector<1x256xf32> to vector<16x256xf32>
    %5 = arith.mulf %2, %4 : vector<16x256xf32>
    %c0_4 = arith.constant 0 : index
    %c0_5 = arith.constant 0 : index
    %6 = vector.load %arg3[%c0_4, %c0_5] : memref<1x256xf32, #tpu.memory_space<vmem>>, vector<1x256xf32>
    %7 = vector.broadcast %6 : vector<1x256xf32> to vector<16x256xf32>
    %8 = arith.addf %5, %7 : vector<16x256xf32>
    %cst = arith.constant 0.000000e+00 : f32
    %9 = vector.broadcast %cst : f32 to vector<16x256xf32>
    %10 = arith.maximumf %8, %9 : vector<16x256xf32>
    %11 = arith.truncf %10 : vector<16x256xf32> to vector<16x256xbf16>
    %c0_6 = arith.constant 0 : index
    %c0_7 = arith.constant 0 : index
    %12 = vector.load %arg4[%c0_6, %c0_7] : memref<256x64xbf16, #tpu.memory_space<vmem>>, vector<256x64xbf16>
    %cst_8 = arith.constant dense<0.000000e+00> : vector<16x64xf32>
    %13 = tpu.matmul %11, %12, %cst_8 {dimension_numbers = #tpu.dot_dimension_numbers<[1], [0], [0], [1], [0, 0, 1, 1], [], []>} : vector<16x256xbf16>, vector<256x64xbf16>, vector<16x64xf32> -> vector<16x64xf32>
    %c0_9 = arith.constant 0 : index
    %c0_10 = arith.constant 0 : index
    %14 = vector.load %arg5[%c0_9, %c0_10] : memref<1x64xf32, #tpu.memory_space<vmem>>, vector<1x64xf32>
    %15 = vector.broadcast %14 : vector<1x64xf32> to vector<16x64xf32>
    %16 = arith.mulf %13, %15 : vector<16x64xf32>
    %c0_11 = arith.constant 0 : index
    %c0_12 = arith.constant 0 : index
    %17 = vector.load %arg6[%c0_11, %c0_12] : memref<1x64xf32, #tpu.memory_space<vmem>>, vector<1x64xf32>
    %18 = vector.broadcast %17 : vector<1x64xf32> to vector<16x64xf32>
    %19 = arith.addf %16, %18 : vector<16x64xf32>
    %cst_13 = arith.constant 0.000000e+00 : f32
    %20 = vector.broadcast %cst_13 : f32 to vector<16x64xf32>
    %21 = arith.maximumf %19, %20 : vector<16x64xf32>
    %22 = arith.truncf %21 : vector<16x64xf32> to vector<16x64xbf16>
    %c0_14 = arith.constant 0 : index
    %c0_15 = arith.constant 0 : index
    %23 = vector.load %arg7[%c0_14, %c0_15] : memref<16x16xbf16, #tpu.memory_space<vmem>>, vector<16x16xbf16>
    %cst_16 = arith.constant dense<0.000000e+00> : vector<16x64xf32>
    %24 = tpu.matmul %23, %22, %cst_16 {dimension_numbers = #tpu.dot_dimension_numbers<[1], [0], [0], [1], [0, 0, 1, 1], [], []>} : vector<16x16xbf16>, vector<16x64xbf16>, vector<16x64xf32> -> vector<16x64xf32>
    %25 = arith.truncf %24 : vector<16x64xf32> to vector<16x64xbf16>
    %c0_17 = arith.constant 0 : index
    %c0_18 = arith.constant 0 : index
    %26 = vector.load %arg8[%c0_17, %c0_18] : memref<16x16xbf16, #tpu.memory_space<vmem>>, vector<16x16xbf16>
    %cst_19 = arith.constant dense<0.000000e+00> : vector<16x64xf32>
    %27 = tpu.matmul %26, %22, %cst_19 {dimension_numbers = #tpu.dot_dimension_numbers<[1], [0], [0], [1], [0, 0, 1, 1], [], []>} : vector<16x16xbf16>, vector<16x64xbf16>, vector<16x64xf32> -> vector<16x64xf32>
    %28 = arith.truncf %27 : vector<16x64xf32> to vector<16x64xbf16>
    %c0_20 = arith.constant 0 : index
    %c0_21 = arith.constant 0 : index
    %29 = vector.load %arg9[%c0_20, %c0_21] : memref<64x64xbf16, #tpu.memory_space<vmem>>, vector<64x64xbf16>
    %cst_22 = arith.constant dense<0.000000e+00> : vector<16x64xf32>
    %30 = tpu.matmul %25, %29, %cst_22 {dimension_numbers = #tpu.dot_dimension_numbers<[1], [0], [0], [1], [0, 0, 1, 1], [], []>} : vector<16x64xbf16>, vector<64x64xbf16>, vector<16x64xf32> -> vector<16x64xf32>
    %c0_23 = arith.constant 0 : index
    %c0_24 = arith.constant 0 : index
    %31 = vector.load %arg10[%c0_23, %c0_24] : memref<64x64xbf16, #tpu.memory_space<vmem>>, vector<64x64xbf16>
    %cst_25 = arith.constant dense<0.000000e+00> : vector<16x64xf32>
    %32 = tpu.matmul %22, %31, %cst_25 {dimension_numbers = #tpu.dot_dimension_numbers<[1], [0], [0], [1], [0, 0, 1, 1], [], []>} : vector<16x64xbf16>, vector<64x64xbf16>, vector<16x64xf32> -> vector<16x64xf32>
    %33 = arith.addf %30, %32 : vector<16x64xf32>
    %c0_26 = arith.constant 0 : index
    %c0_27 = arith.constant 0 : index
    %34 = vector.load %arg11[%c0_26, %c0_27] : memref<64x64xbf16, #tpu.memory_space<vmem>>, vector<64x64xbf16>
    %cst_28 = arith.constant dense<0.000000e+00> : vector<16x64xf32>
    %35 = tpu.matmul %28, %34, %cst_28 {dimension_numbers = #tpu.dot_dimension_numbers<[1], [0], [0], [1], [0, 0, 1, 1], [], []>} : vector<16x64xbf16>, vector<64x64xbf16>, vector<16x64xf32> -> vector<16x64xf32>
    %36 = arith.addf %33, %35 : vector<16x64xf32>
    %c0_29 = arith.constant 0 : index
    %c0_30 = arith.constant 0 : index
    %37 = vector.load %arg12[%c0_29, %c0_30] : memref<1x64xf32, #tpu.memory_space<vmem>>, vector<1x64xf32>
    %38 = vector.broadcast %37 : vector<1x64xf32> to vector<16x64xf32>
    %39 = arith.mulf %36, %38 : vector<16x64xf32>
    %c0_31 = arith.constant 0 : index
    %c0_32 = arith.constant 0 : index
    %40 = vector.load %arg13[%c0_31, %c0_32] : memref<1x64xf32, #tpu.memory_space<vmem>>, vector<1x64xf32>
    %41 = vector.broadcast %40 : vector<1x64xf32> to vector<16x64xf32>
    %42 = arith.addf %39, %41 : vector<16x64xf32>
    %cst_33 = arith.constant 0.000000e+00 : f32
    %43 = vector.broadcast %cst_33 : f32 to vector<16x64xf32>
    %44 = arith.maximumf %42, %43 : vector<16x64xf32>
    %45 = arith.truncf %44 : vector<16x64xf32> to vector<16x64xbf16>
    %c0_34 = arith.constant 0 : index
    %c0_35 = arith.constant 0 : index
    %46 = vector.load %arg14[%c0_34, %c0_35] : memref<64x256xbf16, #tpu.memory_space<vmem>>, vector<64x256xbf16>
    %cst_36 = arith.constant dense<0.000000e+00> : vector<16x256xf32>
    %47 = tpu.matmul %45, %46, %cst_36 {dimension_numbers = #tpu.dot_dimension_numbers<[1], [0], [0], [1], [0, 0, 1, 1], [], []>} : vector<16x64xbf16>, vector<64x256xbf16>, vector<16x256xf32> -> vector<16x256xf32>
    %48 = arith.addf %47, %2 : vector<16x256xf32>
    %49 = arith.truncf %48 : vector<16x256xf32> to vector<16x256xbf16>
    %c0_37 = arith.constant 0 : index
    %c0_38 = arith.constant 0 : index
    %c0_39 = arith.constant 0 : index
    %50 = vector.load %arg15[%c0_37, %c0_38, %c0_39] : memref<1x16x256xbf16, #tpu.memory_space<vmem>>, vector<1x16x256xbf16>
    %51 = vector.shape_cast %50 : vector<1x16x256xbf16> to vector<16x256xbf16>
    %52 = vector.shape_cast %49 : vector<16x256xbf16> to vector<1x16x256xbf16>
    tpu.vector_store %arg15[%c0_37, %c0_38, %c0_39], %52 {strides = array<i32>} : memref<1x16x256xbf16, #tpu.memory_space<vmem>>, vector<1x16x256xbf16>,
    return
  }
  func.func @transform_0(%arg0: i32) -> (i32, i32, i32) {
    %c0_i32 = arith.constant 0 : i32
    %c0_i32_0 = arith.constant 0 : i32
    %c0_i32_1 = arith.constant 0 : i32
    return %arg0, %c0_i32, %c0_i32_0 : i32, i32, i32
  }
  func.func @transform_1(%arg0: i32) -> (i32, i32) {
    %c0_i32 = arith.constant 0 : i32
    %c0_i32_0 = arith.constant 0 : i32
    %c0_i32_1 = arith.constant 0 : i32
    return %c0_i32, %c0_i32_0 : i32, i32
  }
  func.func @transform_2(%arg0: i32) -> (i32, i32) {
    %c0_i32 = arith.constant 0 : i32
    %c0_i32_0 = arith.constant 0 : i32
    %c0_i32_1 = arith.constant 0 : i32
    return %c0_i32, %c0_i32_0 : i32, i32
  }
  func.func @transform_3(%arg0: i32) -> (i32, i32) {
    %c0_i32 = arith.constant 0 : i32
    %c0_i32_0 = arith.constant 0 : i32
    %c0_i32_1 = arith.constant 0 : i32
    return %c0_i32, %c0_i32_0 : i32, i32
  }
  func.func @transform_4(%arg0: i32) -> (i32, i32) {
    %c0_i32 = arith.constant 0 : i32
    %c0_i32_0 = arith.constant 0 : i32
    %c0_i32_1 = arith.constant 0 : i32
    return %c0_i32, %c0_i32_0 : i32, i32
  }
  func.func @transform_5(%arg0: i32) -> (i32, i32) {
    %c0_i32 = arith.constant 0 : i32
    %c0_i32_0 = arith.constant 0 : i32
    %c0_i32_1 = arith.constant 0 : i32
    return %c0_i32, %c0_i32_0 : i32, i32
  }
  func.func @transform_6(%arg0: i32) -> (i32, i32) {
    %c0_i32 = arith.constant 0 : i32
    %c0_i32_0 = arith.constant 0 : i32
    %c0_i32_1 = arith.constant 0 : i32
    return %c0_i32, %c0_i32_0 : i32, i32
  }
  func.func @transform_7(%arg0: i32) -> (i32, i32) {
    %c0_i32 = arith.constant 0 : i32
    %c0_i32_0 = arith.constant 0 : i32
    %c0_i32_1 = arith.constant 0 : i32
    return %c0_i32, %c0_i32_0 : i32, i32
  }
  func.func @transform_8(%arg0: i32) -> (i32, i32) {
    %c0_i32 = arith.constant 0 : i32
    %c0_i32_0 = arith.constant 0 : i32
    %c0_i32_1 = arith.constant 0 : i32
    return %c0_i32, %c0_i32_0 : i32, i32
  }
  func.func @transform_9(%arg0: i32) -> (i32, i32) {
    %c0_i32 = arith.constant 0 : i32
    %c0_i32_0 = arith.constant 0 : i32
    %c0_i32_1 = arith.constant 0 : i32
    return %c0_i32, %c0_i32_0 : i32, i32
  }
  func.func @transform_10(%arg0: i32) -> (i32, i32) {
    %c0_i32 = arith.constant 0 : i32
    %c0_i32_0 = arith.constant 0 : i32
    %c0_i32_1 = arith.constant 0 : i32
    return %c0_i32, %c0_i32_0 : i32, i32
  }
  func.func @transform_11(%arg0: i32) -> (i32, i32) {
    %c0_i32 = arith.constant 0 : i32
    %c0_i32_0 = arith.constant 0 : i32
    %c0_i32_1 = arith.constant 0 : i32
    return %c0_i32, %c0_i32_0 : i32, i32
  }
  func.func @transform_12(%arg0: i32) -> (i32, i32) {
    %c0_i32 = arith.constant 0 : i32
    %c0_i32_0 = arith.constant 0 : i32
    %c0_i32_1 = arith.constant 0 : i32
    return %c0_i32, %c0_i32_0 : i32, i32
  }
  func.func @transform_13(%arg0: i32) -> (i32, i32) {
    %c0_i32 = arith.constant 0 : i32
    %c0_i32_0 = arith.constant 0 : i32
    %c0_i32_1 = arith.constant 0 : i32
    return %c0_i32, %c0_i32_0 : i32, i32
  }
  func.func @transform_14(%arg0: i32) -> (i32, i32, i32) {
    %c0_i32 = arith.constant 0 : i32
    %c0_i32_0 = arith.constant 0 : i32
    %c0_i32_1 = arith.constant 0 : i32
    return %arg0, %c0_i32, %c0_i32_0 : i32, i32, i32
  }
}

module attributes {stable_mosaic.version = 11 : i64} {
  func.func @_mask_apply_kernel(%arg0: i32, %arg1: memref<1x16x256xbf16, #tpu.memory_space<vmem>>, %arg2: memref<1x16x256xbf16, #tpu.memory_space<vmem>>, %arg3: memref<1x256xf32, #tpu.memory_space<vmem>>, %arg4: memref<1x256xf32, #tpu.memory_space<vmem>>, %arg5: memref<256x256xbf16, #tpu.memory_space<vmem>>, %arg6: memref<1x256xf32, #tpu.memory_space<vmem>>, %arg7: memref<1x256xf32, #tpu.memory_space<vmem>>, %arg8: memref<256x256xbf16, #tpu.memory_space<vmem>>, %arg9: memref<1x16x256xbf16, #tpu.memory_space<vmem>>) attributes {dimension_semantics = [#tpu.dimension_semantics<parallel>], iteration_bounds = array<i64: 2>, scalar_prefetch = 0 : i64, scratch_operands = 0 : i64, tpu.core_type = #tpu.core_type<tc>, window_params = [{transform_indices = @transform_0, window_bounds = array<i64: 1, 16, 256>}, {transform_indices = @transform_1, window_bounds = array<i64: 1, 16, 256>}, {pipeline_mode = #tpu.pipeline_mode<synchronous>, transform_indices = @transform_2, window_bounds = array<i64: 1, 256>}, {pipeline_mode = #tpu.pipeline_mode<synchronous>, transform_indices = @transform_3, window_bounds = array<i64: 1, 256>}, {pipeline_mode = #tpu.pipeline_mode<synchronous>, transform_indices = @transform_4, window_bounds = array<i64: 256, 256>}, {pipeline_mode = #tpu.pipeline_mode<synchronous>, transform_indices = @transform_5, window_bounds = array<i64: 1, 256>}, {pipeline_mode = #tpu.pipeline_mode<synchronous>, transform_indices = @transform_6, window_bounds = array<i64: 1, 256>}, {pipeline_mode = #tpu.pipeline_mode<synchronous>, transform_indices = @transform_7, window_bounds = array<i64: 256, 256>}, {transform_indices = @transform_8, window_bounds = array<i64: 1, 16, 256>}]} {
    %c0 = arith.constant 0 : index
    %c0_0 = arith.constant 0 : index
    %c0_1 = arith.constant 0 : index
    %0 = vector.load %arg1[%c0, %c0_0, %c0_1] : memref<1x16x256xbf16, #tpu.memory_space<vmem>>, vector<1x16x256xbf16>
    %1 = vector.shape_cast %0 : vector<1x16x256xbf16> to vector<16x256xbf16>
    %2 = arith.extf %1 : vector<16x256xbf16> to vector<16x256xf32>
    %c0_2 = arith.constant 0 : index
    %c0_3 = arith.constant 0 : index
    %c0_4 = arith.constant 0 : index
    %3 = vector.load %arg2[%c0_2, %c0_3, %c0_4] : memref<1x16x256xbf16, #tpu.memory_space<vmem>>, vector<1x16x256xbf16>
    %4 = vector.shape_cast %3 : vector<1x16x256xbf16> to vector<16x256xbf16>
    %5 = arith.extf %4 : vector<16x256xbf16> to vector<16x256xf32>
    %6 = arith.addf %2, %5 : vector<16x256xf32>
    %c0_5 = arith.constant 0 : index
    %c0_6 = arith.constant 0 : index
    %7 = vector.load %arg3[%c0_5, %c0_6] : memref<1x256xf32, #tpu.memory_space<vmem>>, vector<1x256xf32>
    %8 = vector.broadcast %7 : vector<1x256xf32> to vector<16x256xf32>
    %9 = arith.mulf %6, %8 : vector<16x256xf32>
    %c0_7 = arith.constant 0 : index
    %c0_8 = arith.constant 0 : index
    %10 = vector.load %arg4[%c0_7, %c0_8] : memref<1x256xf32, #tpu.memory_space<vmem>>, vector<1x256xf32>
    %11 = vector.broadcast %10 : vector<1x256xf32> to vector<16x256xf32>
    %12 = arith.addf %9, %11 : vector<16x256xf32>
    %cst = arith.constant 0.000000e+00 : f32
    %13 = vector.broadcast %cst : f32 to vector<16x256xf32>
    %14 = arith.maximumf %12, %13 : vector<16x256xf32>
    %15 = arith.truncf %14 : vector<16x256xf32> to vector<16x256xbf16>
    %c0_9 = arith.constant 0 : index
    %c0_10 = arith.constant 0 : index
    %16 = vector.load %arg5[%c0_9, %c0_10] : memref<256x256xbf16, #tpu.memory_space<vmem>>, vector<256x256xbf16>
    %cst_11 = arith.constant dense<0.000000e+00> : vector<16x256xf32>
    %17 = tpu.matmul %15, %16, %cst_11 {dimension_numbers = #tpu.dot_dimension_numbers<[1], [0], [0], [1], [0, 0, 1, 1], [], []>} : vector<16x256xbf16>, vector<256x256xbf16>, vector<16x256xf32> -> vector<16x256xf32>
    %c0_12 = arith.constant 0 : index
    %c0_13 = arith.constant 0 : index
    %18 = vector.load %arg6[%c0_12, %c0_13] : memref<1x256xf32, #tpu.memory_space<vmem>>, vector<1x256xf32>
    %19 = vector.broadcast %18 : vector<1x256xf32> to vector<16x256xf32>
    %20 = arith.mulf %17, %19 : vector<16x256xf32>
    %c0_14 = arith.constant 0 : index
    %c0_15 = arith.constant 0 : index
    %21 = vector.load %arg7[%c0_14, %c0_15] : memref<1x256xf32, #tpu.memory_space<vmem>>, vector<1x256xf32>
    %22 = vector.broadcast %21 : vector<1x256xf32> to vector<16x256xf32>
    %23 = arith.addf %20, %22 : vector<16x256xf32>
    %cst_16 = arith.constant 0.000000e+00 : f32
    %24 = vector.broadcast %cst_16 : f32 to vector<16x256xf32>
    %25 = arith.maximumf %23, %24 : vector<16x256xf32>
    %26 = arith.truncf %25 : vector<16x256xf32> to vector<16x256xbf16>
    %c0_17 = arith.constant 0 : index
    %c0_18 = arith.constant 0 : index
    %27 = vector.load %arg8[%c0_17, %c0_18] : memref<256x256xbf16, #tpu.memory_space<vmem>>, vector<256x256xbf16>
    %cst_19 = arith.constant dense<0.000000e+00> : vector<16x256xf32>
    %28 = tpu.matmul %26, %27, %cst_19 {dimension_numbers = #tpu.dot_dimension_numbers<[1], [0], [0], [1], [0, 0, 1, 1], [], []>} : vector<16x256xbf16>, vector<256x256xbf16>, vector<16x256xf32> -> vector<16x256xf32>
    %29 = arith.negf %28 : vector<16x256xf32>
    %30 = math.exp %29 : vector<16x256xf32>
    %cst_20 = arith.constant 1.000000e+00 : f32
    %31 = vector.broadcast %cst_20 : f32 to vector<16x256xf32>
    %32 = arith.addf %31, %30 : vector<16x256xf32>
    %33 = arith.divf %31, %32 : vector<16x256xf32>
    %34 = arith.mulf %33, %2 : vector<16x256xf32>
    %35 = arith.addf %34, %2 : vector<16x256xf32>
    %36 = arith.truncf %35 : vector<16x256xf32> to vector<16x256xbf16>
    %c0_21 = arith.constant 0 : index
    %c0_22 = arith.constant 0 : index
    %c0_23 = arith.constant 0 : index
    %37 = vector.load %arg9[%c0_21, %c0_22, %c0_23] : memref<1x16x256xbf16, #tpu.memory_space<vmem>>, vector<1x16x256xbf16>
    %38 = vector.shape_cast %37 : vector<1x16x256xbf16> to vector<16x256xbf16>
    %39 = vector.shape_cast %36 : vector<16x256xbf16> to vector<1x16x256xbf16>
    tpu.vector_store %arg9[%c0_21, %c0_22, %c0_23], %39 {strides = array<i32>} : memref<1x16x256xbf16, #tpu.memory_space<vmem>>, vector<1x16x256xbf16>,
    return
  }
  func.func @transform_0(%arg0: i32) -> (i32, i32, i32) {
    %c0_i32 = arith.constant 0 : i32
    %c0_i32_0 = arith.constant 0 : i32
    %c0_i32_1 = arith.constant 0 : i32
    return %arg0, %c0_i32, %c0_i32_0 : i32, i32, i32
  }
  func.func @transform_1(%arg0: i32) -> (i32, i32, i32) {
    %c0_i32 = arith.constant 0 : i32
    %c0_i32_0 = arith.constant 0 : i32
    %c0_i32_1 = arith.constant 0 : i32
    return %arg0, %c0_i32, %c0_i32_0 : i32, i32, i32
  }
  func.func @transform_2(%arg0: i32) -> (i32, i32) {
    %c0_i32 = arith.constant 0 : i32
    %c0_i32_0 = arith.constant 0 : i32
    %c0_i32_1 = arith.constant 0 : i32
    return %c0_i32, %c0_i32_0 : i32, i32
  }
  func.func @transform_3(%arg0: i32) -> (i32, i32) {
    %c0_i32 = arith.constant 0 : i32
    %c0_i32_0 = arith.constant 0 : i32
    %c0_i32_1 = arith.constant 0 : i32
    return %c0_i32, %c0_i32_0 : i32, i32
  }
  func.func @transform_4(%arg0: i32) -> (i32, i32) {
    %c0_i32 = arith.constant 0 : i32
    %c0_i32_0 = arith.constant 0 : i32
    %c0_i32_1 = arith.constant 0 : i32
    return %c0_i32, %c0_i32_0 : i32, i32
  }
  func.func @transform_5(%arg0: i32) -> (i32, i32) {
    %c0_i32 = arith.constant 0 : i32
    %c0_i32_0 = arith.constant 0 : i32
    %c0_i32_1 = arith.constant 0 : i32
    return %c0_i32, %c0_i32_0 : i32, i32
  }
  func.func @transform_6(%arg0: i32) -> (i32, i32) {
    %c0_i32 = arith.constant 0 : i32
    %c0_i32_0 = arith.constant 0 : i32
    %c0_i32_1 = arith.constant 0 : i32
    return %c0_i32, %c0_i32_0 : i32, i32
  }
  func.func @transform_7(%arg0: i32) -> (i32, i32) {
    %c0_i32 = arith.constant 0 : i32
    %c0_i32_0 = arith.constant 0 : i32
    %c0_i32_1 = arith.constant 0 : i32
    return %c0_i32, %c0_i32_0 : i32, i32
  }
  func.func @transform_8(%arg0: i32) -> (i32, i32, i32) {
    %c0_i32 = arith.constant 0 : i32
    %c0_i32_0 = arith.constant 0 : i32
    %c0_i32_1 = arith.constant 0 : i32
    return %arg0, %c0_i32, %c0_i32_0 : i32, i32, i32
  }
}

</mosaic_0001>

<llo_original>
// kernel: tile.323
$region0: #{tile.323}
  #allocation0 [shape = 's32[1]{0}', space=sflag, size = 0x4, scoped, tag = 'scoped memory for tile.323']
  %s0 = inlined_call_operand.vmem [shape: f32[16], index: 0, kind: input, shape index: {}]
  %s1 = inlined_call_operand.vmem [shape: f32[8,16], index: 1, kind: output, shape index: {}]
  // Predicated region
  $region2: #{tile.323} parent=0 // pred_check
    _
  $region3: #{tile.323} parent=0 // pred_check_branch
    %3 = sbr.rel (0) target = $region5
  $region4: #{tile.323} parent=0 // pred_region
    _
  $region5: #{tile.323} parent=0 // pred_fallthru
    _
  %v4 = vld [vmem:[%s0] ss:$0 sm:$0xff]
  %5 = vst [vmem:[%s1] sm:$0xff] %v4

// kernel: tile.324
$region0: #{tile.324}
  %s0 = inlined_call_operand.vmem [shape: f32[8,16], index: 0, kind: input, shape index: {}]
  %s1 = inlined_call_operand.vmem [shape: f32[1,128], index: 1, kind: output, shape index: {}]
  $region1: #{tile.324} parent=0
    #allocation0 [shape = 'u8[4096]{0}', space=vmem, size = 0x1000, scoped, tag = 'scoped mem for output reshape']
    %v2 = vld [vmem:[%s0] sm:$0x1]
    %vm3 = vcmask 130048
    %4 = vst.msk [vmem:[#allocation0] sm:$0x1] %vm3, %v2
    %s5 = scalar_lea.vmem %s0, 7
    %v6 = vld [vmem:[%s5] sm:$0x1]
    %7 = vrot.lane.b32.xlu0 %v6, 112
    %v8 = vpop.permute.xlu0 %7
    %vm9 = vcmask 1048448
    %10 = vst.msk [vmem:[#allocation0] sm:$0x1] %vm9, %v8
    %s11 = scalar_lea.vmem %s0, 6
    %v12 = vld [vmem:[%s11] sm:$0x1]
    %13 = vrot.lane.b32.xlu0 %v12, 96
    %v14 = vpop.permute.xlu0 %13
    %vm15 = vcmask 917248
    %16 = vst.msk [vmem:[#allocation0] sm:$0x1] %vm15, %v14
    %s17 = scalar_lea.vmem %s0, 5
    %v18 = vld [vmem:[%s17] sm:$0x1]
    %19 = vrot.lane.b32.xlu0 %v18, 80
    %v20 = vpop.permute.xlu0 %19
    %vm21 = vcmask 786048
    %22 = vst.msk [vmem:[#allocation0] sm:$0x1] %vm21, %v20
    %s23 = scalar_lea.vmem %s0, 4
    %v24 = vld [vmem:[%s23] sm:$0x1]
    %25 = vrot.lane.b32.xlu0 %v24, 64
    %v26 = vpop.permute.xlu0 %25
    %vm27 = vcmask 654848
    %28 = vst.msk [vmem:[#allocation0] sm:$0x1] %vm27, %v26
    %s29 = scalar_lea.vmem %s0, 3
    %v30 = vld [vmem:[%s29] sm:$0x1]
    %31 = vrot.lane.b32.xlu0 %v30, 48
    %v32 = vpop.permute.xlu0 %31
    %vm33 = vcmask 523648
    %34 = vst.msk [vmem:[#allocation0] sm:$0x1] %vm33, %v32
    %s35 = scalar_lea.vmem %s0, 2
    %v36 = vld [vmem:[%s35] sm:$0x1]
    %37 = vrot.lane.b32.xlu0 %v36, 32
    %v38 = vpop.permute.xlu0 %37
    %vm39 = vcmask 392448
    %40 = vst.msk [vmem:[#allocation0] sm:$0x1] %vm39, %v38
    %s41 = scalar_lea.vmem %s0, 1
    %v42 = vld [vmem:[%s41] sm:$0x1]
    %43 = vrot.lane.b32.xlu0 %v42, 16
    %v44 = vpop.permute.xlu0 %43
    %vm45 = vcmask 261248
    %46 = vst.msk [vmem:[#allocation0] sm:$0x1] %vm45, %v44
    %s48 = ssub.s32 2, 1
    %v49 = vld [vmem:[#allocation0] sm:%s48]
    %s51 = ssub.s32 2, 1
    %52 = vst [vmem:[%s1] sm:%s51] %v49

// kernel: tile.334
$region0: #{tile.334}
  %s0 = inlined_call_operand.vmem [shape: f32[8,4], index: 0, kind: input, shape index: {}]
  %s1 = inlined_call_operand.vmem [shape: f32[1,32], index: 1, kind: output, shape index: {}]
  $region1: #{tile.334} parent=0
    #allocation0 [shape = 'u8[4096]{0}', space=vmem, size = 0x1000, scoped, tag = 'scoped mem for output reshape']
    %v2 = vld [vmem:[%s0] sm:$0x1]
    %vm3 = vcmask 31744
    %4 = vst.msk [vmem:[#allocation0] sm:$0x1] %vm3, %v2
    %s5 = scalar_lea.vmem %s0, 7
    %v6 = vld [vmem:[%s5] sm:$0x1]
    %7 = vrot.lane.b32.xlu0 %v6, 28
    %v8 = vpop.permute.xlu0 %7
    %vm9 = vcmask 261344
    %10 = vst.msk [vmem:[#allocation0] sm:$0x1] %vm9, %v8
    %s11 = scalar_lea.vmem %s0, 6
    %v12 = vld [vmem:[%s11] sm:$0x1]
    %13 = vrot.lane.b32.xlu0 %v12, 24
    %v14 = vpop.permute.xlu0 %13
    %vm15 = vcmask 228544
    %16 = vst.msk [vmem:[#allocation0] sm:$0x1] %vm15, %v14
    %s17 = scalar_lea.vmem %s0, 5
    %v18 = vld [vmem:[%s17] sm:$0x1]
    %19 = vrot.lane.b32.xlu0 %v18, 20
    %v20 = vpop.permute.xlu0 %19
    %vm21 = vcmask 195744
    %22 = vst.msk [vmem:[#allocation0] sm:$0x1] %vm21, %v20
    %s23 = scalar_lea.vmem %s0, 4
    %v24 = vld [vmem:[%s23] sm:$0x1]
    %25 = vrot.lane.b32.xlu0 %v24, 16
    %v26 = vpop.permute.xlu0 %25
    %vm27 = vcmask 162944
    %28 = vst.msk [vmem:[#allocation0] sm:$0x1] %vm27, %v26
    %s29 = scalar_lea.vmem %s0, 3
    %v30 = vld [vmem:[%s29] sm:$0x1]
    %31 = vrot.lane.b32.xlu0 %v30, 12
    %v32 = vpop.permute.xlu0 %31
    %vm33 = vcmask 130144
    %34 = vst.msk [vmem:[#allocation0] sm:$0x1] %vm33, %v32
    %s35 = scalar_lea.vmem %s0, 2
    %v36 = vld [vmem:[%s35] sm:$0x1]
    %37 = vrot.lane.b32.xlu0 %v36, 8
    %v38 = vpop.permute.xlu0 %37
    %vm39 = vcmask 97344
    %40 = vst.msk [vmem:[#allocation0] sm:$0x1] %vm39, %v38
    %s41 = scalar_lea.vmem %s0, 1
    %v42 = vld [vmem:[%s41] sm:$0x1]
    %43 = vrot.lane.b32.xlu0 %v42, 4
    %v44 = vpop.permute.xlu0 %43
    %vm45 = vcmask 64544
    %46 = vst.msk [vmem:[#allocation0] sm:$0x1] %vm45, %v44
    %s48 = ssub.s32 2, 1
    %v49 = vld [vmem:[#allocation0] sm:%s48]
    %s51 = ssub.s32 2, 1
    %52 = vst [vmem:[%s1] sm:%s51] %v49

// kernel: tile.333
$region0: #{tile.333}
  #allocation0 [shape = 's32[1]{0}', space=sflag, size = 0x4, scoped, tag = 'scoped memory for tile.333']
  %s0 = inlined_call_operand.vmem [shape: f32[4], index: 0, kind: input, shape index: {}]
  %s1 = inlined_call_operand.vmem [shape: f32[8,4], index: 1, kind: output, shape index: {}]
  // Predicated region
  $region2: #{tile.333} parent=0 // pred_check
    _
  $region3: #{tile.333} parent=0 // pred_check_branch
    %3 = sbr.rel (0) target = $region5
  $region4: #{tile.333} parent=0 // pred_region
    _
  $region5: #{tile.333} parent=0 // pred_fallthru
    _
  %v4 = vld [vmem:[%s0] ss:$0 sm:$0xff]
  %5 = vst [vmem:[%s1] sm:$0xff] %v4

// kernel: tile.353
$region0: #{tile.353}
  #allocation0 [shape = 's32[1]{0}', space=sflag, size = 0x4, scoped, tag = 'scoped memory for tile.353']
  %s0 = inlined_call_operand.vmem [shape: f32[16], index: 0, kind: input, shape index: {}]
  %s1 = inlined_call_operand.vmem [shape: f32[4,16], index: 1, kind: output, shape index: {}]
  // Predicated region
  $region2: #{tile.353} parent=0 // pred_check
    _
  $region3: #{tile.353} parent=0 // pred_check_branch
    %3 = sbr.rel (0) target = $region5
  $region4: #{tile.353} parent=0 // pred_region
    _
  $region5: #{tile.353} parent=0 // pred_fallthru
    _
  %v4 = vld [vmem:[%s0] ss:$0 sm:$0xff]
  %5 = vst [vmem:[%s1] sm:$0xf] %v4

// kernel: tile.354
$region0: #{tile.354}
  %s0 = inlined_call_operand.vmem [shape: f32[4,16], index: 0, kind: input, shape index: {}]
  %s1 = inlined_call_operand.vmem [shape: f32[1,64], index: 1, kind: output, shape index: {}]
  $region1: #{tile.354} parent=0
    #allocation0 [shape = 'u8[4096]{0}', space=vmem, size = 0x1000, scoped, tag = 'scoped mem for output reshape']
    #allocation1 [shape = 'u8[4096]{0}', space=vmem, size = 0x1000, scoped, tag = 'scoped mem for input reshape']
    %s3 = ssub.s32 16, 1
    %v4 = vld [vmem:[%s0] sm:%s3]
    %5 = vst [vmem:[#allocation1] sm:%s3] %v4
    %v6 = vld [vmem:[#allocation1] sm:$0x1]
    %vm7 = vcmask 130048
    %8 = vst.msk [vmem:[#allocation0] sm:$0x1] %vm7, %v6
    %s9 = scalar_lea.vmem [#allocation1], 3
    %v10 = vld [vmem:[%s9] sm:$0x1]
    %11 = vrot.lane.b32.xlu0 %v10, 48
    %v12 = vpop.permute.xlu0 %11
    %vm13 = vcmask 523648
    %14 = vst.msk [vmem:[#allocation0] sm:$0x1] %vm13, %v12
    %s15 = scalar_lea.vmem [#allocation1], 2
    %v16 = vld [vmem:[%s15] sm:$0x1]
    %17 = vrot.lane.b32.xlu0 %v16, 32
    %v18 = vpop.permute.xlu0 %17
    %vm19 = vcmask 392448
    %20 = vst.msk [vmem:[#allocation0] sm:$0x1] %vm19, %v18
    %s21 = scalar_lea.vmem [#allocation1], 1
    %v22 = vld [vmem:[%s21] sm:$0x1]
    %23 = vrot.lane.b32.xlu0 %v22, 16
    %v24 = vpop.permute.xlu0 %23
    %vm25 = vcmask 261248
    %26 = vst.msk [vmem:[#allocation0] sm:$0x1] %vm25, %v24
    %s28 = ssub.s32 2, 1
    %v29 = vld [vmem:[#allocation0] sm:%s28]
    %s31 = ssub.s32 2, 1
    %32 = vst [vmem:[%s1] sm:%s31] %v29

// kernel: tile.363
$region0: #{tile.363}
  #allocation0 [shape = 's32[1]{0}', space=sflag, size = 0x4, scoped, tag = 'scoped memory for tile.363']
  %s0 = inlined_call_operand.vmem [shape: f32[4], index: 0, kind: input, shape index: {}]
  %s1 = inlined_call_operand.vmem [shape: f32[4,4], index: 1, kind: output, shape index: {}]
  // Predicated region
  $region2: #{tile.363} parent=0 // pred_check
    _
  $region3: #{tile.363} parent=0 // pred_check_branch
    %3 = sbr.rel (0) target = $region5
  $region4: #{tile.363} parent=0 // pred_region
    _
  $region5: #{tile.363} parent=0 // pred_fallthru
    _
  %v4 = vld [vmem:[%s0] ss:$0 sm:$0xff]
  %5 = vst [vmem:[%s1] sm:$0xf] %v4

// kernel: tile.364
$region0: #{tile.364}
  %s0 = inlined_call_operand.vmem [shape: f32[4,4], index: 0, kind: input, shape index: {}]
  %s1 = inlined_call_operand.vmem [shape: f32[1,16], index: 1, kind: output, shape index: {}]
  $region1: #{tile.364} parent=0
    #allocation0 [shape = 'u8[4096]{0}', space=vmem, size = 0x1000, scoped, tag = 'scoped mem for output reshape']
    #allocation1 [shape = 'u8[4096]{0}', space=vmem, size = 0x1000, scoped, tag = 'scoped mem for input reshape']
    %s3 = ssub.s32 16, 1
    %v4 = vld [vmem:[%s0] sm:%s3]
    %5 = vst [vmem:[#allocation1] sm:%s3] %v4
    %v6 = vld [vmem:[#allocation1] sm:$0x1]
    %vm7 = vcmask 31744
    %8 = vst.msk [vmem:[#allocation0] sm:$0x1] %vm7, %v6
    %s9 = scalar_lea.vmem [#allocation1], 3
    %v10 = vld [vmem:[%s9] sm:$0x1]
    %11 = vrot.lane.b32.xlu0 %v10, 12
    %v12 = vpop.permute.xlu0 %11
    %vm13 = vcmask 130144
    %14 = vst.msk [vmem:[#allocation0] sm:$0x1] %vm13, %v12
    %s15 = scalar_lea.vmem [#allocation1], 2
    %v16 = vld [vmem:[%s15] sm:$0x1]
    %17 = vrot.lane.b32.xlu0 %v16, 8
    %v18 = vpop.permute.xlu0 %17
    %vm19 = vcmask 97344
    %20 = vst.msk [vmem:[#allocation0] sm:$0x1] %vm19, %v18
    %s21 = scalar_lea.vmem [#allocation1], 1
    %v22 = vld [vmem:[%s21] sm:$0x1]
    %23 = vrot.lane.b32.xlu0 %v22, 4
    %v24 = vpop.permute.xlu0 %23
    %vm25 = vcmask 64544
    %26 = vst.msk [vmem:[#allocation0] sm:$0x1] %vm25, %v24
    %s28 = ssub.s32 2, 1
    %v29 = vld [vmem:[#allocation0] sm:%s28]
    %s31 = ssub.s32 2, 1
    %32 = vst [vmem:[%s1] sm:%s31] %v29

// kernel: attention_module_stage1.11
$region0: #{attention_module_stage1.11}
  #allocation0 [shape = 'u32[]', space=smem, size = 0x4, offset = 0x4, fixed_abs, tag = 'smem constant byte address 0x4 - core index']
  #allocation1 [shape = 'u32[72,128]{1,0:T(1,128)}', space=vmem, size = 0x9000, scoped, tag = 'internal scratch']
  %s0 = inlined_call_operand.vmem [shape: bf16[2,8,128], index: 0, kind: input, shape index: {}]
  %s1 = inlined_call_operand.vmem [shape: f32[1,128], index: 1, kind: input, shape index: {}]
  %s2 = inlined_call_operand.vmem [shape: f32[1,128], index: 2, kind: input, shape index: {}]
  %s3 = inlined_call_operand.vmem [shape: bf16[128,32], index: 3, kind: input, shape index: {}]
  %s4 = inlined_call_operand.vmem [shape: f32[1,32], index: 4, kind: input, shape index: {}]
  %s5 = inlined_call_operand.vmem [shape: f32[1,32], index: 5, kind: input, shape index: {}]
  %s6 = inlined_call_operand.vmem [shape: bf16[8,8], index: 6, kind: input, shape index: {}]
  %s7 = inlined_call_operand.vmem [shape: bf16[8,8], index: 7, kind: input, shape index: {}]
  %s8 = inlined_call_operand.vmem [shape: bf16[32,32], index: 8, kind: input, shape index: {}]
  %s9 = inlined_call_operand.vmem [shape: bf16[32,32], index: 9, kind: input, shape index: {}]
  %s10 = inlined_call_operand.vmem [shape: bf16[32,32], index: 10, kind: input, shape index: {}]
  %s11 = inlined_call_operand.vmem [shape: f32[1,32], index: 11, kind: input, shape index: {}]
  %s12 = inlined_call_operand.vmem [shape: f32[1,32], index: 12, kind: input, shape index: {}]
  %s13 = inlined_call_operand.vmem [shape: bf16[32,128], index: 13, kind: input, shape index: {}]
  %s14 = inlined_call_operand.vmem [shape: bf16[2,8,128], index: 14, kind: output, shape index: {}]
  %s15 = sld [smem:[#allocation0]]
  $region89: #{attention_module_stage1.11} parent=0
    _
  %s17 = ssub.s32 1, %s15
  %s18 = scalar_select 0, %s17, %s15
  loop: start=0, step=1, limit=4
  $region2: #{attention_module_stage1.11} parent=0 // loop_pre_header
    _
  $region3: #{attention_module_stage1.11} parent=0 // loop_header
    %s20 = sphi 0, %s24
    %p21 = scmp.ge.s32.totalorder %s20, 4
    %s30 = sphi 0, %s32
    %s33 = sphi 0, %s30
    %s34 = sphi 0, %s33
    %s50 = sphi 0, %s34
    %s54 = sphi 0, %s54
    %s56 = sphi 0, %s54
    %s57 = sphi 0, %s56
    %s71 = sphi 0, %s57
    %s75 = sphi 0, %s75
    %s77 = sphi 0, %s75
    %s78 = sphi 0, %s77
    %s92 = sphi 0, %s78
    %s96 = sphi 0, %s96
    %s98 = sphi 0, %s96
    %s99 = sphi 0, %s98
    %s113 = sphi 0, %s99
    %s117 = sphi 0, %s117
    %s119 = sphi 0, %s117
    %s120 = sphi 0, %s119
    %s134 = sphi 0, %s120
    %s138 = sphi 0, %s138
    %s140 = sphi 0, %s138
    %s141 = sphi 0, %s140
    %s155 = sphi 0, %s141
    %s159 = sphi 0, %s159
    %s161 = sphi 0, %s159
    %s162 = sphi 0, %s161
    %s176 = sphi 0, %s162
    %s180 = sphi 0, %s180
    %s182 = sphi 0, %s180
    %s183 = sphi 0, %s182
    %s197 = sphi 0, %s183
    %s201 = sphi 0, %s201
    %s203 = sphi 0, %s201
    %s204 = sphi 0, %s203
    %s218 = sphi 0, %s204
    %s222 = sphi 0, %s222
    %s224 = sphi 0, %s222
    %s225 = sphi 0, %s224
    %s239 = sphi 0, %s225
    %s243 = sphi 0, %s243
    %s245 = sphi 0, %s243
    %s246 = sphi 0, %s245
    %s260 = sphi 0, %s246
    %s264 = sphi 0, %s264
    %s266 = sphi 0, %s264
    %s267 = sphi 0, %s266
    %s281 = sphi 0, %s267
    %s285 = sphi 0, %s285
    %s287 = sphi 0, %s285
    %s288 = sphi 0, %s287
    %s302 = sphi 0, %s288
    %s306 = sphi 0, %s306
    %s308 = sphi 0, %s306
    %s309 = sphi 0, %s308
    %s323 = sphi 0, %s309
    %s329 = sphi 0, %s331
    %s332 = sphi 0, %s329
    %s333 = sphi 0, %s332
    %s349 = sphi 0, %s333
  $region4: #{attention_module_stage1.11} parent=0 // loop_header_branch
    %23 = sbr.rel (%p21) target = $region8
  $region5: #{attention_module_stage1.11} parent=0 // loop_body
    %s25 = ssub.s32 %s20, 1
    %s26 = ssub.s32 %s20, 2
    %s27 = sadd.s32 %s20, 1
    %s28 = ssub.s32 %s20, %s27
    %p29 = scmp.eq.s32.totalorder %s28, 0
    %s31 = sadd.s32 %s30, 1
    %s32 = scalar_select %p29, %s30, %s31
    %p35 = pneg %p29
    %p36 = scmp.eq.s32.totalorder %s20, 1
    %p37 = por %p35, %p36
    %p38 = scmp.ne.s32.totalorder %s30, %s33
    %p39 = scmp.eq.s32.totalorder %s20, 0
    %p40 = por %p38, %p39
    %p41 = scmp.ne.s32.totalorder %s30, %s33
    %p42 = scmp.eq.s32.totalorder %s25, 1
    %p43 = por %p41, %p42
    %p44 = scmp.ne.s32.totalorder %s33, %s34
    %p45 = scmp.eq.s32.totalorder %s25, 0
    %p46 = por %p44, %p45
    %p47 = scmp.ne.s32.totalorder %s33, %s34
    %p48 = scmp.eq.s32.totalorder %s26, 1
    %p49 = por %p47, %p48
    %p51 = scmp.ne.s32.totalorder %s34, %s50
    %p52 = scmp.eq.s32.totalorder %s26, 0
    %p53 = por %p51, %p52
    %s55 = sadd.s32 %s54, 1
    %p58 = scmp.eq.s32.totalorder %s20, 1
    %p59 = scmp.ne.s32.totalorder %s54, %s56
    %p60 = scmp.eq.s32.totalorder %s20, 0
    %p61 = por %p59, %p60
    %p62 = scmp.ne.s32.totalorder %s54, %s56
    %p63 = scmp.eq.s32.totalorder %s25, 1
    %p64 = por %p62, %p63
    %p65 = scmp.ne.s32.totalorder %s56, %s57
    %p66 = scmp.eq.s32.totalorder %s25, 0
    %p67 = por %p65, %p66
    %p68 = scmp.ne.s32.totalorder %s56, %s57
    %p69 = scmp.eq.s32.totalorder %s26, 1
    %p70 = por %p68, %p69
    %p72 = scmp.ne.s32.totalorder %s57, %s71
    %p73 = scmp.eq.s32.totalorder %s26, 0
    %p74 = por %p72, %p73
    %s76 = sadd.s32 %s75, 1
    %p79 = scmp.eq.s32.totalorder %s20, 1
    %p80 = scmp.ne.s32.totalorder %s75, %s77
    %p81 = scmp.eq.s32.totalorder %s20, 0
    %p82 = por %p80, %p81
    %p83 = scmp.ne.s32.totalorder %s75, %s77
    %p84 = scmp.eq.s32.totalorder %s25, 1
    %p85 = por %p83, %p84
    %p86 = scmp.ne.s32.totalorder %s77, %s78
    %p87 = scmp.eq.s32.totalorder %s25, 0
    %p88 = por %p86, %p87
    %p89 = scmp.ne.s32.totalorder %s77, %s78
    %p90 = scmp.eq.s32.totalorder %s26, 1
    %p91 = por %p89, %p90
    %p93 = scmp.ne.s32.totalorder %s78, %s92
    %p94 = scmp.eq.s32.totalorder %s26, 0
    %p95 = por %p93, %p94
    %s97 = sadd.s32 %s96, 1
    %p100 = scmp.eq.s32.totalorder %s20, 1
    %p101 = scmp.ne.s32.totalorder %s96, %s98
    %p102 = scmp.eq.s32.totalorder %s20, 0
    %p103 = por %p101, %p102
    %p104 = scmp.ne.s32.totalorder %s96, %s98
    %p105 = scmp.eq.s32.totalorder %s25, 1
    %p106 = por %p104, %p105
    %p107 = scmp.ne.s32.totalorder %s98, %s99
    %p108 = scmp.eq.s32.totalorder %s25, 0
    %p109 = por %p107, %p108
    %p110 = scmp.ne.s32.totalorder %s98, %s99
    %p111 = scmp.eq.s32.totalorder %s26, 1
    %p112 = por %p110, %p111
    %p114 = scmp.ne.s32.totalorder %s99, %s113
    %p115 = scmp.eq.s32.totalorder %s26, 0
    %p116 = por %p114, %p115
    %s118 = sadd.s32 %s117, 1
    %p121 = scmp.eq.s32.totalorder %s20, 1
    %p122 = scmp.ne.s32.totalorder %s117, %s119
    %p123 = scmp.eq.s32.totalorder %s20, 0
    %p124 = por %p122, %p123
    %p125 = scmp.ne.s32.totalorder %s117, %s119
    %p126 = scmp.eq.s32.totalorder %s25, 1
    %p127 = por %p125, %p126
    %p128 = scmp.ne.s32.totalorder %s119, %s120
    %p129 = scmp.eq.s32.totalorder %s25, 0
    %p130 = por %p128, %p129
    %p131 = scmp.ne.s32.totalorder %s119, %s120
    %p132 = scmp.eq.s32.totalorder %s26, 1
    %p133 = por %p131, %p132
    %p135 = scmp.ne.s32.totalorder %s120, %s134
    %p136 = scmp.eq.s32.totalorder %s26, 0
    %p137 = por %p135, %p136
    %s139 = sadd.s32 %s138, 1
    %p142 = scmp.eq.s32.totalorder %s20, 1
    %p143 = scmp.ne.s32.totalorder %s138, %s140
    %p144 = scmp.eq.s32.totalorder %s20, 0
    %p145 = por %p143, %p144
    %p146 = scmp.ne.s32.totalorder %s138, %s140
    %p147 = scmp.eq.s32.totalorder %s25, 1
    %p148 = por %p146, %p147
    %p149 = scmp.ne.s32.totalorder %s140, %s141
    %p150 = scmp.eq.s32.totalorder %s25, 0
    %p151 = por %p149, %p150
    %p152 = scmp.ne.s32.totalorder %s140, %s141
    %p153 = scmp.eq.s32.totalorder %s26, 1
    %p154 = por %p152, %p153
    %p156 = scmp.ne.s32.totalorder %s141, %s155
    %p157 = scmp.eq.s32.totalorder %s26, 0
    %p158 = por %p156, %p157
    %s160 = sadd.s32 %s159, 1
    %p163 = scmp.eq.s32.totalorder %s20, 1
    %p164 = scmp.ne.s32.totalorder %s159, %s161
    %p165 = scmp.eq.s32.totalorder %s20, 0
    %p166 = por %p164, %p165
    %p167 = scmp.ne.s32.totalorder %s159, %s161
    %p168 = scmp.eq.s32.totalorder %s25, 1
    %p169 = por %p167, %p168
    %p170 = scmp.ne.s32.totalorder %s161, %s162
    %p171 = scmp.eq.s32.totalorder %s25, 0
    %p172 = por %p170, %p171
    %p173 = scmp.ne.s32.totalorder %s161, %s162
    %p174 = scmp.eq.s32.totalorder %s26, 1
    %p175 = por %p173, %p174
    %p177 = scmp.ne.s32.totalorder %s162, %s176
    %p178 = scmp.eq.s32.totalorder %s26, 0
    %p179 = por %p177, %p178
    %s181 = sadd.s32 %s180, 1
    %p184 = scmp.eq.s32.totalorder %s20, 1
    %p185 = scmp.ne.s32.totalorder %s180, %s182
    %p186 = scmp.eq.s32.totalorder %s20, 0
    %p187 = por %p185, %p186
    %p188 = scmp.ne.s32.totalorder %s180, %s182
    %p189 = scmp.eq.s32.totalorder %s25, 1
    %p190 = por %p188, %p189
    %p191 = scmp.ne.s32.totalorder %s182, %s183
    %p192 = scmp.eq.s32.totalorder %s25, 0
    %p193 = por %p191, %p192
    %p194 = scmp.ne.s32.totalorder %s182, %s183
    %p195 = scmp.eq.s32.totalorder %s26, 1
    %p196 = por %p194, %p195
    %p198 = scmp.ne.s32.totalorder %s183, %s197
    %p199 = scmp.eq.s32.totalorder %s26, 0
    %p200 = por %p198, %p199
    %s202 = sadd.s32 %s201, 1
    %p205 = scmp.eq.s32.totalorder %s20, 1
    %p206 = scmp.ne.s32.totalorder %s201, %s203
    %p207 = scmp.eq.s32.totalorder %s20, 0
    %p208 = por %p206, %p207
    %p209 = scmp.ne.s32.totalorder %s201, %s203
    %p210 = scmp.eq.s32.totalorder %s25, 1
    %p211 = por %p209, %p210
    %p212 = scmp.ne.s32.totalorder %s203, %s204
    %p213 = scmp.eq.s32.totalorder %s25, 0
    %p214 = por %p212, %p213
    %p215 = scmp.ne.s32.totalorder %s203, %s204
    %p216 = scmp.eq.s32.totalorder %s26, 1
    %p217 = por %p215, %p216
    %p219 = scmp.ne.s32.totalorder %s204, %s218
    %p220 = scmp.eq.s32.totalorder %s26, 0
    %p221 = por %p219, %p220
    %s223 = sadd.s32 %s222, 1
    %p226 = scmp.eq.s32.totalorder %s20, 1
    %p227 = scmp.ne.s32.totalorder %s222, %s224
    %p228 = scmp.eq.s32.totalorder %s20, 0
    %p229 = por %p227, %p228
    %p230 = scmp.ne.s32.totalorder %s222, %s224
    %p231 = scmp.eq.s32.totalorder %s25, 1
    %p232 = por %p230, %p231
    %p233 = scmp.ne.s32.totalorder %s224, %s225
    %p234 = scmp.eq.s32.totalorder %s25, 0
    %p235 = por %p233, %p234
    %p236 = scmp.ne.s32.totalorder %s224, %s225
    %p237 = scmp.eq.s32.totalorder %s26, 1
    %p238 = por %p236, %p237
    %p240 = scmp.ne.s32.totalorder %s225, %s239
    %p241 = scmp.eq.s32.totalorder %s26, 0
    %p242 = por %p240, %p241
    %s244 = sadd.s32 %s243, 1
    %p247 = scmp.eq.s32.totalorder %s20, 1
    %p248 = scmp.ne.s32.totalorder %s243, %s245
    %p249 = scmp.eq.s32.totalorder %s20, 0
    %p250 = por %p248, %p249
    %p251 = scmp.ne.s32.totalorder %s243, %s245
    %p252 = scmp.eq.s32.totalorder %s25, 1
    %p253 = por %p251, %p252
    %p254 = scmp.ne.s32.totalorder %s245, %s246
    %p255 = scmp.eq.s32.totalorder %s25, 0
    %p256 = por %p254, %p255
    %p257 = scmp.ne.s32.totalorder %s245, %s246
    %p258 = scmp.eq.s32.totalorder %s26, 1
    %p259 = por %p257, %p258
    %p261 = scmp.ne.s32.totalorder %s246, %s260
    %p262 = scmp.eq.s32.totalorder %s26, 0
    %p263 = por %p261, %p262
    %s265 = sadd.s32 %s264, 1
    %p268 = scmp.eq.s32.totalorder %s20, 1
    %p269 = scmp.ne.s32.totalorder %s264, %s266
    %p270 = scmp.eq.s32.totalorder %s20, 0
    %p271 = por %p269, %p270
    %p272 = scmp.ne.s32.totalorder %s264, %s266
    %p273 = scmp.eq.s32.totalorder %s25, 1
    %p274 = por %p272, %p273
    %p275 = scmp.ne.s32.totalorder %s266, %s267
    %p276 = scmp.eq.s32.totalorder %s25, 0
    %p277 = por %p275, %p276
    %p278 = scmp.ne.s32.totalorder %s266, %s267
    %p279 = scmp.eq.s32.totalorder %s26, 1
    %p280 = por %p278, %p279
    %p282 = scmp.ne.s32.totalorder %s267, %s281
    %p283 = scmp.eq.s32.totalorder %s26, 0
    %p284 = por %p282, %p283
    %s286 = sadd.s32 %s285, 1
    %p289 = scmp.eq.s32.totalorder %s20, 1
    %p290 = scmp.ne.s32.totalorder %s285, %s287
    %p291 = scmp.eq.s32.totalorder %s20, 0
    %p292 = por %p290, %p291
    %p293 = scmp.ne.s32.totalorder %s285, %s287
    %p294 = scmp.eq.s32.totalorder %s25, 1
    %p295 = por %p293, %p294
    %p296 = scmp.ne.s32.totalorder %s287, %s288
    %p297 = scmp.eq.s32.totalorder %s25, 0
    %p298 = por %p296, %p297
    %p299 = scmp.ne.s32.totalorder %s287, %s288
    %p300 = scmp.eq.s32.totalorder %s26, 1
    %p301 = por %p299, %p300
    %p303 = scmp.ne.s32.totalorder %s288, %s302
    %p304 = scmp.eq.s32.totalorder %s26, 0
    %p305 = por %p303, %p304
    %s307 = sadd.s32 %s306, 1
    %p310 = scmp.eq.s32.totalorder %s20, 1
    %p311 = scmp.ne.s32.totalorder %s306, %s308
    %p312 = scmp.eq.s32.totalorder %s20, 0
    %p313 = por %p311, %p312
    %p314 = scmp.ne.s32.totalorder %s306, %s308
    %p315 = scmp.eq.s32.totalorder %s25, 1
    %p316 = por %p314, %p315
    %p317 = scmp.ne.s32.totalorder %s308, %s309
    %p318 = scmp.eq.s32.totalorder %s25, 0
    %p319 = por %p317, %p318
    %p320 = scmp.ne.s32.totalorder %s308, %s309
    %p321 = scmp.eq.s32.totalorder %s26, 1
    %p322 = por %p320, %p321
    %p324 = scmp.ne.s32.totalorder %s309, %s323
    %p325 = scmp.eq.s32.totalorder %s26, 0
    %p326 = por %p324, %p325
    %s327 = ssub.s32 %s20, %s27
    %p328 = scmp.eq.s32.totalorder %s327, 0
    %s330 = sadd.s32 %s329, 1
    %s331 = scalar_select %p328, %s329, %s330
    %p334 = pneg %p328
    %p335 = scmp.eq.s32.totalorder %s20, 1
    %p336 = por %p334, %p335
    %p337 = scmp.ne.s32.totalorder %s329, %s332
    %p338 = scmp.eq.s32.totalorder %s20, 0
    %p339 = por %p337, %p338
    %p340 = scmp.ne.s32.totalorder %s329, %s332
    %p341 = scmp.eq.s32.totalorder %s25, 1
    %p342 = por %p340, %p341
    %p343 = scmp.ne.s32.totalorder %s332, %s333
    %p344 = scmp.eq.s32.totalorder %s25, 0
    %p345 = por %p343, %p344
    %p346 = scmp.ne.s32.totalorder %s332, %s333
    %p347 = scmp.eq.s32.totalorder %s26, 1
    %p348 = por %p346, %p347
    %p350 = scmp.ne.s32.totalorder %s333, %s349
    %p351 = scmp.eq.s32.totalorder %s26, 0
    %p352 = por %p350, %p351
    %p353 = scmp.le.s32.totalorder 1, %s20
    %p354 = scmp.lt.s32.totalorder %s20, 3
    %p355 = pnand %p353, %p354
    %p356 = pneg %p355
    // Predicated region
    $region9: #{attention_module_stage1.11} parent=5 // pred_check
      _
    $region10: #{attention_module_stage1.11} parent=5 // pred_check_branch
      %358 = sbr.rel (%p355) target = $region12
    $region11: #{attention_module_stage1.11} parent=5 // pred_region
      %s359 = ssub.s32 %s20, 1
      // Predicated region
      $region13: #{attention_module_stage1.11} parent=11 // pred_check
        %p360 = pneg %p67
      $region14: #{attention_module_stage1.11} parent=11 // pred_check_branch
        %362 = sbr.rel (%p360) target = $region16
      $region15: #{attention_module_stage1.11} parent=11 // pred_region
        _
      $region16: #{attention_module_stage1.11} parent=11 // pred_fallthru
        _
      // Predicated region
      $region17: #{attention_module_stage1.11} parent=11 // pred_check
        %p363 = pneg %p88
      $region18: #{attention_module_stage1.11} parent=11 // pred_check_branch
        %365 = sbr.rel (%p363) target = $region20
      $region19: #{attention_module_stage1.11} parent=11 // pred_region
        _
      $region20: #{attention_module_stage1.11} parent=11 // pred_fallthru
        _
      // Predicated region
      $region21: #{attention_module_stage1.11} parent=11 // pred_check
        %p366 = pneg %p109
      $region22: #{attention_module_stage1.11} parent=11 // pred_check_branch
        %368 = sbr.rel (%p366) target = $region24
      $region23: #{attention_module_stage1.11} parent=11 // pred_region
        _
      $region24: #{attention_module_stage1.11} parent=11 // pred_fallthru
        _
      // Predicated region
      $region25: #{attention_module_stage1.11} parent=11 // pred_check
        %p369 = pneg %p130
      $region26: #{attention_module_stage1.11} parent=11 // pred_check_branch
        %371 = sbr.rel (%p369) target = $region28
      $region27: #{attention_module_stage1.11} parent=11 // pred_region
        _
      $region28: #{attention_module_stage1.11} parent=11 // pred_fallthru
        _
      // Predicated region
      $region29: #{attention_module_stage1.11} parent=11 // pred_check
        %p372 = pneg %p151
      $region30: #{attention_module_stage1.11} parent=11 // pred_check_branch
        %374 = sbr.rel (%p372) target = $region32
      $region31: #{attention_module_stage1.11} parent=11 // pred_region
        _
      $region32: #{attention_module_stage1.11} parent=11 // pred_fallthru
        _
      // Predicated region
      $region33: #{attention_module_stage1.11} parent=11 // pred_check
        %p375 = pneg %p172
      $region34: #{attention_module_stage1.11} parent=11 // pred_check_branch
        %377 = sbr.rel (%p375) target = $region36
      $region35: #{attention_module_stage1.11} parent=11 // pred_region
        _
      $region36: #{attention_module_stage1.11} parent=11 // pred_fallthru
        _
      // Predicated region
      $region37: #{attention_module_stage1.11} parent=11 // pred_check
        %p378 = pneg %p193
      $region38: #{attention_module_stage1.11} parent=11 // pred_check_branch
        %380 = sbr.rel (%p378) target = $region40
      $region39: #{attention_module_stage1.11} parent=11 // pred_region
        _
      $region40: #{attention_module_stage1.11} parent=11 // pred_fallthru
        _
      // Predicated region
      $region41: #{attention_module_stage1.11} parent=11 // pred_check
        %p381 = pneg %p214
      $region42: #{attention_module_stage1.11} parent=11 // pred_check_branch
        %383 = sbr.rel (%p381) target = $region44
      $region43: #{attention_module_stage1.11} parent=11 // pred_region
        _
      $region44: #{attention_module_stage1.11} parent=11 // pred_fallthru
        _
      // Predicated region
      $region45: #{attention_module_stage1.11} parent=11 // pred_check
        %p384 = pneg %p235
      $region46: #{attention_module_stage1.11} parent=11 // pred_check_branch
        %386 = sbr.rel (%p384) target = $region48
      $region47: #{attention_module_stage1.11} parent=11 // pred_region
        _
      $region48: #{attention_module_stage1.11} parent=11 // pred_fallthru
        _
      // Predicated region
      $region49: #{attention_module_stage1.11} parent=11 // pred_check
        %p387 = pneg %p256
      $region50: #{attention_module_stage1.11} parent=11 // pred_check_branch
        %389 = sbr.rel (%p387) target = $region52
      $region51: #{attention_module_stage1.11} parent=11 // pred_region
        _
      $region52: #{attention_module_stage1.11} parent=11 // pred_fallthru
        _
      // Predicated region
      $region53: #{attention_module_stage1.11} parent=11 // pred_check
        %p390 = pneg %p277
      $region54: #{attention_module_stage1.11} parent=11 // pred_check_branch
        %392 = sbr.rel (%p390) target = $region56
      $region55: #{attention_module_stage1.11} parent=11 // pred_region
        _
      $region56: #{attention_module_stage1.11} parent=11 // pred_fallthru
        _
      // Predicated region
      $region57: #{attention_module_stage1.11} parent=11 // pred_check
        %p393 = pneg %p298
      $region58: #{attention_module_stage1.11} parent=11 // pred_check_branch
        %395 = sbr.rel (%p393) target = $region60
      $region59: #{attention_module_stage1.11} parent=11 // pred_region
        _
      $region60: #{attention_module_stage1.11} parent=11 // pred_fallthru
        _
      // Predicated region
      $region61: #{attention_module_stage1.11} parent=11 // pred_check
        %p396 = pneg %p319
      $region62: #{attention_module_stage1.11} parent=11 // pred_check_branch
        %398 = sbr.rel (%p396) target = $region64
      $region63: #{attention_module_stage1.11} parent=11 // pred_region
        _
      $region64: #{attention_module_stage1.11} parent=11 // pred_fallthru
        _
    $region12: #{attention_module_stage1.11} parent=5 // pred_fallthru
      _
    %p399 = scmp.lt.s32.totalorder %s20, 2
    // Predicated region
    $region65: #{attention_module_stage1.11} parent=5 // pred_check
      %p400 = pneg %p399
    $region66: #{attention_module_stage1.11} parent=5 // pred_check_branch
      %402 = sbr.rel (%p400) target = $region68
    $region67: #{attention_module_stage1.11} parent=5 // pred_region
      // Predicated region
      $region69: #{attention_module_stage1.11} parent=67 // pred_check
        %p403 = pneg %p40
      $region70: #{attention_module_stage1.11} parent=67 // pred_check_branch
        %405 = sbr.rel (%p403) target = $region72
      $region71: #{attention_module_stage1.11} parent=67 // pred_region
        %p406 = scmp.lt.s32.totalorder %s20, 1
        %s407 = scalar_select %p406, %s20, 1
        %s408 = smul.addr %s407, 4
        %s409 = scalar_lea.vmem %s0, %s408
      $region72: #{attention_module_stage1.11} parent=67 // pred_fallthru
        _
    $region68: #{attention_module_stage1.11} parent=5 // pred_fallthru
      _
    %p410 = scmp.le.s32.totalorder 1, %s20
    %p411 = scmp.lt.s32.totalorder %s20, 3
    %p412 = pnand %p410, %p411
    %p413 = pneg %p412
    // Predicated region
    $region73: #{attention_module_stage1.11} parent=5 // pred_check
      _
    $region74: #{attention_module_stage1.11} parent=5 // pred_check_branch
      %415 = sbr.rel (%p412) target = $region76
    $region75: #{attention_module_stage1.11} parent=5 // pred_region
      %s416 = ssub.s32 %s20, 1
      %p417 = scmp.lt.s32.totalorder %s25, 1
      %s418 = scalar_select %p417, %s25, 1
      %s419 = smul.addr %s418, 4
      %s420 = scalar_lea.vmem %s0, %s419
      %p421 = pneg %p46
      %p422 = pneg %p43
      %p423 = pneg %p67
      %p424 = pneg %p64
      %p425 = pneg %p88
      %p426 = pneg %p85
      %p427 = pneg %p109
      %p428 = pneg %p106
      %p429 = pneg %p130
      %p430 = pneg %p127
      %p431 = pneg %p151
      %p432 = pneg %p148
      %p433 = pneg %p172
      %p434 = pneg %p169
      %p435 = pneg %p193
      %p436 = pneg %p190
      %p437 = pneg %p214
      %p438 = pneg %p211
      %p439 = pneg %p235
      %p440 = pneg %p232
      %p441 = pneg %p256
      %p442 = pneg %p253
      %p443 = pneg %p277
      %p444 = pneg %p274
      %p445 = pneg %p298
      %p446 = pneg %p295
      %p447 = pneg %p319
      %p448 = pneg %p316
      %p449 = pneg %p345
      %p450 = pneg %p342
      %p451 = scmp.lt.s32.totalorder %s25, 1
      %s452 = scalar_select %p451, %s25, 1
      %s453 = smul.addr %s452, 4
      %s454 = scalar_lea.vmem %s14, %s453
      %p455 = scmp.lt.s32.totalorder %s25, 1
      %s456 = scalar_select %p455, %s25, 1
      %s457 = smul.addr %s456, 4
      %s458 = scalar_lea.vmem %s0, %s457
      %p459 = scmp.lt.s32.totalorder %s25, 1
      %s460 = scalar_select %p459, %s25, 1
      %s461 = smul.addr %s460, 4
      %s462 = scalar_lea.vmem %s14, %s461
      %v464 = vld [vmem:[%s458] sm:$0xf]
      %v465 = vunpack.c.l.bf16 %v464
      %v466 = vld [vmem:[%s1] sm:$0x1]
      %v468 = vperm.slane %v466, 0
      %v470 = vmul.f32 %v465, %v468
      %v471 = vld [vmem:[%s2] sm:$0x1]
      %v473 = vperm.slane %v471, 0
      %v475 = vadd.f32 %v470, %v473
      %v476 = vmax.f32 %v475, 0.0
      %v477 = vpack.c.bf16 %v476, %v476
      %v478 = vld [vmem:[%s3] sm:$0xf]
      %v479 = vld [vmem:[%s3 + $0x4] sm:$0xf]
      %v480 = vld [vmem:[%s3 + $0x8] sm:$0xf]
      %v481 = vld [vmem:[%s3 + $0xc] sm:$0xf]
      %v482 = vld [vmem:[%s3 + $0x10] sm:$0xf]
      %v483 = vld [vmem:[%s3 + $0x14] sm:$0xf]
      %v484 = vld [vmem:[%s3 + $0x18] sm:$0xf]
      %v485 = vld [vmem:[%s3 + $0x1c] sm:$0xf]
      %v486 = vld [vmem:[%s3 + $0x20] sm:$0xf]
      %v487 = vld [vmem:[%s3 + $0x24] sm:$0xf]
      %v488 = vld [vmem:[%s3 + $0x28] sm:$0xf]
      %v489 = vld [vmem:[%s3 + $0x2c] sm:$0xf]
      %v490 = vld [vmem:[%s3 + $0x30] sm:$0xf]
      %v491 = vld [vmem:[%s3 + $0x34] sm:$0xf]
      %v492 = vld [vmem:[%s3 + $0x38] sm:$0xf]
      %v493 = vld [vmem:[%s3 + $0x3c] sm:$0xf]
      %v510 = vunpack.c.l.b16 %v478
      %v511 = vunpack.c.l.b16 %v479
      %v512 = vunpack.c.l.b16 %v480
      %v513 = vunpack.c.l.b16 %v481
      %v514 = vunpack.c.l.b16 %v482
      %v515 = vunpack.c.l.b16 %v483
      %v516 = vunpack.c.l.b16 %v484
      %v517 = vunpack.c.l.b16 %v485
      %v518 = vunpack.c.l.b16 %v486
      %v519 = vunpack.c.l.b16 %v487
      %v520 = vunpack.c.l.b16 %v488
      %v521 = vunpack.c.l.b16 %v489
      %v522 = vunpack.c.l.b16 %v490
      %v523 = vunpack.c.l.b16 %v491
      %v524 = vunpack.c.l.b16 %v492
      %v525 = vunpack.c.l.b16 %v493
      %v526 = vpack.c.b16 %v511, %v510
      %v527 = vpack.c.b16 %v513, %v512
      %v528 = vpack.c.b16 %v515, %v514
      %v529 = vpack.c.b16 %v517, %v516
      %v530 = vpack.c.b16 %v519, %v518
      %v531 = vpack.c.b16 %v521, %v520
      %v532 = vpack.c.b16 %v523, %v522
      %v533 = vpack.c.b16 %v525, %v524
      %542 = vmatpush.bf16.msra.mxu0 %v533
      %543 = vmatpush.bf16.msra.mxu0 %v532
      %544 = vmatpush.bf16.msra.mxu0 %v531
      %545 = vmatpush.bf16.msra.mxu0 %v530
      %546 = vmatpush.bf16.msra.mxu0 %v529
      %547 = vmatpush.bf16.msra.mxu0 %v528
      %548 = vmatpush.bf16.msra.mxu0 %v527
      %549 = vmatpush.bf16.msra.mxu0 %v526
      %550 = vmatmul.bf16.gmra.mxu0 %v477
      %v551 = vpop.f32.mrf.mxu0
      %v552 = vadd.f32 0.0, %v551
      %v553 = vpop.f32.mrf.mxu0
      %554 = vdwg.mxu0
      %v555 = vld [vmem:[%s4] sm:$0x1]
      %v557 = vperm.slane %v555, 0
      %v559 = vmul.f32 %v552, %v557
      %v560 = vld [vmem:[%s5] sm:$0x1]
      %v562 = vperm.slane %v560, 0
      %v564 = vadd.f32 %v559, %v562
      %v565 = vmax.f32 %v564, 0.0
      %v566 = vpack.c.bf16 %v565, %v565
      %v567 = vld [vmem:[%s6] sm:$0xf]
      %vm568 = vcmask 64512
      %v570 = vsel %vm568, %v567, 0
      %vm572 = vcmask 1043456
      %v574 = vsel %vm572, %v566, 0
      %576 = vmatpush.bf16.msra.mxu0 0
      %577 = vmatpush.bf16.msra.mxu0 0
      %578 = vmatpush.bf16.msra.mxu0 0
      %579 = vmatpush.bf16.msra.mxu0 0
      %580 = vmatpush.bf16.msra.mxu0 0
      %581 = vmatpush.bf16.msra.mxu0 0
      %582 = vmatpush.bf16.msra.mxu0 0
      %583 = vmatpush.bf16.msra.mxu0 %v574
      %584 = vmatmul.bf16.gmra.mxu0 %v570
      %v585 = vpop.f32.mrf.mxu0
      %v586 = vadd.f32 0.0, %v585
      %v587 = vpop.f32.mrf.mxu0
      %588 = vdwg.mxu0
      %v589 = vpack.c.bf16 %v586, %v586
      %v590 = vld [vmem:[%s7] sm:$0xf]
      %v592 = vsel %vm568, %v590, 0
      %594 = vmatpush.bf16.msra.mxu0 0
      %595 = vmatpush.bf16.msra.mxu0 0
      %596 = vmatpush.bf16.msra.mxu0 0
      %597 = vmatpush.bf16.msra.mxu0 0
      %598 = vmatpush.bf16.msra.mxu0 0
      %599 = vmatpush.bf16.msra.mxu0 0
      %600 = vmatpush.bf16.msra.mxu0 0
      %601 = vmatpush.bf16.msra.mxu0 %v574
      %602 = vmatmul.bf16.gmra.mxu0 %v592
      %v603 = vpop.f32.mrf.mxu0
      %v604 = vadd.f32 0.0, %v603
      %v605 = vpop.f32.mrf.mxu0
      %606 = vdwg.mxu0
      %v607 = vpack.c.bf16 %v604, %v604
      %v608 = vld [vmem:[%s8] sm:$0xf]
      %v609 = vld [vmem:[%s8 + $0x4] sm:$0xf]
      %v610 = vld [vmem:[%s8 + $0x8] sm:$0xf]
      %v611 = vld [vmem:[%s8 + $0xc] sm:$0xf]
      %v612 = vld [vmem:[%s9] sm:$0xf]
      %v613 = vld [vmem:[%s9 + $0x4] sm:$0xf]
      %v614 = vld [vmem:[%s9 + $0x8] sm:$0xf]
      %v615 = vld [vmem:[%s9 + $0xc] sm:$0xf]
      %v620 = vunpack.c.l.b16 %v612
      %v621 = vunpack.c.l.b16 %v613
      %v622 = vunpack.c.l.b16 %v614
      %v623 = vunpack.c.l.b16 %v615
      %v624 = vpack.c.b16 %v621, %v620
      %v625 = vpack.c.b16 %v623, %v622
      %vm628 = vcmask 261120
      %v629 = vsel %vm628, %v566, 0
      %631 = vmatpush.bf16.msra.mxu0 0
      %632 = vmatpush.bf16.msra.mxu0 0
      %633 = vmatpush.bf16.msra.mxu0 0
      %634 = vmatpush.bf16.msra.mxu0 0
      %635 = vmatpush.bf16.msra.mxu0 0
      %636 = vmatpush.bf16.msra.mxu0 0
      %637 = vmatpush.bf16.msra.mxu0 %v625
      %638 = vmatpush.bf16.msra.mxu0 %v624
      %639 = vmatmul.bf16.gmra.mxu0 %v629
      %v640 = vpop.f32.mrf.mxu0
      %v641 = vadd.f32 0.0, %v640
      %v642 = vpop.f32.mrf.mxu0
      %643 = vdwg.mxu0
      %v648 = vunpack.c.l.b16 %v608
      %v649 = vunpack.c.l.b16 %v609
      %v650 = vunpack.c.l.b16 %v610
      %v651 = vunpack.c.l.b16 %v611
      %v652 = vpack.c.b16 %v649, %v648
      %v653 = vpack.c.b16 %v651, %v650
      %v657 = vsel %vm628, %v589, 0
      %659 = vmatpush.bf16.msra.mxu0 0
      %660 = vmatpush.bf16.msra.mxu0 0
      %661 = vmatpush.bf16.msra.mxu0 0
      %662 = vmatpush.bf16.msra.mxu0 0
      %663 = vmatpush.bf16.msra.mxu0 0
      %664 = vmatpush.bf16.msra.mxu0 0
      %665 = vmatpush.bf16.msra.mxu0 %v653
      %666 = vmatpush.bf16.msra.mxu0 %v652
      %667 = vmatmul.bf16.gmra.mxu0 %v657
      %v668 = vpop.f32.mrf.mxu0
      %v669 = vadd.f32 %v641, %v668
      %v670 = vpop.f32.mrf.mxu0
      %671 = vdwg.mxu0
      %v672 = vld [vmem:[%s10] sm:$0xf]
      %v673 = vld [vmem:[%s10 + $0x4] sm:$0xf]
      %v674 = vld [vmem:[%s10 + $0x8] sm:$0xf]
      %v675 = vld [vmem:[%s10 + $0xc] sm:$0xf]
      %v680 = vunpack.c.l.b16 %v672
      %v681 = vunpack.c.l.b16 %v673
      %v682 = vunpack.c.l.b16 %v674
      %v683 = vunpack.c.l.b16 %v675
      %v684 = vpack.c.b16 %v681, %v680
      %v685 = vpack.c.b16 %v683, %v682
      %v689 = vsel %vm628, %v607, 0
      %691 = vmatpush.bf16.msra.mxu0 0
      %692 = vmatpush.bf16.msra.mxu0 0
      %693 = vmatpush.bf16.msra.mxu0 0
      %694 = vmatpush.bf16.msra.mxu0 0
      %695 = vmatpush.bf16.msra.mxu0 0
      %696 = vmatpush.bf16.msra.mxu0 0
      %697 = vmatpush.bf16.msra.mxu0 %v685
      %698 = vmatpush.bf16.msra.mxu0 %v684
      %699 = vmatmul.bf16.gmra.mxu0 %v689
      %v700 = vpop.f32.mrf.mxu0
      %v701 = vadd.f32 0.0, %v700
      %v702 = vpop.f32.mrf.mxu0
      %703 = vdwg.mxu0
      %v704 = vadd.f32 %v669, %v701
      %v705 = vld [vmem:[%s11] sm:$0x1]
      %v707 = vperm.slane %v705, 0
      %v709 = vmul.f32 %v704, %v707
      %v710 = vld [vmem:[%s12] sm:$0x1]
      %v712 = vperm.slane %v710, 0
      %v714 = vadd.f32 %v709, %v712
      %v715 = vmax.f32 %v714, 0.0
      %v716 = vpack.c.bf16 %v715, %v715
      %v717 = vld [vmem:[%s13] sm:$0xf]
      %v718 = vld [vmem:[%s13 + $0x4] sm:$0xf]
      %v719 = vld [vmem:[%s13 + $0x8] sm:$0xf]
      %v720 = vld [vmem:[%s13 + $0xc] sm:$0xf]
      %v725 = vunpack.c.l.b16 %v717
      %v726 = vunpack.c.l.b16 %v718
      %v727 = vunpack.c.l.b16 %v719
      %v728 = vunpack.c.l.b16 %v720
      %v729 = vpack.c.b16 %v726, %v725
      %v730 = vpack.c.b16 %v728, %v727
      %v734 = vsel %vm628, %v716, 0
      %736 = vmatpush.bf16.msra.mxu0 0
      %737 = vmatpush.bf16.msra.mxu0 0
      %738 = vmatpush.bf16.msra.mxu0 0
      %739 = vmatpush.bf16.msra.mxu0 0
      %740 = vmatpush.bf16.msra.mxu0 0
      %741 = vmatpush.bf16.msra.mxu0 0
      %742 = vmatpush.bf16.msra.mxu0 %v730
      %743 = vmatpush.bf16.msra.mxu0 %v729
      %744 = vmatmul.bf16.gmra.mxu0 %v734
      %v745 = vpop.f32.mrf.mxu0
      %v746 = vadd.f32 %v465, %v745
      %v747 = vpop.f32.mrf.mxu0
      %748 = vdwg.mxu0
      %v749 = vpack.c.bf16 %v746, %v746
      %750 = vst [vmem:[%s462] sm:$0xf] %v749
      %p751 = scmp.lt.s32.totalorder %s25, 1
      %s752 = scalar_select %p751, %s25, 1
      %s753 = smul.addr %s752, 4
      %s754 = scalar_lea.vmem %s14, %s753
      // Predicated region
      $region77: #{attention_module_stage1.11} parent=75 // pred_check
        %p755 = pneg %p342
      $region78: #{attention_module_stage1.11} parent=75 // pred_check_branch
        %757 = sbr.rel (%p755) target = $region80
      $region79: #{attention_module_stage1.11} parent=75 // pred_region
        _
      $region80: #{attention_module_stage1.11} parent=75 // pred_fallthru
        _
    $region76: #{attention_module_stage1.11} parent=5 // pred_fallthru
      _
    %p758 = scmp.le.s32.totalorder 2, %s20
    // Predicated region
    $region81: #{attention_module_stage1.11} parent=5 // pred_check
      %p759 = pneg %p758
    $region82: #{attention_module_stage1.11} parent=5 // pred_check_branch
      %761 = sbr.rel (%p759) target = $region84
    $region83: #{attention_module_stage1.11} parent=5 // pred_region
      %s762 = ssub.s32 %s20, 2
      // Predicated region
      $region85: #{attention_module_stage1.11} parent=83 // pred_check
        %p763 = pneg %p348
      $region86: #{attention_module_stage1.11} parent=83 // pred_check_branch
        %765 = sbr.rel (%p763) target = $region88
      $region87: #{attention_module_stage1.11} parent=83 // pred_region
        %p766 = scmp.lt.s32.totalorder %s26, 1
        %s767 = scalar_select %p766, %s26, 1
        %s768 = smul.addr %s767, 4
        %s769 = scalar_lea.vmem %s14, %s768
      $region88: #{attention_module_stage1.11} parent=83 // pred_fallthru
        _
    $region84: #{attention_module_stage1.11} parent=5 // pred_fallthru
      _
  $region6: #{attention_module_stage1.11} parent=0 // loop_footer
    %s24 = sadd.s32 1, %s20
  $region7: #{attention_module_stage1.11} parent=0 // loop_footer_branch
    %19 = sbr.rel target = $region3
  $region8: #{attention_module_stage1.11} parent=0 // loop_exit
    _

// kernel: tile.383
$region0: #{tile.383}
  #allocation0 [shape = 's32[1]{0}', space=sflag, size = 0x4, scoped, tag = 'scoped memory for tile.383']
  %s0 = inlined_call_operand.vmem [shape: f32[16], index: 0, kind: input, shape index: {}]
  %s1 = inlined_call_operand.vmem [shape: f32[2,16], index: 1, kind: output, shape index: {}]
  // Predicated region
  $region2: #{tile.383} parent=0 // pred_check
    _
  $region3: #{tile.383} parent=0 // pred_check_branch
    %3 = sbr.rel (0) target = $region5
  $region4: #{tile.383} parent=0 // pred_region
    _
  $region5: #{tile.383} parent=0 // pred_fallthru
    _
  %v4 = vld [vmem:[%s0] ss:$0 sm:$0xff]
  %5 = vst [vmem:[%s1] sm:$0x3] %v4

// kernel: tile.384
$region0: #{tile.384}
  %s0 = inlined_call_operand.vmem [shape: f32[2,16], index: 0, kind: input, shape index: {}]
  %s1 = inlined_call_operand.vmem [shape: f32[1,32], index: 1, kind: output, shape index: {}]
  $region1: #{tile.384} parent=0
    #allocation0 [shape = 'u8[4096]{0}', space=vmem, size = 0x1000, scoped, tag = 'scoped mem for output reshape']
    #allocation1 [shape = 'u8[4096]{0}', space=vmem, size = 0x1000, scoped, tag = 'scoped mem for input reshape']
    %s3 = ssub.s32 4, 1
    %v4 = vld [vmem:[%s0] sm:%s3]
    %5 = vst [vmem:[#allocation1] sm:%s3] %v4
    %v6 = vld [vmem:[#allocation1] sm:$0x1]
    %vm7 = vcmask 130048
    %8 = vst.msk [vmem:[#allocation0] sm:$0x1] %vm7, %v6
    %s9 = scalar_lea.vmem [#allocation1], 1
    %v10 = vld [vmem:[%s9] sm:$0x1]
    %11 = vrot.lane.b32.xlu0 %v10, 16
    %v12 = vpop.permute.xlu0 %11
    %vm13 = vcmask 261248
    %14 = vst.msk [vmem:[#allocation0] sm:$0x1] %vm13, %v12
    %s16 = ssub.s32 2, 1
    %v17 = vld [vmem:[#allocation0] sm:%s16]
    %s19 = ssub.s32 2, 1
    %20 = vst [vmem:[%s1] sm:%s19] %v17

// kernel: tile.393
$region0: #{tile.393}
  #allocation0 [shape = 's32[1]{0}', space=sflag, size = 0x4, scoped, tag = 'scoped memory for tile.393']
  %s0 = inlined_call_operand.vmem [shape: f32[4], index: 0, kind: input, shape index: {}]
  %s1 = inlined_call_operand.vmem [shape: f32[2,4], index: 1, kind: output, shape index: {}]
  // Predicated region
  $region2: #{tile.393} parent=0 // pred_check
    _
  $region3: #{tile.393} parent=0 // pred_check_branch
    %3 = sbr.rel (0) target = $region5
  $region4: #{tile.393} parent=0 // pred_region
    _
  $region5: #{tile.393} parent=0 // pred_fallthru
    _
  %v4 = vld [vmem:[%s0] ss:$0 sm:$0xff]
  %5 = vst [vmem:[%s1] sm:$0x3] %v4

// kernel: tile.394
$region0: #{tile.394}
  %s0 = inlined_call_operand.vmem [shape: f32[2,4], index: 0, kind: input, shape index: {}]
  %s1 = inlined_call_operand.vmem [shape: f32[1,8], index: 1, kind: output, shape index: {}]
  $region1: #{tile.394} parent=0
    #allocation0 [shape = 'u8[4096]{0}', space=vmem, size = 0x1000, scoped, tag = 'scoped mem for output reshape']
    #allocation1 [shape = 'u8[4096]{0}', space=vmem, size = 0x1000, scoped, tag = 'scoped mem for input reshape']
    %s3 = ssub.s32 4, 1
    %v4 = vld [vmem:[%s0] sm:%s3]
    %5 = vst [vmem:[#allocation1] sm:%s3] %v4
    %v6 = vld [vmem:[#allocation1] sm:$0x1]
    %vm7 = vcmask 31744
    %8 = vst.msk [vmem:[#allocation0] sm:$0x1] %vm7, %v6
    %s9 = scalar_lea.vmem [#allocation1], 1
    %v10 = vld [vmem:[%s9] sm:$0x1]
    %11 = vrot.lane.b32.xlu0 %v10, 4
    %v12 = vpop.permute.xlu0 %11
    %vm13 = vcmask 64544
    %14 = vst.msk [vmem:[#allocation0] sm:$0x1] %vm13, %v12
    %s16 = ssub.s32 2, 1
    %v17 = vld [vmem:[#allocation0] sm:%s16]
    %s19 = ssub.s32 2, 1
    %20 = vst [vmem:[%s1] sm:%s19] %v17

// kernel: attention_module_stage1.12
$region0: #{attention_module_stage1.12}
  #allocation0 [shape = 'u32[]', space=smem, size = 0x4, offset = 0x4, fixed_abs, tag = 'smem constant byte address 0x4 - core index']
  #allocation1 [shape = 'u32[72,128]{1,0:T(1,128)}', space=vmem, size = 0x9000, scoped, tag = 'internal scratch']
  %s0 = inlined_call_operand.vmem [shape: bf16[2,4,64], index: 0, kind: input, shape index: {}]
  %s1 = inlined_call_operand.vmem [shape: f32[1,64], index: 1, kind: input, shape index: {}]
  %s2 = inlined_call_operand.vmem [shape: f32[1,64], index: 2, kind: input, shape index: {}]
  %s3 = inlined_call_operand.vmem [shape: bf16[64,16], index: 3, kind: input, shape index: {}]
  %s4 = inlined_call_operand.vmem [shape: f32[1,16], index: 4, kind: input, shape index: {}]
  %s5 = inlined_call_operand.vmem [shape: f32[1,16], index: 5, kind: input, shape index: {}]
  %s6 = inlined_call_operand.vmem [shape: bf16[4,4], index: 6, kind: input, shape index: {}]
  %s7 = inlined_call_operand.vmem [shape: bf16[4,4], index: 7, kind: input, shape index: {}]
  %s8 = inlined_call_operand.vmem [shape: bf16[16,16], index: 8, kind: input, shape index: {}]
  %s9 = inlined_call_operand.vmem [shape: bf16[16,16], index: 9, kind: input, shape index: {}]
  %s10 = inlined_call_operand.vmem [shape: bf16[16,16], index: 10, kind: input, shape index: {}]
  %s11 = inlined_call_operand.vmem [shape: f32[1,16], index: 11, kind: input, shape index: {}]
  %s12 = inlined_call_operand.vmem [shape: f32[1,16], index: 12, kind: input, shape index: {}]
  %s13 = inlined_call_operand.vmem [shape: bf16[16,64], index: 13, kind: input, shape index: {}]
  %s14 = inlined_call_operand.vmem [shape: bf16[2,4,64], index: 14, kind: output, shape index: {}]
  %s15 = sld [smem:[#allocation0]]
  $region89: #{attention_module_stage1.12} parent=0
    _
  %s17 = ssub.s32 1, %s15
  %s18 = scalar_select 0, %s17, %s15
  loop: start=0, step=1, limit=4
  $region2: #{attention_module_stage1.12} parent=0 // loop_pre_header
    _
  $region3: #{attention_module_stage1.12} parent=0 // loop_header
    %s20 = sphi 0, %s24
    %p21 = scmp.ge.s32.totalorder %s20, 4
    %s30 = sphi 0, %s32
    %s33 = sphi 0, %s30
    %s34 = sphi 0, %s33
    %s50 = sphi 0, %s34
    %s54 = sphi 0, %s54
    %s56 = sphi 0, %s54
    %s57 = sphi 0, %s56
    %s71 = sphi 0, %s57
    %s75 = sphi 0, %s75
    %s77 = sphi 0, %s75
    %s78 = sphi 0, %s77
    %s92 = sphi 0, %s78
    %s96 = sphi 0, %s96
    %s98 = sphi 0, %s96
    %s99 = sphi 0, %s98
    %s113 = sphi 0, %s99
    %s117 = sphi 0, %s117
    %s119 = sphi 0, %s117
    %s120 = sphi 0, %s119
    %s134 = sphi 0, %s120
    %s138 = sphi 0, %s138
    %s140 = sphi 0, %s138
    %s141 = sphi 0, %s140
    %s155 = sphi 0, %s141
    %s159 = sphi 0, %s159
    %s161 = sphi 0, %s159
    %s162 = sphi 0, %s161
    %s176 = sphi 0, %s162
    %s180 = sphi 0, %s180
    %s182 = sphi 0, %s180
    %s183 = sphi 0, %s182
    %s197 = sphi 0, %s183
    %s201 = sphi 0, %s201
    %s203 = sphi 0, %s201
    %s204 = sphi 0, %s203
    %s218 = sphi 0, %s204
    %s222 = sphi 0, %s222
    %s224 = sphi 0, %s222
    %s225 = sphi 0, %s224
    %s239 = sphi 0, %s225
    %s243 = sphi 0, %s243
    %s245 = sphi 0, %s243
    %s246 = sphi 0, %s245
    %s260 = sphi 0, %s246
    %s264 = sphi 0, %s264
    %s266 = sphi 0, %s264
    %s267 = sphi 0, %s266
    %s281 = sphi 0, %s267
    %s285 = sphi 0, %s285
    %s287 = sphi 0, %s285
    %s288 = sphi 0, %s287
    %s302 = sphi 0, %s288
    %s306 = sphi 0, %s306
    %s308 = sphi 0, %s306
    %s309 = sphi 0, %s308
    %s323 = sphi 0, %s309
    %s329 = sphi 0, %s331
    %s332 = sphi 0, %s329
    %s333 = sphi 0, %s332
    %s349 = sphi 0, %s333
  $region4: #{attention_module_stage1.12} parent=0 // loop_header_branch
    %23 = sbr.rel (%p21) target = $region8
  $region5: #{attention_module_stage1.12} parent=0 // loop_body
    %s25 = ssub.s32 %s20, 1
    %s26 = ssub.s32 %s20, 2
    %s27 = sadd.s32 %s20, 1
    %s28 = ssub.s32 %s20, %s27
    %p29 = scmp.eq.s32.totalorder %s28, 0
    %s31 = sadd.s32 %s30, 1
    %s32 = scalar_select %p29, %s30, %s31
    %p35 = pneg %p29
    %p36 = scmp.eq.s32.totalorder %s20, 1
    %p37 = por %p35, %p36
    %p38 = scmp.ne.s32.totalorder %s30, %s33
    %p39 = scmp.eq.s32.totalorder %s20, 0
    %p40 = por %p38, %p39
    %p41 = scmp.ne.s32.totalorder %s30, %s33
    %p42 = scmp.eq.s32.totalorder %s25, 1
    %p43 = por %p41, %p42
    %p44 = scmp.ne.s32.totalorder %s33, %s34
    %p45 = scmp.eq.s32.totalorder %s25, 0
    %p46 = por %p44, %p45
    %p47 = scmp.ne.s32.totalorder %s33, %s34
    %p48 = scmp.eq.s32.totalorder %s26, 1
    %p49 = por %p47, %p48
    %p51 = scmp.ne.s32.totalorder %s34, %s50
    %p52 = scmp.eq.s32.totalorder %s26, 0
    %p53 = por %p51, %p52
    %s55 = sadd.s32 %s54, 1
    %p58 = scmp.eq.s32.totalorder %s20, 1
    %p59 = scmp.ne.s32.totalorder %s54, %s56
    %p60 = scmp.eq.s32.totalorder %s20, 0
    %p61 = por %p59, %p60
    %p62 = scmp.ne.s32.totalorder %s54, %s56
    %p63 = scmp.eq.s32.totalorder %s25, 1
    %p64 = por %p62, %p63
    %p65 = scmp.ne.s32.totalorder %s56, %s57
    %p66 = scmp.eq.s32.totalorder %s25, 0
    %p67 = por %p65, %p66
    %p68 = scmp.ne.s32.totalorder %s56, %s57
    %p69 = scmp.eq.s32.totalorder %s26, 1
    %p70 = por %p68, %p69
    %p72 = scmp.ne.s32.totalorder %s57, %s71
    %p73 = scmp.eq.s32.totalorder %s26, 0
    %p74 = por %p72, %p73
    %s76 = sadd.s32 %s75, 1
    %p79 = scmp.eq.s32.totalorder %s20, 1
    %p80 = scmp.ne.s32.totalorder %s75, %s77
    %p81 = scmp.eq.s32.totalorder %s20, 0
    %p82 = por %p80, %p81
    %p83 = scmp.ne.s32.totalorder %s75, %s77
    %p84 = scmp.eq.s32.totalorder %s25, 1
    %p85 = por %p83, %p84
    %p86 = scmp.ne.s32.totalorder %s77, %s78
    %p87 = scmp.eq.s32.totalorder %s25, 0
    %p88 = por %p86, %p87
    %p89 = scmp.ne.s32.totalorder %s77, %s78
    %p90 = scmp.eq.s32.totalorder %s26, 1
    %p91 = por %p89, %p90
    %p93 = scmp.ne.s32.totalorder %s78, %s92
    %p94 = scmp.eq.s32.totalorder %s26, 0
    %p95 = por %p93, %p94
    %s97 = sadd.s32 %s96, 1
    %p100 = scmp.eq.s32.totalorder %s20, 1
    %p101 = scmp.ne.s32.totalorder %s96, %s98
    %p102 = scmp.eq.s32.totalorder %s20, 0
    %p103 = por %p101, %p102
    %p104 = scmp.ne.s32.totalorder %s96, %s98
    %p105 = scmp.eq.s32.totalorder %s25, 1
    %p106 = por %p104, %p105
    %p107 = scmp.ne.s32.totalorder %s98, %s99
    %p108 = scmp.eq.s32.totalorder %s25, 0
    %p109 = por %p107, %p108
    %p110 = scmp.ne.s32.totalorder %s98, %s99
    %p111 = scmp.eq.s32.totalorder %s26, 1
    %p112 = por %p110, %p111
    %p114 = scmp.ne.s32.totalorder %s99, %s113
    %p115 = scmp.eq.s32.totalorder %s26, 0
    %p116 = por %p114, %p115
    %s118 = sadd.s32 %s117, 1
    %p121 = scmp.eq.s32.totalorder %s20, 1
    %p122 = scmp.ne.s32.totalorder %s117, %s119
    %p123 = scmp.eq.s32.totalorder %s20, 0
    %p124 = por %p122, %p123
    %p125 = scmp.ne.s32.totalorder %s117, %s119
    %p126 = scmp.eq.s32.totalorder %s25, 1
    %p127 = por %p125, %p126
    %p128 = scmp.ne.s32.totalorder %s119, %s120
    %p129 = scmp.eq.s32.totalorder %s25, 0
    %p130 = por %p128, %p129
    %p131 = scmp.ne.s32.totalorder %s119, %s120
    %p132 = scmp.eq.s32.totalorder %s26, 1
    %p133 = por %p131, %p132
    %p135 = scmp.ne.s32.totalorder %s120, %s134
    %p136 = scmp.eq.s32.totalorder %s26, 0
    %p137 = por %p135, %p136
    %s139 = sadd.s32 %s138, 1
    %p142 = scmp.eq.s32.totalorder %s20, 1
    %p143 = scmp.ne.s32.totalorder %s138, %s140
    %p144 = scmp.eq.s32.totalorder %s20, 0
    %p145 = por %p143, %p144
    %p146 = scmp.ne.s32.totalorder %s138, %s140
    %p147 = scmp.eq.s32.totalorder %s25, 1
    %p148 = por %p146, %p147
    %p149 = scmp.ne.s32.totalorder %s140, %s141
    %p150 = scmp.eq.s32.totalorder %s25, 0
    %p151 = por %p149, %p150
    %p152 = scmp.ne.s32.totalorder %s140, %s141
    %p153 = scmp.eq.s32.totalorder %s26, 1
    %p154 = por %p152, %p153
    %p156 = scmp.ne.s32.totalorder %s141, %s155
    %p157 = scmp.eq.s32.totalorder %s26, 0
    %p158 = por %p156, %p157
    %s160 = sadd.s32 %s159, 1
    %p163 = scmp.eq.s32.totalorder %s20, 1
    %p164 = scmp.ne.s32.totalorder %s159, %s161
    %p165 = scmp.eq.s32.totalorder %s20, 0
    %p166 = por %p164, %p165
    %p167 = scmp.ne.s32.totalorder %s159, %s161
    %p168 = scmp.eq.s32.totalorder %s25, 1
    %p169 = por %p167, %p168
    %p170 = scmp.ne.s32.totalorder %s161, %s162
    %p171 = scmp.eq.s32.totalorder %s25, 0
    %p172 = por %p170, %p171
    %p173 = scmp.ne.s32.totalorder %s161, %s162
    %p174 = scmp.eq.s32.totalorder %s26, 1
    %p175 = por %p173, %p174
    %p177 = scmp.ne.s32.totalorder %s162, %s176
    %p178 = scmp.eq.s32.totalorder %s26, 0
    %p179 = por %p177, %p178
    %s181 = sadd.s32 %s180, 1
    %p184 = scmp.eq.s32.totalorder %s20, 1
    %p185 = scmp.ne.s32.totalorder %s180, %s182
    %p186 = scmp.eq.s32.totalorder %s20, 0
    %p187 = por %p185, %p186
    %p188 = scmp.ne.s32.totalorder %s180, %s182
    %p189 = scmp.eq.s32.totalorder %s25, 1
    %p190 = por %p188, %p189
    %p191 = scmp.ne.s32.totalorder %s182, %s183
    %p192 = scmp.eq.s32.totalorder %s25, 0
    %p193 = por %p191, %p192
    %p194 = scmp.ne.s32.totalorder %s182, %s183
    %p195 = scmp.eq.s32.totalorder %s26, 1
    %p196 = por %p194, %p195
    %p198 = scmp.ne.s32.totalorder %s183, %s197
    %p199 = scmp.eq.s32.totalorder %s26, 0
    %p200 = por %p198, %p199
    %s202 = sadd.s32 %s201, 1
    %p205 = scmp.eq.s32.totalorder %s20, 1
    %p206 = scmp.ne.s32.totalorder %s201, %s203
    %p207 = scmp.eq.s32.totalorder %s20, 0
    %p208 = por %p206, %p207
    %p209 = scmp.ne.s32.totalorder %s201, %s203
    %p210 = scmp.eq.s32.totalorder %s25, 1
    %p211 = por %p209, %p210
    %p212 = scmp.ne.s32.totalorder %s203, %s204
    %p213 = scmp.eq.s32.totalorder %s25, 0
    %p214 = por %p212, %p213
    %p215 = scmp.ne.s32.totalorder %s203, %s204
    %p216 = scmp.eq.s32.totalorder %s26, 1
    %p217 = por %p215, %p216
    %p219 = scmp.ne.s32.totalorder %s204, %s218
    %p220 = scmp.eq.s32.totalorder %s26, 0
    %p221 = por %p219, %p220
    %s223 = sadd.s32 %s222, 1
    %p226 = scmp.eq.s32.totalorder %s20, 1
    %p227 = scmp.ne.s32.totalorder %s222, %s224
    %p228 = scmp.eq.s32.totalorder %s20, 0
    %p229 = por %p227, %p228
    %p230 = scmp.ne.s32.totalorder %s222, %s224
    %p231 = scmp.eq.s32.totalorder %s25, 1
    %p232 = por %p230, %p231
    %p233 = scmp.ne.s32.totalorder %s224, %s225
    %p234 = scmp.eq.s32.totalorder %s25, 0
    %p235 = por %p233, %p234
    %p236 = scmp.ne.s32.totalorder %s224, %s225
    %p237 = scmp.eq.s32.totalorder %s26, 1
    %p238 = por %p236, %p237
    %p240 = scmp.ne.s32.totalorder %s225, %s239
    %p241 = scmp.eq.s32.totalorder %s26, 0
    %p242 = por %p240, %p241
    %s244 = sadd.s32 %s243, 1
    %p247 = scmp.eq.s32.totalorder %s20, 1
    %p248 = scmp.ne.s32.totalorder %s243, %s245
    %p249 = scmp.eq.s32.totalorder %s20, 0
    %p250 = por %p248, %p249
    %p251 = scmp.ne.s32.totalorder %s243, %s245
    %p252 = scmp.eq.s32.totalorder %s25, 1
    %p253 = por %p251, %p252
    %p254 = scmp.ne.s32.totalorder %s245, %s246
    %p255 = scmp.eq.s32.totalorder %s25, 0
    %p256 = por %p254, %p255
    %p257 = scmp.ne.s32.totalorder %s245, %s246
    %p258 = scmp.eq.s32.totalorder %s26, 1
    %p259 = por %p257, %p258
    %p261 = scmp.ne.s32.totalorder %s246, %s260
    %p262 = scmp.eq.s32.totalorder %s26, 0
    %p263 = por %p261, %p262
    %s265 = sadd.s32 %s264, 1
    %p268 = scmp.eq.s32.totalorder %s20, 1
    %p269 = scmp.ne.s32.totalorder %s264, %s266
    %p270 = scmp.eq.s32.totalorder %s20, 0
    %p271 = por %p269, %p270
    %p272 = scmp.ne.s32.totalorder %s264, %s266
    %p273 = scmp.eq.s32.totalorder %s25, 1
    %p274 = por %p272, %p273
    %p275 = scmp.ne.s32.totalorder %s266, %s267
    %p276 = scmp.eq.s32.totalorder %s25, 0
    %p277 = por %p275, %p276
    %p278 = scmp.ne.s32.totalorder %s266, %s267
    %p279 = scmp.eq.s32.totalorder %s26, 1
    %p280 = por %p278, %p279
    %p282 = scmp.ne.s32.totalorder %s267, %s281
    %p283 = scmp.eq.s32.totalorder %s26, 0
    %p284 = por %p282, %p283
    %s286 = sadd.s32 %s285, 1
    %p289 = scmp.eq.s32.totalorder %s20, 1
    %p290 = scmp.ne.s32.totalorder %s285, %s287
    %p291 = scmp.eq.s32.totalorder %s20, 0
    %p292 = por %p290, %p291
    %p293 = scmp.ne.s32.totalorder %s285, %s287
    %p294 = scmp.eq.s32.totalorder %s25, 1
    %p295 = por %p293, %p294
    %p296 = scmp.ne.s32.totalorder %s287, %s288
    %p297 = scmp.eq.s32.totalorder %s25, 0
    %p298 = por %p296, %p297
    %p299 = scmp.ne.s32.totalorder %s287, %s288
    %p300 = scmp.eq.s32.totalorder %s26, 1
    %p301 = por %p299, %p300
    %p303 = scmp.ne.s32.totalorder %s288, %s302
    %p304 = scmp.eq.s32.totalorder %s26, 0
    %p305 = por %p303, %p304
    %s307 = sadd.s32 %s306, 1
    %p310 = scmp.eq.s32.totalorder %s20, 1
    %p311 = scmp.ne.s32.totalorder %s306, %s308
    %p312 = scmp.eq.s32.totalorder %s20, 0
    %p313 = por %p311, %p312
    %p314 = scmp.ne.s32.totalorder %s306, %s308
    %p315 = scmp.eq.s32.totalorder %s25, 1
    %p316 = por %p314, %p315
    %p317 = scmp.ne.s32.totalorder %s308, %s309
    %p318 = scmp.eq.s32.totalorder %s25, 0
    %p319 = por %p317, %p318
    %p320 = scmp.ne.s32.totalorder %s308, %s309
    %p321 = scmp.eq.s32.totalorder %s26, 1
    %p322 = por %p320, %p321
    %p324 = scmp.ne.s32.totalorder %s309, %s323
    %p325 = scmp.eq.s32.totalorder %s26, 0
    %p326 = por %p324, %p325
    %s327 = ssub.s32 %s20, %s27
    %p328 = scmp.eq.s32.totalorder %s327, 0
    %s330 = sadd.s32 %s329, 1
    %s331 = scalar_select %p328, %s329, %s330
    %p334 = pneg %p328
    %p335 = scmp.eq.s32.totalorder %s20, 1
    %p336 = por %p334, %p335
    %p337 = scmp.ne.s32.totalorder %s329, %s332
    %p338 = scmp.eq.s32.totalorder %s20, 0
    %p339 = por %p337, %p338
    %p340 = scmp.ne.s32.totalorder %s329, %s332
    %p341 = scmp.eq.s32.totalorder %s25, 1
    %p342 = por %p340, %p341
    %p343 = scmp.ne.s32.totalorder %s332, %s333
    %p344 = scmp.eq.s32.totalorder %s25, 0
    %p345 = por %p343, %p344
    %p346 = scmp.ne.s32.totalorder %s332, %s333
    %p347 = scmp.eq.s32.totalorder %s26, 1
    %p348 = por %p346, %p347
    %p350 = scmp.ne.s32.totalorder %s333, %s349
    %p351 = scmp.eq.s32.totalorder %s26, 0
    %p352 = por %p350, %p351
    %p353 = scmp.le.s32.totalorder 1, %s20
    %p354 = scmp.lt.s32.totalorder %s20, 3
    %p355 = pnand %p353, %p354
    %p356 = pneg %p355
    // Predicated region
    $region9: #{attention_module_stage1.12} parent=5 // pred_check
      _
    $region10: #{attention_module_stage1.12} parent=5 // pred_check_branch
      %358 = sbr.rel (%p355) target = $region12
    $region11: #{attention_module_stage1.12} parent=5 // pred_region
      %s359 = ssub.s32 %s20, 1
      // Predicated region
      $region13: #{attention_module_stage1.12} parent=11 // pred_check
        %p360 = pneg %p67
      $region14: #{attention_module_stage1.12} parent=11 // pred_check_branch
        %362 = sbr.rel (%p360) target = $region16
      $region15: #{attention_module_stage1.12} parent=11 // pred_region
        _
      $region16: #{attention_module_stage1.12} parent=11 // pred_fallthru
        _
      // Predicated region
      $region17: #{attention_module_stage1.12} parent=11 // pred_check
        %p363 = pneg %p88
      $region18: #{attention_module_stage1.12} parent=11 // pred_check_branch
        %365 = sbr.rel (%p363) target = $region20
      $region19: #{attention_module_stage1.12} parent=11 // pred_region
        _
      $region20: #{attention_module_stage1.12} parent=11 // pred_fallthru
        _
      // Predicated region
      $region21: #{attention_module_stage1.12} parent=11 // pred_check
        %p366 = pneg %p109
      $region22: #{attention_module_stage1.12} parent=11 // pred_check_branch
        %368 = sbr.rel (%p366) target = $region24
      $region23: #{attention_module_stage1.12} parent=11 // pred_region
        _
      $region24: #{attention_module_stage1.12} parent=11 // pred_fallthru
        _
      // Predicated region
      $region25: #{attention_module_stage1.12} parent=11 // pred_check
        %p369 = pneg %p130
      $region26: #{attention_module_stage1.12} parent=11 // pred_check_branch
        %371 = sbr.rel (%p369) target = $region28
      $region27: #{attention_module_stage1.12} parent=11 // pred_region
        _
      $region28: #{attention_module_stage1.12} parent=11 // pred_fallthru
        _
      // Predicated region
      $region29: #{attention_module_stage1.12} parent=11 // pred_check
        %p372 = pneg %p151
      $region30: #{attention_module_stage1.12} parent=11 // pred_check_branch
        %374 = sbr.rel (%p372) target = $region32
      $region31: #{attention_module_stage1.12} parent=11 // pred_region
        _
      $region32: #{attention_module_stage1.12} parent=11 // pred_fallthru
        _
      // Predicated region
      $region33: #{attention_module_stage1.12} parent=11 // pred_check
        %p375 = pneg %p172
      $region34: #{attention_module_stage1.12} parent=11 // pred_check_branch
        %377 = sbr.rel (%p375) target = $region36
      $region35: #{attention_module_stage1.12} parent=11 // pred_region
        _
      $region36: #{attention_module_stage1.12} parent=11 // pred_fallthru
        _
      // Predicated region
      $region37: #{attention_module_stage1.12} parent=11 // pred_check
        %p378 = pneg %p193
      $region38: #{attention_module_stage1.12} parent=11 // pred_check_branch
        %380 = sbr.rel (%p378) target = $region40
      $region39: #{attention_module_stage1.12} parent=11 // pred_region
        _
      $region40: #{attention_module_stage1.12} parent=11 // pred_fallthru
        _
      // Predicated region
      $region41: #{attention_module_stage1.12} parent=11 // pred_check
        %p381 = pneg %p214
      $region42: #{attention_module_stage1.12} parent=11 // pred_check_branch
        %383 = sbr.rel (%p381) target = $region44
      $region43: #{attention_module_stage1.12} parent=11 // pred_region
        _
      $region44: #{attention_module_stage1.12} parent=11 // pred_fallthru
        _
      // Predicated region
      $region45: #{attention_module_stage1.12} parent=11 // pred_check
        %p384 = pneg %p235
      $region46: #{attention_module_stage1.12} parent=11 // pred_check_branch
        %386 = sbr.rel (%p384) target = $region48
      $region47: #{attention_module_stage1.12} parent=11 // pred_region
        _
      $region48: #{attention_module_stage1.12} parent=11 // pred_fallthru
        _
      // Predicated region
      $region49: #{attention_module_stage1.12} parent=11 // pred_check
        %p387 = pneg %p256
      $region50: #{attention_module_stage1.12} parent=11 // pred_check_branch
        %389 = sbr.rel (%p387) target = $region52
      $region51: #{attention_module_stage1.12} parent=11 // pred_region
        _
      $region52: #{attention_module_stage1.12} parent=11 // pred_fallthru
        _
      // Predicated region
      $region53: #{attention_module_stage1.12} parent=11 // pred_check
        %p390 = pneg %p277
      $region54: #{attention_module_stage1.12} parent=11 // pred_check_branch
        %392 = sbr.rel (%p390) target = $region56
      $region55: #{attention_module_stage1.12} parent=11 // pred_region
        _
      $region56: #{attention_module_stage1.12} parent=11 // pred_fallthru
        _
      // Predicated region
      $region57: #{attention_module_stage1.12} parent=11 // pred_check
        %p393 = pneg %p298
      $region58: #{attention_module_stage1.12} parent=11 // pred_check_branch
        %395 = sbr.rel (%p393) target = $region60
      $region59: #{attention_module_stage1.12} parent=11 // pred_region
        _
      $region60: #{attention_module_stage1.12} parent=11 // pred_fallthru
        _
      // Predicated region
      $region61: #{attention_module_stage1.12} parent=11 // pred_check
        %p396 = pneg %p319
      $region62: #{attention_module_stage1.12} parent=11 // pred_check_branch
        %398 = sbr.rel (%p396) target = $region64
      $region63: #{attention_module_stage1.12} parent=11 // pred_region
        _
      $region64: #{attention_module_stage1.12} parent=11 // pred_fallthru
        _
    $region12: #{attention_module_stage1.12} parent=5 // pred_fallthru
      _
    %p399 = scmp.lt.s32.totalorder %s20, 2
    // Predicated region
    $region65: #{attention_module_stage1.12} parent=5 // pred_check
      %p400 = pneg %p399
    $region66: #{attention_module_stage1.12} parent=5 // pred_check_branch
      %402 = sbr.rel (%p400) target = $region68
    $region67: #{attention_module_stage1.12} parent=5 // pred_region
      // Predicated region
      $region69: #{attention_module_stage1.12} parent=67 // pred_check
        %p403 = pneg %p40
      $region70: #{attention_module_stage1.12} parent=67 // pred_check_branch
        %405 = sbr.rel (%p403) target = $region72
      $region71: #{attention_module_stage1.12} parent=67 // pred_region
        %p406 = scmp.lt.s32.totalorder %s20, 1
        %s407 = scalar_select %p406, %s20, 1
        %s408 = smul.addr %s407, 2
        %s409 = scalar_lea.vmem %s0, %s408
      $region72: #{attention_module_stage1.12} parent=67 // pred_fallthru
        _
    $region68: #{attention_module_stage1.12} parent=5 // pred_fallthru
      _
    %p410 = scmp.le.s32.totalorder 1, %s20
    %p411 = scmp.lt.s32.totalorder %s20, 3
    %p412 = pnand %p410, %p411
    %p413 = pneg %p412
    // Predicated region
    $region73: #{attention_module_stage1.12} parent=5 // pred_check
      _
    $region74: #{attention_module_stage1.12} parent=5 // pred_check_branch
      %415 = sbr.rel (%p412) target = $region76
    $region75: #{attention_module_stage1.12} parent=5 // pred_region
      %s416 = ssub.s32 %s20, 1
      %p417 = scmp.lt.s32.totalorder %s25, 1
      %s418 = scalar_select %p417, %s25, 1
      %s419 = smul.addr %s418, 2
      %s420 = scalar_lea.vmem %s0, %s419
      %p421 = pneg %p46
      %p422 = pneg %p43
      %p423 = pneg %p67
      %p424 = pneg %p64
      %p425 = pneg %p88
      %p426 = pneg %p85
      %p427 = pneg %p109
      %p428 = pneg %p106
      %p429 = pneg %p130
      %p430 = pneg %p127
      %p431 = pneg %p151
      %p432 = pneg %p148
      %p433 = pneg %p172
      %p434 = pneg %p169
      %p435 = pneg %p193
      %p436 = pneg %p190
      %p437 = pneg %p214
      %p438 = pneg %p211
      %p439 = pneg %p235
      %p440 = pneg %p232
      %p441 = pneg %p256
      %p442 = pneg %p253
      %p443 = pneg %p277
      %p444 = pneg %p274
      %p445 = pneg %p298
      %p446 = pneg %p295
      %p447 = pneg %p319
      %p448 = pneg %p316
      %p449 = pneg %p345
      %p450 = pneg %p342
      %p451 = scmp.lt.s32.totalorder %s25, 1
      %s452 = scalar_select %p451, %s25, 1
      %s453 = smul.addr %s452, 2
      %s454 = scalar_lea.vmem %s14, %s453
      %p455 = scmp.lt.s32.totalorder %s25, 1
      %s456 = scalar_select %p455, %s25, 1
      %s457 = smul.addr %s456, 2
      %s458 = scalar_lea.vmem %s0, %s457
      %p459 = scmp.lt.s32.totalorder %s25, 1
      %s460 = scalar_select %p459, %s25, 1
      %s461 = smul.addr %s460, 2
      %s462 = scalar_lea.vmem %s14, %s461
      %v464 = vld [vmem:[%s458] sm:$0x3]
      %v465 = vunpack.c.l.bf16 %v464
      %v466 = vld [vmem:[%s1] sm:$0x1]
      %v468 = vperm.slane %v466, 0
      %v470 = vmul.f32 %v465, %v468
      %v471 = vld [vmem:[%s2] sm:$0x1]
      %v473 = vperm.slane %v471, 0
      %v475 = vadd.f32 %v470, %v473
      %v476 = vmax.f32 %v475, 0.0
      %v477 = vpack.c.bf16 %v476, %v476
      %v478 = vld [vmem:[%s3] sm:$0xf]
      %v479 = vld [vmem:[%s3 + $0x4] sm:$0xf]
      %v480 = vld [vmem:[%s3 + $0x8] sm:$0xf]
      %v481 = vld [vmem:[%s3 + $0xc] sm:$0xf]
      %v482 = vld [vmem:[%s3 + $0x10] sm:$0xf]
      %v483 = vld [vmem:[%s3 + $0x14] sm:$0xf]
      %v484 = vld [vmem:[%s3 + $0x18] sm:$0xf]
      %v485 = vld [vmem:[%s3 + $0x1c] sm:$0xf]
      %v494 = vunpack.c.l.b16 %v478
      %v495 = vunpack.c.l.b16 %v479
      %v496 = vunpack.c.l.b16 %v480
      %v497 = vunpack.c.l.b16 %v481
      %v498 = vunpack.c.l.b16 %v482
      %v499 = vunpack.c.l.b16 %v483
      %v500 = vunpack.c.l.b16 %v484
      %v501 = vunpack.c.l.b16 %v485
      %v502 = vpack.c.b16 %v495, %v494
      %v503 = vpack.c.b16 %v497, %v496
      %v504 = vpack.c.b16 %v499, %v498
      %v505 = vpack.c.b16 %v501, %v500
      %vm510 = vcmask 523264
      %v512 = vsel %vm510, %v477, 0
      %514 = vmatpush.bf16.msra.mxu0 0
      %515 = vmatpush.bf16.msra.mxu0 0
      %516 = vmatpush.bf16.msra.mxu0 0
      %517 = vmatpush.bf16.msra.mxu0 0
      %518 = vmatpush.bf16.msra.mxu0 %v505
      %519 = vmatpush.bf16.msra.mxu0 %v504
      %520 = vmatpush.bf16.msra.mxu0 %v503
      %521 = vmatpush.bf16.msra.mxu0 %v502
      %522 = vmatmul.bf16.gmra.mxu0 %v512
      %v523 = vpop.f32.mrf.mxu0
      %v524 = vadd.f32 0.0, %v523
      %v525 = vpop.f32.mrf.mxu0
      %526 = vdwg.mxu0
      %v527 = vld [vmem:[%s4] sm:$0x1]
      %v529 = vperm.slane %v527, 0
      %v531 = vmul.f32 %v524, %v529
      %v532 = vld [vmem:[%s5] sm:$0x1]
      %v534 = vperm.slane %v532, 0
      %v536 = vadd.f32 %v531, %v534
      %v537 = vmax.f32 %v536, 0.0
      %v538 = vpack.c.bf16 %v537, %v537
      %v539 = vld [vmem:[%s6] sm:$0x3]
      %vm540 = vcmask 31744
      %v542 = vsel %vm540, %v539, 0
      %vm544 = vcmask 1041408
      %v546 = vsel %vm544, %v538, 0
      %548 = vmatpush.bf16.msra.mxu0 0
      %549 = vmatpush.bf16.msra.mxu0 0
      %550 = vmatpush.bf16.msra.mxu0 0
      %551 = vmatpush.bf16.msra.mxu0 0
      %552 = vmatpush.bf16.msra.mxu0 0
      %553 = vmatpush.bf16.msra.mxu0 0
      %554 = vmatpush.bf16.msra.mxu0 0
      %555 = vmatpush.bf16.msra.mxu0 %v546
      %556 = vmatmul.bf16.gmra.mxu0 %v542
      %v557 = vpop.f32.mrf.mxu0
      %v558 = vadd.f32 0.0, %v557
      %v559 = vpop.f32.mrf.mxu0
      %560 = vdwg.mxu0
      %v561 = vpack.c.bf16 %v558, %v558
      %v562 = vld [vmem:[%s7] sm:$0x3]
      %v564 = vsel %vm540, %v562, 0
      %566 = vmatpush.bf16.msra.mxu0 0
      %567 = vmatpush.bf16.msra.mxu0 0
      %568 = vmatpush.bf16.msra.mxu0 0
      %569 = vmatpush.bf16.msra.mxu0 0
      %570 = vmatpush.bf16.msra.mxu0 0
      %571 = vmatpush.bf16.msra.mxu0 0
      %572 = vmatpush.bf16.msra.mxu0 0
      %573 = vmatpush.bf16.msra.mxu0 %v546
      %574 = vmatmul.bf16.gmra.mxu0 %v564
      %v575 = vpop.f32.mrf.mxu0
      %v576 = vadd.f32 0.0, %v575
      %v577 = vpop.f32.mrf.mxu0
      %578 = vdwg.mxu0
      %v579 = vpack.c.bf16 %v576, %v576
      %v580 = vld [vmem:[%s8] sm:$0xf]
      %v581 = vld [vmem:[%s8 + $0x4] sm:$0xf]
      %v582 = vld [vmem:[%s9] sm:$0xf]
      %v583 = vld [vmem:[%s9 + $0x4] sm:$0xf]
      %v586 = vunpack.c.l.b16 %v582
      %v587 = vunpack.c.l.b16 %v583
      %v588 = vpack.c.b16 %v587, %v586
      %vm590 = vcmask 130048
      %v591 = vsel %vm590, %v538, 0
      %593 = vmatpush.bf16.msra.mxu0 0
      %594 = vmatpush.bf16.msra.mxu0 0
      %595 = vmatpush.bf16.msra.mxu0 0
      %596 = vmatpush.bf16.msra.mxu0 0
      %597 = vmatpush.bf16.msra.mxu0 0
      %598 = vmatpush.bf16.msra.mxu0 0
      %599 = vmatpush.bf16.msra.mxu0 0
      %600 = vmatpush.bf16.msra.mxu0 %v588
      %601 = vmatmul.bf16.gmra.mxu0 %v591
      %v602 = vpop.f32.mrf.mxu0
      %v603 = vadd.f32 0.0, %v602
      %v604 = vpop.f32.mrf.mxu0
      %605 = vdwg.mxu0
      %v608 = vunpack.c.l.b16 %v580
      %v609 = vunpack.c.l.b16 %v581
      %v610 = vpack.c.b16 %v609, %v608
      %v613 = vsel %vm590, %v561, 0
      %615 = vmatpush.bf16.msra.mxu0 0
      %616 = vmatpush.bf16.msra.mxu0 0
      %617 = vmatpush.bf16.msra.mxu0 0
      %618 = vmatpush.bf16.msra.mxu0 0
      %619 = vmatpush.bf16.msra.mxu0 0
      %620 = vmatpush.bf16.msra.mxu0 0
      %621 = vmatpush.bf16.msra.mxu0 0
      %622 = vmatpush.bf16.msra.mxu0 %v610
      %623 = vmatmul.bf16.gmra.mxu0 %v613
      %v624 = vpop.f32.mrf.mxu0
      %v625 = vadd.f32 %v603, %v624
      %v626 = vpop.f32.mrf.mxu0
      %627 = vdwg.mxu0
      %v628 = vld [vmem:[%s10] sm:$0xf]
      %v629 = vld [vmem:[%s10 + $0x4] sm:$0xf]
      %v632 = vunpack.c.l.b16 %v628
      %v633 = vunpack.c.l.b16 %v629
      %v634 = vpack.c.b16 %v633, %v632
      %v637 = vsel %vm590, %v579, 0
      %639 = vmatpush.bf16.msra.mxu0 0
      %640 = vmatpush.bf16.msra.mxu0 0
      %641 = vmatpush.bf16.msra.mxu0 0
      %642 = vmatpush.bf16.msra.mxu0 0
      %643 = vmatpush.bf16.msra.mxu0 0
      %644 = vmatpush.bf16.msra.mxu0 0
      %645 = vmatpush.bf16.msra.mxu0 0
      %646 = vmatpush.bf16.msra.mxu0 %v634
      %647 = vmatmul.bf16.gmra.mxu0 %v637
      %v648 = vpop.f32.mrf.mxu0
      %v649 = vadd.f32 0.0, %v648
      %v650 = vpop.f32.mrf.mxu0
      %651 = vdwg.mxu0
      %v652 = vadd.f32 %v625, %v649
      %v653 = vld [vmem:[%s11] sm:$0x1]
      %v655 = vperm.slane %v653, 0
      %v657 = vmul.f32 %v652, %v655
      %v658 = vld [vmem:[%s12] sm:$0x1]
      %v660 = vperm.slane %v658, 0
      %v662 = vadd.f32 %v657, %v660
      %v663 = vmax.f32 %v662, 0.0
      %v664 = vpack.c.bf16 %v663, %v663
      %v665 = vld [vmem:[%s13] sm:$0xf]
      %v666 = vld [vmem:[%s13 + $0x4] sm:$0xf]
      %v669 = vunpack.c.l.b16 %v665
      %v670 = vunpack.c.l.b16 %v666
      %v671 = vpack.c.b16 %v670, %v669
      %v674 = vsel %vm590, %v664, 0
      %676 = vmatpush.bf16.msra.mxu0 0
      %677 = vmatpush.bf16.msra.mxu0 0
      %678 = vmatpush.bf16.msra.mxu0 0
      %679 = vmatpush.bf16.msra.mxu0 0
      %680 = vmatpush.bf16.msra.mxu0 0
      %681 = vmatpush.bf16.msra.mxu0 0
      %682 = vmatpush.bf16.msra.mxu0 0
      %683 = vmatpush.bf16.msra.mxu0 %v671
      %684 = vmatmul.bf16.gmra.mxu0 %v674
      %v685 = vpop.f32.mrf.mxu0
      %v686 = vadd.f32 %v465, %v685
      %v687 = vpop.f32.mrf.mxu0
      %688 = vdwg.mxu0
      %v689 = vpack.c.bf16 %v686, %v686
      %vm690 = vcmask 517120
      %691 = vst.msk [vmem:[%s462] sm:$0x3] %vm690, %v689
      %p692 = scmp.lt.s32.totalorder %s25, 1
      %s693 = scalar_select %p692, %s25, 1
      %s694 = smul.addr %s693, 2
      %s695 = scalar_lea.vmem %s14, %s694
      // Predicated region
      $region77: #{attention_module_stage1.12} parent=75 // pred_check
        %p696 = pneg %p342
      $region78: #{attention_module_stage1.12} parent=75 // pred_check_branch
        %698 = sbr.rel (%p696) target = $region80
      $region79: #{attention_module_stage1.12} parent=75 // pred_region
        _
      $region80: #{attention_module_stage1.12} parent=75 // pred_fallthru
        _
    $region76: #{attention_module_stage1.12} parent=5 // pred_fallthru
      _
    %p699 = scmp.le.s32.totalorder 2, %s20
    // Predicated region
    $region81: #{attention_module_stage1.12} parent=5 // pred_check
      %p700 = pneg %p699
    $region82: #{attention_module_stage1.12} parent=5 // pred_check_branch
      %702 = sbr.rel (%p700) target = $region84
    $region83: #{attention_module_stage1.12} parent=5 // pred_region
      %s703 = ssub.s32 %s20, 2
      // Predicated region
      $region85: #{attention_module_stage1.12} parent=83 // pred_check
        %p704 = pneg %p348
      $region86: #{attention_module_stage1.12} parent=83 // pred_check_branch
        %706 = sbr.rel (%p704) target = $region88
      $region87: #{attention_module_stage1.12} parent=83 // pred_region
        %p707 = scmp.lt.s32.totalorder %s26, 1
        %s708 = scalar_select %p707, %s26, 1
        %s709 = smul.addr %s708, 2
        %s710 = scalar_lea.vmem %s14, %s709
      $region88: #{attention_module_stage1.12} parent=83 // pred_fallthru
        _
    $region84: #{attention_module_stage1.12} parent=5 // pred_fallthru
      _
  $region6: #{attention_module_stage1.12} parent=0 // loop_footer
    %s24 = sadd.s32 1, %s20
  $region7: #{attention_module_stage1.12} parent=0 // loop_footer_branch
    %19 = sbr.rel target = $region3
  $region8: #{attention_module_stage1.12} parent=0 // loop_exit
    _

// kernel: attention_module_stage1.13
$region0: #{attention_module_stage1.13}
  #allocation0 [shape = 'u32[]', space=smem, size = 0x4, offset = 0x4, fixed_abs, tag = 'smem constant byte address 0x4 - core index']
  #allocation1 [shape = 'u32[72,128]{1,0:T(1,128)}', space=vmem, size = 0x9000, scoped, tag = 'internal scratch']
  %s0 = inlined_call_operand.vmem [shape: bf16[2,2,32], index: 0, kind: input, shape index: {}]
  %s1 = inlined_call_operand.vmem [shape: f32[1,32], index: 1, kind: input, shape index: {}]
  %s2 = inlined_call_operand.vmem [shape: f32[1,32], index: 2, kind: input, shape index: {}]
  %s3 = inlined_call_operand.vmem [shape: bf16[32,8], index: 3, kind: input, shape index: {}]
  %s4 = inlined_call_operand.vmem [shape: f32[1,8], index: 4, kind: input, shape index: {}]
  %s5 = inlined_call_operand.vmem [shape: f32[1,8], index: 5, kind: input, shape index: {}]
  %s6 = inlined_call_operand.vmem [shape: bf16[2,2], index: 6, kind: input, shape index: {}]
  %s7 = inlined_call_operand.vmem [shape: bf16[2,2], index: 7, kind: input, shape index: {}]
  %s8 = inlined_call_operand.vmem [shape: bf16[8,8], index: 8, kind: input, shape index: {}]
  %s9 = inlined_call_operand.vmem [shape: bf16[8,8], index: 9, kind: input, shape index: {}]
  %s10 = inlined_call_operand.vmem [shape: bf16[8,8], index: 10, kind: input, shape index: {}]
  %s11 = inlined_call_operand.vmem [shape: f32[1,8], index: 11, kind: input, shape index: {}]
  %s12 = inlined_call_operand.vmem [shape: f32[1,8], index: 12, kind: input, shape index: {}]
  %s13 = inlined_call_operand.vmem [shape: bf16[8,32], index: 13, kind: input, shape index: {}]
  %s14 = inlined_call_operand.vmem [shape: bf16[2,2,32], index: 14, kind: output, shape index: {}]
  %s15 = sld [smem:[#allocation0]]
  $region89: #{attention_module_stage1.13} parent=0
    _
  %s17 = ssub.s32 1, %s15
  %s18 = scalar_select 0, %s17, %s15
  loop: start=0, step=1, limit=4
  $region2: #{attention_module_stage1.13} parent=0 // loop_pre_header
    _
  $region3: #{attention_module_stage1.13} parent=0 // loop_header
    %s20 = sphi 0, %s24
    %p21 = scmp.ge.s32.totalorder %s20, 4
    %s30 = sphi 0, %s32
    %s33 = sphi 0, %s30
    %s34 = sphi 0, %s33
    %s50 = sphi 0, %s34
    %s54 = sphi 0, %s54
    %s56 = sphi 0, %s54
    %s57 = sphi 0, %s56
    %s71 = sphi 0, %s57
    %s75 = sphi 0, %s75
    %s77 = sphi 0, %s75
    %s78 = sphi 0, %s77
    %s92 = sphi 0, %s78
    %s96 = sphi 0, %s96
    %s98 = sphi 0, %s96
    %s99 = sphi 0, %s98
    %s113 = sphi 0, %s99
    %s117 = sphi 0, %s117
    %s119 = sphi 0, %s117
    %s120 = sphi 0, %s119
    %s134 = sphi 0, %s120
    %s138 = sphi 0, %s138
    %s140 = sphi 0, %s138
    %s141 = sphi 0, %s140
    %s155 = sphi 0, %s141
    %s159 = sphi 0, %s159
    %s161 = sphi 0, %s159
    %s162 = sphi 0, %s161
    %s176 = sphi 0, %s162
    %s180 = sphi 0, %s180
    %s182 = sphi 0, %s180
    %s183 = sphi 0, %s182
    %s197 = sphi 0, %s183
    %s201 = sphi 0, %s201
    %s203 = sphi 0, %s201
    %s204 = sphi 0, %s203
    %s218 = sphi 0, %s204
    %s222 = sphi 0, %s222
    %s224 = sphi 0, %s222
    %s225 = sphi 0, %s224
    %s239 = sphi 0, %s225
    %s243 = sphi 0, %s243
    %s245 = sphi 0, %s243
    %s246 = sphi 0, %s245
    %s260 = sphi 0, %s246
    %s264 = sphi 0, %s264
    %s266 = sphi 0, %s264
    %s267 = sphi 0, %s266
    %s281 = sphi 0, %s267
    %s285 = sphi 0, %s285
    %s287 = sphi 0, %s285
    %s288 = sphi 0, %s287
    %s302 = sphi 0, %s288
    %s306 = sphi 0, %s306
    %s308 = sphi 0, %s306
    %s309 = sphi 0, %s308
    %s323 = sphi 0, %s309
    %s329 = sphi 0, %s331
    %s332 = sphi 0, %s329
    %s333 = sphi 0, %s332
    %s349 = sphi 0, %s333
  $region4: #{attention_module_stage1.13} parent=0 // loop_header_branch
    %23 = sbr.rel (%p21) target = $region8
  $region5: #{attention_module_stage1.13} parent=0 // loop_body
    %s25 = ssub.s32 %s20, 1
    %s26 = ssub.s32 %s20, 2
    %s27 = sadd.s32 %s20, 1
    %s28 = ssub.s32 %s20, %s27
    %p29 = scmp.eq.s32.totalorder %s28, 0
    %s31 = sadd.s32 %s30, 1
    %s32 = scalar_select %p29, %s30, %s31
    %p35 = pneg %p29
    %p36 = scmp.eq.s32.totalorder %s20, 1
    %p37 = por %p35, %p36
    %p38 = scmp.ne.s32.totalorder %s30, %s33
    %p39 = scmp.eq.s32.totalorder %s20, 0
    %p40 = por %p38, %p39
    %p41 = scmp.ne.s32.totalorder %s30, %s33
    %p42 = scmp.eq.s32.totalorder %s25, 1
    %p43 = por %p41, %p42
    %p44 = scmp.ne.s32.totalorder %s33, %s34
    %p45 = scmp.eq.s32.totalorder %s25, 0
    %p46 = por %p44, %p45
    %p47 = scmp.ne.s32.totalorder %s33, %s34
    %p48 = scmp.eq.s32.totalorder %s26, 1
    %p49 = por %p47, %p48
    %p51 = scmp.ne.s32.totalorder %s34, %s50
    %p52 = scmp.eq.s32.totalorder %s26, 0
    %p53 = por %p51, %p52
    %s55 = sadd.s32 %s54, 1
    %p58 = scmp.eq.s32.totalorder %s20, 1
    %p59 = scmp.ne.s32.totalorder %s54, %s56
    %p60 = scmp.eq.s32.totalorder %s20, 0
    %p61 = por %p59, %p60
    %p62 = scmp.ne.s32.totalorder %s54, %s56
    %p63 = scmp.eq.s32.totalorder %s25, 1
    %p64 = por %p62, %p63
    %p65 = scmp.ne.s32.totalorder %s56, %s57
    %p66 = scmp.eq.s32.totalorder %s25, 0
    %p67 = por %p65, %p66
    %p68 = scmp.ne.s32.totalorder %s56, %s57
    %p69 = scmp.eq.s32.totalorder %s26, 1
    %p70 = por %p68, %p69
    %p72 = scmp.ne.s32.totalorder %s57, %s71
    %p73 = scmp.eq.s32.totalorder %s26, 0
    %p74 = por %p72, %p73
    %s76 = sadd.s32 %s75, 1
    %p79 = scmp.eq.s32.totalorder %s20, 1
    %p80 = scmp.ne.s32.totalorder %s75, %s77
    %p81 = scmp.eq.s32.totalorder %s20, 0
    %p82 = por %p80, %p81
    %p83 = scmp.ne.s32.totalorder %s75, %s77
    %p84 = scmp.eq.s32.totalorder %s25, 1
    %p85 = por %p83, %p84
    %p86 = scmp.ne.s32.totalorder %s77, %s78
    %p87 = scmp.eq.s32.totalorder %s25, 0
    %p88 = por %p86, %p87
    %p89 = scmp.ne.s32.totalorder %s77, %s78
    %p90 = scmp.eq.s32.totalorder %s26, 1
    %p91 = por %p89, %p90
    %p93 = scmp.ne.s32.totalorder %s78, %s92
    %p94 = scmp.eq.s32.totalorder %s26, 0
    %p95 = por %p93, %p94
    %s97 = sadd.s32 %s96, 1
    %p100 = scmp.eq.s32.totalorder %s20, 1
    %p101 = scmp.ne.s32.totalorder %s96, %s98
    %p102 = scmp.eq.s32.totalorder %s20, 0
    %p103 = por %p101, %p102
    %p104 = scmp.ne.s32.totalorder %s96, %s98
    %p105 = scmp.eq.s32.totalorder %s25, 1
    %p106 = por %p104, %p105
    %p107 = scmp.ne.s32.totalorder %s98, %s99
    %p108 = scmp.eq.s32.totalorder %s25, 0
    %p109 = por %p107, %p108
    %p110 = scmp.ne.s32.totalorder %s98, %s99
    %p111 = scmp.eq.s32.totalorder %s26, 1
    %p112 = por %p110, %p111
    %p114 = scmp.ne.s32.totalorder %s99, %s113
    %p115 = scmp.eq.s32.totalorder %s26, 0
    %p116 = por %p114, %p115
    %s118 = sadd.s32 %s117, 1
    %p121 = scmp.eq.s32.totalorder %s20, 1
    %p122 = scmp.ne.s32.totalorder %s117, %s119
    %p123 = scmp.eq.s32.totalorder %s20, 0
    %p124 = por %p122, %p123
    %p125 = scmp.ne.s32.totalorder %s117, %s119
    %p126 = scmp.eq.s32.totalorder %s25, 1
    %p127 = por %p125, %p126
    %p128 = scmp.ne.s32.totalorder %s119, %s120
    %p129 = scmp.eq.s32.totalorder %s25, 0
    %p130 = por %p128, %p129
    %p131 = scmp.ne.s32.totalorder %s119, %s120
    %p132 = scmp.eq.s32.totalorder %s26, 1
    %p133 = por %p131, %p132
    %p135 = scmp.ne.s32.totalorder %s120, %s134
    %p136 = scmp.eq.s32.totalorder %s26, 0
    %p137 = por %p135, %p136
    %s139 = sadd.s32 %s138, 1
    %p142 = scmp.eq.s32.totalorder %s20, 1
    %p143 = scmp.ne.s32.totalorder %s138, %s140
    %p144 = scmp.eq.s32.totalorder %s20, 0
    %p145 = por %p143, %p144
    %p146 = scmp.ne.s32.totalorder %s138, %s140
    %p147 = scmp.eq.s32.totalorder %s25, 1
    %p148 = por %p146, %p147
    %p149 = scmp.ne.s32.totalorder %s140, %s141
    %p150 = scmp.eq.s32.totalorder %s25, 0
    %p151 = por %p149, %p150
    %p152 = scmp.ne.s32.totalorder %s140, %s141
    %p153 = scmp.eq.s32.totalorder %s26, 1
    %p154 = por %p152, %p153
    %p156 = scmp.ne.s32.totalorder %s141, %s155
    %p157 = scmp.eq.s32.totalorder %s26, 0
    %p158 = por %p156, %p157
    %s160 = sadd.s32 %s159, 1
    %p163 = scmp.eq.s32.totalorder %s20, 1
    %p164 = scmp.ne.s32.totalorder %s159, %s161
    %p165 = scmp.eq.s32.totalorder %s20, 0
    %p166 = por %p164, %p165
    %p167 = scmp.ne.s32.totalorder %s159, %s161
    %p168 = scmp.eq.s32.totalorder %s25, 1
    %p169 = por %p167, %p168
    %p170 = scmp.ne.s32.totalorder %s161, %s162
    %p171 = scmp.eq.s32.totalorder %s25, 0
    %p172 = por %p170, %p171
    %p173 = scmp.ne.s32.totalorder %s161, %s162
    %p174 = scmp.eq.s32.totalorder %s26, 1
    %p175 = por %p173, %p174
    %p177 = scmp.ne.s32.totalorder %s162, %s176
    %p178 = scmp.eq.s32.totalorder %s26, 0
    %p179 = por %p177, %p178
    %s181 = sadd.s32 %s180, 1
    %p184 = scmp.eq.s32.totalorder %s20, 1
    %p185 = scmp.ne.s32.totalorder %s180, %s182
    %p186 = scmp.eq.s32.totalorder %s20, 0
    %p187 = por %p185, %p186
    %p188 = scmp.ne.s32.totalorder %s180, %s182
    %p189 = scmp.eq.s32.totalorder %s25, 1
    %p190 = por %p188, %p189
    %p191 = scmp.ne.s32.totalorder %s182, %s183
    %p192 = scmp.eq.s32.totalorder %s25, 0
    %p193 = por %p191, %p192
    %p194 = scmp.ne.s32.totalorder %s182, %s183
    %p195 = scmp.eq.s32.totalorder %s26, 1
    %p196 = por %p194, %p195
    %p198 = scmp.ne.s32.totalorder %s183, %s197
    %p199 = scmp.eq.s32.totalorder %s26, 0
    %p200 = por %p198, %p199
    %s202 = sadd.s32 %s201, 1
    %p205 = scmp.eq.s32.totalorder %s20, 1
    %p206 = scmp.ne.s32.totalorder %s201, %s203
    %p207 = scmp.eq.s32.totalorder %s20, 0
    %p208 = por %p206, %p207
    %p209 = scmp.ne.s32.totalorder %s201, %s203
    %p210 = scmp.eq.s32.totalorder %s25, 1
    %p211 = por %p209, %p210
    %p212 = scmp.ne.s32.totalorder %s203, %s204
    %p213 = scmp.eq.s32.totalorder %s25, 0
    %p214 = por %p212, %p213
    %p215 = scmp.ne.s32.totalorder %s203, %s204
    %p216 = scmp.eq.s32.totalorder %s26, 1
    %p217 = por %p215, %p216
    %p219 = scmp.ne.s32.totalorder %s204, %s218
    %p220 = scmp.eq.s32.totalorder %s26, 0
    %p221 = por %p219, %p220
    %s223 = sadd.s32 %s222, 1
    %p226 = scmp.eq.s32.totalorder %s20, 1
    %p227 = scmp.ne.s32.totalorder %s222, %s224
    %p228 = scmp.eq.s32.totalorder %s20, 0
    %p229 = por %p227, %p228
    %p230 = scmp.ne.s32.totalorder %s222, %s224
    %p231 = scmp.eq.s32.totalorder %s25, 1
    %p232 = por %p230, %p231
    %p233 = scmp.ne.s32.totalorder %s224, %s225
    %p234 = scmp.eq.s32.totalorder %s25, 0
    %p235 = por %p233, %p234
    %p236 = scmp.ne.s32.totalorder %s224, %s225
    %p237 = scmp.eq.s32.totalorder %s26, 1
    %p238 = por %p236, %p237
    %p240 = scmp.ne.s32.totalorder %s225, %s239
    %p241 = scmp.eq.s32.totalorder %s26, 0
    %p242 = por %p240, %p241
    %s244 = sadd.s32 %s243, 1
    %p247 = scmp.eq.s32.totalorder %s20, 1
    %p248 = scmp.ne.s32.totalorder %s243, %s245
    %p249 = scmp.eq.s32.totalorder %s20, 0
    %p250 = por %p248, %p249
    %p251 = scmp.ne.s32.totalorder %s243, %s245
    %p252 = scmp.eq.s32.totalorder %s25, 1
    %p253 = por %p251, %p252
    %p254 = scmp.ne.s32.totalorder %s245, %s246
    %p255 = scmp.eq.s32.totalorder %s25, 0
    %p256 = por %p254, %p255
    %p257 = scmp.ne.s32.totalorder %s245, %s246
    %p258 = scmp.eq.s32.totalorder %s26, 1
    %p259 = por %p257, %p258
    %p261 = scmp.ne.s32.totalorder %s246, %s260
    %p262 = scmp.eq.s32.totalorder %s26, 0
    %p263 = por %p261, %p262
    %s265 = sadd.s32 %s264, 1
    %p268 = scmp.eq.s32.totalorder %s20, 1
    %p269 = scmp.ne.s32.totalorder %s264, %s266
    %p270 = scmp.eq.s32.totalorder %s20, 0
    %p271 = por %p269, %p270
    %p272 = scmp.ne.s32.totalorder %s264, %s266
    %p273 = scmp.eq.s32.totalorder %s25, 1
    %p274 = por %p272, %p273
    %p275 = scmp.ne.s32.totalorder %s266, %s267
    %p276 = scmp.eq.s32.totalorder %s25, 0
    %p277 = por %p275, %p276
    %p278 = scmp.ne.s32.totalorder %s266, %s267
    %p279 = scmp.eq.s32.totalorder %s26, 1
    %p280 = por %p278, %p279
    %p282 = scmp.ne.s32.totalorder %s267, %s281
    %p283 = scmp.eq.s32.totalorder %s26, 0
    %p284 = por %p282, %p283
    %s286 = sadd.s32 %s285, 1
    %p289 = scmp.eq.s32.totalorder %s20, 1
    %p290 = scmp.ne.s32.totalorder %s285, %s287
    %p291 = scmp.eq.s32.totalorder %s20, 0
    %p292 = por %p290, %p291
    %p293 = scmp.ne.s32.totalorder %s285, %s287
    %p294 = scmp.eq.s32.totalorder %s25, 1
    %p295 = por %p293, %p294
    %p296 = scmp.ne.s32.totalorder %s287, %s288
    %p297 = scmp.eq.s32.totalorder %s25, 0
    %p298 = por %p296, %p297
    %p299 = scmp.ne.s32.totalorder %s287, %s288
    %p300 = scmp.eq.s32.totalorder %s26, 1
    %p301 = por %p299, %p300
    %p303 = scmp.ne.s32.totalorder %s288, %s302
    %p304 = scmp.eq.s32.totalorder %s26, 0
    %p305 = por %p303, %p304
    %s307 = sadd.s32 %s306, 1
    %p310 = scmp.eq.s32.totalorder %s20, 1
    %p311 = scmp.ne.s32.totalorder %s306, %s308
    %p312 = scmp.eq.s32.totalorder %s20, 0
    %p313 = por %p311, %p312
    %p314 = scmp.ne.s32.totalorder %s306, %s308
    %p315 = scmp.eq.s32.totalorder %s25, 1
    %p316 = por %p314, %p315
    %p317 = scmp.ne.s32.totalorder %s308, %s309
    %p318 = scmp.eq.s32.totalorder %s25, 0
    %p319 = por %p317, %p318
    %p320 = scmp.ne.s32.totalorder %s308, %s309
    %p321 = scmp.eq.s32.totalorder %s26, 1
    %p322 = por %p320, %p321
    %p324 = scmp.ne.s32.totalorder %s309, %s323
    %p325 = scmp.eq.s32.totalorder %s26, 0
    %p326 = por %p324, %p325
    %s327 = ssub.s32 %s20, %s27
    %p328 = scmp.eq.s32.totalorder %s327, 0
    %s330 = sadd.s32 %s329, 1
    %s331 = scalar_select %p328, %s329, %s330
    %p334 = pneg %p328
    %p335 = scmp.eq.s32.totalorder %s20, 1
    %p336 = por %p334, %p335
    %p337 = scmp.ne.s32.totalorder %s329, %s332
    %p338 = scmp.eq.s32.totalorder %s20, 0
    %p339 = por %p337, %p338
    %p340 = scmp.ne.s32.totalorder %s329, %s332
    %p341 = scmp.eq.s32.totalorder %s25, 1
    %p342 = por %p340, %p341
    %p343 = scmp.ne.s32.totalorder %s332, %s333
    %p344 = scmp.eq.s32.totalorder %s25, 0
    %p345 = por %p343, %p344
    %p346 = scmp.ne.s32.totalorder %s332, %s333
    %p347 = scmp.eq.s32.totalorder %s26, 1
    %p348 = por %p346, %p347
    %p350 = scmp.ne.s32.totalorder %s333, %s349
    %p351 = scmp.eq.s32.totalorder %s26, 0
    %p352 = por %p350, %p351
    %p353 = scmp.le.s32.totalorder 1, %s20
    %p354 = scmp.lt.s32.totalorder %s20, 3
    %p355 = pnand %p353, %p354
    %p356 = pneg %p355
    // Predicated region
    $region9: #{attention_module_stage1.13} parent=5 // pred_check
      _
    $region10: #{attention_module_stage1.13} parent=5 // pred_check_branch
      %358 = sbr.rel (%p355) target = $region12
    $region11: #{attention_module_stage1.13} parent=5 // pred_region
      %s359 = ssub.s32 %s20, 1
      // Predicated region
      $region13: #{attention_module_stage1.13} parent=11 // pred_check
        %p360 = pneg %p67
      $region14: #{attention_module_stage1.13} parent=11 // pred_check_branch
        %362 = sbr.rel (%p360) target = $region16
      $region15: #{attention_module_stage1.13} parent=11 // pred_region
        _
      $region16: #{attention_module_stage1.13} parent=11 // pred_fallthru
        _
      // Predicated region
      $region17: #{attention_module_stage1.13} parent=11 // pred_check
        %p363 = pneg %p88
      $region18: #{attention_module_stage1.13} parent=11 // pred_check_branch
        %365 = sbr.rel (%p363) target = $region20
      $region19: #{attention_module_stage1.13} parent=11 // pred_region
        _
      $region20: #{attention_module_stage1.13} parent=11 // pred_fallthru
        _
      // Predicated region
      $region21: #{attention_module_stage1.13} parent=11 // pred_check
        %p366 = pneg %p109
      $region22: #{attention_module_stage1.13} parent=11 // pred_check_branch
        %368 = sbr.rel (%p366) target = $region24
      $region23: #{attention_module_stage1.13} parent=11 // pred_region
        _
      $region24: #{attention_module_stage1.13} parent=11 // pred_fallthru
        _
      // Predicated region
      $region25: #{attention_module_stage1.13} parent=11 // pred_check
        %p369 = pneg %p130
      $region26: #{attention_module_stage1.13} parent=11 // pred_check_branch
        %371 = sbr.rel (%p369) target = $region28
      $region27: #{attention_module_stage1.13} parent=11 // pred_region
        _
      $region28: #{attention_module_stage1.13} parent=11 // pred_fallthru
        _
      // Predicated region
      $region29: #{attention_module_stage1.13} parent=11 // pred_check
        %p372 = pneg %p151
      $region30: #{attention_module_stage1.13} parent=11 // pred_check_branch
        %374 = sbr.rel (%p372) target = $region32
      $region31: #{attention_module_stage1.13} parent=11 // pred_region
        _
      $region32: #{attention_module_stage1.13} parent=11 // pred_fallthru
        _
      // Predicated region
      $region33: #{attention_module_stage1.13} parent=11 // pred_check
        %p375 = pneg %p172
      $region34: #{attention_module_stage1.13} parent=11 // pred_check_branch
        %377 = sbr.rel (%p375) target = $region36
      $region35: #{attention_module_stage1.13} parent=11 // pred_region
        _
      $region36: #{attention_module_stage1.13} parent=11 // pred_fallthru
        _
      // Predicated region
      $region37: #{attention_module_stage1.13} parent=11 // pred_check
        %p378 = pneg %p193
      $region38: #{attention_module_stage1.13} parent=11 // pred_check_branch
        %380 = sbr.rel (%p378) target = $region40
      $region39: #{attention_module_stage1.13} parent=11 // pred_region
        _
      $region40: #{attention_module_stage1.13} parent=11 // pred_fallthru
        _
      // Predicated region
      $region41: #{attention_module_stage1.13} parent=11 // pred_check
        %p381 = pneg %p214
      $region42: #{attention_module_stage1.13} parent=11 // pred_check_branch
        %383 = sbr.rel (%p381) target = $region44
      $region43: #{attention_module_stage1.13} parent=11 // pred_region
        _
      $region44: #{attention_module_stage1.13} parent=11 // pred_fallthru
        _
      // Predicated region
      $region45: #{attention_module_stage1.13} parent=11 // pred_check
        %p384 = pneg %p235
      $region46: #{attention_module_stage1.13} parent=11 // pred_check_branch
        %386 = sbr.rel (%p384) target = $region48
      $region47: #{attention_module_stage1.13} parent=11 // pred_region
        _
      $region48: #{attention_module_stage1.13} parent=11 // pred_fallthru
        _
      // Predicated region
      $region49: #{attention_module_stage1.13} parent=11 // pred_check
        %p387 = pneg %p256
      $region50: #{attention_module_stage1.13} parent=11 // pred_check_branch
        %389 = sbr.rel (%p387) target = $region52
      $region51: #{attention_module_stage1.13} parent=11 // pred_region
        _
      $region52: #{attention_module_stage1.13} parent=11 // pred_fallthru
        _
      // Predicated region
      $region53: #{attention_module_stage1.13} parent=11 // pred_check
        %p390 = pneg %p277
      $region54: #{attention_module_stage1.13} parent=11 // pred_check_branch
        %392 = sbr.rel (%p390) target = $region56
      $region55: #{attention_module_stage1.13} parent=11 // pred_region
        _
      $region56: #{attention_module_stage1.13} parent=11 // pred_fallthru
        _
      // Predicated region
      $region57: #{attention_module_stage1.13} parent=11 // pred_check
        %p393 = pneg %p298
      $region58: #{attention_module_stage1.13} parent=11 // pred_check_branch
        %395 = sbr.rel (%p393) target = $region60
      $region59: #{attention_module_stage1.13} parent=11 // pred_region
        _
      $region60: #{attention_module_stage1.13} parent=11 // pred_fallthru
        _
      // Predicated region
      $region61: #{attention_module_stage1.13} parent=11 // pred_check
        %p396 = pneg %p319
      $region62: #{attention_module_stage1.13} parent=11 // pred_check_branch
        %398 = sbr.rel (%p396) target = $region64
      $region63: #{attention_module_stage1.13} parent=11 // pred_region
        _
      $region64: #{attention_module_stage1.13} parent=11 // pred_fallthru
        _
    $region12: #{attention_module_stage1.13} parent=5 // pred_fallthru
      _
    %p399 = scmp.lt.s32.totalorder %s20, 2
    // Predicated region
    $region65: #{attention_module_stage1.13} parent=5 // pred_check
      %p400 = pneg %p399
    $region66: #{attention_module_stage1.13} parent=5 // pred_check_branch
      %402 = sbr.rel (%p400) target = $region68
    $region67: #{attention_module_stage1.13} parent=5 // pred_region
      // Predicated region
      $region69: #{attention_module_stage1.13} parent=67 // pred_check
        %p403 = pneg %p40
      $region70: #{attention_module_stage1.13} parent=67 // pred_check_branch
        %405 = sbr.rel (%p403) target = $region72
      $region71: #{attention_module_stage1.13} parent=67 // pred_region
        %p406 = scmp.lt.s32.totalorder %s20, 1
        %s407 = scalar_select %p406, %s20, 1
        %s408 = scalar_lea.vmem %s0, %s407
      $region72: #{attention_module_stage1.13} parent=67 // pred_fallthru
        _
    $region68: #{attention_module_stage1.13} parent=5 // pred_fallthru
      _
    %p409 = scmp.le.s32.totalorder 1, %s20
    %p410 = scmp.lt.s32.totalorder %s20, 3
    %p411 = pnand %p409, %p410
    %p412 = pneg %p411
    // Predicated region
    $region73: #{attention_module_stage1.13} parent=5 // pred_check
      _
    $region74: #{attention_module_stage1.13} parent=5 // pred_check_branch
      %414 = sbr.rel (%p411) target = $region76
    $region75: #{attention_module_stage1.13} parent=5 // pred_region
      %s415 = ssub.s32 %s20, 1
      %p416 = scmp.lt.s32.totalorder %s25, 1
      %s417 = scalar_select %p416, %s25, 1
      %s418 = scalar_lea.vmem %s0, %s417
      %p419 = pneg %p46
      %p420 = pneg %p43
      %p421 = pneg %p67
      %p422 = pneg %p64
      %p423 = pneg %p88
      %p424 = pneg %p85
      %p425 = pneg %p109
      %p426 = pneg %p106
      %p427 = pneg %p130
      %p428 = pneg %p127
      %p429 = pneg %p151
      %p430 = pneg %p148
      %p431 = pneg %p172
      %p432 = pneg %p169
      %p433 = pneg %p193
      %p434 = pneg %p190
      %p435 = pneg %p214
      %p436 = pneg %p211
      %p437 = pneg %p235
      %p438 = pneg %p232
      %p439 = pneg %p256
      %p440 = pneg %p253
      %p441 = pneg %p277
      %p442 = pneg %p274
      %p443 = pneg %p298
      %p444 = pneg %p295
      %p445 = pneg %p319
      %p446 = pneg %p316
      %p447 = pneg %p345
      %p448 = pneg %p342
      %p449 = scmp.lt.s32.totalorder %s25, 1
      %s450 = scalar_select %p449, %s25, 1
      %s451 = scalar_lea.vmem %s14, %s450
      %p452 = scmp.lt.s32.totalorder %s25, 1
      %s453 = scalar_select %p452, %s25, 1
      %s454 = scalar_lea.vmem %s0, %s453
      %p455 = scmp.lt.s32.totalorder %s25, 1
      %s456 = scalar_select %p455, %s25, 1
      %s457 = scalar_lea.vmem %s14, %s456
      %v459 = vld [vmem:[%s454] sm:$0x1]
      %v460 = vunpack.c.l.bf16 %v459
      %v461 = vld [vmem:[%s1] sm:$0x1]
      %v463 = vperm.slane %v461, 0
      %v465 = vmul.f32 %v460, %v463
      %v466 = vld [vmem:[%s2] sm:$0x1]
      %v468 = vperm.slane %v466, 0
      %v470 = vadd.f32 %v465, %v468
      %v471 = vmax.f32 %v470, 0.0
      %v472 = vpack.c.bf16 %v471, %v471
      %v473 = vld [vmem:[%s3] sm:$0xf]
      %v474 = vld [vmem:[%s3 + $0x4] sm:$0xf]
      %v475 = vld [vmem:[%s3 + $0x8] sm:$0xf]
      %v476 = vld [vmem:[%s3 + $0xc] sm:$0xf]
      %v481 = vunpack.c.l.b16 %v473
      %v482 = vunpack.c.l.b16 %v474
      %v483 = vunpack.c.l.b16 %v475
      %v484 = vunpack.c.l.b16 %v476
      %v485 = vpack.c.b16 %v482, %v481
      %v486 = vpack.c.b16 %v484, %v483
      %vm489 = vcmask 261120
      %v491 = vsel %vm489, %v472, 0
      %493 = vmatpush.bf16.msra.mxu0 0
      %494 = vmatpush.bf16.msra.mxu0 0
      %495 = vmatpush.bf16.msra.mxu0 0
      %496 = vmatpush.bf16.msra.mxu0 0
      %497 = vmatpush.bf16.msra.mxu0 0
      %498 = vmatpush.bf16.msra.mxu0 0
      %499 = vmatpush.bf16.msra.mxu0 %v486
      %500 = vmatpush.bf16.msra.mxu0 %v485
      %501 = vmatmul.bf16.gmra.mxu0 %v491
      %v502 = vpop.f32.mrf.mxu0
      %v503 = vadd.f32 0.0, %v502
      %v504 = vpop.f32.mrf.mxu0
      %505 = vdwg.mxu0
      %v506 = vld [vmem:[%s4] sm:$0x1]
      %v508 = vperm.slane %v506, 0
      %v510 = vmul.f32 %v503, %v508
      %v511 = vld [vmem:[%s5] sm:$0x1]
      %v513 = vperm.slane %v511, 0
      %v515 = vadd.f32 %v510, %v513
      %v516 = vmax.f32 %v515, 0.0
      %v517 = vpack.c.bf16 %v516, %v516
      %v518 = vld [vmem:[%s6] sm:$0x1]
      %vm519 = vcmask 15360
      %v521 = vsel %vm519, %v518, 0
      %vm523 = vcmask 1040384
      %v525 = vsel %vm523, %v517, 0
      %527 = vmatpush.bf16.msra.mxu0 0
      %528 = vmatpush.bf16.msra.mxu0 0
      %529 = vmatpush.bf16.msra.mxu0 0
      %530 = vmatpush.bf16.msra.mxu0 0
      %531 = vmatpush.bf16.msra.mxu0 0
      %532 = vmatpush.bf16.msra.mxu0 0
      %533 = vmatpush.bf16.msra.mxu0 0
      %534 = vmatpush.bf16.msra.mxu0 %v525
      %535 = vmatmul.bf16.gmra.mxu0 %v521
      %v536 = vpop.f32.mrf.mxu0
      %v537 = vadd.f32 0.0, %v536
      %v538 = vpop.f32.mrf.mxu0
      %539 = vdwg.mxu0
      %v540 = vpack.c.bf16 %v537, %v537
      %v541 = vld [vmem:[%s7] sm:$0x1]
      %v543 = vsel %vm519, %v541, 0
      %545 = vmatpush.bf16.msra.mxu0 0
      %546 = vmatpush.bf16.msra.mxu0 0
      %547 = vmatpush.bf16.msra.mxu0 0
      %548 = vmatpush.bf16.msra.mxu0 0
      %549 = vmatpush.bf16.msra.mxu0 0
      %550 = vmatpush.bf16.msra.mxu0 0
      %551 = vmatpush.bf16.msra.mxu0 0
      %552 = vmatpush.bf16.msra.mxu0 %v525
      %553 = vmatmul.bf16.gmra.mxu0 %v543
      %v554 = vpop.f32.mrf.mxu0
      %v555 = vadd.f32 0.0, %v554
      %v556 = vpop.f32.mrf.mxu0
      %557 = vdwg.mxu0
      %v558 = vpack.c.bf16 %v555, %v555
      %v559 = vld [vmem:[%s8] sm:$0xf]
      %v560 = vld [vmem:[%s9] sm:$0xf]
      %vm561 = vcmask 64512
      %v562 = vsel %vm561, %v517, 0
      %vm564 = vcmask 1043456
      %v566 = vsel %vm564, %v560, 0
      %568 = vmatpush.bf16.msra.mxu0 0
      %569 = vmatpush.bf16.msra.mxu0 0
      %570 = vmatpush.bf16.msra.mxu0 0
      %571 = vmatpush.bf16.msra.mxu0 0
      %572 = vmatpush.bf16.msra.mxu0 0
      %573 = vmatpush.bf16.msra.mxu0 0
      %574 = vmatpush.bf16.msra.mxu0 0
      %575 = vmatpush.bf16.msra.mxu0 %v566
      %576 = vmatmul.bf16.gmra.mxu0 %v562
      %v577 = vpop.f32.mrf.mxu0
      %v578 = vadd.f32 0.0, %v577
      %v579 = vpop.f32.mrf.mxu0
      %580 = vdwg.mxu0
      %v582 = vsel %vm561, %v540, 0
      %v585 = vsel %vm564, %v559, 0
      %587 = vmatpush.bf16.msra.mxu0 0
      %588 = vmatpush.bf16.msra.mxu0 0
      %589 = vmatpush.bf16.msra.mxu0 0
      %590 = vmatpush.bf16.msra.mxu0 0
      %591 = vmatpush.bf16.msra.mxu0 0
      %592 = vmatpush.bf16.msra.mxu0 0
      %593 = vmatpush.bf16.msra.mxu0 0
      %594 = vmatpush.bf16.msra.mxu0 %v585
      %595 = vmatmul.bf16.gmra.mxu0 %v582
      %v596 = vpop.f32.mrf.mxu0
      %v597 = vadd.f32 %v578, %v596
      %v598 = vpop.f32.mrf.mxu0
      %599 = vdwg.mxu0
      %v600 = vld [vmem:[%s10] sm:$0xf]
      %v602 = vsel %vm561, %v558, 0
      %v605 = vsel %vm564, %v600, 0
      %607 = vmatpush.bf16.msra.mxu0 0
      %608 = vmatpush.bf16.msra.mxu0 0
      %609 = vmatpush.bf16.msra.mxu0 0
      %610 = vmatpush.bf16.msra.mxu0 0
      %611 = vmatpush.bf16.msra.mxu0 0
      %612 = vmatpush.bf16.msra.mxu0 0
      %613 = vmatpush.bf16.msra.mxu0 0
      %614 = vmatpush.bf16.msra.mxu0 %v605
      %615 = vmatmul.bf16.gmra.mxu0 %v602
      %v616 = vpop.f32.mrf.mxu0
      %v617 = vadd.f32 0.0, %v616
      %v618 = vpop.f32.mrf.mxu0
      %619 = vdwg.mxu0
      %v620 = vadd.f32 %v597, %v617
      %v621 = vld [vmem:[%s11] sm:$0x1]
      %v623 = vperm.slane %v621, 0
      %v625 = vmul.f32 %v620, %v623
      %v626 = vld [vmem:[%s12] sm:$0x1]
      %v628 = vperm.slane %v626, 0
      %v630 = vadd.f32 %v625, %v628
      %v631 = vmax.f32 %v630, 0.0
      %v632 = vpack.c.bf16 %v631, %v631
      %v633 = vld [vmem:[%s13] sm:$0xf]
      %v635 = vsel %vm561, %v632, 0
      %v638 = vsel %vm564, %v633, 0
      %640 = vmatpush.bf16.msra.mxu0 0
      %641 = vmatpush.bf16.msra.mxu0 0
      %642 = vmatpush.bf16.msra.mxu0 0
      %643 = vmatpush.bf16.msra.mxu0 0
      %644 = vmatpush.bf16.msra.mxu0 0
      %645 = vmatpush.bf16.msra.mxu0 0
      %646 = vmatpush.bf16.msra.mxu0 0
      %647 = vmatpush.bf16.msra.mxu0 %v638
      %648 = vmatmul.bf16.gmra.mxu0 %v635
      %v649 = vpop.f32.mrf.mxu0
      %v650 = vadd.f32 %v460, %v649
      %v651 = vpop.f32.mrf.mxu0
      %652 = vdwg.mxu0
      %v653 = vpack.c.bf16 %v650, %v650
      %vm654 = vcmask 253952
      %655 = vst.msk [vmem:[%s457] sm:$0x1] %vm654, %v653
      %p656 = scmp.lt.s32.totalorder %s25, 1
      %s657 = scalar_select %p656, %s25, 1
      %s658 = scalar_lea.vmem %s14, %s657
      // Predicated region
      $region77: #{attention_module_stage1.13} parent=75 // pred_check
        %p659 = pneg %p342
      $region78: #{attention_module_stage1.13} parent=75 // pred_check_branch
        %661 = sbr.rel (%p659) target = $region80
      $region79: #{attention_module_stage1.13} parent=75 // pred_region
        _
      $region80: #{attention_module_stage1.13} parent=75 // pred_fallthru
        _
    $region76: #{attention_module_stage1.13} parent=5 // pred_fallthru
      _
    %p662 = scmp.le.s32.totalorder 2, %s20
    // Predicated region
    $region81: #{attention_module_stage1.13} parent=5 // pred_check
      %p663 = pneg %p662
    $region82: #{attention_module_stage1.13} parent=5 // pred_check_branch
      %665 = sbr.rel (%p663) target = $region84
    $region83: #{attention_module_stage1.13} parent=5 // pred_region
      %s666 = ssub.s32 %s20, 2
      // Predicated region
      $region85: #{attention_module_stage1.13} parent=83 // pred_check
        %p667 = pneg %p348
      $region86: #{attention_module_stage1.13} parent=83 // pred_check_branch
        %669 = sbr.rel (%p667) target = $region88
      $region87: #{attention_module_stage1.13} parent=83 // pred_region
        %p670 = scmp.lt.s32.totalorder %s26, 1
        %s671 = scalar_select %p670, %s26, 1
        %s672 = scalar_lea.vmem %s14, %s671
      $region88: #{attention_module_stage1.13} parent=83 // pred_fallthru
        _
    $region84: #{attention_module_stage1.13} parent=5 // pred_fallthru
      _
  $region6: #{attention_module_stage1.13} parent=0 // loop_footer
    %s24 = sadd.s32 1, %s20
  $region7: #{attention_module_stage1.13} parent=0 // loop_footer_branch
    %19 = sbr.rel target = $region3
  $region8: #{attention_module_stage1.13} parent=0 // loop_exit
    _

// kernel: attention_module_stage1.16
$region0: #{attention_module_stage1.16}
  #allocation0 [shape = 'u32[]', space=smem, size = 0x4, offset = 0x4, fixed_abs, tag = 'smem constant byte address 0x4 - core index']
  #allocation1 [shape = 'u32[72,128]{1,0:T(1,128)}', space=vmem, size = 0x9000, scoped, tag = 'internal scratch']
  %s0 = inlined_call_operand.vmem [shape: bf16[2,4,64], index: 0, kind: input, shape index: {}]
  %s1 = inlined_call_operand.vmem [shape: bf16[2,4,64], index: 1, kind: input, shape index: {}]
  %s2 = inlined_call_operand.vmem [shape: bf16[2,4,64], index: 2, kind: input, shape index: {}]
  %s3 = inlined_call_operand.vmem [shape: f32[1,64], index: 3, kind: input, shape index: {}]
  %s4 = inlined_call_operand.vmem [shape: f32[1,64], index: 4, kind: input, shape index: {}]
  %s5 = inlined_call_operand.vmem [shape: bf16[64,16], index: 5, kind: input, shape index: {}]
  %s6 = inlined_call_operand.vmem [shape: f32[1,16], index: 6, kind: input, shape index: {}]
  %s7 = inlined_call_operand.vmem [shape: f32[1,16], index: 7, kind: input, shape index: {}]
  %s8 = inlined_call_operand.vmem [shape: bf16[4,4], index: 8, kind: input, shape index: {}]
  %s9 = inlined_call_operand.vmem [shape: bf16[4,4], index: 9, kind: input, shape index: {}]
  %s10 = inlined_call_operand.vmem [shape: bf16[16,16], index: 10, kind: input, shape index: {}]
  %s11 = inlined_call_operand.vmem [shape: bf16[16,16], index: 11, kind: input, shape index: {}]
  %s12 = inlined_call_operand.vmem [shape: bf16[16,16], index: 12, kind: input, shape index: {}]
  %s13 = inlined_call_operand.vmem [shape: f32[1,16], index: 13, kind: input, shape index: {}]
  %s14 = inlined_call_operand.vmem [shape: f32[1,16], index: 14, kind: input, shape index: {}]
  %s15 = inlined_call_operand.vmem [shape: bf16[16,64], index: 15, kind: input, shape index: {}]
  %s16 = inlined_call_operand.vmem [shape: bf16[2,4,64], index: 16, kind: output, shape index: {}]
  %s17 = sld [smem:[#allocation0]]
  $region97: #{attention_module_stage1.16} parent=0
    _
  %s19 = ssub.s32 1, %s17
  %s20 = scalar_select 0, %s19, %s17
  loop: start=0, step=1, limit=4
  $region2: #{attention_module_stage1.16} parent=0 // loop_pre_header
    _
  $region3: #{attention_module_stage1.16} parent=0 // loop_header
    %s22 = sphi 0, %s26
    %p23 = scmp.ge.s32.totalorder %s22, 4
    %s32 = sphi 0, %s34
    %s35 = sphi 0, %s32
    %s36 = sphi 0, %s35
    %s52 = sphi 0, %s36
    %s58 = sphi 0, %s60
    %s61 = sphi 0, %s58
    %s62 = sphi 0, %s61
    %s78 = sphi 0, %s62
    %s84 = sphi 0, %s86
    %s87 = sphi 0, %s84
    %s88 = sphi 0, %s87
    %s104 = sphi 0, %s88
    %s108 = sphi 0, %s108
    %s110 = sphi 0, %s108
    %s111 = sphi 0, %s110
    %s125 = sphi 0, %s111
    %s129 = sphi 0, %s129
    %s131 = sphi 0, %s129
    %s132 = sphi 0, %s131
    %s146 = sphi 0, %s132
    %s150 = sphi 0, %s150
    %s152 = sphi 0, %s150
    %s153 = sphi 0, %s152
    %s167 = sphi 0, %s153
    %s171 = sphi 0, %s171
    %s173 = sphi 0, %s171
    %s174 = sphi 0, %s173
    %s188 = sphi 0, %s174
    %s192 = sphi 0, %s192
    %s194 = sphi 0, %s192
    %s195 = sphi 0, %s194
    %s209 = sphi 0, %s195
    %s213 = sphi 0, %s213
    %s215 = sphi 0, %s213
    %s216 = sphi 0, %s215
    %s230 = sphi 0, %s216
    %s234 = sphi 0, %s234
    %s236 = sphi 0, %s234
    %s237 = sphi 0, %s236
    %s251 = sphi 0, %s237
    %s255 = sphi 0, %s255
    %s257 = sphi 0, %s255
    %s258 = sphi 0, %s257
    %s272 = sphi 0, %s258
    %s276 = sphi 0, %s276
    %s278 = sphi 0, %s276
    %s279 = sphi 0, %s278
    %s293 = sphi 0, %s279
    %s297 = sphi 0, %s297
    %s299 = sphi 0, %s297
    %s300 = sphi 0, %s299
    %s314 = sphi 0, %s300
    %s318 = sphi 0, %s318
    %s320 = sphi 0, %s318
    %s321 = sphi 0, %s320
    %s335 = sphi 0, %s321
    %s339 = sphi 0, %s339
    %s341 = sphi 0, %s339
    %s342 = sphi 0, %s341
    %s356 = sphi 0, %s342
    %s360 = sphi 0, %s360
    %s362 = sphi 0, %s360
    %s363 = sphi 0, %s362
    %s377 = sphi 0, %s363
    %s383 = sphi 0, %s385
    %s386 = sphi 0, %s383
    %s387 = sphi 0, %s386
    %s403 = sphi 0, %s387
  $region4: #{attention_module_stage1.16} parent=0 // loop_header_branch
    %25 = sbr.rel (%p23) target = $region8
  $region5: #{attention_module_stage1.16} parent=0 // loop_body
    %s27 = ssub.s32 %s22, 1
    %s28 = ssub.s32 %s22, 2
    %s29 = sadd.s32 %s22, 1
    %s30 = ssub.s32 %s22, %s29
    %p31 = scmp.eq.s32.totalorder %s30, 0
    %s33 = sadd.s32 %s32, 1
    %s34 = scalar_select %p31, %s32, %s33
    %p37 = pneg %p31
    %p38 = scmp.eq.s32.totalorder %s22, 1
    %p39 = por %p37, %p38
    %p40 = scmp.ne.s32.totalorder %s32, %s35
    %p41 = scmp.eq.s32.totalorder %s22, 0
    %p42 = por %p40, %p41
    %p43 = scmp.ne.s32.totalorder %s32, %s35
    %p44 = scmp.eq.s32.totalorder %s27, 1
    %p45 = por %p43, %p44
    %p46 = scmp.ne.s32.totalorder %s35, %s36
    %p47 = scmp.eq.s32.totalorder %s27, 0
    %p48 = por %p46, %p47
    %p49 = scmp.ne.s32.totalorder %s35, %s36
    %p50 = scmp.eq.s32.totalorder %s28, 1
    %p51 = por %p49, %p50
    %p53 = scmp.ne.s32.totalorder %s36, %s52
    %p54 = scmp.eq.s32.totalorder %s28, 0
    %p55 = por %p53, %p54
    %s56 = ssub.s32 %s22, %s29
    %p57 = scmp.eq.s32.totalorder %s56, 0
    %s59 = sadd.s32 %s58, 1
    %s60 = scalar_select %p57, %s58, %s59
    %p63 = pneg %p57
    %p64 = scmp.eq.s32.totalorder %s22, 1
    %p65 = por %p63, %p64
    %p66 = scmp.ne.s32.totalorder %s58, %s61
    %p67 = scmp.eq.s32.totalorder %s22, 0
    %p68 = por %p66, %p67
    %p69 = scmp.ne.s32.totalorder %s58, %s61
    %p70 = scmp.eq.s32.totalorder %s27, 1
    %p71 = por %p69, %p70
    %p72 = scmp.ne.s32.totalorder %s61, %s62
    %p73 = scmp.eq.s32.totalorder %s27, 0
    %p74 = por %p72, %p73
    %p75 = scmp.ne.s32.totalorder %s61, %s62
    %p76 = scmp.eq.s32.totalorder %s28, 1
    %p77 = por %p75, %p76
    %p79 = scmp.ne.s32.totalorder %s62, %s78
    %p80 = scmp.eq.s32.totalorder %s28, 0
    %p81 = por %p79, %p80
    %s82 = ssub.s32 %s22, %s29
    %p83 = scmp.eq.s32.totalorder %s82, 0
    %s85 = sadd.s32 %s84, 1
    %s86 = scalar_select %p83, %s84, %s85
    %p89 = pneg %p83
    %p90 = scmp.eq.s32.totalorder %s22, 1
    %p91 = por %p89, %p90
    %p92 = scmp.ne.s32.totalorder %s84, %s87
    %p93 = scmp.eq.s32.totalorder %s22, 0
    %p94 = por %p92, %p93
    %p95 = scmp.ne.s32.totalorder %s84, %s87
    %p96 = scmp.eq.s32.totalorder %s27, 1
    %p97 = por %p95, %p96
    %p98 = scmp.ne.s32.totalorder %s87, %s88
    %p99 = scmp.eq.s32.totalorder %s27, 0
    %p100 = por %p98, %p99
    %p101 = scmp.ne.s32.totalorder %s87, %s88
    %p102 = scmp.eq.s32.totalorder %s28, 1
    %p103 = por %p101, %p102
    %p105 = scmp.ne.s32.totalorder %s88, %s104
    %p106 = scmp.eq.s32.totalorder %s28, 0
    %p107 = por %p105, %p106
    %s109 = sadd.s32 %s108, 1
    %p112 = scmp.eq.s32.totalorder %s22, 1
    %p113 = scmp.ne.s32.totalorder %s108, %s110
    %p114 = scmp.eq.s32.totalorder %s22, 0
    %p115 = por %p113, %p114
    %p116 = scmp.ne.s32.totalorder %s108, %s110
    %p117 = scmp.eq.s32.totalorder %s27, 1
    %p118 = por %p116, %p117
    %p119 = scmp.ne.s32.totalorder %s110, %s111
    %p120 = scmp.eq.s32.totalorder %s27, 0
    %p121 = por %p119, %p120
    %p122 = scmp.ne.s32.totalorder %s110, %s111
    %p123 = scmp.eq.s32.totalorder %s28, 1
    %p124 = por %p122, %p123
    %p126 = scmp.ne.s32.totalorder %s111, %s125
    %p127 = scmp.eq.s32.totalorder %s28, 0
    %p128 = por %p126, %p127
    %s130 = sadd.s32 %s129, 1
    %p133 = scmp.eq.s32.totalorder %s22, 1
    %p134 = scmp.ne.s32.totalorder %s129, %s131
    %p135 = scmp.eq.s32.totalorder %s22, 0
    %p136 = por %p134, %p135
    %p137 = scmp.ne.s32.totalorder %s129, %s131
    %p138 = scmp.eq.s32.totalorder %s27, 1
    %p139 = por %p137, %p138
    %p140 = scmp.ne.s32.totalorder %s131, %s132
    %p141 = scmp.eq.s32.totalorder %s27, 0
    %p142 = por %p140, %p141
    %p143 = scmp.ne.s32.totalorder %s131, %s132
    %p144 = scmp.eq.s32.totalorder %s28, 1
    %p145 = por %p143, %p144
    %p147 = scmp.ne.s32.totalorder %s132, %s146
    %p148 = scmp.eq.s32.totalorder %s28, 0
    %p149 = por %p147, %p148
    %s151 = sadd.s32 %s150, 1
    %p154 = scmp.eq.s32.totalorder %s22, 1
    %p155 = scmp.ne.s32.totalorder %s150, %s152
    %p156 = scmp.eq.s32.totalorder %s22, 0
    %p157 = por %p155, %p156
    %p158 = scmp.ne.s32.totalorder %s150, %s152
    %p159 = scmp.eq.s32.totalorder %s27, 1
    %p160 = por %p158, %p159
    %p161 = scmp.ne.s32.totalorder %s152, %s153
    %p162 = scmp.eq.s32.totalorder %s27, 0
    %p163 = por %p161, %p162
    %p164 = scmp.ne.s32.totalorder %s152, %s153
    %p165 = scmp.eq.s32.totalorder %s28, 1
    %p166 = por %p164, %p165
    %p168 = scmp.ne.s32.totalorder %s153, %s167
    %p169 = scmp.eq.s32.totalorder %s28, 0
    %p170 = por %p168, %p169
    %s172 = sadd.s32 %s171, 1
    %p175 = scmp.eq.s32.totalorder %s22, 1
    %p176 = scmp.ne.s32.totalorder %s171, %s173
    %p177 = scmp.eq.s32.totalorder %s22, 0
    %p178 = por %p176, %p177
    %p179 = scmp.ne.s32.totalorder %s171, %s173
    %p180 = scmp.eq.s32.totalorder %s27, 1
    %p181 = por %p179, %p180
    %p182 = scmp.ne.s32.totalorder %s173, %s174
    %p183 = scmp.eq.s32.totalorder %s27, 0
    %p184 = por %p182, %p183
    %p185 = scmp.ne.s32.totalorder %s173, %s174
    %p186 = scmp.eq.s32.totalorder %s28, 1
    %p187 = por %p185, %p186
    %p189 = scmp.ne.s32.totalorder %s174, %s188
    %p190 = scmp.eq.s32.totalorder %s28, 0
    %p191 = por %p189, %p190
    %s193 = sadd.s32 %s192, 1
    %p196 = scmp.eq.s32.totalorder %s22, 1
    %p197 = scmp.ne.s32.totalorder %s192, %s194
    %p198 = scmp.eq.s32.totalorder %s22, 0
    %p199 = por %p197, %p198
    %p200 = scmp.ne.s32.totalorder %s192, %s194
    %p201 = scmp.eq.s32.totalorder %s27, 1
    %p202 = por %p200, %p201
    %p203 = scmp.ne.s32.totalorder %s194, %s195
    %p204 = scmp.eq.s32.totalorder %s27, 0
    %p205 = por %p203, %p204
    %p206 = scmp.ne.s32.totalorder %s194, %s195
    %p207 = scmp.eq.s32.totalorder %s28, 1
    %p208 = por %p206, %p207
    %p210 = scmp.ne.s32.totalorder %s195, %s209
    %p211 = scmp.eq.s32.totalorder %s28, 0
    %p212 = por %p210, %p211
    %s214 = sadd.s32 %s213, 1
    %p217 = scmp.eq.s32.totalorder %s22, 1
    %p218 = scmp.ne.s32.totalorder %s213, %s215
    %p219 = scmp.eq.s32.totalorder %s22, 0
    %p220 = por %p218, %p219
    %p221 = scmp.ne.s32.totalorder %s213, %s215
    %p222 = scmp.eq.s32.totalorder %s27, 1
    %p223 = por %p221, %p222
    %p224 = scmp.ne.s32.totalorder %s215, %s216
    %p225 = scmp.eq.s32.totalorder %s27, 0
    %p226 = por %p224, %p225
    %p227 = scmp.ne.s32.totalorder %s215, %s216
    %p228 = scmp.eq.s32.totalorder %s28, 1
    %p229 = por %p227, %p228
    %p231 = scmp.ne.s32.totalorder %s216, %s230
    %p232 = scmp.eq.s32.totalorder %s28, 0
    %p233 = por %p231, %p232
    %s235 = sadd.s32 %s234, 1
    %p238 = scmp.eq.s32.totalorder %s22, 1
    %p239 = scmp.ne.s32.totalorder %s234, %s236
    %p240 = scmp.eq.s32.totalorder %s22, 0
    %p241 = por %p239, %p240
    %p242 = scmp.ne.s32.totalorder %s234, %s236
    %p243 = scmp.eq.s32.totalorder %s27, 1
    %p244 = por %p242, %p243
    %p245 = scmp.ne.s32.totalorder %s236, %s237
    %p246 = scmp.eq.s32.totalorder %s27, 0
    %p247 = por %p245, %p246
    %p248 = scmp.ne.s32.totalorder %s236, %s237
    %p249 = scmp.eq.s32.totalorder %s28, 1
    %p250 = por %p248, %p249
    %p252 = scmp.ne.s32.totalorder %s237, %s251
    %p253 = scmp.eq.s32.totalorder %s28, 0
    %p254 = por %p252, %p253
    %s256 = sadd.s32 %s255, 1
    %p259 = scmp.eq.s32.totalorder %s22, 1
    %p260 = scmp.ne.s32.totalorder %s255, %s257
    %p261 = scmp.eq.s32.totalorder %s22, 0
    %p262 = por %p260, %p261
    %p263 = scmp.ne.s32.totalorder %s255, %s257
    %p264 = scmp.eq.s32.totalorder %s27, 1
    %p265 = por %p263, %p264
    %p266 = scmp.ne.s32.totalorder %s257, %s258
    %p267 = scmp.eq.s32.totalorder %s27, 0
    %p268 = por %p266, %p267
    %p269 = scmp.ne.s32.totalorder %s257, %s258
    %p270 = scmp.eq.s32.totalorder %s28, 1
    %p271 = por %p269, %p270
    %p273 = scmp.ne.s32.totalorder %s258, %s272
    %p274 = scmp.eq.s32.totalorder %s28, 0
    %p275 = por %p273, %p274
    %s277 = sadd.s32 %s276, 1
    %p280 = scmp.eq.s32.totalorder %s22, 1
    %p281 = scmp.ne.s32.totalorder %s276, %s278
    %p282 = scmp.eq.s32.totalorder %s22, 0
    %p283 = por %p281, %p282
    %p284 = scmp.ne.s32.totalorder %s276, %s278
    %p285 = scmp.eq.s32.totalorder %s27, 1
    %p286 = por %p284, %p285
    %p287 = scmp.ne.s32.totalorder %s278, %s279
    %p288 = scmp.eq.s32.totalorder %s27, 0
    %p289 = por %p287, %p288
    %p290 = scmp.ne.s32.totalorder %s278, %s279
    %p291 = scmp.eq.s32.totalorder %s28, 1
    %p292 = por %p290, %p291
    %p294 = scmp.ne.s32.totalorder %s279, %s293
    %p295 = scmp.eq.s32.totalorder %s28, 0
    %p296 = por %p294, %p295
    %s298 = sadd.s32 %s297, 1
    %p301 = scmp.eq.s32.totalorder %s22, 1
    %p302 = scmp.ne.s32.totalorder %s297, %s299
    %p303 = scmp.eq.s32.totalorder %s22, 0
    %p304 = por %p302, %p303
    %p305 = scmp.ne.s32.totalorder %s297, %s299
    %p306 = scmp.eq.s32.totalorder %s27, 1
    %p307 = por %p305, %p306
    %p308 = scmp.ne.s32.totalorder %s299, %s300
    %p309 = scmp.eq.s32.totalorder %s27, 0
    %p310 = por %p308, %p309
    %p311 = scmp.ne.s32.totalorder %s299, %s300
    %p312 = scmp.eq.s32.totalorder %s28, 1
    %p313 = por %p311, %p312
    %p315 = scmp.ne.s32.totalorder %s300, %s314
    %p316 = scmp.eq.s32.totalorder %s28, 0
    %p317 = por %p315, %p316
    %s319 = sadd.s32 %s318, 1
    %p322 = scmp.eq.s32.totalorder %s22, 1
    %p323 = scmp.ne.s32.totalorder %s318, %s320
    %p324 = scmp.eq.s32.totalorder %s22, 0
    %p325 = por %p323, %p324
    %p326 = scmp.ne.s32.totalorder %s318, %s320
    %p327 = scmp.eq.s32.totalorder %s27, 1
    %p328 = por %p326, %p327
    %p329 = scmp.ne.s32.totalorder %s320, %s321
    %p330 = scmp.eq.s32.totalorder %s27, 0
    %p331 = por %p329, %p330
    %p332 = scmp.ne.s32.totalorder %s320, %s321
    %p333 = scmp.eq.s32.totalorder %s28, 1
    %p334 = por %p332, %p333
    %p336 = scmp.ne.s32.totalorder %s321, %s335
    %p337 = scmp.eq.s32.totalorder %s28, 0
    %p338 = por %p336, %p337
    %s340 = sadd.s32 %s339, 1
    %p343 = scmp.eq.s32.totalorder %s22, 1
    %p344 = scmp.ne.s32.totalorder %s339, %s341
    %p345 = scmp.eq.s32.totalorder %s22, 0
    %p346 = por %p344, %p345
    %p347 = scmp.ne.s32.totalorder %s339, %s341
    %p348 = scmp.eq.s32.totalorder %s27, 1
    %p349 = por %p347, %p348
    %p350 = scmp.ne.s32.totalorder %s341, %s342
    %p351 = scmp.eq.s32.totalorder %s27, 0
    %p352 = por %p350, %p351
    %p353 = scmp.ne.s32.totalorder %s341, %s342
    %p354 = scmp.eq.s32.totalorder %s28, 1
    %p355 = por %p353, %p354
    %p357 = scmp.ne.s32.totalorder %s342, %s356
    %p358 = scmp.eq.s32.totalorder %s28, 0
    %p359 = por %p357, %p358
    %s361 = sadd.s32 %s360, 1
    %p364 = scmp.eq.s32.totalorder %s22, 1
    %p365 = scmp.ne.s32.totalorder %s360, %s362
    %p366 = scmp.eq.s32.totalorder %s22, 0
    %p367 = por %p365, %p366
    %p368 = scmp.ne.s32.totalorder %s360, %s362
    %p369 = scmp.eq.s32.totalorder %s27, 1
    %p370 = por %p368, %p369
    %p371 = scmp.ne.s32.totalorder %s362, %s363
    %p372 = scmp.eq.s32.totalorder %s27, 0
    %p373 = por %p371, %p372
    %p374 = scmp.ne.s32.totalorder %s362, %s363
    %p375 = scmp.eq.s32.totalorder %s28, 1
    %p376 = por %p374, %p375
    %p378 = scmp.ne.s32.totalorder %s363, %s377
    %p379 = scmp.eq.s32.totalorder %s28, 0
    %p380 = por %p378, %p379
    %s381 = ssub.s32 %s22, %s29
    %p382 = scmp.eq.s32.totalorder %s381, 0
    %s384 = sadd.s32 %s383, 1
    %s385 = scalar_select %p382, %s383, %s384
    %p388 = pneg %p382
    %p389 = scmp.eq.s32.totalorder %s22, 1
    %p390 = por %p388, %p389
    %p391 = scmp.ne.s32.totalorder %s383, %s386
    %p392 = scmp.eq.s32.totalorder %s22, 0
    %p393 = por %p391, %p392
    %p394 = scmp.ne.s32.totalorder %s383, %s386
    %p395 = scmp.eq.s32.totalorder %s27, 1
    %p396 = por %p394, %p395
    %p397 = scmp.ne.s32.totalorder %s386, %s387
    %p398 = scmp.eq.s32.totalorder %s27, 0
    %p399 = por %p397, %p398
    %p400 = scmp.ne.s32.totalorder %s386, %s387
    %p401 = scmp.eq.s32.totalorder %s28, 1
    %p402 = por %p400, %p401
    %p404 = scmp.ne.s32.totalorder %s387, %s403
    %p405 = scmp.eq.s32.totalorder %s28, 0
    %p406 = por %p404, %p405
    %p407 = scmp.le.s32.totalorder 1, %s22
    %p408 = scmp.lt.s32.totalorder %s22, 3
    %p409 = pnand %p407, %p408
    %p410 = pneg %p409
    // Predicated region
    $region9: #{attention_module_stage1.16} parent=5 // pred_check
      _
    $region10: #{attention_module_stage1.16} parent=5 // pred_check_branch
      %412 = sbr.rel (%p409) target = $region12
    $region11: #{attention_module_stage1.16} parent=5 // pred_region
      %s413 = ssub.s32 %s22, 1
      // Predicated region
      $region13: #{attention_module_stage1.16} parent=11 // pred_check
        %p414 = pneg %p121
      $region14: #{attention_module_stage1.16} parent=11 // pred_check_branch
        %416 = sbr.rel (%p414) target = $region16
      $region15: #{attention_module_stage1.16} parent=11 // pred_region
        _
      $region16: #{attention_module_stage1.16} parent=11 // pred_fallthru
        _
      // Predicated region
      $region17: #{attention_module_stage1.16} parent=11 // pred_check
        %p417 = pneg %p142
      $region18: #{attention_module_stage1.16} parent=11 // pred_check_branch
        %419 = sbr.rel (%p417) target = $region20
      $region19: #{attention_module_stage1.16} parent=11 // pred_region
        _
      $region20: #{attention_module_stage1.16} parent=11 // pred_fallthru
        _
      // Predicated region
      $region21: #{attention_module_stage1.16} parent=11 // pred_check
        %p420 = pneg %p163
      $region22: #{attention_module_stage1.16} parent=11 // pred_check_branch
        %422 = sbr.rel (%p420) target = $region24
      $region23: #{attention_module_stage1.16} parent=11 // pred_region
        _
      $region24: #{attention_module_stage1.16} parent=11 // pred_fallthru
        _
      // Predicated region
      $region25: #{attention_module_stage1.16} parent=11 // pred_check
        %p423 = pneg %p184
      $region26: #{attention_module_stage1.16} parent=11 // pred_check_branch
        %425 = sbr.rel (%p423) target = $region28
      $region27: #{attention_module_stage1.16} parent=11 // pred_region
        _
      $region28: #{attention_module_stage1.16} parent=11 // pred_fallthru
        _
      // Predicated region
      $region29: #{attention_module_stage1.16} parent=11 // pred_check
        %p426 = pneg %p205
      $region30: #{attention_module_stage1.16} parent=11 // pred_check_branch
        %428 = sbr.rel (%p426) target = $region32
      $region31: #{attention_module_stage1.16} parent=11 // pred_region
        _
      $region32: #{attention_module_stage1.16} parent=11 // pred_fallthru
        _
      // Predicated region
      $region33: #{attention_module_stage1.16} parent=11 // pred_check
        %p429 = pneg %p226
      $region34: #{attention_module_stage1.16} parent=11 // pred_check_branch
        %431 = sbr.rel (%p429) target = $region36
      $region35: #{attention_module_stage1.16} parent=11 // pred_region
        _
      $region36: #{attention_module_stage1.16} parent=11 // pred_fallthru
        _
      // Predicated region
      $region37: #{attention_module_stage1.16} parent=11 // pred_check
        %p432 = pneg %p247
      $region38: #{attention_module_stage1.16} parent=11 // pred_check_branch
        %434 = sbr.rel (%p432) target = $region40
      $region39: #{attention_module_stage1.16} parent=11 // pred_region
        _
      $region40: #{attention_module_stage1.16} parent=11 // pred_fallthru
        _
      // Predicated region
      $region41: #{attention_module_stage1.16} parent=11 // pred_check
        %p435 = pneg %p268
      $region42: #{attention_module_stage1.16} parent=11 // pred_check_branch
        %437 = sbr.rel (%p435) target = $region44
      $region43: #{attention_module_stage1.16} parent=11 // pred_region
        _
      $region44: #{attention_module_stage1.16} parent=11 // pred_fallthru
        _
      // Predicated region
      $region45: #{attention_module_stage1.16} parent=11 // pred_check
        %p438 = pneg %p289
      $region46: #{attention_module_stage1.16} parent=11 // pred_check_branch
        %440 = sbr.rel (%p438) target = $region48
      $region47: #{attention_module_stage1.16} parent=11 // pred_region
        _
      $region48: #{attention_module_stage1.16} parent=11 // pred_fallthru
        _
      // Predicated region
      $region49: #{attention_module_stage1.16} parent=11 // pred_check
        %p441 = pneg %p310
      $region50: #{attention_module_stage1.16} parent=11 // pred_check_branch
        %443 = sbr.rel (%p441) target = $region52
      $region51: #{attention_module_stage1.16} parent=11 // pred_region
        _
      $region52: #{attention_module_stage1.16} parent=11 // pred_fallthru
        _
      // Predicated region
      $region53: #{attention_module_stage1.16} parent=11 // pred_check
        %p444 = pneg %p331
      $region54: #{attention_module_stage1.16} parent=11 // pred_check_branch
        %446 = sbr.rel (%p444) target = $region56
      $region55: #{attention_module_stage1.16} parent=11 // pred_region
        _
      $region56: #{attention_module_stage1.16} parent=11 // pred_fallthru
        _
      // Predicated region
      $region57: #{attention_module_stage1.16} parent=11 // pred_check
        %p447 = pneg %p352
      $region58: #{attention_module_stage1.16} parent=11 // pred_check_branch
        %449 = sbr.rel (%p447) target = $region60
      $region59: #{attention_module_stage1.16} parent=11 // pred_region
        _
      $region60: #{attention_module_stage1.16} parent=11 // pred_fallthru
        _
      // Predicated region
      $region61: #{attention_module_stage1.16} parent=11 // pred_check
        %p450 = pneg %p373
      $region62: #{attention_module_stage1.16} parent=11 // pred_check_branch
        %452 = sbr.rel (%p450) target = $region64
      $region63: #{attention_module_stage1.16} parent=11 // pred_region
        _
      $region64: #{attention_module_stage1.16} parent=11 // pred_fallthru
        _
    $region12: #{attention_module_stage1.16} parent=5 // pred_fallthru
      _
    %p453 = scmp.lt.s32.totalorder %s22, 2
    // Predicated region
    $region65: #{attention_module_stage1.16} parent=5 // pred_check
      %p454 = pneg %p453
    $region66: #{attention_module_stage1.16} parent=5 // pred_check_branch
      %456 = sbr.rel (%p454) target = $region68
    $region67: #{attention_module_stage1.16} parent=5 // pred_region
      // Predicated region
      $region69: #{attention_module_stage1.16} parent=67 // pred_check
        %p457 = pneg %p42
      $region70: #{attention_module_stage1.16} parent=67 // pred_check_branch
        %459 = sbr.rel (%p457) target = $region72
      $region71: #{attention_module_stage1.16} parent=67 // pred_region
        %p460 = scmp.lt.s32.totalorder %s22, 1
        %s461 = scalar_select %p460, %s22, 1
        %s462 = smul.addr %s461, 2
        %s463 = scalar_lea.vmem %s0, %s462
      $region72: #{attention_module_stage1.16} parent=67 // pred_fallthru
        _
      // Predicated region
      $region73: #{attention_module_stage1.16} parent=67 // pred_check
        %p464 = pneg %p68
      $region74: #{attention_module_stage1.16} parent=67 // pred_check_branch
        %466 = sbr.rel (%p464) target = $region76
      $region75: #{attention_module_stage1.16} parent=67 // pred_region
        %p467 = scmp.lt.s32.totalorder %s22, 1
        %s468 = scalar_select %p467, %s22, 1
        %s469 = smul.addr %s468, 2
        %s470 = scalar_lea.vmem %s1, %s469
      $region76: #{attention_module_stage1.16} parent=67 // pred_fallthru
        _
      // Predicated region
      $region77: #{attention_module_stage1.16} parent=67 // pred_check
        %p471 = pneg %p94
      $region78: #{attention_module_stage1.16} parent=67 // pred_check_branch
        %473 = sbr.rel (%p471) target = $region80
      $region79: #{attention_module_stage1.16} parent=67 // pred_region
        %p474 = scmp.lt.s32.totalorder %s22, 1
        %s475 = scalar_select %p474, %s22, 1
        %s476 = smul.addr %s475, 2
        %s477 = scalar_lea.vmem %s2, %s476
      $region80: #{attention_module_stage1.16} parent=67 // pred_fallthru
        _
    $region68: #{attention_module_stage1.16} parent=5 // pred_fallthru
      _
    %p478 = scmp.le.s32.totalorder 1, %s22
    %p479 = scmp.lt.s32.totalorder %s22, 3
    %p480 = pnand %p478, %p479
    %p481 = pneg %p480
    // Predicated region
    $region81: #{attention_module_stage1.16} parent=5 // pred_check
      _
    $region82: #{attention_module_stage1.16} parent=5 // pred_check_branch
      %483 = sbr.rel (%p480) target = $region84
    $region83: #{attention_module_stage1.16} parent=5 // pred_region
      %s484 = ssub.s32 %s22, 1
      %p485 = scmp.lt.s32.totalorder %s27, 1
      %s486 = scalar_select %p485, %s27, 1
      %s487 = smul.addr %s486, 2
      %s488 = scalar_lea.vmem %s0, %s487
      %p489 = pneg %p48
      %p490 = pneg %p45
      %p491 = scmp.lt.s32.totalorder %s27, 1
      %s492 = scalar_select %p491, %s27, 1
      %s493 = smul.addr %s492, 2
      %s494 = scalar_lea.vmem %s1, %s493
      %p495 = pneg %p74
      %p496 = pneg %p71
      %p497 = scmp.lt.s32.totalorder %s27, 1
      %s498 = scalar_select %p497, %s27, 1
      %s499 = smul.addr %s498, 2
      %s500 = scalar_lea.vmem %s2, %s499
      %p501 = pneg %p100
      %p502 = pneg %p97
      %p503 = pneg %p121
      %p504 = pneg %p118
      %p505 = pneg %p142
      %p506 = pneg %p139
      %p507 = pneg %p163
      %p508 = pneg %p160
      %p509 = pneg %p184
      %p510 = pneg %p181
      %p511 = pneg %p205
      %p512 = pneg %p202
      %p513 = pneg %p226
      %p514 = pneg %p223
      %p515 = pneg %p247
      %p516 = pneg %p244
      %p517 = pneg %p268
      %p518 = pneg %p265
      %p519 = pneg %p289
      %p520 = pneg %p286
      %p521 = pneg %p310
      %p522 = pneg %p307
      %p523 = pneg %p331
      %p524 = pneg %p328
      %p525 = pneg %p352
      %p526 = pneg %p349
      %p527 = pneg %p373
      %p528 = pneg %p370
      %p529 = pneg %p399
      %p530 = pneg %p396
      %p531 = scmp.lt.s32.totalorder %s27, 1
      %s532 = scalar_select %p531, %s27, 1
      %s533 = smul.addr %s532, 2
      %s534 = scalar_lea.vmem %s16, %s533
      %p535 = scmp.lt.s32.totalorder %s27, 1
      %s536 = scalar_select %p535, %s27, 1
      %s537 = smul.addr %s536, 2
      %s538 = scalar_lea.vmem %s0, %s537
      %p539 = scmp.lt.s32.totalorder %s27, 1
      %s540 = scalar_select %p539, %s27, 1
      %s541 = smul.addr %s540, 2
      %s542 = scalar_lea.vmem %s1, %s541
      %p543 = scmp.lt.s32.totalorder %s27, 1
      %s544 = scalar_select %p543, %s27, 1
      %s545 = smul.addr %s544, 2
      %s546 = scalar_lea.vmem %s2, %s545
      %p547 = scmp.lt.s32.totalorder %s27, 1
      %s548 = scalar_select %p547, %s27, 1
      %s549 = smul.addr %s548, 2
      %s550 = scalar_lea.vmem %s16, %s549
      %v552 = vld [vmem:[%s538] sm:$0x3]
      %v553 = vunpack.c.l.bf16 %v552
      %v554 = vld [vmem:[%s542] sm:$0x3]
      %v555 = vunpack.c.l.bf16 %v554
      %v556 = vadd.f32 %v553, %v555
      %v557 = vld [vmem:[%s546] sm:$0x3]
      %v558 = vunpack.c.l.bf16 %v557
      %v559 = vadd.f32 %v556, %v558
      %v560 = vld [vmem:[%s3] sm:$0x1]
      %v562 = vperm.slane %v560, 0
      %v564 = vmul.f32 %v559, %v562
      %v565 = vld [vmem:[%s4] sm:$0x1]
      %v567 = vperm.slane %v565, 0
      %v569 = vadd.f32 %v564, %v567
      %v570 = vmax.f32 %v569, 0.0
      %v571 = vpack.c.bf16 %v570, %v570
      %v572 = vld [vmem:[%s5] sm:$0xf]
      %v573 = vld [vmem:[%s5 + $0x4] sm:$0xf]
      %v574 = vld [vmem:[%s5 + $0x8] sm:$0xf]
      %v575 = vld [vmem:[%s5 + $0xc] sm:$0xf]
      %v576 = vld [vmem:[%s5 + $0x10] sm:$0xf]
      %v577 = vld [vmem:[%s5 + $0x14] sm:$0xf]
      %v578 = vld [vmem:[%s5 + $0x18] sm:$0xf]
      %v579 = vld [vmem:[%s5 + $0x1c] sm:$0xf]
      %v588 = vunpack.c.l.b16 %v572
      %v589 = vunpack.c.l.b16 %v573
      %v590 = vunpack.c.l.b16 %v574
      %v591 = vunpack.c.l.b16 %v575
      %v592 = vunpack.c.l.b16 %v576
      %v593 = vunpack.c.l.b16 %v577
      %v594 = vunpack.c.l.b16 %v578
      %v595 = vunpack.c.l.b16 %v579
      %v596 = vpack.c.b16 %v589, %v588
      %v597 = vpack.c.b16 %v591, %v590
      %v598 = vpack.c.b16 %v593, %v592
      %v599 = vpack.c.b16 %v595, %v594
      %vm604 = vcmask 523264
      %v606 = vsel %vm604, %v571, 0
      %608 = vmatpush.bf16.msra.mxu0 0
      %609 = vmatpush.bf16.msra.mxu0 0
      %610 = vmatpush.bf16.msra.mxu0 0
      %611 = vmatpush.bf16.msra.mxu0 0
      %612 = vmatpush.bf16.msra.mxu0 %v599
      %613 = vmatpush.bf16.msra.mxu0 %v598
      %614 = vmatpush.bf16.msra.mxu0 %v597
      %615 = vmatpush.bf16.msra.mxu0 %v596
      %616 = vmatmul.bf16.gmra.mxu0 %v606
      %v617 = vpop.f32.mrf.mxu0
      %v618 = vadd.f32 0.0, %v617
      %v619 = vpop.f32.mrf.mxu0
      %620 = vdwg.mxu0
      %v621 = vld [vmem:[%s6] sm:$0x1]
      %v623 = vperm.slane %v621, 0
      %v625 = vmul.f32 %v618, %v623
      %v626 = vld [vmem:[%s7] sm:$0x1]
      %v628 = vperm.slane %v626, 0
      %v630 = vadd.f32 %v625, %v628
      %v631 = vmax.f32 %v630, 0.0
      %v632 = vpack.c.bf16 %v631, %v631
      %v633 = vld [vmem:[%s8] sm:$0x3]
      %vm634 = vcmask 31744
      %v636 = vsel %vm634, %v633, 0
      %vm638 = vcmask 1041408
      %v640 = vsel %vm638, %v632, 0
      %642 = vmatpush.bf16.msra.mxu0 0
      %643 = vmatpush.bf16.msra.mxu0 0
      %644 = vmatpush.bf16.msra.mxu0 0
      %645 = vmatpush.bf16.msra.mxu0 0
      %646 = vmatpush.bf16.msra.mxu0 0
      %647 = vmatpush.bf16.msra.mxu0 0
      %648 = vmatpush.bf16.msra.mxu0 0
      %649 = vmatpush.bf16.msra.mxu0 %v640
      %650 = vmatmul.bf16.gmra.mxu0 %v636
      %v651 = vpop.f32.mrf.mxu0
      %v652 = vadd.f32 0.0, %v651
      %v653 = vpop.f32.mrf.mxu0
      %654 = vdwg.mxu0
      %v655 = vpack.c.bf16 %v652, %v652
      %v656 = vld [vmem:[%s9] sm:$0x3]
      %v658 = vsel %vm634, %v656, 0
      %660 = vmatpush.bf16.msra.mxu0 0
      %661 = vmatpush.bf16.msra.mxu0 0
      %662 = vmatpush.bf16.msra.mxu0 0
      %663 = vmatpush.bf16.msra.mxu0 0
      %664 = vmatpush.bf16.msra.mxu0 0
      %665 = vmatpush.bf16.msra.mxu0 0
      %666 = vmatpush.bf16.msra.mxu0 0
      %667 = vmatpush.bf16.msra.mxu0 %v640
      %668 = vmatmul.bf16.gmra.mxu0 %v658
      %v669 = vpop.f32.mrf.mxu0
      %v670 = vadd.f32 0.0, %v669
      %v671 = vpop.f32.mrf.mxu0
      %672 = vdwg.mxu0
      %v673 = vpack.c.bf16 %v670, %v670
      %v674 = vld [vmem:[%s10] sm:$0xf]
      %v675 = vld [vmem:[%s10 + $0x4] sm:$0xf]
      %v676 = vld [vmem:[%s11] sm:$0xf]
      %v677 = vld [vmem:[%s11 + $0x4] sm:$0xf]
      %v680 = vunpack.c.l.b16 %v676
      %v681 = vunpack.c.l.b16 %v677
      %v682 = vpack.c.b16 %v681, %v680
      %vm684 = vcmask 130048
      %v685 = vsel %vm684, %v632, 0
      %687 = vmatpush.bf16.msra.mxu0 0
      %688 = vmatpush.bf16.msra.mxu0 0
      %689 = vmatpush.bf16.msra.mxu0 0
      %690 = vmatpush.bf16.msra.mxu0 0
      %691 = vmatpush.bf16.msra.mxu0 0
      %692 = vmatpush.bf16.msra.mxu0 0
      %693 = vmatpush.bf16.msra.mxu0 0
      %694 = vmatpush.bf16.msra.mxu0 %v682
      %695 = vmatmul.bf16.gmra.mxu0 %v685
      %v696 = vpop.f32.mrf.mxu0
      %v697 = vadd.f32 0.0, %v696
      %v698 = vpop.f32.mrf.mxu0
      %699 = vdwg.mxu0
      %v702 = vunpack.c.l.b16 %v674
      %v703 = vunpack.c.l.b16 %v675
      %v704 = vpack.c.b16 %v703, %v702
      %v707 = vsel %vm684, %v655, 0
      %709 = vmatpush.bf16.msra.mxu0 0
      %710 = vmatpush.bf16.msra.mxu0 0
      %711 = vmatpush.bf16.msra.mxu0 0
      %712 = vmatpush.bf16.msra.mxu0 0
      %713 = vmatpush.bf16.msra.mxu0 0
      %714 = vmatpush.bf16.msra.mxu0 0
      %715 = vmatpush.bf16.msra.mxu0 0
      %716 = vmatpush.bf16.msra.mxu0 %v704
      %717 = vmatmul.bf16.gmra.mxu0 %v707
      %v718 = vpop.f32.mrf.mxu0
      %v719 = vadd.f32 %v697, %v718
      %v720 = vpop.f32.mrf.mxu0
      %721 = vdwg.mxu0
      %v722 = vld [vmem:[%s12] sm:$0xf]
      %v723 = vld [vmem:[%s12 + $0x4] sm:$0xf]
      %v726 = vunpack.c.l.b16 %v722
      %v727 = vunpack.c.l.b16 %v723
      %v728 = vpack.c.b16 %v727, %v726
      %v731 = vsel %vm684, %v673, 0
      %733 = vmatpush.bf16.msra.mxu0 0
      %734 = vmatpush.bf16.msra.mxu0 0
      %735 = vmatpush.bf16.msra.mxu0 0
      %736 = vmatpush.bf16.msra.mxu0 0
      %737 = vmatpush.bf16.msra.mxu0 0
      %738 = vmatpush.bf16.msra.mxu0 0
      %739 = vmatpush.bf16.msra.mxu0 0
      %740 = vmatpush.bf16.msra.mxu0 %v728
      %741 = vmatmul.bf16.gmra.mxu0 %v731
      %v742 = vpop.f32.mrf.mxu0
      %v743 = vadd.f32 0.0, %v742
      %v744 = vpop.f32.mrf.mxu0
      %745 = vdwg.mxu0
      %v746 = vadd.f32 %v719, %v743
      %v747 = vld [vmem:[%s13] sm:$0x1]
      %v749 = vperm.slane %v747, 0
      %v751 = vmul.f32 %v746, %v749
      %v752 = vld [vmem:[%s14] sm:$0x1]
      %v754 = vperm.slane %v752, 0
      %v756 = vadd.f32 %v751, %v754
      %v757 = vmax.f32 %v756, 0.0
      %v758 = vpack.c.bf16 %v757, %v757
      %v759 = vld [vmem:[%s15] sm:$0xf]
      %v760 = vld [vmem:[%s15 + $0x4] sm:$0xf]
      %v763 = vunpack.c.l.b16 %v759
      %v764 = vunpack.c.l.b16 %v760
      %v765 = vpack.c.b16 %v764, %v763
      %v768 = vsel %vm684, %v758, 0
      %770 = vmatpush.bf16.msra.mxu0 0
      %771 = vmatpush.bf16.msra.mxu0 0
      %772 = vmatpush.bf16.msra.mxu0 0
      %773 = vmatpush.bf16.msra.mxu0 0
      %774 = vmatpush.bf16.msra.mxu0 0
      %775 = vmatpush.bf16.msra.mxu0 0
      %776 = vmatpush.bf16.msra.mxu0 0
      %777 = vmatpush.bf16.msra.mxu0 %v765
      %778 = vmatmul.bf16.gmra.mxu0 %v768
      %v779 = vpop.f32.mrf.mxu0
      %v780 = vadd.f32 %v559, %v779
      %v781 = vpop.f32.mrf.mxu0
      %782 = vdwg.mxu0
      %v783 = vpack.c.bf16 %v780, %v780
      %vm784 = vcmask 517120
      %785 = vst.msk [vmem:[%s550] sm:$0x3] %vm784, %v783
      %p786 = scmp.lt.s32.totalorder %s27, 1
      %s787 = scalar_select %p786, %s27, 1
      %s788 = smul.addr %s787, 2
      %s789 = scalar_lea.vmem %s16, %s788
      // Predicated region
      $region85: #{attention_module_stage1.16} parent=83 // pred_check
        %p790 = pneg %p396
      $region86: #{attention_module_stage1.16} parent=83 // pred_check_branch
        %792 = sbr.rel (%p790) target = $region88
      $region87: #{attention_module_stage1.16} parent=83 // pred_region
        _
      $region88: #{attention_module_stage1.16} parent=83 // pred_fallthru
        _
    $region84: #{attention_module_stage1.16} parent=5 // pred_fallthru
      _
    %p793 = scmp.le.s32.totalorder 2, %s22
    // Predicated region
    $region89: #{attention_module_stage1.16} parent=5 // pred_check
      %p794 = pneg %p793
    $region90: #{attention_module_stage1.16} parent=5 // pred_check_branch
      %796 = sbr.rel (%p794) target = $region92
    $region91: #{attention_module_stage1.16} parent=5 // pred_region
      %s797 = ssub.s32 %s22, 2
      // Predicated region
      $region93: #{attention_module_stage1.16} parent=91 // pred_check
        %p798 = pneg %p402
      $region94: #{attention_module_stage1.16} parent=91 // pred_check_branch
        %800 = sbr.rel (%p798) target = $region96
      $region95: #{attention_module_stage1.16} parent=91 // pred_region
        %p801 = scmp.lt.s32.totalorder %s28, 1
        %s802 = scalar_select %p801, %s28, 1
        %s803 = smul.addr %s802, 2
        %s804 = scalar_lea.vmem %s16, %s803
      $region96: #{attention_module_stage1.16} parent=91 // pred_fallthru
        _
    $region92: #{attention_module_stage1.16} parent=5 // pred_fallthru
      _
  $region6: #{attention_module_stage1.16} parent=0 // loop_footer
    %s26 = sadd.s32 1, %s22
  $region7: #{attention_module_stage1.16} parent=0 // loop_footer_branch
    %21 = sbr.rel target = $region3
  $region8: #{attention_module_stage1.16} parent=0 // loop_exit
    _

// kernel: attention_module_stage1.18
$region0: #{attention_module_stage1.18}
  #allocation0 [shape = 'u32[]', space=smem, size = 0x4, offset = 0x4, fixed_abs, tag = 'smem constant byte address 0x4 - core index']
  #allocation1 [shape = 'u32[72,128]{1,0:T(1,128)}', space=vmem, size = 0x9000, scoped, tag = 'internal scratch']
  %s0 = inlined_call_operand.vmem [shape: bf16[2,8,128], index: 0, kind: input, shape index: {}]
  %s1 = inlined_call_operand.vmem [shape: bf16[2,8,128], index: 1, kind: input, shape index: {}]
  %s2 = inlined_call_operand.vmem [shape: bf16[2,8,128], index: 2, kind: input, shape index: {}]
  %s3 = inlined_call_operand.vmem [shape: f32[1,128], index: 3, kind: input, shape index: {}]
  %s4 = inlined_call_operand.vmem [shape: f32[1,128], index: 4, kind: input, shape index: {}]
  %s5 = inlined_call_operand.vmem [shape: bf16[128,32], index: 5, kind: input, shape index: {}]
  %s6 = inlined_call_operand.vmem [shape: f32[1,32], index: 6, kind: input, shape index: {}]
  %s7 = inlined_call_operand.vmem [shape: f32[1,32], index: 7, kind: input, shape index: {}]
  %s8 = inlined_call_operand.vmem [shape: bf16[8,8], index: 8, kind: input, shape index: {}]
  %s9 = inlined_call_operand.vmem [shape: bf16[8,8], index: 9, kind: input, shape index: {}]
  %s10 = inlined_call_operand.vmem [shape: bf16[32,32], index: 10, kind: input, shape index: {}]
  %s11 = inlined_call_operand.vmem [shape: bf16[32,32], index: 11, kind: input, shape index: {}]
  %s12 = inlined_call_operand.vmem [shape: bf16[32,32], index: 12, kind: input, shape index: {}]
  %s13 = inlined_call_operand.vmem [shape: f32[1,32], index: 13, kind: input, shape index: {}]
  %s14 = inlined_call_operand.vmem [shape: f32[1,32], index: 14, kind: input, shape index: {}]
  %s15 = inlined_call_operand.vmem [shape: bf16[32,128], index: 15, kind: input, shape index: {}]
  %s16 = inlined_call_operand.vmem [shape: bf16[2,8,128], index: 16, kind: output, shape index: {}]
  %s17 = sld [smem:[#allocation0]]
  $region97: #{attention_module_stage1.18} parent=0
    _
  %s19 = ssub.s32 1, %s17
  %s20 = scalar_select 0, %s19, %s17
  loop: start=0, step=1, limit=4
  $region2: #{attention_module_stage1.18} parent=0 // loop_pre_header
    _
  $region3: #{attention_module_stage1.18} parent=0 // loop_header
    %s22 = sphi 0, %s26
    %p23 = scmp.ge.s32.totalorder %s22, 4
    %s32 = sphi 0, %s34
    %s35 = sphi 0, %s32
    %s36 = sphi 0, %s35
    %s52 = sphi 0, %s36
    %s58 = sphi 0, %s60
    %s61 = sphi 0, %s58
    %s62 = sphi 0, %s61
    %s78 = sphi 0, %s62
    %s84 = sphi 0, %s86
    %s87 = sphi 0, %s84
    %s88 = sphi 0, %s87
    %s104 = sphi 0, %s88
    %s108 = sphi 0, %s108
    %s110 = sphi 0, %s108
    %s111 = sphi 0, %s110
    %s125 = sphi 0, %s111
    %s129 = sphi 0, %s129
    %s131 = sphi 0, %s129
    %s132 = sphi 0, %s131
    %s146 = sphi 0, %s132
    %s150 = sphi 0, %s150
    %s152 = sphi 0, %s150
    %s153 = sphi 0, %s152
    %s167 = sphi 0, %s153
    %s171 = sphi 0, %s171
    %s173 = sphi 0, %s171
    %s174 = sphi 0, %s173
    %s188 = sphi 0, %s174
    %s192 = sphi 0, %s192
    %s194 = sphi 0, %s192
    %s195 = sphi 0, %s194
    %s209 = sphi 0, %s195
    %s213 = sphi 0, %s213
    %s215 = sphi 0, %s213
    %s216 = sphi 0, %s215
    %s230 = sphi 0, %s216
    %s234 = sphi 0, %s234
    %s236 = sphi 0, %s234
    %s237 = sphi 0, %s236
    %s251 = sphi 0, %s237
    %s255 = sphi 0, %s255
    %s257 = sphi 0, %s255
    %s258 = sphi 0, %s257
    %s272 = sphi 0, %s258
    %s276 = sphi 0, %s276
    %s278 = sphi 0, %s276
    %s279 = sphi 0, %s278
    %s293 = sphi 0, %s279
    %s297 = sphi 0, %s297
    %s299 = sphi 0, %s297
    %s300 = sphi 0, %s299
    %s314 = sphi 0, %s300
    %s318 = sphi 0, %s318
    %s320 = sphi 0, %s318
    %s321 = sphi 0, %s320
    %s335 = sphi 0, %s321
    %s339 = sphi 0, %s339
    %s341 = sphi 0, %s339
    %s342 = sphi 0, %s341
    %s356 = sphi 0, %s342
    %s360 = sphi 0, %s360
    %s362 = sphi 0, %s360
    %s363 = sphi 0, %s362
    %s377 = sphi 0, %s363
    %s383 = sphi 0, %s385
    %s386 = sphi 0, %s383
    %s387 = sphi 0, %s386
    %s403 = sphi 0, %s387
  $region4: #{attention_module_stage1.18} parent=0 // loop_header_branch
    %25 = sbr.rel (%p23) target = $region8
  $region5: #{attention_module_stage1.18} parent=0 // loop_body
    %s27 = ssub.s32 %s22, 1
    %s28 = ssub.s32 %s22, 2
    %s29 = sadd.s32 %s22, 1
    %s30 = ssub.s32 %s22, %s29
    %p31 = scmp.eq.s32.totalorder %s30, 0
    %s33 = sadd.s32 %s32, 1
    %s34 = scalar_select %p31, %s32, %s33
    %p37 = pneg %p31
    %p38 = scmp.eq.s32.totalorder %s22, 1
    %p39 = por %p37, %p38
    %p40 = scmp.ne.s32.totalorder %s32, %s35
    %p41 = scmp.eq.s32.totalorder %s22, 0
    %p42 = por %p40, %p41
    %p43 = scmp.ne.s32.totalorder %s32, %s35
    %p44 = scmp.eq.s32.totalorder %s27, 1
    %p45 = por %p43, %p44
    %p46 = scmp.ne.s32.totalorder %s35, %s36
    %p47 = scmp.eq.s32.totalorder %s27, 0
    %p48 = por %p46, %p47
    %p49 = scmp.ne.s32.totalorder %s35, %s36
    %p50 = scmp.eq.s32.totalorder %s28, 1
    %p51 = por %p49, %p50
    %p53 = scmp.ne.s32.totalorder %s36, %s52
    %p54 = scmp.eq.s32.totalorder %s28, 0
    %p55 = por %p53, %p54
    %s56 = ssub.s32 %s22, %s29
    %p57 = scmp.eq.s32.totalorder %s56, 0
    %s59 = sadd.s32 %s58, 1
    %s60 = scalar_select %p57, %s58, %s59
    %p63 = pneg %p57
    %p64 = scmp.eq.s32.totalorder %s22, 1
    %p65 = por %p63, %p64
    %p66 = scmp.ne.s32.totalorder %s58, %s61
    %p67 = scmp.eq.s32.totalorder %s22, 0
    %p68 = por %p66, %p67
    %p69 = scmp.ne.s32.totalorder %s58, %s61
    %p70 = scmp.eq.s32.totalorder %s27, 1
    %p71 = por %p69, %p70
    %p72 = scmp.ne.s32.totalorder %s61, %s62
    %p73 = scmp.eq.s32.totalorder %s27, 0
    %p74 = por %p72, %p73
    %p75 = scmp.ne.s32.totalorder %s61, %s62
    %p76 = scmp.eq.s32.totalorder %s28, 1
    %p77 = por %p75, %p76
    %p79 = scmp.ne.s32.totalorder %s62, %s78
    %p80 = scmp.eq.s32.totalorder %s28, 0
    %p81 = por %p79, %p80
    %s82 = ssub.s32 %s22, %s29
    %p83 = scmp.eq.s32.totalorder %s82, 0
    %s85 = sadd.s32 %s84, 1
    %s86 = scalar_select %p83, %s84, %s85
    %p89 = pneg %p83
    %p90 = scmp.eq.s32.totalorder %s22, 1
    %p91 = por %p89, %p90
    %p92 = scmp.ne.s32.totalorder %s84, %s87
    %p93 = scmp.eq.s32.totalorder %s22, 0
    %p94 = por %p92, %p93
    %p95 = scmp.ne.s32.totalorder %s84, %s87
    %p96 = scmp.eq.s32.totalorder %s27, 1
    %p97 = por %p95, %p96
    %p98 = scmp.ne.s32.totalorder %s87, %s88
    %p99 = scmp.eq.s32.totalorder %s27, 0
    %p100 = por %p98, %p99
    %p101 = scmp.ne.s32.totalorder %s87, %s88
    %p102 = scmp.eq.s32.totalorder %s28, 1
    %p103 = por %p101, %p102
    %p105 = scmp.ne.s32.totalorder %s88, %s104
    %p106 = scmp.eq.s32.totalorder %s28, 0
    %p107 = por %p105, %p106
    %s109 = sadd.s32 %s108, 1
    %p112 = scmp.eq.s32.totalorder %s22, 1
    %p113 = scmp.ne.s32.totalorder %s108, %s110
    %p114 = scmp.eq.s32.totalorder %s22, 0
    %p115 = por %p113, %p114
    %p116 = scmp.ne.s32.totalorder %s108, %s110
    %p117 = scmp.eq.s32.totalorder %s27, 1
    %p118 = por %p116, %p117
    %p119 = scmp.ne.s32.totalorder %s110, %s111
    %p120 = scmp.eq.s32.totalorder %s27, 0
    %p121 = por %p119, %p120
    %p122 = scmp.ne.s32.totalorder %s110, %s111
    %p123 = scmp.eq.s32.totalorder %s28, 1
    %p124 = por %p122, %p123
    %p126 = scmp.ne.s32.totalorder %s111, %s125
    %p127 = scmp.eq.s32.totalorder %s28, 0
    %p128 = por %p126, %p127
    %s130 = sadd.s32 %s129, 1
    %p133 = scmp.eq.s32.totalorder %s22, 1
    %p134 = scmp.ne.s32.totalorder %s129, %s131
    %p135 = scmp.eq.s32.totalorder %s22, 0
    %p136 = por %p134, %p135
    %p137 = scmp.ne.s32.totalorder %s129, %s131
    %p138 = scmp.eq.s32.totalorder %s27, 1
    %p139 = por %p137, %p138
    %p140 = scmp.ne.s32.totalorder %s131, %s132
    %p141 = scmp.eq.s32.totalorder %s27, 0
    %p142 = por %p140, %p141
    %p143 = scmp.ne.s32.totalorder %s131, %s132
    %p144 = scmp.eq.s32.totalorder %s28, 1
    %p145 = por %p143, %p144
    %p147 = scmp.ne.s32.totalorder %s132, %s146
    %p148 = scmp.eq.s32.totalorder %s28, 0
    %p149 = por %p147, %p148
    %s151 = sadd.s32 %s150, 1
    %p154 = scmp.eq.s32.totalorder %s22, 1
    %p155 = scmp.ne.s32.totalorder %s150, %s152
    %p156 = scmp.eq.s32.totalorder %s22, 0
    %p157 = por %p155, %p156
    %p158 = scmp.ne.s32.totalorder %s150, %s152
    %p159 = scmp.eq.s32.totalorder %s27, 1
    %p160 = por %p158, %p159
    %p161 = scmp.ne.s32.totalorder %s152, %s153
    %p162 = scmp.eq.s32.totalorder %s27, 0
    %p163 = por %p161, %p162
    %p164 = scmp.ne.s32.totalorder %s152, %s153
    %p165 = scmp.eq.s32.totalorder %s28, 1
    %p166 = por %p164, %p165
    %p168 = scmp.ne.s32.totalorder %s153, %s167
    %p169 = scmp.eq.s32.totalorder %s28, 0
    %p170 = por %p168, %p169
    %s172 = sadd.s32 %s171, 1
    %p175 = scmp.eq.s32.totalorder %s22, 1
    %p176 = scmp.ne.s32.totalorder %s171, %s173
    %p177 = scmp.eq.s32.totalorder %s22, 0
    %p178 = por %p176, %p177
    %p179 = scmp.ne.s32.totalorder %s171, %s173
    %p180 = scmp.eq.s32.totalorder %s27, 1
    %p181 = por %p179, %p180
    %p182 = scmp.ne.s32.totalorder %s173, %s174
    %p183 = scmp.eq.s32.totalorder %s27, 0
    %p184 = por %p182, %p183
    %p185 = scmp.ne.s32.totalorder %s173, %s174
    %p186 = scmp.eq.s32.totalorder %s28, 1
    %p187 = por %p185, %p186
    %p189 = scmp.ne.s32.totalorder %s174, %s188
    %p190 = scmp.eq.s32.totalorder %s28, 0
    %p191 = por %p189, %p190
    %s193 = sadd.s32 %s192, 1
    %p196 = scmp.eq.s32.totalorder %s22, 1
    %p197 = scmp.ne.s32.totalorder %s192, %s194
    %p198 = scmp.eq.s32.totalorder %s22, 0
    %p199 = por %p197, %p198
    %p200 = scmp.ne.s32.totalorder %s192, %s194
    %p201 = scmp.eq.s32.totalorder %s27, 1
    %p202 = por %p200, %p201
    %p203 = scmp.ne.s32.totalorder %s194, %s195
    %p204 = scmp.eq.s32.totalorder %s27, 0
    %p205 = por %p203, %p204
    %p206 = scmp.ne.s32.totalorder %s194, %s195
    %p207 = scmp.eq.s32.totalorder %s28, 1
    %p208 = por %p206, %p207
    %p210 = scmp.ne.s32.totalorder %s195, %s209
    %p211 = scmp.eq.s32.totalorder %s28, 0
    %p212 = por %p210, %p211
    %s214 = sadd.s32 %s213, 1
    %p217 = scmp.eq.s32.totalorder %s22, 1
    %p218 = scmp.ne.s32.totalorder %s213, %s215
    %p219 = scmp.eq.s32.totalorder %s22, 0
    %p220 = por %p218, %p219
    %p221 = scmp.ne.s32.totalorder %s213, %s215
    %p222 = scmp.eq.s32.totalorder %s27, 1
    %p223 = por %p221, %p222
    %p224 = scmp.ne.s32.totalorder %s215, %s216
    %p225 = scmp.eq.s32.totalorder %s27, 0
    %p226 = por %p224, %p225
    %p227 = scmp.ne.s32.totalorder %s215, %s216
    %p228 = scmp.eq.s32.totalorder %s28, 1
    %p229 = por %p227, %p228
    %p231 = scmp.ne.s32.totalorder %s216, %s230
    %p232 = scmp.eq.s32.totalorder %s28, 0
    %p233 = por %p231, %p232
    %s235 = sadd.s32 %s234, 1
    %p238 = scmp.eq.s32.totalorder %s22, 1
    %p239 = scmp.ne.s32.totalorder %s234, %s236
    %p240 = scmp.eq.s32.totalorder %s22, 0
    %p241 = por %p239, %p240
    %p242 = scmp.ne.s32.totalorder %s234, %s236
    %p243 = scmp.eq.s32.totalorder %s27, 1
    %p244 = por %p242, %p243
    %p245 = scmp.ne.s32.totalorder %s236, %s237
    %p246 = scmp.eq.s32.totalorder %s27, 0
    %p247 = por %p245, %p246
    %p248 = scmp.ne.s32.totalorder %s236, %s237
    %p249 = scmp.eq.s32.totalorder %s28, 1
    %p250 = por %p248, %p249
    %p252 = scmp.ne.s32.totalorder %s237, %s251
    %p253 = scmp.eq.s32.totalorder %s28, 0
    %p254 = por %p252, %p253
    %s256 = sadd.s32 %s255, 1
    %p259 = scmp.eq.s32.totalorder %s22, 1
    %p260 = scmp.ne.s32.totalorder %s255, %s257
    %p261 = scmp.eq.s32.totalorder %s22, 0
    %p262 = por %p260, %p261
    %p263 = scmp.ne.s32.totalorder %s255, %s257
    %p264 = scmp.eq.s32.totalorder %s27, 1
    %p265 = por %p263, %p264
    %p266 = scmp.ne.s32.totalorder %s257, %s258
    %p267 = scmp.eq.s32.totalorder %s27, 0
    %p268 = por %p266, %p267
    %p269 = scmp.ne.s32.totalorder %s257, %s258
    %p270 = scmp.eq.s32.totalorder %s28, 1
    %p271 = por %p269, %p270
    %p273 = scmp.ne.s32.totalorder %s258, %s272
    %p274 = scmp.eq.s32.totalorder %s28, 0
    %p275 = por %p273, %p274
    %s277 = sadd.s32 %s276, 1
    %p280 = scmp.eq.s32.totalorder %s22, 1
    %p281 = scmp.ne.s32.totalorder %s276, %s278
    %p282 = scmp.eq.s32.totalorder %s22, 0
    %p283 = por %p281, %p282
    %p284 = scmp.ne.s32.totalorder %s276, %s278
    %p285 = scmp.eq.s32.totalorder %s27, 1
    %p286 = por %p284, %p285
    %p287 = scmp.ne.s32.totalorder %s278, %s279
    %p288 = scmp.eq.s32.totalorder %s27, 0
    %p289 = por %p287, %p288
    %p290 = scmp.ne.s32.totalorder %s278, %s279
    %p291 = scmp.eq.s32.totalorder %s28, 1
    %p292 = por %p290, %p291
    %p294 = scmp.ne.s32.totalorder %s279, %s293
    %p295 = scmp.eq.s32.totalorder %s28, 0
    %p296 = por %p294, %p295
    %s298 = sadd.s32 %s297, 1
    %p301 = scmp.eq.s32.totalorder %s22, 1
    %p302 = scmp.ne.s32.totalorder %s297, %s299
    %p303 = scmp.eq.s32.totalorder %s22, 0
    %p304 = por %p302, %p303
    %p305 = scmp.ne.s32.totalorder %s297, %s299
    %p306 = scmp.eq.s32.totalorder %s27, 1
    %p307 = por %p305, %p306
    %p308 = scmp.ne.s32.totalorder %s299, %s300
    %p309 = scmp.eq.s32.totalorder %s27, 0
    %p310 = por %p308, %p309
    %p311 = scmp.ne.s32.totalorder %s299, %s300
    %p312 = scmp.eq.s32.totalorder %s28, 1
    %p313 = por %p311, %p312
    %p315 = scmp.ne.s32.totalorder %s300, %s314
    %p316 = scmp.eq.s32.totalorder %s28, 0
    %p317 = por %p315, %p316
    %s319 = sadd.s32 %s318, 1
    %p322 = scmp.eq.s32.totalorder %s22, 1
    %p323 = scmp.ne.s32.totalorder %s318, %s320
    %p324 = scmp.eq.s32.totalorder %s22, 0
    %p325 = por %p323, %p324
    %p326 = scmp.ne.s32.totalorder %s318, %s320
    %p327 = scmp.eq.s32.totalorder %s27, 1
    %p328 = por %p326, %p327
    %p329 = scmp.ne.s32.totalorder %s320, %s321
    %p330 = scmp.eq.s32.totalorder %s27, 0
    %p331 = por %p329, %p330
    %p332 = scmp.ne.s32.totalorder %s320, %s321
    %p333 = scmp.eq.s32.totalorder %s28, 1
    %p334 = por %p332, %p333
    %p336 = scmp.ne.s32.totalorder %s321, %s335
    %p337 = scmp.eq.s32.totalorder %s28, 0
    %p338 = por %p336, %p337
    %s340 = sadd.s32 %s339, 1
    %p343 = scmp.eq.s32.totalorder %s22, 1
    %p344 = scmp.ne.s32.totalorder %s339, %s341
    %p345 = scmp.eq.s32.totalorder %s22, 0
    %p346 = por %p344, %p345
    %p347 = scmp.ne.s32.totalorder %s339, %s341
    %p348 = scmp.eq.s32.totalorder %s27, 1
    %p349 = por %p347, %p348
    %p350 = scmp.ne.s32.totalorder %s341, %s342
    %p351 = scmp.eq.s32.totalorder %s27, 0
    %p352 = por %p350, %p351
    %p353 = scmp.ne.s32.totalorder %s341, %s342
    %p354 = scmp.eq.s32.totalorder %s28, 1
    %p355 = por %p353, %p354
    %p357 = scmp.ne.s32.totalorder %s342, %s356
    %p358 = scmp.eq.s32.totalorder %s28, 0
    %p359 = por %p357, %p358
    %s361 = sadd.s32 %s360, 1
    %p364 = scmp.eq.s32.totalorder %s22, 1
    %p365 = scmp.ne.s32.totalorder %s360, %s362
    %p366 = scmp.eq.s32.totalorder %s22, 0
    %p367 = por %p365, %p366
    %p368 = scmp.ne.s32.totalorder %s360, %s362
    %p369 = scmp.eq.s32.totalorder %s27, 1
    %p370 = por %p368, %p369
    %p371 = scmp.ne.s32.totalorder %s362, %s363
    %p372 = scmp.eq.s32.totalorder %s27, 0
    %p373 = por %p371, %p372
    %p374 = scmp.ne.s32.totalorder %s362, %s363
    %p375 = scmp.eq.s32.totalorder %s28, 1
    %p376 = por %p374, %p375
    %p378 = scmp.ne.s32.totalorder %s363, %s377
    %p379 = scmp.eq.s32.totalorder %s28, 0
    %p380 = por %p378, %p379
    %s381 = ssub.s32 %s22, %s29
    %p382 = scmp.eq.s32.totalorder %s381, 0
    %s384 = sadd.s32 %s383, 1
    %s385 = scalar_select %p382, %s383, %s384
    %p388 = pneg %p382
    %p389 = scmp.eq.s32.totalorder %s22, 1
    %p390 = por %p388, %p389
    %p391 = scmp.ne.s32.totalorder %s383, %s386
    %p392 = scmp.eq.s32.totalorder %s22, 0
    %p393 = por %p391, %p392
    %p394 = scmp.ne.s32.totalorder %s383, %s386
    %p395 = scmp.eq.s32.totalorder %s27, 1
    %p396 = por %p394, %p395
    %p397 = scmp.ne.s32.totalorder %s386, %s387
    %p398 = scmp.eq.s32.totalorder %s27, 0
    %p399 = por %p397, %p398
    %p400 = scmp.ne.s32.totalorder %s386, %s387
    %p401 = scmp.eq.s32.totalorder %s28, 1
    %p402 = por %p400, %p401
    %p404 = scmp.ne.s32.totalorder %s387, %s403
    %p405 = scmp.eq.s32.totalorder %s28, 0
    %p406 = por %p404, %p405
    %p407 = scmp.le.s32.totalorder 1, %s22
    %p408 = scmp.lt.s32.totalorder %s22, 3
    %p409 = pnand %p407, %p408
    %p410 = pneg %p409
    // Predicated region
    $region9: #{attention_module_stage1.18} parent=5 // pred_check
      _
    $region10: #{attention_module_stage1.18} parent=5 // pred_check_branch
      %412 = sbr.rel (%p409) target = $region12
    $region11: #{attention_module_stage1.18} parent=5 // pred_region
      %s413 = ssub.s32 %s22, 1
      // Predicated region
      $region13: #{attention_module_stage1.18} parent=11 // pred_check
        %p414 = pneg %p121
      $region14: #{attention_module_stage1.18} parent=11 // pred_check_branch
        %416 = sbr.rel (%p414) target = $region16
      $region15: #{attention_module_stage1.18} parent=11 // pred_region
        _
      $region16: #{attention_module_stage1.18} parent=11 // pred_fallthru
        _
      // Predicated region
      $region17: #{attention_module_stage1.18} parent=11 // pred_check
        %p417 = pneg %p142
      $region18: #{attention_module_stage1.18} parent=11 // pred_check_branch
        %419 = sbr.rel (%p417) target = $region20
      $region19: #{attention_module_stage1.18} parent=11 // pred_region
        _
      $region20: #{attention_module_stage1.18} parent=11 // pred_fallthru
        _
      // Predicated region
      $region21: #{attention_module_stage1.18} parent=11 // pred_check
        %p420 = pneg %p163
      $region22: #{attention_module_stage1.18} parent=11 // pred_check_branch
        %422 = sbr.rel (%p420) target = $region24
      $region23: #{attention_module_stage1.18} parent=11 // pred_region
        _
      $region24: #{attention_module_stage1.18} parent=11 // pred_fallthru
        _
      // Predicated region
      $region25: #{attention_module_stage1.18} parent=11 // pred_check
        %p423 = pneg %p184
      $region26: #{attention_module_stage1.18} parent=11 // pred_check_branch
        %425 = sbr.rel (%p423) target = $region28
      $region27: #{attention_module_stage1.18} parent=11 // pred_region
        _
      $region28: #{attention_module_stage1.18} parent=11 // pred_fallthru
        _
      // Predicated region
      $region29: #{attention_module_stage1.18} parent=11 // pred_check
        %p426 = pneg %p205
      $region30: #{attention_module_stage1.18} parent=11 // pred_check_branch
        %428 = sbr.rel (%p426) target = $region32
      $region31: #{attention_module_stage1.18} parent=11 // pred_region
        _
      $region32: #{attention_module_stage1.18} parent=11 // pred_fallthru
        _
      // Predicated region
      $region33: #{attention_module_stage1.18} parent=11 // pred_check
        %p429 = pneg %p226
      $region34: #{attention_module_stage1.18} parent=11 // pred_check_branch
        %431 = sbr.rel (%p429) target = $region36
      $region35: #{attention_module_stage1.18} parent=11 // pred_region
        _
      $region36: #{attention_module_stage1.18} parent=11 // pred_fallthru
        _
      // Predicated region
      $region37: #{attention_module_stage1.18} parent=11 // pred_check
        %p432 = pneg %p247
      $region38: #{attention_module_stage1.18} parent=11 // pred_check_branch
        %434 = sbr.rel (%p432) target = $region40
      $region39: #{attention_module_stage1.18} parent=11 // pred_region
        _
      $region40: #{attention_module_stage1.18} parent=11 // pred_fallthru
        _
      // Predicated region
      $region41: #{attention_module_stage1.18} parent=11 // pred_check
        %p435 = pneg %p268
      $region42: #{attention_module_stage1.18} parent=11 // pred_check_branch
        %437 = sbr.rel (%p435) target = $region44
      $region43: #{attention_module_stage1.18} parent=11 // pred_region
        _
      $region44: #{attention_module_stage1.18} parent=11 // pred_fallthru
        _
      // Predicated region
      $region45: #{attention_module_stage1.18} parent=11 // pred_check
        %p438 = pneg %p289
      $region46: #{attention_module_stage1.18} parent=11 // pred_check_branch
        %440 = sbr.rel (%p438) target = $region48
      $region47: #{attention_module_stage1.18} parent=11 // pred_region
        _
      $region48: #{attention_module_stage1.18} parent=11 // pred_fallthru
        _
      // Predicated region
      $region49: #{attention_module_stage1.18} parent=11 // pred_check
        %p441 = pneg %p310
      $region50: #{attention_module_stage1.18} parent=11 // pred_check_branch
        %443 = sbr.rel (%p441) target = $region52
      $region51: #{attention_module_stage1.18} parent=11 // pred_region
        _
      $region52: #{attention_module_stage1.18} parent=11 // pred_fallthru
        _
      // Predicated region
      $region53: #{attention_module_stage1.18} parent=11 // pred_check
        %p444 = pneg %p331
      $region54: #{attention_module_stage1.18} parent=11 // pred_check_branch
        %446 = sbr.rel (%p444) target = $region56
      $region55: #{attention_module_stage1.18} parent=11 // pred_region
        _
      $region56: #{attention_module_stage1.18} parent=11 // pred_fallthru
        _
      // Predicated region
      $region57: #{attention_module_stage1.18} parent=11 // pred_check
        %p447 = pneg %p352
      $region58: #{attention_module_stage1.18} parent=11 // pred_check_branch
        %449 = sbr.rel (%p447) target = $region60
      $region59: #{attention_module_stage1.18} parent=11 // pred_region
        _
      $region60: #{attention_module_stage1.18} parent=11 // pred_fallthru
        _
      // Predicated region
      $region61: #{attention_module_stage1.18} parent=11 // pred_check
        %p450 = pneg %p373
      $region62: #{attention_module_stage1.18} parent=11 // pred_check_branch
        %452 = sbr.rel (%p450) target = $region64
      $region63: #{attention_module_stage1.18} parent=11 // pred_region
        _
      $region64: #{attention_module_stage1.18} parent=11 // pred_fallthru
        _
    $region12: #{attention_module_stage1.18} parent=5 // pred_fallthru
      _
    %p453 = scmp.lt.s32.totalorder %s22, 2
    // Predicated region
    $region65: #{attention_module_stage1.18} parent=5 // pred_check
      %p454 = pneg %p453
    $region66: #{attention_module_stage1.18} parent=5 // pred_check_branch
      %456 = sbr.rel (%p454) target = $region68
    $region67: #{attention_module_stage1.18} parent=5 // pred_region
      // Predicated region
      $region69: #{attention_module_stage1.18} parent=67 // pred_check
        %p457 = pneg %p42
      $region70: #{attention_module_stage1.18} parent=67 // pred_check_branch
        %459 = sbr.rel (%p457) target = $region72
      $region71: #{attention_module_stage1.18} parent=67 // pred_region
        %p460 = scmp.lt.s32.totalorder %s22, 1
        %s461 = scalar_select %p460, %s22, 1
        %s462 = smul.addr %s461, 4
        %s463 = scalar_lea.vmem %s0, %s462
      $region72: #{attention_module_stage1.18} parent=67 // pred_fallthru
        _
      // Predicated region
      $region73: #{attention_module_stage1.18} parent=67 // pred_check
        %p464 = pneg %p68
      $region74: #{attention_module_stage1.18} parent=67 // pred_check_branch
        %466 = sbr.rel (%p464) target = $region76
      $region75: #{attention_module_stage1.18} parent=67 // pred_region
        %p467 = scmp.lt.s32.totalorder %s22, 1
        %s468 = scalar_select %p467, %s22, 1
        %s469 = smul.addr %s468, 4
        %s470 = scalar_lea.vmem %s1, %s469
      $region76: #{attention_module_stage1.18} parent=67 // pred_fallthru
        _
      // Predicated region
      $region77: #{attention_module_stage1.18} parent=67 // pred_check
        %p471 = pneg %p94
      $region78: #{attention_module_stage1.18} parent=67 // pred_check_branch
        %473 = sbr.rel (%p471) target = $region80
      $region79: #{attention_module_stage1.18} parent=67 // pred_region
        %p474 = scmp.lt.s32.totalorder %s22, 1
        %s475 = scalar_select %p474, %s22, 1
        %s476 = smul.addr %s475, 4
        %s477 = scalar_lea.vmem %s2, %s476
      $region80: #{attention_module_stage1.18} parent=67 // pred_fallthru
        _
    $region68: #{attention_module_stage1.18} parent=5 // pred_fallthru
      _
    %p478 = scmp.le.s32.totalorder 1, %s22
    %p479 = scmp.lt.s32.totalorder %s22, 3
    %p480 = pnand %p478, %p479
    %p481 = pneg %p480
    // Predicated region
    $region81: #{attention_module_stage1.18} parent=5 // pred_check
      _
    $region82: #{attention_module_stage1.18} parent=5 // pred_check_branch
      %483 = sbr.rel (%p480) target = $region84
    $region83: #{attention_module_stage1.18} parent=5 // pred_region
      %s484 = ssub.s32 %s22, 1
      %p485 = scmp.lt.s32.totalorder %s27, 1
      %s486 = scalar_select %p485, %s27, 1
      %s487 = smul.addr %s486, 4
      %s488 = scalar_lea.vmem %s0, %s487
      %p489 = pneg %p48
      %p490 = pneg %p45
      %p491 = scmp.lt.s32.totalorder %s27, 1
      %s492 = scalar_select %p491, %s27, 1
      %s493 = smul.addr %s492, 4
      %s494 = scalar_lea.vmem %s1, %s493
      %p495 = pneg %p74
      %p496 = pneg %p71
      %p497 = scmp.lt.s32.totalorder %s27, 1
      %s498 = scalar_select %p497, %s27, 1
      %s499 = smul.addr %s498, 4
      %s500 = scalar_lea.vmem %s2, %s499
      %p501 = pneg %p100
      %p502 = pneg %p97
      %p503 = pneg %p121
      %p504 = pneg %p118
      %p505 = pneg %p142
      %p506 = pneg %p139
      %p507 = pneg %p163
      %p508 = pneg %p160
      %p509 = pneg %p184
      %p510 = pneg %p181
      %p511 = pneg %p205
      %p512 = pneg %p202
      %p513 = pneg %p226
      %p514 = pneg %p223
      %p515 = pneg %p247
      %p516 = pneg %p244
      %p517 = pneg %p268
      %p518 = pneg %p265
      %p519 = pneg %p289
      %p520 = pneg %p286
      %p521 = pneg %p310
      %p522 = pneg %p307
      %p523 = pneg %p331
      %p524 = pneg %p328
      %p525 = pneg %p352
      %p526 = pneg %p349
      %p527 = pneg %p373
      %p528 = pneg %p370
      %p529 = pneg %p399
      %p530 = pneg %p396
      %p531 = scmp.lt.s32.totalorder %s27, 1
      %s532 = scalar_select %p531, %s27, 1
      %s533 = smul.addr %s532, 4
      %s534 = scalar_lea.vmem %s16, %s533
      %p535 = scmp.lt.s32.totalorder %s27, 1
      %s536 = scalar_select %p535, %s27, 1
      %s537 = smul.addr %s536, 4
      %s538 = scalar_lea.vmem %s0, %s537
      %p539 = scmp.lt.s32.totalorder %s27, 1
      %s540 = scalar_select %p539, %s27, 1
      %s541 = smul.addr %s540, 4
      %s542 = scalar_lea.vmem %s1, %s541
      %p543 = scmp.lt.s32.totalorder %s27, 1
      %s544 = scalar_select %p543, %s27, 1
      %s545 = smul.addr %s544, 4
      %s546 = scalar_lea.vmem %s2, %s545
      %p547 = scmp.lt.s32.totalorder %s27, 1
      %s548 = scalar_select %p547, %s27, 1
      %s549 = smul.addr %s548, 4
      %s550 = scalar_lea.vmem %s16, %s549
      %v552 = vld [vmem:[%s538] sm:$0xf]
      %v553 = vunpack.c.l.bf16 %v552
      %v554 = vld [vmem:[%s542] sm:$0xf]
      %v555 = vunpack.c.l.bf16 %v554
      %v556 = vadd.f32 %v553, %v555
      %v557 = vld [vmem:[%s546] sm:$0xf]
      %v558 = vunpack.c.l.bf16 %v557
      %v559 = vadd.f32 %v556, %v558
      %v560 = vld [vmem:[%s3] sm:$0x1]
      %v562 = vperm.slane %v560, 0
      %v564 = vmul.f32 %v559, %v562
      %v565 = vld [vmem:[%s4] sm:$0x1]
      %v567 = vperm.slane %v565, 0
      %v569 = vadd.f32 %v564, %v567
      %v570 = vmax.f32 %v569, 0.0
      %v571 = vpack.c.bf16 %v570, %v570
      %v572 = vld [vmem:[%s5] sm:$0xf]
      %v573 = vld [vmem:[%s5 + $0x4] sm:$0xf]
      %v574 = vld [vmem:[%s5 + $0x8] sm:$0xf]
      %v575 = vld [vmem:[%s5 + $0xc] sm:$0xf]
      %v576 = vld [vmem:[%s5 + $0x10] sm:$0xf]
      %v577 = vld [vmem:[%s5 + $0x14] sm:$0xf]
      %v578 = vld [vmem:[%s5 + $0x18] sm:$0xf]
      %v579 = vld [vmem:[%s5 + $0x1c] sm:$0xf]
      %v580 = vld [vmem:[%s5 + $0x20] sm:$0xf]
      %v581 = vld [vmem:[%s5 + $0x24] sm:$0xf]
      %v582 = vld [vmem:[%s5 + $0x28] sm:$0xf]
      %v583 = vld [vmem:[%s5 + $0x2c] sm:$0xf]
      %v584 = vld [vmem:[%s5 + $0x30] sm:$0xf]
      %v585 = vld [vmem:[%s5 + $0x34] sm:$0xf]
      %v586 = vld [vmem:[%s5 + $0x38] sm:$0xf]
      %v587 = vld [vmem:[%s5 + $0x3c] sm:$0xf]
      %v604 = vunpack.c.l.b16 %v572
      %v605 = vunpack.c.l.b16 %v573
      %v606 = vunpack.c.l.b16 %v574
      %v607 = vunpack.c.l.b16 %v575
      %v608 = vunpack.c.l.b16 %v576
      %v609 = vunpack.c.l.b16 %v577
      %v610 = vunpack.c.l.b16 %v578
      %v611 = vunpack.c.l.b16 %v579
      %v612 = vunpack.c.l.b16 %v580
      %v613 = vunpack.c.l.b16 %v581
      %v614 = vunpack.c.l.b16 %v582
      %v615 = vunpack.c.l.b16 %v583
      %v616 = vunpack.c.l.b16 %v584
      %v617 = vunpack.c.l.b16 %v585
      %v618 = vunpack.c.l.b16 %v586
      %v619 = vunpack.c.l.b16 %v587
      %v620 = vpack.c.b16 %v605, %v604
      %v621 = vpack.c.b16 %v607, %v606
      %v622 = vpack.c.b16 %v609, %v608
      %v623 = vpack.c.b16 %v611, %v610
      %v624 = vpack.c.b16 %v613, %v612
      %v625 = vpack.c.b16 %v615, %v614
      %v626 = vpack.c.b16 %v617, %v616
      %v627 = vpack.c.b16 %v619, %v618
      %636 = vmatpush.bf16.msra.mxu0 %v627
      %637 = vmatpush.bf16.msra.mxu0 %v626
      %638 = vmatpush.bf16.msra.mxu0 %v625
      %639 = vmatpush.bf16.msra.mxu0 %v624
      %640 = vmatpush.bf16.msra.mxu0 %v623
      %641 = vmatpush.bf16.msra.mxu0 %v622
      %642 = vmatpush.bf16.msra.mxu0 %v621
      %643 = vmatpush.bf16.msra.mxu0 %v620
      %644 = vmatmul.bf16.gmra.mxu0 %v571
      %v645 = vpop.f32.mrf.mxu0
      %v646 = vadd.f32 0.0, %v645
      %v647 = vpop.f32.mrf.mxu0
      %648 = vdwg.mxu0
      %v649 = vld [vmem:[%s6] sm:$0x1]
      %v651 = vperm.slane %v649, 0
      %v653 = vmul.f32 %v646, %v651
      %v654 = vld [vmem:[%s7] sm:$0x1]
      %v656 = vperm.slane %v654, 0
      %v658 = vadd.f32 %v653, %v656
      %v659 = vmax.f32 %v658, 0.0
      %v660 = vpack.c.bf16 %v659, %v659
      %v661 = vld [vmem:[%s8] sm:$0xf]
      %vm662 = vcmask 64512
      %v664 = vsel %vm662, %v661, 0
      %vm666 = vcmask 1043456
      %v668 = vsel %vm666, %v660, 0
      %670 = vmatpush.bf16.msra.mxu0 0
      %671 = vmatpush.bf16.msra.mxu0 0
      %672 = vmatpush.bf16.msra.mxu0 0
      %673 = vmatpush.bf16.msra.mxu0 0
      %674 = vmatpush.bf16.msra.mxu0 0
      %675 = vmatpush.bf16.msra.mxu0 0
      %676 = vmatpush.bf16.msra.mxu0 0
      %677 = vmatpush.bf16.msra.mxu0 %v668
      %678 = vmatmul.bf16.gmra.mxu0 %v664
      %v679 = vpop.f32.mrf.mxu0
      %v680 = vadd.f32 0.0, %v679
      %v681 = vpop.f32.mrf.mxu0
      %682 = vdwg.mxu0
      %v683 = vpack.c.bf16 %v680, %v680
      %v684 = vld [vmem:[%s9] sm:$0xf]
      %v686 = vsel %vm662, %v684, 0
      %688 = vmatpush.bf16.msra.mxu0 0
      %689 = vmatpush.bf16.msra.mxu0 0
      %690 = vmatpush.bf16.msra.mxu0 0
      %691 = vmatpush.bf16.msra.mxu0 0
      %692 = vmatpush.bf16.msra.mxu0 0
      %693 = vmatpush.bf16.msra.mxu0 0
      %694 = vmatpush.bf16.msra.mxu0 0
      %695 = vmatpush.bf16.msra.mxu0 %v668
      %696 = vmatmul.bf16.gmra.mxu0 %v686
      %v697 = vpop.f32.mrf.mxu0
      %v698 = vadd.f32 0.0, %v697
      %v699 = vpop.f32.mrf.mxu0
      %700 = vdwg.mxu0
      %v701 = vpack.c.bf16 %v698, %v698
      %v702 = vld [vmem:[%s10] sm:$0xf]
      %v703 = vld [vmem:[%s10 + $0x4] sm:$0xf]
      %v704 = vld [vmem:[%s10 + $0x8] sm:$0xf]
      %v705 = vld [vmem:[%s10 + $0xc] sm:$0xf]
      %v706 = vld [vmem:[%s11] sm:$0xf]
      %v707 = vld [vmem:[%s11 + $0x4] sm:$0xf]
      %v708 = vld [vmem:[%s11 + $0x8] sm:$0xf]
      %v709 = vld [vmem:[%s11 + $0xc] sm:$0xf]
      %v714 = vunpack.c.l.b16 %v706
      %v715 = vunpack.c.l.b16 %v707
      %v716 = vunpack.c.l.b16 %v708
      %v717 = vunpack.c.l.b16 %v709
      %v718 = vpack.c.b16 %v715, %v714
      %v719 = vpack.c.b16 %v717, %v716
      %vm722 = vcmask 261120
      %v723 = vsel %vm722, %v660, 0
      %725 = vmatpush.bf16.msra.mxu0 0
      %726 = vmatpush.bf16.msra.mxu0 0
      %727 = vmatpush.bf16.msra.mxu0 0
      %728 = vmatpush.bf16.msra.mxu0 0
      %729 = vmatpush.bf16.msra.mxu0 0
      %730 = vmatpush.bf16.msra.mxu0 0
      %731 = vmatpush.bf16.msra.mxu0 %v719
      %732 = vmatpush.bf16.msra.mxu0 %v718
      %733 = vmatmul.bf16.gmra.mxu0 %v723
      %v734 = vpop.f32.mrf.mxu0
      %v735 = vadd.f32 0.0, %v734
      %v736 = vpop.f32.mrf.mxu0
      %737 = vdwg.mxu0
      %v742 = vunpack.c.l.b16 %v702
      %v743 = vunpack.c.l.b16 %v703
      %v744 = vunpack.c.l.b16 %v704
      %v745 = vunpack.c.l.b16 %v705
      %v746 = vpack.c.b16 %v743, %v742
      %v747 = vpack.c.b16 %v745, %v744
      %v751 = vsel %vm722, %v683, 0
      %753 = vmatpush.bf16.msra.mxu0 0
      %754 = vmatpush.bf16.msra.mxu0 0
      %755 = vmatpush.bf16.msra.mxu0 0
      %756 = vmatpush.bf16.msra.mxu0 0
      %757 = vmatpush.bf16.msra.mxu0 0
      %758 = vmatpush.bf16.msra.mxu0 0
      %759 = vmatpush.bf16.msra.mxu0 %v747
      %760 = vmatpush.bf16.msra.mxu0 %v746
      %761 = vmatmul.bf16.gmra.mxu0 %v751
      %v762 = vpop.f32.mrf.mxu0
      %v763 = vadd.f32 %v735, %v762
      %v764 = vpop.f32.mrf.mxu0
      %765 = vdwg.mxu0
      %v766 = vld [vmem:[%s12] sm:$0xf]
      %v767 = vld [vmem:[%s12 + $0x4] sm:$0xf]
      %v768 = vld [vmem:[%s12 + $0x8] sm:$0xf]
      %v769 = vld [vmem:[%s12 + $0xc] sm:$0xf]
      %v774 = vunpack.c.l.b16 %v766
      %v775 = vunpack.c.l.b16 %v767
      %v776 = vunpack.c.l.b16 %v768
      %v777 = vunpack.c.l.b16 %v769
      %v778 = vpack.c.b16 %v775, %v774
      %v779 = vpack.c.b16 %v777, %v776
      %v783 = vsel %vm722, %v701, 0
      %785 = vmatpush.bf16.msra.mxu0 0
      %786 = vmatpush.bf16.msra.mxu0 0
      %787 = vmatpush.bf16.msra.mxu0 0
      %788 = vmatpush.bf16.msra.mxu0 0
      %789 = vmatpush.bf16.msra.mxu0 0
      %790 = vmatpush.bf16.msra.mxu0 0
      %791 = vmatpush.bf16.msra.mxu0 %v779
      %792 = vmatpush.bf16.msra.mxu0 %v778
      %793 = vmatmul.bf16.gmra.mxu0 %v783
      %v794 = vpop.f32.mrf.mxu0
      %v795 = vadd.f32 0.0, %v794
      %v796 = vpop.f32.mrf.mxu0
      %797 = vdwg.mxu0
      %v798 = vadd.f32 %v763, %v795
      %v799 = vld [vmem:[%s13] sm:$0x1]
      %v801 = vperm.slane %v799, 0
      %v803 = vmul.f32 %v798, %v801
      %v804 = vld [vmem:[%s14] sm:$0x1]
      %v806 = vperm.slane %v804, 0
      %v808 = vadd.f32 %v803, %v806
      %v809 = vmax.f32 %v808, 0.0
      %v810 = vpack.c.bf16 %v809, %v809
      %v811 = vld [vmem:[%s15] sm:$0xf]
      %v812 = vld [vmem:[%s15 + $0x4] sm:$0xf]
      %v813 = vld [vmem:[%s15 + $0x8] sm:$0xf]
      %v814 = vld [vmem:[%s15 + $0xc] sm:$0xf]
      %v819 = vunpack.c.l.b16 %v811
      %v820 = vunpack.c.l.b16 %v812
      %v821 = vunpack.c.l.b16 %v813
      %v822 = vunpack.c.l.b16 %v814
      %v823 = vpack.c.b16 %v820, %v819
      %v824 = vpack.c.b16 %v822, %v821
      %v828 = vsel %vm722, %v810, 0
      %830 = vmatpush.bf16.msra.mxu0 0
      %831 = vmatpush.bf16.msra.mxu0 0
      %832 = vmatpush.bf16.msra.mxu0 0
      %833 = vmatpush.bf16.msra.mxu0 0
      %834 = vmatpush.bf16.msra.mxu0 0
      %835 = vmatpush.bf16.msra.mxu0 0
      %836 = vmatpush.bf16.msra.mxu0 %v824
      %837 = vmatpush.bf16.msra.mxu0 %v823
      %838 = vmatmul.bf16.gmra.mxu0 %v828
      %v839 = vpop.f32.mrf.mxu0
      %v840 = vadd.f32 %v559, %v839
      %v841 = vpop.f32.mrf.mxu0
      %842 = vdwg.mxu0
      %v843 = vpack.c.bf16 %v840, %v840
      %844 = vst [vmem:[%s550] sm:$0xf] %v843
      %p845 = scmp.lt.s32.totalorder %s27, 1
      %s846 = scalar_select %p845, %s27, 1
      %s847 = smul.addr %s846, 4
      %s848 = scalar_lea.vmem %s16, %s847
      // Predicated region
      $region85: #{attention_module_stage1.18} parent=83 // pred_check
        %p849 = pneg %p396
      $region86: #{attention_module_stage1.18} parent=83 // pred_check_branch
        %851 = sbr.rel (%p849) target = $region88
      $region87: #{attention_module_stage1.18} parent=83 // pred_region
        _
      $region88: #{attention_module_stage1.18} parent=83 // pred_fallthru
        _
    $region84: #{attention_module_stage1.18} parent=5 // pred_fallthru
      _
    %p852 = scmp.le.s32.totalorder 2, %s22
    // Predicated region
    $region89: #{attention_module_stage1.18} parent=5 // pred_check
      %p853 = pneg %p852
    $region90: #{attention_module_stage1.18} parent=5 // pred_check_branch
      %855 = sbr.rel (%p853) target = $region92
    $region91: #{attention_module_stage1.18} parent=5 // pred_region
      %s856 = ssub.s32 %s22, 2
      // Predicated region
      $region93: #{attention_module_stage1.18} parent=91 // pred_check
        %p857 = pneg %p402
      $region94: #{attention_module_stage1.18} parent=91 // pred_check_branch
        %859 = sbr.rel (%p857) target = $region96
      $region95: #{attention_module_stage1.18} parent=91 // pred_region
        %p860 = scmp.lt.s32.totalorder %s28, 1
        %s861 = scalar_select %p860, %s28, 1
        %s862 = smul.addr %s861, 4
        %s863 = scalar_lea.vmem %s16, %s862
      $region96: #{attention_module_stage1.18} parent=91 // pred_fallthru
        _
    $region92: #{attention_module_stage1.18} parent=5 // pred_fallthru
      _
  $region6: #{attention_module_stage1.18} parent=0 // loop_footer
    %s26 = sadd.s32 1, %s22
  $region7: #{attention_module_stage1.18} parent=0 // loop_footer_branch
    %21 = sbr.rel target = $region3
  $region8: #{attention_module_stage1.18} parent=0 // loop_exit
    _

// kernel: tile.563
$region0: #{tile.563}
  #allocation0 [shape = 's32[1]{0}', space=sflag, size = 0x4, scoped, tag = 'scoped memory for tile.563']
  %s0 = inlined_call_operand.vmem [shape: f32[16], index: 0, kind: input, shape index: {}]
  %s1 = inlined_call_operand.vmem [shape: f32[16,16], index: 1, kind: output, shape index: {}]
  // Predicated region
  $region2: #{tile.563} parent=0 // pred_check
    _
  $region3: #{tile.563} parent=0 // pred_check_branch
    %3 = sbr.rel (0) target = $region5
  $region4: #{tile.563} parent=0 // pred_region
    _
  $region5: #{tile.563} parent=0 // pred_fallthru
    _
  %v4 = vld [vmem:[%s0] ss:$0 sm:$0xff]
  %5 = vst [vmem:[%s1] sm:$0xff] %v4
  %s6 = scalar_lea.vmem %s1, 8
  %7 = vst [vmem:[%s6] sm:$0xff] %v4

// kernel: tile.564
$region0: #{tile.564}
  %s0 = inlined_call_operand.vmem [shape: f32[16,16], index: 0, kind: input, shape index: {}]
  %s1 = inlined_call_operand.vmem [shape: f32[1,256], index: 1, kind: output, shape index: {}]
  $region1: #{tile.564} parent=0
    #allocation0 [shape = 'u8[8192]{0}', space=vmem, size = 0x2000, scoped, tag = 'scoped mem for output reshape']
    %s2 = smov 3
    %v3 = vld [vmem:[%s0] ss:$8 sm:%s2]
    %vm4 = vcmask 130048
    %5 = vst.msk [vmem:[#allocation0] ss:$8 sm:$0x3] %vm4, %v3
    %s6 = scalar_lea.vmem %s0, 7
    %s7 = smov 3
    %v8 = vld [vmem:[%s6] ss:$8 sm:%s7]
    %9 = vrot.lane.b32.xlu0 %v8, 112
    %v10 = vpop.permute.xlu0 %9
    %vm11 = vcmask 1048448
    %12 = vst.msk [vmem:[#allocation0] ss:$8 sm:$0x3] %vm11, %v10
    %s13 = scalar_lea.vmem %s0, 6
    %s14 = smov 3
    %v15 = vld [vmem:[%s13] ss:$8 sm:%s14]
    %16 = vrot.lane.b32.xlu0 %v15, 96
    %v17 = vpop.permute.xlu0 %16
    %vm18 = vcmask 917248
    %19 = vst.msk [vmem:[#allocation0] ss:$8 sm:$0x3] %vm18, %v17
    %s20 = scalar_lea.vmem %s0, 5
    %s21 = smov 3
    %v22 = vld [vmem:[%s20] ss:$8 sm:%s21]
    %23 = vrot.lane.b32.xlu0 %v22, 80
    %v24 = vpop.permute.xlu0 %23
    %vm25 = vcmask 786048
    %26 = vst.msk [vmem:[#allocation0] ss:$8 sm:$0x3] %vm25, %v24
    %s27 = scalar_lea.vmem %s0, 4
    %s28 = smov 3
    %v29 = vld [vmem:[%s27] ss:$8 sm:%s28]
    %30 = vrot.lane.b32.xlu0 %v29, 64
    %v31 = vpop.permute.xlu0 %30
    %vm32 = vcmask 654848
    %33 = vst.msk [vmem:[#allocation0] ss:$8 sm:$0x3] %vm32, %v31
    %s34 = scalar_lea.vmem %s0, 3
    %s35 = smov 3
    %v36 = vld [vmem:[%s34] ss:$8 sm:%s35]
    %37 = vrot.lane.b32.xlu0 %v36, 48
    %v38 = vpop.permute.xlu0 %37
    %vm39 = vcmask 523648
    %40 = vst.msk [vmem:[#allocation0] ss:$8 sm:$0x3] %vm39, %v38
    %s41 = scalar_lea.vmem %s0, 2
    %s42 = smov 3
    %v43 = vld [vmem:[%s41] ss:$8 sm:%s42]
    %44 = vrot.lane.b32.xlu0 %v43, 32
    %v45 = vpop.permute.xlu0 %44
    %vm46 = vcmask 392448
    %47 = vst.msk [vmem:[#allocation0] ss:$8 sm:$0x3] %vm46, %v45
    %s48 = scalar_lea.vmem %s0, 1
    %s49 = smov 3
    %v50 = vld [vmem:[%s48] ss:$8 sm:%s49]
    %51 = vrot.lane.b32.xlu0 %v50, 16
    %v52 = vpop.permute.xlu0 %51
    %vm53 = vcmask 261248
    %54 = vst.msk [vmem:[#allocation0] ss:$8 sm:$0x3] %vm53, %v52
    %s56 = ssub.s32 2, 1
    %v57 = vld [vmem:[#allocation0] sm:%s56]
    %s59 = ssub.s32 2, 1
    %60 = vst [vmem:[%s1] sm:%s59] %v57
    %s61 = scalar_lea.vmem [#allocation0], 8
    %v62 = vld [vmem:[%s61] sm:%s56]
    %s64 = ssub.s32 2, 1
    %s65 = scalar_lea.vmem %s1, 1
    %66 = vst [vmem:[%s65] sm:%s64] %v62

// kernel: tile.573
$region0: #{tile.573}
  #allocation0 [shape = 's32[1]{0}', space=sflag, size = 0x4, scoped, tag = 'scoped memory for tile.573']
  %s0 = inlined_call_operand.vmem [shape: f32[4], index: 0, kind: input, shape index: {}]
  %s1 = inlined_call_operand.vmem [shape: f32[16,4], index: 1, kind: output, shape index: {}]
  // Predicated region
  $region2: #{tile.573} parent=0 // pred_check
    _
  $region3: #{tile.573} parent=0 // pred_check_branch
    %3 = sbr.rel (0) target = $region5
  $region4: #{tile.573} parent=0 // pred_region
    _
  $region5: #{tile.573} parent=0 // pred_fallthru
    _
  %v4 = vld [vmem:[%s0] ss:$0 sm:$0xff]
  %5 = vst [vmem:[%s1] sm:$0xff] %v4
  %s6 = scalar_lea.vmem %s1, 8
  %7 = vst [vmem:[%s6] sm:$0xff] %v4

// kernel: tile.574
$region0: #{tile.574}
  %s0 = inlined_call_operand.vmem [shape: f32[16,4], index: 0, kind: input, shape index: {}]
  %s1 = inlined_call_operand.vmem [shape: f32[1,64], index: 1, kind: output, shape index: {}]
  $region1: #{tile.574} parent=0
    #allocation0 [shape = 'u8[4096]{0}', space=vmem, size = 0x1000, scoped, tag = 'scoped mem for output reshape']
    %v2 = vld [vmem:[%s0] sm:$0x1]
    %vm3 = vcmask 31744
    %4 = vst.msk [vmem:[#allocation0] sm:$0x1] %vm3, %v2
    %s5 = scalar_lea.vmem %s0, 15
    %v6 = vld [vmem:[%s5] sm:$0x1]
    %7 = vrot.lane.b32.xlu0 %v6, 60
    %v8 = vpop.permute.xlu0 %7
    %vm9 = vcmask 523744
    %10 = vst.msk [vmem:[#allocation0] sm:$0x1] %vm9, %v8
    %s11 = scalar_lea.vmem %s0, 14
    %v12 = vld [vmem:[%s11] sm:$0x1]
    %13 = vrot.lane.b32.xlu0 %v12, 56
    %v14 = vpop.permute.xlu0 %13
    %vm15 = vcmask 490944
    %16 = vst.msk [vmem:[#allocation0] sm:$0x1] %vm15, %v14
    %s17 = scalar_lea.vmem %s0, 13
    %v18 = vld [vmem:[%s17] sm:$0x1]
    %19 = vrot.lane.b32.xlu0 %v18, 52
    %v20 = vpop.permute.xlu0 %19
    %vm21 = vcmask 458144
    %22 = vst.msk [vmem:[#allocation0] sm:$0x1] %vm21, %v20
    %s23 = scalar_lea.vmem %s0, 12
    %v24 = vld [vmem:[%s23] sm:$0x1]
    %25 = vrot.lane.b32.xlu0 %v24, 48
    %v26 = vpop.permute.xlu0 %25
    %vm27 = vcmask 425344
    %28 = vst.msk [vmem:[#allocation0] sm:$0x1] %vm27, %v26
    %s29 = scalar_lea.vmem %s0, 11
    %v30 = vld [vmem:[%s29] sm:$0x1]
    %31 = vrot.lane.b32.xlu0 %v30, 44
    %v32 = vpop.permute.xlu0 %31
    %vm33 = vcmask 392544
    %34 = vst.msk [vmem:[#allocation0] sm:$0x1] %vm33, %v32
    %s35 = scalar_lea.vmem %s0, 10
    %v36 = vld [vmem:[%s35] sm:$0x1]
    %37 = vrot.lane.b32.xlu0 %v36, 40
    %v38 = vpop.permute.xlu0 %37
    %vm39 = vcmask 359744
    %40 = vst.msk [vmem:[#allocation0] sm:$0x1] %vm39, %v38
    %s41 = scalar_lea.vmem %s0, 9
    %v42 = vld [vmem:[%s41] sm:$0x1]
    %43 = vrot.lane.b32.xlu0 %v42, 36
    %v44 = vpop.permute.xlu0 %43
    %vm45 = vcmask 326944
    %46 = vst.msk [vmem:[#allocation0] sm:$0x1] %vm45, %v44
    %s47 = scalar_lea.vmem %s0, 8
    %v48 = vld [vmem:[%s47] sm:$0x1]
    %49 = vrot.lane.b32.xlu0 %v48, 32
    %v50 = vpop.permute.xlu0 %49
    %vm51 = vcmask 294144
    %52 = vst.msk [vmem:[#allocation0] sm:$0x1] %vm51, %v50
    %s53 = scalar_lea.vmem %s0, 7
    %v54 = vld [vmem:[%s53] sm:$0x1]
    %55 = vrot.lane.b32.xlu0 %v54, 28
    %v56 = vpop.permute.xlu0 %55
    %vm57 = vcmask 261344
    %58 = vst.msk [vmem:[#allocation0] sm:$0x1] %vm57, %v56
    %s59 = scalar_lea.vmem %s0, 6
    %v60 = vld [vmem:[%s59] sm:$0x1]
    %61 = vrot.lane.b32.xlu0 %v60, 24
    %v62 = vpop.permute.xlu0 %61
    %vm63 = vcmask 228544
    %64 = vst.msk [vmem:[#allocation0] sm:$0x1] %vm63, %v62
    %s65 = scalar_lea.vmem %s0, 5
    %v66 = vld [vmem:[%s65] sm:$0x1]
    %67 = vrot.lane.b32.xlu0 %v66, 20
    %v68 = vpop.permute.xlu0 %67
    %vm69 = vcmask 195744
    %70 = vst.msk [vmem:[#allocation0] sm:$0x1] %vm69, %v68
    %s71 = scalar_lea.vmem %s0, 4
    %v72 = vld [vmem:[%s71] sm:$0x1]
    %73 = vrot.lane.b32.xlu0 %v72, 16
    %v74 = vpop.permute.xlu0 %73
    %vm75 = vcmask 162944
    %76 = vst.msk [vmem:[#allocation0] sm:$0x1] %vm75, %v74
    %s77 = scalar_lea.vmem %s0, 3
    %v78 = vld [vmem:[%s77] sm:$0x1]
    %79 = vrot.lane.b32.xlu0 %v78, 12
    %v80 = vpop.permute.xlu0 %79
    %vm81 = vcmask 130144
    %82 = vst.msk [vmem:[#allocation0] sm:$0x1] %vm81, %v80
    %s83 = scalar_lea.vmem %s0, 2
    %v84 = vld [vmem:[%s83] sm:$0x1]
    %85 = vrot.lane.b32.xlu0 %v84, 8
    %v86 = vpop.permute.xlu0 %85
    %vm87 = vcmask 97344
    %88 = vst.msk [vmem:[#allocation0] sm:$0x1] %vm87, %v86
    %s89 = scalar_lea.vmem %s0, 1
    %v90 = vld [vmem:[%s89] sm:$0x1]
    %91 = vrot.lane.b32.xlu0 %v90, 4
    %v92 = vpop.permute.xlu0 %91
    %vm93 = vcmask 64544
    %94 = vst.msk [vmem:[#allocation0] sm:$0x1] %vm93, %v92
    %s96 = ssub.s32 2, 1
    %v97 = vld [vmem:[#allocation0] sm:%s96]
    %s99 = ssub.s32 2, 1
    %100 = vst [vmem:[%s1] sm:%s99] %v97

// kernel: attention_module_stage1.19
$region0: #{attention_module_stage1.19}
  #allocation0 [shape = 'u32[]', space=smem, size = 0x4, offset = 0x4, fixed_abs, tag = 'smem constant byte address 0x4 - core index']
  #allocation1 [shape = 'u32[72,128]{1,0:T(1,128)}', space=vmem, size = 0x9000, scoped, tag = 'internal scratch']
  %s0 = inlined_call_operand.vmem [shape: bf16[2,16,256], index: 0, kind: input, shape index: {}]
  %s1 = inlined_call_operand.vmem [shape: f32[1,256], index: 1, kind: input, shape index: {}]
  %s2 = inlined_call_operand.vmem [shape: f32[1,256], index: 2, kind: input, shape index: {}]
  %s3 = inlined_call_operand.vmem [shape: bf16[256,64], index: 3, kind: input, shape index: {}]
  %s4 = inlined_call_operand.vmem [shape: f32[1,64], index: 4, kind: input, shape index: {}]
  %s5 = inlined_call_operand.vmem [shape: f32[1,64], index: 5, kind: input, shape index: {}]
  %s6 = inlined_call_operand.vmem [shape: bf16[16,16], index: 6, kind: input, shape index: {}]
  %s7 = inlined_call_operand.vmem [shape: bf16[16,16], index: 7, kind: input, shape index: {}]
  %s8 = inlined_call_operand.vmem [shape: bf16[64,64], index: 8, kind: input, shape index: {}]
  %s9 = inlined_call_operand.vmem [shape: bf16[64,64], index: 9, kind: input, shape index: {}]
  %s10 = inlined_call_operand.vmem [shape: bf16[64,64], index: 10, kind: input, shape index: {}]
  %s11 = inlined_call_operand.vmem [shape: f32[1,64], index: 11, kind: input, shape index: {}]
  %s12 = inlined_call_operand.vmem [shape: f32[1,64], index: 12, kind: input, shape index: {}]
  %s13 = inlined_call_operand.vmem [shape: bf16[64,256], index: 13, kind: input, shape index: {}]
  %s14 = inlined_call_operand.vmem [shape: bf16[2,16,256], index: 14, kind: output, shape index: {}]
  %s15 = sld [smem:[#allocation0]]
  $region89: #{attention_module_stage1.19} parent=0
    _
  %s17 = ssub.s32 1, %s15
  %s18 = scalar_select 0, %s17, %s15
  loop: start=0, step=1, limit=4
  $region2: #{attention_module_stage1.19} parent=0 // loop_pre_header
    _
  $region3: #{attention_module_stage1.19} parent=0 // loop_header
    %s20 = sphi 0, %s24
    %p21 = scmp.ge.s32.totalorder %s20, 4
    %s30 = sphi 0, %s32
    %s33 = sphi 0, %s30
    %s34 = sphi 0, %s33
    %s50 = sphi 0, %s34
    %s54 = sphi 0, %s54
    %s56 = sphi 0, %s54
    %s57 = sphi 0, %s56
    %s71 = sphi 0, %s57
    %s75 = sphi 0, %s75
    %s77 = sphi 0, %s75
    %s78 = sphi 0, %s77
    %s92 = sphi 0, %s78
    %s96 = sphi 0, %s96
    %s98 = sphi 0, %s96
    %s99 = sphi 0, %s98
    %s113 = sphi 0, %s99
    %s117 = sphi 0, %s117
    %s119 = sphi 0, %s117
    %s120 = sphi 0, %s119
    %s134 = sphi 0, %s120
    %s138 = sphi 0, %s138
    %s140 = sphi 0, %s138
    %s141 = sphi 0, %s140
    %s155 = sphi 0, %s141
    %s159 = sphi 0, %s159
    %s161 = sphi 0, %s159
    %s162 = sphi 0, %s161
    %s176 = sphi 0, %s162
    %s180 = sphi 0, %s180
    %s182 = sphi 0, %s180
    %s183 = sphi 0, %s182
    %s197 = sphi 0, %s183
    %s201 = sphi 0, %s201
    %s203 = sphi 0, %s201
    %s204 = sphi 0, %s203
    %s218 = sphi 0, %s204
    %s222 = sphi 0, %s222
    %s224 = sphi 0, %s222
    %s225 = sphi 0, %s224
    %s239 = sphi 0, %s225
    %s243 = sphi 0, %s243
    %s245 = sphi 0, %s243
    %s246 = sphi 0, %s245
    %s260 = sphi 0, %s246
    %s264 = sphi 0, %s264
    %s266 = sphi 0, %s264
    %s267 = sphi 0, %s266
    %s281 = sphi 0, %s267
    %s285 = sphi 0, %s285
    %s287 = sphi 0, %s285
    %s288 = sphi 0, %s287
    %s302 = sphi 0, %s288
    %s306 = sphi 0, %s306
    %s308 = sphi 0, %s306
    %s309 = sphi 0, %s308
    %s323 = sphi 0, %s309
    %s329 = sphi 0, %s331
    %s332 = sphi 0, %s329
    %s333 = sphi 0, %s332
    %s349 = sphi 0, %s333
  $region4: #{attention_module_stage1.19} parent=0 // loop_header_branch
    %23 = sbr.rel (%p21) target = $region8
  $region5: #{attention_module_stage1.19} parent=0 // loop_body
    %s25 = ssub.s32 %s20, 1
    %s26 = ssub.s32 %s20, 2
    %s27 = sadd.s32 %s20, 1
    %s28 = ssub.s32 %s20, %s27
    %p29 = scmp.eq.s32.totalorder %s28, 0
    %s31 = sadd.s32 %s30, 1
    %s32 = scalar_select %p29, %s30, %s31
    %p35 = pneg %p29
    %p36 = scmp.eq.s32.totalorder %s20, 1
    %p37 = por %p35, %p36
    %p38 = scmp.ne.s32.totalorder %s30, %s33
    %p39 = scmp.eq.s32.totalorder %s20, 0
    %p40 = por %p38, %p39
    %p41 = scmp.ne.s32.totalorder %s30, %s33
    %p42 = scmp.eq.s32.totalorder %s25, 1
    %p43 = por %p41, %p42
    %p44 = scmp.ne.s32.totalorder %s33, %s34
    %p45 = scmp.eq.s32.totalorder %s25, 0
    %p46 = por %p44, %p45
    %p47 = scmp.ne.s32.totalorder %s33, %s34
    %p48 = scmp.eq.s32.totalorder %s26, 1
    %p49 = por %p47, %p48
    %p51 = scmp.ne.s32.totalorder %s34, %s50
    %p52 = scmp.eq.s32.totalorder %s26, 0
    %p53 = por %p51, %p52
    %s55 = sadd.s32 %s54, 1
    %p58 = scmp.eq.s32.totalorder %s20, 1
    %p59 = scmp.ne.s32.totalorder %s54, %s56
    %p60 = scmp.eq.s32.totalorder %s20, 0
    %p61 = por %p59, %p60
    %p62 = scmp.ne.s32.totalorder %s54, %s56
    %p63 = scmp.eq.s32.totalorder %s25, 1
    %p64 = por %p62, %p63
    %p65 = scmp.ne.s32.totalorder %s56, %s57
    %p66 = scmp.eq.s32.totalorder %s25, 0
    %p67 = por %p65, %p66
    %p68 = scmp.ne.s32.totalorder %s56, %s57
    %p69 = scmp.eq.s32.totalorder %s26, 1
    %p70 = por %p68, %p69
    %p72 = scmp.ne.s32.totalorder %s57, %s71
    %p73 = scmp.eq.s32.totalorder %s26, 0
    %p74 = por %p72, %p73
    %s76 = sadd.s32 %s75, 1
    %p79 = scmp.eq.s32.totalorder %s20, 1
    %p80 = scmp.ne.s32.totalorder %s75, %s77
    %p81 = scmp.eq.s32.totalorder %s20, 0
    %p82 = por %p80, %p81
    %p83 = scmp.ne.s32.totalorder %s75, %s77
    %p84 = scmp.eq.s32.totalorder %s25, 1
    %p85 = por %p83, %p84
    %p86 = scmp.ne.s32.totalorder %s77, %s78
    %p87 = scmp.eq.s32.totalorder %s25, 0
    %p88 = por %p86, %p87
    %p89 = scmp.ne.s32.totalorder %s77, %s78
    %p90 = scmp.eq.s32.totalorder %s26, 1
    %p91 = por %p89, %p90
    %p93 = scmp.ne.s32.totalorder %s78, %s92
    %p94 = scmp.eq.s32.totalorder %s26, 0
    %p95 = por %p93, %p94
    %s97 = sadd.s32 %s96, 1
    %p100 = scmp.eq.s32.totalorder %s20, 1
    %p101 = scmp.ne.s32.totalorder %s96, %s98
    %p102 = scmp.eq.s32.totalorder %s20, 0
    %p103 = por %p101, %p102
    %p104 = scmp.ne.s32.totalorder %s96, %s98
    %p105 = scmp.eq.s32.totalorder %s25, 1
    %p106 = por %p104, %p105
    %p107 = scmp.ne.s32.totalorder %s98, %s99
    %p108 = scmp.eq.s32.totalorder %s25, 0
    %p109 = por %p107, %p108
    %p110 = scmp.ne.s32.totalorder %s98, %s99
    %p111 = scmp.eq.s32.totalorder %s26, 1
    %p112 = por %p110, %p111
    %p114 = scmp.ne.s32.totalorder %s99, %s113
    %p115 = scmp.eq.s32.totalorder %s26, 0
    %p116 = por %p114, %p115
    %s118 = sadd.s32 %s117, 1
    %p121 = scmp.eq.s32.totalorder %s20, 1
    %p122 = scmp.ne.s32.totalorder %s117, %s119
    %p123 = scmp.eq.s32.totalorder %s20, 0
    %p124 = por %p122, %p123
    %p125 = scmp.ne.s32.totalorder %s117, %s119
    %p126 = scmp.eq.s32.totalorder %s25, 1
    %p127 = por %p125, %p126
    %p128 = scmp.ne.s32.totalorder %s119, %s120
    %p129 = scmp.eq.s32.totalorder %s25, 0
    %p130 = por %p128, %p129
    %p131 = scmp.ne.s32.totalorder %s119, %s120
    %p132 = scmp.eq.s32.totalorder %s26, 1
    %p133 = por %p131, %p132
    %p135 = scmp.ne.s32.totalorder %s120, %s134
    %p136 = scmp.eq.s32.totalorder %s26, 0
    %p137 = por %p135, %p136
    %s139 = sadd.s32 %s138, 1
    %p142 = scmp.eq.s32.totalorder %s20, 1
    %p143 = scmp.ne.s32.totalorder %s138, %s140
    %p144 = scmp.eq.s32.totalorder %s20, 0
    %p145 = por %p143, %p144
    %p146 = scmp.ne.s32.totalorder %s138, %s140
    %p147 = scmp.eq.s32.totalorder %s25, 1
    %p148 = por %p146, %p147
    %p149 = scmp.ne.s32.totalorder %s140, %s141
    %p150 = scmp.eq.s32.totalorder %s25, 0
    %p151 = por %p149, %p150
    %p152 = scmp.ne.s32.totalorder %s140, %s141
    %p153 = scmp.eq.s32.totalorder %s26, 1
    %p154 = por %p152, %p153
    %p156 = scmp.ne.s32.totalorder %s141, %s155
    %p157 = scmp.eq.s32.totalorder %s26, 0
    %p158 = por %p156, %p157
    %s160 = sadd.s32 %s159, 1
    %p163 = scmp.eq.s32.totalorder %s20, 1
    %p164 = scmp.ne.s32.totalorder %s159, %s161
    %p165 = scmp.eq.s32.totalorder %s20, 0
    %p166 = por %p164, %p165
    %p167 = scmp.ne.s32.totalorder %s159, %s161
    %p168 = scmp.eq.s32.totalorder %s25, 1
    %p169 = por %p167, %p168
    %p170 = scmp.ne.s32.totalorder %s161, %s162
    %p171 = scmp.eq.s32.totalorder %s25, 0
    %p172 = por %p170, %p171
    %p173 = scmp.ne.s32.totalorder %s161, %s162
    %p174 = scmp.eq.s32.totalorder %s26, 1
    %p175 = por %p173, %p174
    %p177 = scmp.ne.s32.totalorder %s162, %s176
    %p178 = scmp.eq.s32.totalorder %s26, 0
    %p179 = por %p177, %p178
    %s181 = sadd.s32 %s180, 1
    %p184 = scmp.eq.s32.totalorder %s20, 1
    %p185 = scmp.ne.s32.totalorder %s180, %s182
    %p186 = scmp.eq.s32.totalorder %s20, 0
    %p187 = por %p185, %p186
    %p188 = scmp.ne.s32.totalorder %s180, %s182
    %p189 = scmp.eq.s32.totalorder %s25, 1
    %p190 = por %p188, %p189
    %p191 = scmp.ne.s32.totalorder %s182, %s183
    %p192 = scmp.eq.s32.totalorder %s25, 0
    %p193 = por %p191, %p192
    %p194 = scmp.ne.s32.totalorder %s182, %s183
    %p195 = scmp.eq.s32.totalorder %s26, 1
    %p196 = por %p194, %p195
    %p198 = scmp.ne.s32.totalorder %s183, %s197
    %p199 = scmp.eq.s32.totalorder %s26, 0
    %p200 = por %p198, %p199
    %s202 = sadd.s32 %s201, 1
    %p205 = scmp.eq.s32.totalorder %s20, 1
    %p206 = scmp.ne.s32.totalorder %s201, %s203
    %p207 = scmp.eq.s32.totalorder %s20, 0
    %p208 = por %p206, %p207
    %p209 = scmp.ne.s32.totalorder %s201, %s203
    %p210 = scmp.eq.s32.totalorder %s25, 1
    %p211 = por %p209, %p210
    %p212 = scmp.ne.s32.totalorder %s203, %s204
    %p213 = scmp.eq.s32.totalorder %s25, 0
    %p214 = por %p212, %p213
    %p215 = scmp.ne.s32.totalorder %s203, %s204
    %p216 = scmp.eq.s32.totalorder %s26, 1
    %p217 = por %p215, %p216
    %p219 = scmp.ne.s32.totalorder %s204, %s218
    %p220 = scmp.eq.s32.totalorder %s26, 0
    %p221 = por %p219, %p220
    %s223 = sadd.s32 %s222, 1
    %p226 = scmp.eq.s32.totalorder %s20, 1
    %p227 = scmp.ne.s32.totalorder %s222, %s224
    %p228 = scmp.eq.s32.totalorder %s20, 0
    %p229 = por %p227, %p228
    %p230 = scmp.ne.s32.totalorder %s222, %s224
    %p231 = scmp.eq.s32.totalorder %s25, 1
    %p232 = por %p230, %p231
    %p233 = scmp.ne.s32.totalorder %s224, %s225
    %p234 = scmp.eq.s32.totalorder %s25, 0
    %p235 = por %p233, %p234
    %p236 = scmp.ne.s32.totalorder %s224, %s225
    %p237 = scmp.eq.s32.totalorder %s26, 1
    %p238 = por %p236, %p237
    %p240 = scmp.ne.s32.totalorder %s225, %s239
    %p241 = scmp.eq.s32.totalorder %s26, 0
    %p242 = por %p240, %p241
    %s244 = sadd.s32 %s243, 1
    %p247 = scmp.eq.s32.totalorder %s20, 1
    %p248 = scmp.ne.s32.totalorder %s243, %s245
    %p249 = scmp.eq.s32.totalorder %s20, 0
    %p250 = por %p248, %p249
    %p251 = scmp.ne.s32.totalorder %s243, %s245
    %p252 = scmp.eq.s32.totalorder %s25, 1
    %p253 = por %p251, %p252
    %p254 = scmp.ne.s32.totalorder %s245, %s246
    %p255 = scmp.eq.s32.totalorder %s25, 0
    %p256 = por %p254, %p255
    %p257 = scmp.ne.s32.totalorder %s245, %s246
    %p258 = scmp.eq.s32.totalorder %s26, 1
    %p259 = por %p257, %p258
    %p261 = scmp.ne.s32.totalorder %s246, %s260
    %p262 = scmp.eq.s32.totalorder %s26, 0
    %p263 = por %p261, %p262
    %s265 = sadd.s32 %s264, 1
    %p268 = scmp.eq.s32.totalorder %s20, 1
    %p269 = scmp.ne.s32.totalorder %s264, %s266
    %p270 = scmp.eq.s32.totalorder %s20, 0
    %p271 = por %p269, %p270
    %p272 = scmp.ne.s32.totalorder %s264, %s266
    %p273 = scmp.eq.s32.totalorder %s25, 1
    %p274 = por %p272, %p273
    %p275 = scmp.ne.s32.totalorder %s266, %s267
    %p276 = scmp.eq.s32.totalorder %s25, 0
    %p277 = por %p275, %p276
    %p278 = scmp.ne.s32.totalorder %s266, %s267
    %p279 = scmp.eq.s32.totalorder %s26, 1
    %p280 = por %p278, %p279
    %p282 = scmp.ne.s32.totalorder %s267, %s281
    %p283 = scmp.eq.s32.totalorder %s26, 0
    %p284 = por %p282, %p283
    %s286 = sadd.s32 %s285, 1
    %p289 = scmp.eq.s32.totalorder %s20, 1
    %p290 = scmp.ne.s32.totalorder %s285, %s287
    %p291 = scmp.eq.s32.totalorder %s20, 0
    %p292 = por %p290, %p291
    %p293 = scmp.ne.s32.totalorder %s285, %s287
    %p294 = scmp.eq.s32.totalorder %s25, 1
    %p295 = por %p293, %p294
    %p296 = scmp.ne.s32.totalorder %s287, %s288
    %p297 = scmp.eq.s32.totalorder %s25, 0
    %p298 = por %p296, %p297
    %p299 = scmp.ne.s32.totalorder %s287, %s288
    %p300 = scmp.eq.s32.totalorder %s26, 1
    %p301 = por %p299, %p300
    %p303 = scmp.ne.s32.totalorder %s288, %s302
    %p304 = scmp.eq.s32.totalorder %s26, 0
    %p305 = por %p303, %p304
    %s307 = sadd.s32 %s306, 1
    %p310 = scmp.eq.s32.totalorder %s20, 1
    %p311 = scmp.ne.s32.totalorder %s306, %s308
    %p312 = scmp.eq.s32.totalorder %s20, 0
    %p313 = por %p311, %p312
    %p314 = scmp.ne.s32.totalorder %s306, %s308
    %p315 = scmp.eq.s32.totalorder %s25, 1
    %p316 = por %p314, %p315
    %p317 = scmp.ne.s32.totalorder %s308, %s309
    %p318 = scmp.eq.s32.totalorder %s25, 0
    %p319 = por %p317, %p318
    %p320 = scmp.ne.s32.totalorder %s308, %s309
    %p321 = scmp.eq.s32.totalorder %s26, 1
    %p322 = por %p320, %p321
    %p324 = scmp.ne.s32.totalorder %s309, %s323
    %p325 = scmp.eq.s32.totalorder %s26, 0
    %p326 = por %p324, %p325
    %s327 = ssub.s32 %s20, %s27
    %p328 = scmp.eq.s32.totalorder %s327, 0
    %s330 = sadd.s32 %s329, 1
    %s331 = scalar_select %p328, %s329, %s330
    %p334 = pneg %p328
    %p335 = scmp.eq.s32.totalorder %s20, 1
    %p336 = por %p334, %p335
    %p337 = scmp.ne.s32.totalorder %s329, %s332
    %p338 = scmp.eq.s32.totalorder %s20, 0
    %p339 = por %p337, %p338
    %p340 = scmp.ne.s32.totalorder %s329, %s332
    %p341 = scmp.eq.s32.totalorder %s25, 1
    %p342 = por %p340, %p341
    %p343 = scmp.ne.s32.totalorder %s332, %s333
    %p344 = scmp.eq.s32.totalorder %s25, 0
    %p345 = por %p343, %p344
    %p346 = scmp.ne.s32.totalorder %s332, %s333
    %p347 = scmp.eq.s32.totalorder %s26, 1
    %p348 = por %p346, %p347
    %p350 = scmp.ne.s32.totalorder %s333, %s349
    %p351 = scmp.eq.s32.totalorder %s26, 0
    %p352 = por %p350, %p351
    %p353 = scmp.le.s32.totalorder 1, %s20
    %p354 = scmp.lt.s32.totalorder %s20, 3
    %p355 = pnand %p353, %p354
    %p356 = pneg %p355
    // Predicated region
    $region9: #{attention_module_stage1.19} parent=5 // pred_check
      _
    $region10: #{attention_module_stage1.19} parent=5 // pred_check_branch
      %358 = sbr.rel (%p355) target = $region12
    $region11: #{attention_module_stage1.19} parent=5 // pred_region
      %s359 = ssub.s32 %s20, 1
      // Predicated region
      $region13: #{attention_module_stage1.19} parent=11 // pred_check
        %p360 = pneg %p67
      $region14: #{attention_module_stage1.19} parent=11 // pred_check_branch
        %362 = sbr.rel (%p360) target = $region16
      $region15: #{attention_module_stage1.19} parent=11 // pred_region
        _
      $region16: #{attention_module_stage1.19} parent=11 // pred_fallthru
        _
      // Predicated region
      $region17: #{attention_module_stage1.19} parent=11 // pred_check
        %p363 = pneg %p88
      $region18: #{attention_module_stage1.19} parent=11 // pred_check_branch
        %365 = sbr.rel (%p363) target = $region20
      $region19: #{attention_module_stage1.19} parent=11 // pred_region
        _
      $region20: #{attention_module_stage1.19} parent=11 // pred_fallthru
        _
      // Predicated region
      $region21: #{attention_module_stage1.19} parent=11 // pred_check
        %p366 = pneg %p109
      $region22: #{attention_module_stage1.19} parent=11 // pred_check_branch
        %368 = sbr.rel (%p366) target = $region24
      $region23: #{attention_module_stage1.19} parent=11 // pred_region
        _
      $region24: #{attention_module_stage1.19} parent=11 // pred_fallthru
        _
      // Predicated region
      $region25: #{attention_module_stage1.19} parent=11 // pred_check
        %p369 = pneg %p130
      $region26: #{attention_module_stage1.19} parent=11 // pred_check_branch
        %371 = sbr.rel (%p369) target = $region28
      $region27: #{attention_module_stage1.19} parent=11 // pred_region
        _
      $region28: #{attention_module_stage1.19} parent=11 // pred_fallthru
        _
      // Predicated region
      $region29: #{attention_module_stage1.19} parent=11 // pred_check
        %p372 = pneg %p151
      $region30: #{attention_module_stage1.19} parent=11 // pred_check_branch
        %374 = sbr.rel (%p372) target = $region32
      $region31: #{attention_module_stage1.19} parent=11 // pred_region
        _
      $region32: #{attention_module_stage1.19} parent=11 // pred_fallthru
        _
      // Predicated region
      $region33: #{attention_module_stage1.19} parent=11 // pred_check
        %p375 = pneg %p172
      $region34: #{attention_module_stage1.19} parent=11 // pred_check_branch
        %377 = sbr.rel (%p375) target = $region36
      $region35: #{attention_module_stage1.19} parent=11 // pred_region
        _
      $region36: #{attention_module_stage1.19} parent=11 // pred_fallthru
        _
      // Predicated region
      $region37: #{attention_module_stage1.19} parent=11 // pred_check
        %p378 = pneg %p193
      $region38: #{attention_module_stage1.19} parent=11 // pred_check_branch
        %380 = sbr.rel (%p378) target = $region40
      $region39: #{attention_module_stage1.19} parent=11 // pred_region
        _
      $region40: #{attention_module_stage1.19} parent=11 // pred_fallthru
        _
      // Predicated region
      $region41: #{attention_module_stage1.19} parent=11 // pred_check
        %p381 = pneg %p214
      $region42: #{attention_module_stage1.19} parent=11 // pred_check_branch
        %383 = sbr.rel (%p381) target = $region44
      $region43: #{attention_module_stage1.19} parent=11 // pred_region
        _
      $region44: #{attention_module_stage1.19} parent=11 // pred_fallthru
        _
      // Predicated region
      $region45: #{attention_module_stage1.19} parent=11 // pred_check
        %p384 = pneg %p235
      $region46: #{attention_module_stage1.19} parent=11 // pred_check_branch
        %386 = sbr.rel (%p384) target = $region48
      $region47: #{attention_module_stage1.19} parent=11 // pred_region
        _
      $region48: #{attention_module_stage1.19} parent=11 // pred_fallthru
        _
      // Predicated region
      $region49: #{attention_module_stage1.19} parent=11 // pred_check
        %p387 = pneg %p256
      $region50: #{attention_module_stage1.19} parent=11 // pred_check_branch
        %389 = sbr.rel (%p387) target = $region52
      $region51: #{attention_module_stage1.19} parent=11 // pred_region
        _
      $region52: #{attention_module_stage1.19} parent=11 // pred_fallthru
        _
      // Predicated region
      $region53: #{attention_module_stage1.19} parent=11 // pred_check
        %p390 = pneg %p277
      $region54: #{attention_module_stage1.19} parent=11 // pred_check_branch
        %392 = sbr.rel (%p390) target = $region56
      $region55: #{attention_module_stage1.19} parent=11 // pred_region
        _
      $region56: #{attention_module_stage1.19} parent=11 // pred_fallthru
        _
      // Predicated region
      $region57: #{attention_module_stage1.19} parent=11 // pred_check
        %p393 = pneg %p298
      $region58: #{attention_module_stage1.19} parent=11 // pred_check_branch
        %395 = sbr.rel (%p393) target = $region60
      $region59: #{attention_module_stage1.19} parent=11 // pred_region
        _
      $region60: #{attention_module_stage1.19} parent=11 // pred_fallthru
        _
      // Predicated region
      $region61: #{attention_module_stage1.19} parent=11 // pred_check
        %p396 = pneg %p319
      $region62: #{attention_module_stage1.19} parent=11 // pred_check_branch
        %398 = sbr.rel (%p396) target = $region64
      $region63: #{attention_module_stage1.19} parent=11 // pred_region
        _
      $region64: #{attention_module_stage1.19} parent=11 // pred_fallthru
        _
    $region12: #{attention_module_stage1.19} parent=5 // pred_fallthru
      _
    %p399 = scmp.lt.s32.totalorder %s20, 2
    // Predicated region
    $region65: #{attention_module_stage1.19} parent=5 // pred_check
      %p400 = pneg %p399
    $region66: #{attention_module_stage1.19} parent=5 // pred_check_branch
      %402 = sbr.rel (%p400) target = $region68
    $region67: #{attention_module_stage1.19} parent=5 // pred_region
      // Predicated region
      $region69: #{attention_module_stage1.19} parent=67 // pred_check
        %p403 = pneg %p40
      $region70: #{attention_module_stage1.19} parent=67 // pred_check_branch
        %405 = sbr.rel (%p403) target = $region72
      $region71: #{attention_module_stage1.19} parent=67 // pred_region
        %p406 = scmp.lt.s32.totalorder %s20, 1
        %s407 = scalar_select %p406, %s20, 1
        %s408 = smul.addr %s407, 4
        %s409 = smul.addr %s408, 4
        %s410 = scalar_lea.vmem %s0, %s409
      $region72: #{attention_module_stage1.19} parent=67 // pred_fallthru
        _
    $region68: #{attention_module_stage1.19} parent=5 // pred_fallthru
      _
    %p411 = scmp.le.s32.totalorder 1, %s20
    %p412 = scmp.lt.s32.totalorder %s20, 3
    %p413 = pnand %p411, %p412
    %p414 = pneg %p413
    // Predicated region
    $region73: #{attention_module_stage1.19} parent=5 // pred_check
      _
    $region74: #{attention_module_stage1.19} parent=5 // pred_check_branch
      %416 = sbr.rel (%p413) target = $region76
    $region75: #{attention_module_stage1.19} parent=5 // pred_region
      %s417 = ssub.s32 %s20, 1
      %p418 = scmp.lt.s32.totalorder %s25, 1
      %s419 = scalar_select %p418, %s25, 1
      %s420 = smul.addr %s419, 4
      %s421 = smul.addr %s420, 4
      %s422 = scalar_lea.vmem %s0, %s421
      %p423 = pneg %p46
      %p424 = pneg %p43
      %p425 = pneg %p67
      %p426 = pneg %p64
      %p427 = pneg %p88
      %p428 = pneg %p85
      %p429 = pneg %p109
      %p430 = pneg %p106
      %p431 = pneg %p130
      %p432 = pneg %p127
      %p433 = pneg %p151
      %p434 = pneg %p148
      %p435 = pneg %p172
      %p436 = pneg %p169
      %p437 = pneg %p193
      %p438 = pneg %p190
      %p439 = pneg %p214
      %p440 = pneg %p211
      %p441 = pneg %p235
      %p442 = pneg %p232
      %p443 = pneg %p256
      %p444 = pneg %p253
      %p445 = pneg %p277
      %p446 = pneg %p274
      %p447 = pneg %p298
      %p448 = pneg %p295
      %p449 = pneg %p319
      %p450 = pneg %p316
      %p451 = pneg %p345
      %p452 = pneg %p342
      %p453 = scmp.lt.s32.totalorder %s25, 1
      %s454 = scalar_select %p453, %s25, 1
      %s455 = smul.addr %s454, 4
      %s456 = smul.addr %s455, 4
      %s457 = scalar_lea.vmem %s14, %s456
      %p458 = scmp.lt.s32.totalorder %s25, 1
      %s459 = scalar_select %p458, %s25, 1
      %s460 = smul.addr %s459, 4
      %s461 = smul.addr %s460, 4
      %s462 = scalar_lea.vmem %s0, %s461
      %p463 = scmp.lt.s32.totalorder %s25, 1
      %s464 = scalar_select %p463, %s25, 1
      %s465 = smul.addr %s464, 4
      %s466 = smul.addr %s465, 4
      %s467 = scalar_lea.vmem %s14, %s466
      %v469 = vld [vmem:[%s462] sm:$0xff]
      %v470 = vld [vmem:[%s462 + $0x8] sm:$0xff]
      %v471 = vunpack.c.l.bf16 %v469
      %v472 = vunpack.c.h.bf16 %v469
      %v473 = vunpack.c.l.bf16 %v470
      %v474 = vunpack.c.h.bf16 %v470
      %v475 = vld [vmem:[%s1] sm:$0x3]
      %v477 = vperm.slane %v475, 0
      %v478 = vperm.slane %v475, 1
      %v481 = vmul.f32 %v471, %v477
      %v482 = vmul.f32 %v472, %v478
      %v483 = vmul.f32 %v473, %v477
      %v484 = vmul.f32 %v474, %v478
      %v485 = vld [vmem:[%s2] sm:$0x3]
      %v487 = vperm.slane %v485, 0
      %v488 = vperm.slane %v485, 1
      %v491 = vadd.f32 %v481, %v487
      %v492 = vadd.f32 %v482, %v488
      %v493 = vadd.f32 %v483, %v487
      %v494 = vadd.f32 %v484, %v488
      %v495 = vmax.f32 %v491, 0.0
      %v496 = vmax.f32 %v492, 0.0
      %v497 = vmax.f32 %v493, 0.0
      %v498 = vmax.f32 %v494, 0.0
      %v499 = vpack.c.bf16 %v497, %v495
      %v500 = vpack.c.bf16 %v498, %v496
      %v501 = vld [vmem:[%s3] sm:$0xf]
      %v502 = vld [vmem:[%s3 + $0x4] sm:$0xf]
      %v503 = vld [vmem:[%s3 + $0x8] sm:$0xf]
      %v504 = vld [vmem:[%s3 + $0xc] sm:$0xf]
      %v505 = vld [vmem:[%s3 + $0x10] sm:$0xf]
      %v506 = vld [vmem:[%s3 + $0x14] sm:$0xf]
      %v507 = vld [vmem:[%s3 + $0x18] sm:$0xf]
      %v508 = vld [vmem:[%s3 + $0x1c] sm:$0xf]
      %v509 = vld [vmem:[%s3 + $0x20] sm:$0xf]
      %v510 = vld [vmem:[%s3 + $0x24] sm:$0xf]
      %v511 = vld [vmem:[%s3 + $0x28] sm:$0xf]
      %v512 = vld [vmem:[%s3 + $0x2c] sm:$0xf]
      %v513 = vld [vmem:[%s3 + $0x30] sm:$0xf]
      %v514 = vld [vmem:[%s3 + $0x34] sm:$0xf]
      %v515 = vld [vmem:[%s3 + $0x38] sm:$0xf]
      %v516 = vld [vmem:[%s3 + $0x3c] sm:$0xf]
      %v517 = vld [vmem:[%s3 + $0x40] sm:$0xf]
      %v518 = vld [vmem:[%s3 + $0x44] sm:$0xf]
      %v519 = vld [vmem:[%s3 + $0x48] sm:$0xf]
      %v520 = vld [vmem:[%s3 + $0x4c] sm:$0xf]
      %v521 = vld [vmem:[%s3 + $0x50] sm:$0xf]
      %v522 = vld [vmem:[%s3 + $0x54] sm:$0xf]
      %v523 = vld [vmem:[%s3 + $0x58] sm:$0xf]
      %v524 = vld [vmem:[%s3 + $0x5c] sm:$0xf]
      %v525 = vld [vmem:[%s3 + $0x60] sm:$0xf]
      %v526 = vld [vmem:[%s3 + $0x64] sm:$0xf]
      %v527 = vld [vmem:[%s3 + $0x68] sm:$0xf]
      %v528 = vld [vmem:[%s3 + $0x6c] sm:$0xf]
      %v529 = vld [vmem:[%s3 + $0x70] sm:$0xf]
      %v530 = vld [vmem:[%s3 + $0x74] sm:$0xf]
      %v531 = vld [vmem:[%s3 + $0x78] sm:$0xf]
      %v532 = vld [vmem:[%s3 + $0x7c] sm:$0xf]
      %v565 = vunpack.c.l.b16 %v501
      %v566 = vunpack.c.l.b16 %v502
      %v567 = vunpack.c.l.b16 %v503
      %v568 = vunpack.c.l.b16 %v504
      %v569 = vunpack.c.l.b16 %v505
      %v570 = vunpack.c.l.b16 %v506
      %v571 = vunpack.c.l.b16 %v507
      %v572 = vunpack.c.l.b16 %v508
      %v573 = vunpack.c.l.b16 %v509
      %v574 = vunpack.c.l.b16 %v510
      %v575 = vunpack.c.l.b16 %v511
      %v576 = vunpack.c.l.b16 %v512
      %v577 = vunpack.c.l.b16 %v513
      %v578 = vunpack.c.l.b16 %v514
      %v579 = vunpack.c.l.b16 %v515
      %v580 = vunpack.c.l.b16 %v516
      %v581 = vunpack.c.l.b16 %v517
      %v582 = vunpack.c.l.b16 %v518
      %v583 = vunpack.c.l.b16 %v519
      %v584 = vunpack.c.l.b16 %v520
      %v585 = vunpack.c.l.b16 %v521
      %v586 = vunpack.c.l.b16 %v522
      %v587 = vunpack.c.l.b16 %v523
      %v588 = vunpack.c.l.b16 %v524
      %v589 = vunpack.c.l.b16 %v525
      %v590 = vunpack.c.l.b16 %v526
      %v591 = vunpack.c.l.b16 %v527
      %v592 = vunpack.c.l.b16 %v528
      %v593 = vunpack.c.l.b16 %v529
      %v594 = vunpack.c.l.b16 %v530
      %v595 = vunpack.c.l.b16 %v531
      %v596 = vunpack.c.l.b16 %v532
      %v597 = vpack.c.b16 %v566, %v565
      %v598 = vpack.c.b16 %v568, %v567
      %v599 = vpack.c.b16 %v570, %v569
      %v600 = vpack.c.b16 %v572, %v571
      %v601 = vpack.c.b16 %v574, %v573
      %v602 = vpack.c.b16 %v576, %v575
      %v603 = vpack.c.b16 %v578, %v577
      %v604 = vpack.c.b16 %v580, %v579
      %v605 = vpack.c.b16 %v582, %v581
      %v606 = vpack.c.b16 %v584, %v583
      %v607 = vpack.c.b16 %v586, %v585
      %v608 = vpack.c.b16 %v588, %v587
      %v609 = vpack.c.b16 %v590, %v589
      %v610 = vpack.c.b16 %v592, %v591
      %v611 = vpack.c.b16 %v594, %v593
      %v612 = vpack.c.b16 %v596, %v595
      %629 = vmatpush.bf16.msra.mxu0 %v604
      %630 = vmatpush.bf16.msra.mxu0 %v603
      %631 = vmatpush.bf16.msra.mxu0 %v602
      %632 = vmatpush.bf16.msra.mxu0 %v601
      %633 = vmatpush.bf16.msra.mxu0 %v600
      %634 = vmatpush.bf16.msra.mxu0 %v599
      %635 = vmatpush.bf16.msra.mxu0 %v598
      %636 = vmatpush.bf16.msra.mxu0 %v597
      %637 = vmatmul.bf16.gmra.mxu0 %v499
      %v638 = vpop.f32.mrf.mxu0
      %v639 = vadd.f32 0.0, %v638
      %v640 = vpop.f32.mrf.mxu0
      %v641 = vadd.f32 0.0, %v640
      %642 = vdwg.mxu0
      %643 = vmatpush.bf16.msra.mxu0 %v612
      %644 = vmatpush.bf16.msra.mxu0 %v611
      %645 = vmatpush.bf16.msra.mxu0 %v610
      %646 = vmatpush.bf16.msra.mxu0 %v609
      %647 = vmatpush.bf16.msra.mxu0 %v608
      %648 = vmatpush.bf16.msra.mxu0 %v607
      %649 = vmatpush.bf16.msra.mxu0 %v606
      %650 = vmatpush.bf16.msra.mxu0 %v605
      %651 = vmatmul.bf16.gmra.mxu0 %v500
      %v652 = vpop.f32.mrf.mxu0
      %v653 = vadd.f32 %v639, %v652
      %v654 = vpop.f32.mrf.mxu0
      %v655 = vadd.f32 %v641, %v654
      %656 = vdwg.mxu0
      %v657 = vld [vmem:[%s4] sm:$0x1]
      %v659 = vperm.slane %v657, 0
      %v661 = vmul.f32 %v653, %v659
      %v662 = vmul.f32 %v655, %v659
      %v663 = vld [vmem:[%s5] sm:$0x1]
      %v665 = vperm.slane %v663, 0
      %v667 = vadd.f32 %v661, %v665
      %v668 = vadd.f32 %v662, %v665
      %v669 = vmax.f32 %v667, 0.0
      %v670 = vmax.f32 %v668, 0.0
      %v671 = vpack.c.bf16 %v670, %v669
      %v672 = vld [vmem:[%s6] sm:$0xf]
      %v673 = vld [vmem:[%s6 + $0x4] sm:$0xf]
      %v676 = vunpack.c.l.b16 %v672
      %v677 = vunpack.c.l.b16 %v673
      %v678 = vpack.c.b16 %v677, %v676
      %vm679 = vcmask 130048
      %v681 = vsel %vm679, %v678, 0
      %683 = vmatpush.bf16.msra.mxu0 0
      %684 = vmatpush.bf16.msra.mxu0 0
      %685 = vmatpush.bf16.msra.mxu0 0
      %686 = vmatpush.bf16.msra.mxu0 0
      %687 = vmatpush.bf16.msra.mxu0 0
      %688 = vmatpush.bf16.msra.mxu0 0
      %689 = vmatpush.bf16.msra.mxu0 0
      %690 = vmatpush.bf16.msra.mxu0 %v671
      %691 = vmatmul.bf16.gmra.mxu0 %v681
      %v692 = vpop.f32.mrf.mxu0
      %v693 = vadd.f32 0.0, %v692
      %v694 = vpop.f32.mrf.mxu0
      %v695 = vadd.f32 0.0, %v694
      %696 = vdwg.mxu0
      %v697 = vpack.c.bf16 %v695, %v693
      %v698 = vld [vmem:[%s7] sm:$0xf]
      %v699 = vld [vmem:[%s7 + $0x4] sm:$0xf]
      %v702 = vunpack.c.l.b16 %v698
      %v703 = vunpack.c.l.b16 %v699
      %v704 = vpack.c.b16 %v703, %v702
      %v706 = vsel %vm679, %v704, 0
      %708 = vmatpush.bf16.msra.mxu0 0
      %709 = vmatpush.bf16.msra.mxu0 0
      %710 = vmatpush.bf16.msra.mxu0 0
      %711 = vmatpush.bf16.msra.mxu0 0
      %712 = vmatpush.bf16.msra.mxu0 0
      %713 = vmatpush.bf16.msra.mxu0 0
      %714 = vmatpush.bf16.msra.mxu0 0
      %715 = vmatpush.bf16.msra.mxu0 %v671
      %716 = vmatmul.bf16.gmra.mxu0 %v706
      %v717 = vpop.f32.mrf.mxu0
      %v718 = vadd.f32 0.0, %v717
      %v719 = vpop.f32.mrf.mxu0
      %v720 = vadd.f32 0.0, %v719
      %721 = vdwg.mxu0
      %v722 = vpack.c.bf16 %v720, %v718
      %v723 = vld [vmem:[%s8] sm:$0xf]
      %v724 = vld [vmem:[%s8 + $0x4] sm:$0xf]
      %v725 = vld [vmem:[%s8 + $0x8] sm:$0xf]
      %v726 = vld [vmem:[%s8 + $0xc] sm:$0xf]
      %v727 = vld [vmem:[%s8 + $0x10] sm:$0xf]
      %v728 = vld [vmem:[%s8 + $0x14] sm:$0xf]
      %v729 = vld [vmem:[%s8 + $0x18] sm:$0xf]
      %v730 = vld [vmem:[%s8 + $0x1c] sm:$0xf]
      %v731 = vld [vmem:[%s9] sm:$0xf]
      %v732 = vld [vmem:[%s9 + $0x4] sm:$0xf]
      %v733 = vld [vmem:[%s9 + $0x8] sm:$0xf]
      %v734 = vld [vmem:[%s9 + $0xc] sm:$0xf]
      %v735 = vld [vmem:[%s9 + $0x10] sm:$0xf]
      %v736 = vld [vmem:[%s9 + $0x14] sm:$0xf]
      %v737 = vld [vmem:[%s9 + $0x18] sm:$0xf]
      %v738 = vld [vmem:[%s9 + $0x1c] sm:$0xf]
      %v747 = vunpack.c.l.b16 %v731
      %v748 = vunpack.c.l.b16 %v732
      %v749 = vunpack.c.l.b16 %v733
      %v750 = vunpack.c.l.b16 %v734
      %v751 = vunpack.c.l.b16 %v735
      %v752 = vunpack.c.l.b16 %v736
      %v753 = vunpack.c.l.b16 %v737
      %v754 = vunpack.c.l.b16 %v738
      %v755 = vpack.c.b16 %v748, %v747
      %v756 = vpack.c.b16 %v750, %v749
      %v757 = vpack.c.b16 %v752, %v751
      %v758 = vpack.c.b16 %v754, %v753
      %vm763 = vcmask 523264
      %v765 = vsel %vm763, %v671, 0
      %767 = vmatpush.bf16.msra.mxu0 0
      %768 = vmatpush.bf16.msra.mxu0 0
      %769 = vmatpush.bf16.msra.mxu0 0
      %770 = vmatpush.bf16.msra.mxu0 0
      %771 = vmatpush.bf16.msra.mxu0 %v758
      %772 = vmatpush.bf16.msra.mxu0 %v757
      %773 = vmatpush.bf16.msra.mxu0 %v756
      %774 = vmatpush.bf16.msra.mxu0 %v755
      %775 = vmatmul.bf16.gmra.mxu0 %v765
      %v776 = vpop.f32.mrf.mxu0
      %v777 = vadd.f32 0.0, %v776
      %v778 = vpop.f32.mrf.mxu0
      %v779 = vadd.f32 0.0, %v778
      %780 = vdwg.mxu0
      %v789 = vunpack.c.l.b16 %v723
      %v790 = vunpack.c.l.b16 %v724
      %v791 = vunpack.c.l.b16 %v725
      %v792 = vunpack.c.l.b16 %v726
      %v793 = vunpack.c.l.b16 %v727
      %v794 = vunpack.c.l.b16 %v728
      %v795 = vunpack.c.l.b16 %v729
      %v796 = vunpack.c.l.b16 %v730
      %v797 = vpack.c.b16 %v790, %v789
      %v798 = vpack.c.b16 %v792, %v791
      %v799 = vpack.c.b16 %v794, %v793
      %v800 = vpack.c.b16 %v796, %v795
      %v806 = vsel %vm763, %v697, 0
      %808 = vmatpush.bf16.msra.mxu0 0
      %809 = vmatpush.bf16.msra.mxu0 0
      %810 = vmatpush.bf16.msra.mxu0 0
      %811 = vmatpush.bf16.msra.mxu0 0
      %812 = vmatpush.bf16.msra.mxu0 %v800
      %813 = vmatpush.bf16.msra.mxu0 %v799
      %814 = vmatpush.bf16.msra.mxu0 %v798
      %815 = vmatpush.bf16.msra.mxu0 %v797
      %816 = vmatmul.bf16.gmra.mxu0 %v806
      %v817 = vpop.f32.mrf.mxu0
      %v818 = vadd.f32 %v777, %v817
      %v819 = vpop.f32.mrf.mxu0
      %v820 = vadd.f32 %v779, %v819
      %821 = vdwg.mxu0
      %v822 = vld [vmem:[%s10] sm:$0xf]
      %v823 = vld [vmem:[%s10 + $0x4] sm:$0xf]
      %v824 = vld [vmem:[%s10 + $0x8] sm:$0xf]
      %v825 = vld [vmem:[%s10 + $0xc] sm:$0xf]
      %v826 = vld [vmem:[%s10 + $0x10] sm:$0xf]
      %v827 = vld [vmem:[%s10 + $0x14] sm:$0xf]
      %v828 = vld [vmem:[%s10 + $0x18] sm:$0xf]
      %v829 = vld [vmem:[%s10 + $0x1c] sm:$0xf]
      %v838 = vunpack.c.l.b16 %v822
      %v839 = vunpack.c.l.b16 %v823
      %v840 = vunpack.c.l.b16 %v824
      %v841 = vunpack.c.l.b16 %v825
      %v842 = vunpack.c.l.b16 %v826
      %v843 = vunpack.c.l.b16 %v827
      %v844 = vunpack.c.l.b16 %v828
      %v845 = vunpack.c.l.b16 %v829
      %v846 = vpack.c.b16 %v839, %v838
      %v847 = vpack.c.b16 %v841, %v840
      %v848 = vpack.c.b16 %v843, %v842
      %v849 = vpack.c.b16 %v845, %v844
      %v855 = vsel %vm763, %v722, 0
      %857 = vmatpush.bf16.msra.mxu0 0
      %858 = vmatpush.bf16.msra.mxu0 0
      %859 = vmatpush.bf16.msra.mxu0 0
      %860 = vmatpush.bf16.msra.mxu0 0
      %861 = vmatpush.bf16.msra.mxu0 %v849
      %862 = vmatpush.bf16.msra.mxu0 %v848
      %863 = vmatpush.bf16.msra.mxu0 %v847
      %864 = vmatpush.bf16.msra.mxu0 %v846
      %865 = vmatmul.bf16.gmra.mxu0 %v855
      %v866 = vpop.f32.mrf.mxu0
      %v867 = vadd.f32 0.0, %v866
      %v868 = vpop.f32.mrf.mxu0
      %v869 = vadd.f32 0.0, %v868
      %870 = vdwg.mxu0
      %v871 = vadd.f32 %v818, %v867
      %v872 = vadd.f32 %v820, %v869
      %v873 = vld [vmem:[%s11] sm:$0x1]
      %v875 = vperm.slane %v873, 0
      %v877 = vmul.f32 %v871, %v875
      %v878 = vmul.f32 %v872, %v875
      %v879 = vld [vmem:[%s12] sm:$0x1]
      %v881 = vperm.slane %v879, 0
      %v883 = vadd.f32 %v877, %v881
      %v884 = vadd.f32 %v878, %v881
      %v885 = vmax.f32 %v883, 0.0
      %v886 = vmax.f32 %v884, 0.0
      %v887 = vpack.c.bf16 %v886, %v885
      %v888 = vld [vmem:[%s13] sm:$0xff]
      %v889 = vld [vmem:[%s13 + $0x8] sm:$0xff]
      %v890 = vld [vmem:[%s13 + $0x10] sm:$0xff]
      %v891 = vld [vmem:[%s13 + $0x18] sm:$0xff]
      %v892 = vld [vmem:[%s13 + $0x20] sm:$0xff]
      %v893 = vld [vmem:[%s13 + $0x28] sm:$0xff]
      %v894 = vld [vmem:[%s13 + $0x30] sm:$0xff]
      %v895 = vld [vmem:[%s13 + $0x38] sm:$0xff]
      %v904 = vunpack.c.l.b16 %v888
      %v905 = vunpack.c.h.b16 %v888
      %v906 = vunpack.c.l.b16 %v889
      %v907 = vunpack.c.h.b16 %v889
      %v908 = vunpack.c.l.b16 %v890
      %v909 = vunpack.c.h.b16 %v890
      %v910 = vunpack.c.l.b16 %v891
      %v911 = vunpack.c.h.b16 %v891
      %v912 = vunpack.c.l.b16 %v892
      %v913 = vunpack.c.h.b16 %v892
      %v914 = vunpack.c.l.b16 %v893
      %v915 = vunpack.c.h.b16 %v893
      %v916 = vunpack.c.l.b16 %v894
      %v917 = vunpack.c.h.b16 %v894
      %v918 = vunpack.c.l.b16 %v895
      %v919 = vunpack.c.h.b16 %v895
      %v920 = vpack.c.b16 %v906, %v904
      %v921 = vpack.c.b16 %v907, %v905
      %v922 = vpack.c.b16 %v910, %v908
      %v923 = vpack.c.b16 %v911, %v909
      %v924 = vpack.c.b16 %v914, %v912
      %v925 = vpack.c.b16 %v915, %v913
      %v926 = vpack.c.b16 %v918, %v916
      %v927 = vpack.c.b16 %v919, %v917
      %v937 = vsel %vm763, %v887, 0
      %939 = vmatpush.bf16.msra.mxu0 0
      %940 = vmatpush.bf16.msra.mxu0 0
      %941 = vmatpush.bf16.msra.mxu0 0
      %942 = vmatpush.bf16.msra.mxu0 0
      %943 = vmatpush.bf16.msra.mxu0 %v926
      %944 = vmatpush.bf16.msra.mxu0 %v924
      %945 = vmatpush.bf16.msra.mxu0 %v922
      %946 = vmatpush.bf16.msra.mxu0 %v920
      %947 = vmatmul.bf16.gmra.mxu0 %v937
      %v948 = vpop.f32.mrf.mxu0
      %v949 = vadd.f32 %v471, %v948
      %v950 = vpop.f32.mrf.mxu0
      %v951 = vadd.f32 %v473, %v950
      %952 = vdwg.mxu0
      %953 = vmatpush.bf16.msra.mxu0 0
      %954 = vmatpush.bf16.msra.mxu0 0
      %955 = vmatpush.bf16.msra.mxu0 0
      %956 = vmatpush.bf16.msra.mxu0 0
      %957 = vmatpush.bf16.msra.mxu0 %v927
      %958 = vmatpush.bf16.msra.mxu0 %v925
      %959 = vmatpush.bf16.msra.mxu0 %v923
      %960 = vmatpush.bf16.msra.mxu0 %v921
      %961 = vmatmul.bf16.gmra.mxu0 %v937
      %v962 = vpop.f32.mrf.mxu0
      %v963 = vadd.f32 %v472, %v962
      %v964 = vpop.f32.mrf.mxu0
      %v965 = vadd.f32 %v474, %v964
      %966 = vdwg.mxu0
      %v967 = vpack.c.bf16 %v963, %v949
      %v968 = vpack.c.bf16 %v965, %v951
      %969 = vst [vmem:[%s467] sm:$0xff] %v967
      %970 = vst [vmem:[%s467 + $0x8] sm:$0xff] %v968
      %p971 = scmp.lt.s32.totalorder %s25, 1
      %s972 = scalar_select %p971, %s25, 1
      %s973 = smul.addr %s972, 4
      %s974 = smul.addr %s973, 4
      %s975 = scalar_lea.vmem %s14, %s974
      // Predicated region
      $region77: #{attention_module_stage1.19} parent=75 // pred_check
        %p976 = pneg %p342
      $region78: #{attention_module_stage1.19} parent=75 // pred_check_branch
        %978 = sbr.rel (%p976) target = $region80
      $region79: #{attention_module_stage1.19} parent=75 // pred_region
        _
      $region80: #{attention_module_stage1.19} parent=75 // pred_fallthru
        _
    $region76: #{attention_module_stage1.19} parent=5 // pred_fallthru
      _
    %p979 = scmp.le.s32.totalorder 2, %s20
    // Predicated region
    $region81: #{attention_module_stage1.19} parent=5 // pred_check
      %p980 = pneg %p979
    $region82: #{attention_module_stage1.19} parent=5 // pred_check_branch
      %982 = sbr.rel (%p980) target = $region84
    $region83: #{attention_module_stage1.19} parent=5 // pred_region
      %s983 = ssub.s32 %s20, 2
      // Predicated region
      $region85: #{attention_module_stage1.19} parent=83 // pred_check
        %p984 = pneg %p348
      $region86: #{attention_module_stage1.19} parent=83 // pred_check_branch
        %986 = sbr.rel (%p984) target = $region88
      $region87: #{attention_module_stage1.19} parent=83 // pred_region
        %p987 = scmp.lt.s32.totalorder %s26, 1
        %s988 = scalar_select %p987, %s26, 1
        %s989 = smul.addr %s988, 4
        %s990 = smul.addr %s989, 4
        %s991 = scalar_lea.vmem %s14, %s990
      $region88: #{attention_module_stage1.19} parent=83 // pred_fallthru
        _
    $region84: #{attention_module_stage1.19} parent=5 // pred_fallthru
      _
  $region6: #{attention_module_stage1.19} parent=0 // loop_footer
    %s24 = sadd.s32 1, %s20
  $region7: #{attention_module_stage1.19} parent=0 // loop_footer_branch
    %19 = sbr.rel target = $region3
  $region8: #{attention_module_stage1.19} parent=0 // loop_exit
    _

// kernel: attention_module_stage1.21
$region0: #{attention_module_stage1.21}
  #allocation0 [shape = 'u32[]', space=smem, size = 0x4, offset = 0x4, fixed_abs, tag = 'smem constant byte address 0x4 - core index']
  #allocation1 [shape = 'u32[72,128]{1,0:T(1,128)}', space=vmem, size = 0x9000, scoped, tag = 'internal scratch']
  %s0 = inlined_call_operand.vmem [shape: bf16[2,16,256], index: 0, kind: input, shape index: {}]
  %s1 = inlined_call_operand.vmem [shape: bf16[2,16,256], index: 1, kind: input, shape index: {}]
  %s2 = inlined_call_operand.vmem [shape: f32[1,256], index: 2, kind: input, shape index: {}]
  %s3 = inlined_call_operand.vmem [shape: f32[1,256], index: 3, kind: input, shape index: {}]
  %s4 = inlined_call_operand.vmem [shape: bf16[256,256], index: 4, kind: input, shape index: {}]
  %s5 = inlined_call_operand.vmem [shape: f32[1,256], index: 5, kind: input, shape index: {}]
  %s6 = inlined_call_operand.vmem [shape: f32[1,256], index: 6, kind: input, shape index: {}]
  %s7 = inlined_call_operand.vmem [shape: bf16[256,256], index: 7, kind: input, shape index: {}]
  %s8 = inlined_call_operand.vmem [shape: bf16[2,16,256], index: 8, kind: output, shape index: {}]
  %s9 = sld [smem:[#allocation0]]
  $region65: #{attention_module_stage1.21} parent=0
    _
  %s11 = ssub.s32 1, %s9
  %s12 = scalar_select 0, %s11, %s9
  loop: start=0, step=1, limit=4
  $region2: #{attention_module_stage1.21} parent=0 // loop_pre_header
    _
  $region3: #{attention_module_stage1.21} parent=0 // loop_header
    %s14 = sphi 0, %s18
    %p15 = scmp.ge.s32.totalorder %s14, 4
    %s24 = sphi 0, %s26
    %s27 = sphi 0, %s24
    %s28 = sphi 0, %s27
    %s44 = sphi 0, %s28
    %s50 = sphi 0, %s52
    %s53 = sphi 0, %s50
    %s54 = sphi 0, %s53
    %s70 = sphi 0, %s54
    %s74 = sphi 0, %s74
    %s76 = sphi 0, %s74
    %s77 = sphi 0, %s76
    %s91 = sphi 0, %s77
    %s95 = sphi 0, %s95
    %s97 = sphi 0, %s95
    %s98 = sphi 0, %s97
    %s112 = sphi 0, %s98
    %s116 = sphi 0, %s116
    %s118 = sphi 0, %s116
    %s119 = sphi 0, %s118
    %s133 = sphi 0, %s119
    %s137 = sphi 0, %s137
    %s139 = sphi 0, %s137
    %s140 = sphi 0, %s139
    %s154 = sphi 0, %s140
    %s158 = sphi 0, %s158
    %s160 = sphi 0, %s158
    %s161 = sphi 0, %s160
    %s175 = sphi 0, %s161
    %s179 = sphi 0, %s179
    %s181 = sphi 0, %s179
    %s182 = sphi 0, %s181
    %s196 = sphi 0, %s182
    %s202 = sphi 0, %s204
    %s205 = sphi 0, %s202
    %s206 = sphi 0, %s205
    %s222 = sphi 0, %s206
  $region4: #{attention_module_stage1.21} parent=0 // loop_header_branch
    %17 = sbr.rel (%p15) target = $region8
  $region5: #{attention_module_stage1.21} parent=0 // loop_body
    %s19 = ssub.s32 %s14, 1
    %s20 = ssub.s32 %s14, 2
    %s21 = sadd.s32 %s14, 1
    %s22 = ssub.s32 %s14, %s21
    %p23 = scmp.eq.s32.totalorder %s22, 0
    %s25 = sadd.s32 %s24, 1
    %s26 = scalar_select %p23, %s24, %s25
    %p29 = pneg %p23
    %p30 = scmp.eq.s32.totalorder %s14, 1
    %p31 = por %p29, %p30
    %p32 = scmp.ne.s32.totalorder %s24, %s27
    %p33 = scmp.eq.s32.totalorder %s14, 0
    %p34 = por %p32, %p33
    %p35 = scmp.ne.s32.totalorder %s24, %s27
    %p36 = scmp.eq.s32.totalorder %s19, 1
    %p37 = por %p35, %p36
    %p38 = scmp.ne.s32.totalorder %s27, %s28
    %p39 = scmp.eq.s32.totalorder %s19, 0
    %p40 = por %p38, %p39
    %p41 = scmp.ne.s32.totalorder %s27, %s28
    %p42 = scmp.eq.s32.totalorder %s20, 1
    %p43 = por %p41, %p42
    %p45 = scmp.ne.s32.totalorder %s28, %s44
    %p46 = scmp.eq.s32.totalorder %s20, 0
    %p47 = por %p45, %p46
    %s48 = ssub.s32 %s14, %s21
    %p49 = scmp.eq.s32.totalorder %s48, 0
    %s51 = sadd.s32 %s50, 1
    %s52 = scalar_select %p49, %s50, %s51
    %p55 = pneg %p49
    %p56 = scmp.eq.s32.totalorder %s14, 1
    %p57 = por %p55, %p56
    %p58 = scmp.ne.s32.totalorder %s50, %s53
    %p59 = scmp.eq.s32.totalorder %s14, 0
    %p60 = por %p58, %p59
    %p61 = scmp.ne.s32.totalorder %s50, %s53
    %p62 = scmp.eq.s32.totalorder %s19, 1
    %p63 = por %p61, %p62
    %p64 = scmp.ne.s32.totalorder %s53, %s54
    %p65 = scmp.eq.s32.totalorder %s19, 0
    %p66 = por %p64, %p65
    %p67 = scmp.ne.s32.totalorder %s53, %s54
    %p68 = scmp.eq.s32.totalorder %s20, 1
    %p69 = por %p67, %p68
    %p71 = scmp.ne.s32.totalorder %s54, %s70
    %p72 = scmp.eq.s32.totalorder %s20, 0
    %p73 = por %p71, %p72
    %s75 = sadd.s32 %s74, 1
    %p78 = scmp.eq.s32.totalorder %s14, 1
    %p79 = scmp.ne.s32.totalorder %s74, %s76
    %p80 = scmp.eq.s32.totalorder %s14, 0
    %p81 = por %p79, %p80
    %p82 = scmp.ne.s32.totalorder %s74, %s76
    %p83 = scmp.eq.s32.totalorder %s19, 1
    %p84 = por %p82, %p83
    %p85 = scmp.ne.s32.totalorder %s76, %s77
    %p86 = scmp.eq.s32.totalorder %s19, 0
    %p87 = por %p85, %p86
    %p88 = scmp.ne.s32.totalorder %s76, %s77
    %p89 = scmp.eq.s32.totalorder %s20, 1
    %p90 = por %p88, %p89
    %p92 = scmp.ne.s32.totalorder %s77, %s91
    %p93 = scmp.eq.s32.totalorder %s20, 0
    %p94 = por %p92, %p93
    %s96 = sadd.s32 %s95, 1
    %p99 = scmp.eq.s32.totalorder %s14, 1
    %p100 = scmp.ne.s32.totalorder %s95, %s97
    %p101 = scmp.eq.s32.totalorder %s14, 0
    %p102 = por %p100, %p101
    %p103 = scmp.ne.s32.totalorder %s95, %s97
    %p104 = scmp.eq.s32.totalorder %s19, 1
    %p105 = por %p103, %p104
    %p106 = scmp.ne.s32.totalorder %s97, %s98
    %p107 = scmp.eq.s32.totalorder %s19, 0
    %p108 = por %p106, %p107
    %p109 = scmp.ne.s32.totalorder %s97, %s98
    %p110 = scmp.eq.s32.totalorder %s20, 1
    %p111 = por %p109, %p110
    %p113 = scmp.ne.s32.totalorder %s98, %s112
    %p114 = scmp.eq.s32.totalorder %s20, 0
    %p115 = por %p113, %p114
    %s117 = sadd.s32 %s116, 1
    %p120 = scmp.eq.s32.totalorder %s14, 1
    %p121 = scmp.ne.s32.totalorder %s116, %s118
    %p122 = scmp.eq.s32.totalorder %s14, 0
    %p123 = por %p121, %p122
    %p124 = scmp.ne.s32.totalorder %s116, %s118
    %p125 = scmp.eq.s32.totalorder %s19, 1
    %p126 = por %p124, %p125
    %p127 = scmp.ne.s32.totalorder %s118, %s119
    %p128 = scmp.eq.s32.totalorder %s19, 0
    %p129 = por %p127, %p128
    %p130 = scmp.ne.s32.totalorder %s118, %s119
    %p131 = scmp.eq.s32.totalorder %s20, 1
    %p132 = por %p130, %p131
    %p134 = scmp.ne.s32.totalorder %s119, %s133
    %p135 = scmp.eq.s32.totalorder %s20, 0
    %p136 = por %p134, %p135
    %s138 = sadd.s32 %s137, 1
    %p141 = scmp.eq.s32.totalorder %s14, 1
    %p142 = scmp.ne.s32.totalorder %s137, %s139
    %p143 = scmp.eq.s32.totalorder %s14, 0
    %p144 = por %p142, %p143
    %p145 = scmp.ne.s32.totalorder %s137, %s139
    %p146 = scmp.eq.s32.totalorder %s19, 1
    %p147 = por %p145, %p146
    %p148 = scmp.ne.s32.totalorder %s139, %s140
    %p149 = scmp.eq.s32.totalorder %s19, 0
    %p150 = por %p148, %p149
    %p151 = scmp.ne.s32.totalorder %s139, %s140
    %p152 = scmp.eq.s32.totalorder %s20, 1
    %p153 = por %p151, %p152
    %p155 = scmp.ne.s32.totalorder %s140, %s154
    %p156 = scmp.eq.s32.totalorder %s20, 0
    %p157 = por %p155, %p156
    %s159 = sadd.s32 %s158, 1
    %p162 = scmp.eq.s32.totalorder %s14, 1
    %p163 = scmp.ne.s32.totalorder %s158, %s160
    %p164 = scmp.eq.s32.totalorder %s14, 0
    %p165 = por %p163, %p164
    %p166 = scmp.ne.s32.totalorder %s158, %s160
    %p167 = scmp.eq.s32.totalorder %s19, 1
    %p168 = por %p166, %p167
    %p169 = scmp.ne.s32.totalorder %s160, %s161
    %p170 = scmp.eq.s32.totalorder %s19, 0
    %p171 = por %p169, %p170
    %p172 = scmp.ne.s32.totalorder %s160, %s161
    %p173 = scmp.eq.s32.totalorder %s20, 1
    %p174 = por %p172, %p173
    %p176 = scmp.ne.s32.totalorder %s161, %s175
    %p177 = scmp.eq.s32.totalorder %s20, 0
    %p178 = por %p176, %p177
    %s180 = sadd.s32 %s179, 1
    %p183 = scmp.eq.s32.totalorder %s14, 1
    %p184 = scmp.ne.s32.totalorder %s179, %s181
    %p185 = scmp.eq.s32.totalorder %s14, 0
    %p186 = por %p184, %p185
    %p187 = scmp.ne.s32.totalorder %s179, %s181
    %p188 = scmp.eq.s32.totalorder %s19, 1
    %p189 = por %p187, %p188
    %p190 = scmp.ne.s32.totalorder %s181, %s182
    %p191 = scmp.eq.s32.totalorder %s19, 0
    %p192 = por %p190, %p191
    %p193 = scmp.ne.s32.totalorder %s181, %s182
    %p194 = scmp.eq.s32.totalorder %s20, 1
    %p195 = por %p193, %p194
    %p197 = scmp.ne.s32.totalorder %s182, %s196
    %p198 = scmp.eq.s32.totalorder %s20, 0
    %p199 = por %p197, %p198
    %s200 = ssub.s32 %s14, %s21
    %p201 = scmp.eq.s32.totalorder %s200, 0
    %s203 = sadd.s32 %s202, 1
    %s204 = scalar_select %p201, %s202, %s203
    %p207 = pneg %p201
    %p208 = scmp.eq.s32.totalorder %s14, 1
    %p209 = por %p207, %p208
    %p210 = scmp.ne.s32.totalorder %s202, %s205
    %p211 = scmp.eq.s32.totalorder %s14, 0
    %p212 = por %p210, %p211
    %p213 = scmp.ne.s32.totalorder %s202, %s205
    %p214 = scmp.eq.s32.totalorder %s19, 1
    %p215 = por %p213, %p214
    %p216 = scmp.ne.s32.totalorder %s205, %s206
    %p217 = scmp.eq.s32.totalorder %s19, 0
    %p218 = por %p216, %p217
    %p219 = scmp.ne.s32.totalorder %s205, %s206
    %p220 = scmp.eq.s32.totalorder %s20, 1
    %p221 = por %p219, %p220
    %p223 = scmp.ne.s32.totalorder %s206, %s222
    %p224 = scmp.eq.s32.totalorder %s20, 0
    %p225 = por %p223, %p224
    %p226 = scmp.le.s32.totalorder 1, %s14
    %p227 = scmp.lt.s32.totalorder %s14, 3
    %p228 = pnand %p226, %p227
    %p229 = pneg %p228
    // Predicated region
    $region9: #{attention_module_stage1.21} parent=5 // pred_check
      _
    $region10: #{attention_module_stage1.21} parent=5 // pred_check_branch
      %231 = sbr.rel (%p228) target = $region12
    $region11: #{attention_module_stage1.21} parent=5 // pred_region
      %s232 = ssub.s32 %s14, 1
      // Predicated region
      $region13: #{attention_module_stage1.21} parent=11 // pred_check
        %p233 = pneg %p87
      $region14: #{attention_module_stage1.21} parent=11 // pred_check_branch
        %235 = sbr.rel (%p233) target = $region16
      $region15: #{attention_module_stage1.21} parent=11 // pred_region
        _
      $region16: #{attention_module_stage1.21} parent=11 // pred_fallthru
        _
      // Predicated region
      $region17: #{attention_module_stage1.21} parent=11 // pred_check
        %p236 = pneg %p108
      $region18: #{attention_module_stage1.21} parent=11 // pred_check_branch
        %238 = sbr.rel (%p236) target = $region20
      $region19: #{attention_module_stage1.21} parent=11 // pred_region
        _
      $region20: #{attention_module_stage1.21} parent=11 // pred_fallthru
        _
      // Predicated region
      $region21: #{attention_module_stage1.21} parent=11 // pred_check
        %p239 = pneg %p129
      $region22: #{attention_module_stage1.21} parent=11 // pred_check_branch
        %241 = sbr.rel (%p239) target = $region24
      $region23: #{attention_module_stage1.21} parent=11 // pred_region
        _
      $region24: #{attention_module_stage1.21} parent=11 // pred_fallthru
        _
      // Predicated region
      $region25: #{attention_module_stage1.21} parent=11 // pred_check
        %p242 = pneg %p150
      $region26: #{attention_module_stage1.21} parent=11 // pred_check_branch
        %244 = sbr.rel (%p242) target = $region28
      $region27: #{attention_module_stage1.21} parent=11 // pred_region
        _
      $region28: #{attention_module_stage1.21} parent=11 // pred_fallthru
        _
      // Predicated region
      $region29: #{attention_module_stage1.21} parent=11 // pred_check
        %p245 = pneg %p171
      $region30: #{attention_module_stage1.21} parent=11 // pred_check_branch
        %247 = sbr.rel (%p245) target = $region32
      $region31: #{attention_module_stage1.21} parent=11 // pred_region
        _
      $region32: #{attention_module_stage1.21} parent=11 // pred_fallthru
        _
      // Predicated region
      $region33: #{attention_module_stage1.21} parent=11 // pred_check
        %p248 = pneg %p192
      $region34: #{attention_module_stage1.21} parent=11 // pred_check_branch
        %250 = sbr.rel (%p248) target = $region36
      $region35: #{attention_module_stage1.21} parent=11 // pred_region
        _
      $region36: #{attention_module_stage1.21} parent=11 // pred_fallthru
        _
    $region12: #{attention_module_stage1.21} parent=5 // pred_fallthru
      _
    %p251 = scmp.lt.s32.totalorder %s14, 2
    // Predicated region
    $region37: #{attention_module_stage1.21} parent=5 // pred_check
      %p252 = pneg %p251
    $region38: #{attention_module_stage1.21} parent=5 // pred_check_branch
      %254 = sbr.rel (%p252) target = $region40
    $region39: #{attention_module_stage1.21} parent=5 // pred_region
      // Predicated region
      $region41: #{attention_module_stage1.21} parent=39 // pred_check
        %p255 = pneg %p34
      $region42: #{attention_module_stage1.21} parent=39 // pred_check_branch
        %257 = sbr.rel (%p255) target = $region44
      $region43: #{attention_module_stage1.21} parent=39 // pred_region
        %p258 = scmp.lt.s32.totalorder %s14, 1
        %s259 = scalar_select %p258, %s14, 1
        %s260 = smul.addr %s259, 4
        %s261 = smul.addr %s260, 4
        %s262 = scalar_lea.vmem %s0, %s261
      $region44: #{attention_module_stage1.21} parent=39 // pred_fallthru
        _
      // Predicated region
      $region45: #{attention_module_stage1.21} parent=39 // pred_check
        %p263 = pneg %p60
      $region46: #{attention_module_stage1.21} parent=39 // pred_check_branch
        %265 = sbr.rel (%p263) target = $region48
      $region47: #{attention_module_stage1.21} parent=39 // pred_region
        %p266 = scmp.lt.s32.totalorder %s14, 1
        %s267 = scalar_select %p266, %s14, 1
        %s268 = smul.addr %s267, 4
        %s269 = smul.addr %s268, 4
        %s270 = scalar_lea.vmem %s1, %s269
      $region48: #{attention_module_stage1.21} parent=39 // pred_fallthru
        _
    $region40: #{attention_module_stage1.21} parent=5 // pred_fallthru
      _
    %p271 = scmp.le.s32.totalorder 1, %s14
    %p272 = scmp.lt.s32.totalorder %s14, 3
    %p273 = pnand %p271, %p272
    %p274 = pneg %p273
    // Predicated region
    $region49: #{attention_module_stage1.21} parent=5 // pred_check
      _
    $region50: #{attention_module_stage1.21} parent=5 // pred_check_branch
      %276 = sbr.rel (%p273) target = $region52
    $region51: #{attention_module_stage1.21} parent=5 // pred_region
      %s277 = ssub.s32 %s14, 1
      %p278 = scmp.lt.s32.totalorder %s19, 1
      %s279 = scalar_select %p278, %s19, 1
      %s280 = smul.addr %s279, 4
      %s281 = smul.addr %s280, 4
      %s282 = scalar_lea.vmem %s0, %s281
      %p283 = pneg %p40
      %p284 = pneg %p37
      %p285 = scmp.lt.s32.totalorder %s19, 1
      %s286 = scalar_select %p285, %s19, 1
      %s287 = smul.addr %s286, 4
      %s288 = smul.addr %s287, 4
      %s289 = scalar_lea.vmem %s1, %s288
      %p290 = pneg %p66
      %p291 = pneg %p63
      %p292 = pneg %p87
      %p293 = pneg %p84
      %p294 = pneg %p108
      %p295 = pneg %p105
      %p296 = pneg %p129
      %p297 = pneg %p126
      %p298 = pneg %p150
      %p299 = pneg %p147
      %p300 = pneg %p171
      %p301 = pneg %p168
      %p302 = pneg %p192
      %p303 = pneg %p189
      %p304 = pneg %p218
      %p305 = pneg %p215
      %p306 = scmp.lt.s32.totalorder %s19, 1
      %s307 = scalar_select %p306, %s19, 1
      %s308 = smul.addr %s307, 4
      %s309 = smul.addr %s308, 4
      %s310 = scalar_lea.vmem %s8, %s309
      %p311 = scmp.lt.s32.totalorder %s19, 1
      %s312 = scalar_select %p311, %s19, 1
      %s313 = smul.addr %s312, 4
      %s314 = smul.addr %s313, 4
      %s315 = scalar_lea.vmem %s0, %s314
      %p316 = scmp.lt.s32.totalorder %s19, 1
      %s317 = scalar_select %p316, %s19, 1
      %s318 = smul.addr %s317, 4
      %s319 = smul.addr %s318, 4
      %s320 = scalar_lea.vmem %s1, %s319
      %p321 = scmp.lt.s32.totalorder %s19, 1
      %s322 = scalar_select %p321, %s19, 1
      %s323 = smul.addr %s322, 4
      %s324 = smul.addr %s323, 4
      %s325 = scalar_lea.vmem %s8, %s324
      %v326 = vld [vmem:[%s315] sm:$0xff]
      %v327 = vld [vmem:[%s315 + $0x8] sm:$0xff]
      %v328 = vunpack.c.l.bf16 %v326
      %v329 = vunpack.c.h.bf16 %v326
      %v330 = vunpack.c.l.bf16 %v327
      %v331 = vunpack.c.h.bf16 %v327
      %v332 = vld [vmem:[%s320] sm:$0xff]
      %v333 = vld [vmem:[%s320 + $0x8] sm:$0xff]
      %v334 = vunpack.c.l.bf16 %v332
      %v335 = vunpack.c.h.bf16 %v332
      %v336 = vunpack.c.l.bf16 %v333
      %v337 = vunpack.c.h.bf16 %v333
      %v338 = vadd.f32 %v328, %v334
      %v339 = vadd.f32 %v329, %v335
      %v340 = vadd.f32 %v330, %v336
      %v341 = vadd.f32 %v331, %v337
      %v342 = vld [vmem:[%s2] sm:$0x3]
      %v344 = vperm.slane %v342, 0
      %v345 = vperm.slane %v342, 1
      %v348 = vmul.f32 %v338, %v344
      %v349 = vmul.f32 %v339, %v345
      %v350 = vmul.f32 %v340, %v344
      %v351 = vmul.f32 %v341, %v345
      %v352 = vld [vmem:[%s3] sm:$0x3]
      %v354 = vperm.slane %v352, 0
      %v355 = vperm.slane %v352, 1
      %v358 = vadd.f32 %v348, %v354
      %v359 = vadd.f32 %v349, %v355
      %v360 = vadd.f32 %v350, %v354
      %v361 = vadd.f32 %v351, %v355
      %v362 = vmax.f32 %v358, 0.0
      %v363 = vmax.f32 %v359, 0.0
      %v364 = vmax.f32 %v360, 0.0
      %v365 = vmax.f32 %v361, 0.0
      %v366 = vpack.c.bf16 %v364, %v362
      %v367 = vpack.c.bf16 %v365, %v363
      %v368 = vld [vmem:[%s4] sm:$0xff]
      %v369 = vld [vmem:[%s4 + $0x8] sm:$0xff]
      %v370 = vld [vmem:[%s4 + $0x10] sm:$0xff]
      %v371 = vld [vmem:[%s4 + $0x18] sm:$0xff]
      %v372 = vld [vmem:[%s4 + $0x20] sm:$0xff]
      %v373 = vld [vmem:[%s4 + $0x28] sm:$0xff]
      %v374 = vld [vmem:[%s4 + $0x30] sm:$0xff]
      %v375 = vld [vmem:[%s4 + $0x38] sm:$0xff]
      %v376 = vld [vmem:[%s4 + $0x40] sm:$0xff]
      %v377 = vld [vmem:[%s4 + $0x48] sm:$0xff]
      %v378 = vld [vmem:[%s4 + $0x50] sm:$0xff]
      %v379 = vld [vmem:[%s4 + $0x58] sm:$0xff]
      %v380 = vld [vmem:[%s4 + $0x60] sm:$0xff]
      %v381 = vld [vmem:[%s4 + $0x68] sm:$0xff]
      %v382 = vld [vmem:[%s4 + $0x70] sm:$0xff]
      %v383 = vld [vmem:[%s4 + $0x78] sm:$0xff]
      %v384 = vld [vmem:[%s4 + $0x80] sm:$0xff]
      %v385 = vld [vmem:[%s4 + $0x88] sm:$0xff]
      %v386 = vld [vmem:[%s4 + $0x90] sm:$0xff]
      %v387 = vld [vmem:[%s4 + $0x98] sm:$0xff]
      %v388 = vld [vmem:[%s4 + $0xa0] sm:$0xff]
      %v389 = vld [vmem:[%s4 + $0xa8] sm:$0xff]
      %v390 = vld [vmem:[%s4 + $0xb0] sm:$0xff]
      %v391 = vld [vmem:[%s4 + $0xb8] sm:$0xff]
      %v392 = vld [vmem:[%s4 + $0xc0] sm:$0xff]
      %v393 = vld [vmem:[%s4 + $0xc8] sm:$0xff]
      %v394 = vld [vmem:[%s4 + $0xd0] sm:$0xff]
      %v395 = vld [vmem:[%s4 + $0xd8] sm:$0xff]
      %v396 = vld [vmem:[%s4 + $0xe0] sm:$0xff]
      %v397 = vld [vmem:[%s4 + $0xe8] sm:$0xff]
      %v398 = vld [vmem:[%s4 + $0xf0] sm:$0xff]
      %v399 = vld [vmem:[%s4 + $0xf8] sm:$0xff]
      %v432 = vunpack.c.l.b16 %v368
      %v433 = vunpack.c.h.b16 %v368
      %v434 = vunpack.c.l.b16 %v369
      %v435 = vunpack.c.h.b16 %v369
      %v436 = vunpack.c.l.b16 %v370
      %v437 = vunpack.c.h.b16 %v370
      %v438 = vunpack.c.l.b16 %v371
      %v439 = vunpack.c.h.b16 %v371
      %v440 = vunpack.c.l.b16 %v372
      %v441 = vunpack.c.h.b16 %v372
      %v442 = vunpack.c.l.b16 %v373
      %v443 = vunpack.c.h.b16 %v373
      %v444 = vunpack.c.l.b16 %v374
      %v445 = vunpack.c.h.b16 %v374
      %v446 = vunpack.c.l.b16 %v375
      %v447 = vunpack.c.h.b16 %v375
      %v448 = vunpack.c.l.b16 %v376
      %v449 = vunpack.c.h.b16 %v376
      %v450 = vunpack.c.l.b16 %v377
      %v451 = vunpack.c.h.b16 %v377
      %v452 = vunpack.c.l.b16 %v378
      %v453 = vunpack.c.h.b16 %v378
      %v454 = vunpack.c.l.b16 %v379
      %v455 = vunpack.c.h.b16 %v379
      %v456 = vunpack.c.l.b16 %v380
      %v457 = vunpack.c.h.b16 %v380
      %v458 = vunpack.c.l.b16 %v381
      %v459 = vunpack.c.h.b16 %v381
      %v460 = vunpack.c.l.b16 %v382
      %v461 = vunpack.c.h.b16 %v382
      %v462 = vunpack.c.l.b16 %v383
      %v463 = vunpack.c.h.b16 %v383
      %v464 = vunpack.c.l.b16 %v384
      %v465 = vunpack.c.h.b16 %v384
      %v466 = vunpack.c.l.b16 %v385
      %v467 = vunpack.c.h.b16 %v385
      %v468 = vunpack.c.l.b16 %v386
      %v469 = vunpack.c.h.b16 %v386
      %v470 = vunpack.c.l.b16 %v387
      %v471 = vunpack.c.h.b16 %v387
      %v472 = vunpack.c.l.b16 %v388
      %v473 = vunpack.c.h.b16 %v388
      %v474 = vunpack.c.l.b16 %v389
      %v475 = vunpack.c.h.b16 %v389
      %v476 = vunpack.c.l.b16 %v390
      %v477 = vunpack.c.h.b16 %v390
      %v478 = vunpack.c.l.b16 %v391
      %v479 = vunpack.c.h.b16 %v391
      %v480 = vunpack.c.l.b16 %v392
      %v481 = vunpack.c.h.b16 %v392
      %v482 = vunpack.c.l.b16 %v393
      %v483 = vunpack.c.h.b16 %v393
      %v484 = vunpack.c.l.b16 %v394
      %v485 = vunpack.c.h.b16 %v394
      %v486 = vunpack.c.l.b16 %v395
      %v487 = vunpack.c.h.b16 %v395
      %v488 = vunpack.c.l.b16 %v396
      %v489 = vunpack.c.h.b16 %v396
      %v490 = vunpack.c.l.b16 %v397
      %v491 = vunpack.c.h.b16 %v397
      %v492 = vunpack.c.l.b16 %v398
      %v493 = vunpack.c.h.b16 %v398
      %v494 = vunpack.c.l.b16 %v399
      %v495 = vunpack.c.h.b16 %v399
      %v496 = vpack.c.b16 %v434, %v432
      %v497 = vpack.c.b16 %v435, %v433
      %v498 = vpack.c.b16 %v438, %v436
      %v499 = vpack.c.b16 %v439, %v437
      %v500 = vpack.c.b16 %v442, %v440
      %v501 = vpack.c.b16 %v443, %v441
      %v502 = vpack.c.b16 %v446, %v444
      %v503 = vpack.c.b16 %v447, %v445
      %v504 = vpack.c.b16 %v450, %v448
      %v505 = vpack.c.b16 %v451, %v449
      %v506 = vpack.c.b16 %v454, %v452
      %v507 = vpack.c.b16 %v455, %v453
      %v508 = vpack.c.b16 %v458, %v456
      %v509 = vpack.c.b16 %v459, %v457
      %v510 = vpack.c.b16 %v462, %v460
      %v511 = vpack.c.b16 %v463, %v461
      %v512 = vpack.c.b16 %v466, %v464
      %v513 = vpack.c.b16 %v467, %v465
      %v514 = vpack.c.b16 %v470, %v468
      %v515 = vpack.c.b16 %v471, %v469
      %v516 = vpack.c.b16 %v474, %v472
      %v517 = vpack.c.b16 %v475, %v473
      %v518 = vpack.c.b16 %v478, %v476
      %v519 = vpack.c.b16 %v479, %v477
      %v520 = vpack.c.b16 %v482, %v480
      %v521 = vpack.c.b16 %v483, %v481
      %v522 = vpack.c.b16 %v486, %v484
      %v523 = vpack.c.b16 %v487, %v485
      %v524 = vpack.c.b16 %v490, %v488
      %v525 = vpack.c.b16 %v491, %v489
      %v526 = vpack.c.b16 %v494, %v492
      %v527 = vpack.c.b16 %v495, %v493
      %560 = vmatpush.bf16.msra.mxu0 %v510
      %561 = vmatpush.bf16.msra.mxu0 %v508
      %562 = vmatpush.bf16.msra.mxu0 %v506
      %563 = vmatpush.bf16.msra.mxu0 %v504
      %564 = vmatpush.bf16.msra.mxu0 %v502
      %565 = vmatpush.bf16.msra.mxu0 %v500
      %566 = vmatpush.bf16.msra.mxu0 %v498
      %567 = vmatpush.bf16.msra.mxu0 %v496
      %568 = vmatmul.bf16.gmra.mxu0 %v366
      %v569 = vpop.f32.mrf.mxu0
      %v570 = vadd.f32 0.0, %v569
      %v571 = vpop.f32.mrf.mxu0
      %v572 = vadd.f32 0.0, %v571
      %573 = vdwg.mxu0
      %574 = vmatpush.bf16.msra.mxu0 %v526
      %575 = vmatpush.bf16.msra.mxu0 %v524
      %576 = vmatpush.bf16.msra.mxu0 %v522
      %577 = vmatpush.bf16.msra.mxu0 %v520
      %578 = vmatpush.bf16.msra.mxu0 %v518
      %579 = vmatpush.bf16.msra.mxu0 %v516
      %580 = vmatpush.bf16.msra.mxu0 %v514
      %581 = vmatpush.bf16.msra.mxu0 %v512
      %582 = vmatmul.bf16.gmra.mxu0 %v367
      %v583 = vpop.f32.mrf.mxu0
      %v584 = vadd.f32 %v570, %v583
      %v585 = vpop.f32.mrf.mxu0
      %v586 = vadd.f32 %v572, %v585
      %587 = vdwg.mxu0
      %588 = vmatpush.bf16.msra.mxu0 %v511
      %589 = vmatpush.bf16.msra.mxu0 %v509
      %590 = vmatpush.bf16.msra.mxu0 %v507
      %591 = vmatpush.bf16.msra.mxu0 %v505
      %592 = vmatpush.bf16.msra.mxu0 %v503
      %593 = vmatpush.bf16.msra.mxu0 %v501
      %594 = vmatpush.bf16.msra.mxu0 %v499
      %595 = vmatpush.bf16.msra.mxu0 %v497
      %596 = vmatmul.bf16.gmra.mxu0 %v366
      %v597 = vpop.f32.mrf.mxu0
      %v598 = vadd.f32 0.0, %v597
      %v599 = vpop.f32.mrf.mxu0
      %v600 = vadd.f32 0.0, %v599
      %601 = vdwg.mxu0
      %602 = vmatpush.bf16.msra.mxu0 %v527
      %603 = vmatpush.bf16.msra.mxu0 %v525
      %604 = vmatpush.bf16.msra.mxu0 %v523
      %605 = vmatpush.bf16.msra.mxu0 %v521
      %606 = vmatpush.bf16.msra.mxu0 %v519
      %607 = vmatpush.bf16.msra.mxu0 %v517
      %608 = vmatpush.bf16.msra.mxu0 %v515
      %609 = vmatpush.bf16.msra.mxu0 %v513
      %610 = vmatmul.bf16.gmra.mxu0 %v367
      %v611 = vpop.f32.mrf.mxu0
      %v612 = vadd.f32 %v598, %v611
      %v613 = vpop.f32.mrf.mxu0
      %v614 = vadd.f32 %v600, %v613
      %615 = vdwg.mxu0
      %v616 = vld [vmem:[%s5] sm:$0x3]
      %v618 = vperm.slane %v616, 0
      %v619 = vperm.slane %v616, 1
      %v622 = vmul.f32 %v584, %v618
      %v623 = vmul.f32 %v612, %v619
      %v624 = vmul.f32 %v586, %v618
      %v625 = vmul.f32 %v614, %v619
      %v626 = vld [vmem:[%s6] sm:$0x3]
      %v628 = vperm.slane %v626, 0
      %v629 = vperm.slane %v626, 1
      %v632 = vadd.f32 %v622, %v628
      %v633 = vadd.f32 %v623, %v629
      %v634 = vadd.f32 %v624, %v628
      %v635 = vadd.f32 %v625, %v629
      %v636 = vmax.f32 %v632, 0.0
      %v637 = vmax.f32 %v633, 0.0
      %v638 = vmax.f32 %v634, 0.0
      %v639 = vmax.f32 %v635, 0.0
      %v640 = vpack.c.bf16 %v638, %v636
      %v641 = vpack.c.bf16 %v639, %v637
      %v642 = vld [vmem:[%s7] sm:$0xff]
      %v643 = vld [vmem:[%s7 + $0x8] sm:$0xff]
      %v644 = vld [vmem:[%s7 + $0x10] sm:$0xff]
      %v645 = vld [vmem:[%s7 + $0x18] sm:$0xff]
      %v646 = vld [vmem:[%s7 + $0x20] sm:$0xff]
      %v647 = vld [vmem:[%s7 + $0x28] sm:$0xff]
      %v648 = vld [vmem:[%s7 + $0x30] sm:$0xff]
      %v649 = vld [vmem:[%s7 + $0x38] sm:$0xff]
      %v650 = vld [vmem:[%s7 + $0x40] sm:$0xff]
      %v651 = vld [vmem:[%s7 + $0x48] sm:$0xff]
      %v652 = vld [vmem:[%s7 + $0x50] sm:$0xff]
      %v653 = vld [vmem:[%s7 + $0x58] sm:$0xff]
      %v654 = vld [vmem:[%s7 + $0x60] sm:$0xff]
      %v655 = vld [vmem:[%s7 + $0x68] sm:$0xff]
      %v656 = vld [vmem:[%s7 + $0x70] sm:$0xff]
      %v657 = vld [vmem:[%s7 + $0x78] sm:$0xff]
      %v658 = vld [vmem:[%s7 + $0x80] sm:$0xff]
      %v659 = vld [vmem:[%s7 + $0x88] sm:$0xff]
      %v660 = vld [vmem:[%s7 + $0x90] sm:$0xff]
      %v661 = vld [vmem:[%s7 + $0x98] sm:$0xff]
      %v662 = vld [vmem:[%s7 + $0xa0] sm:$0xff]
      %v663 = vld [vmem:[%s7 + $0xa8] sm:$0xff]
      %v664 = vld [vmem:[%s7 + $0xb0] sm:$0xff]
      %v665 = vld [vmem:[%s7 + $0xb8] sm:$0xff]
      %v666 = vld [vmem:[%s7 + $0xc0] sm:$0xff]
      %v667 = vld [vmem:[%s7 + $0xc8] sm:$0xff]
      %v668 = vld [vmem:[%s7 + $0xd0] sm:$0xff]
      %v669 = vld [vmem:[%s7 + $0xd8] sm:$0xff]
      %v670 = vld [vmem:[%s7 + $0xe0] sm:$0xff]
      %v671 = vld [vmem:[%s7 + $0xe8] sm:$0xff]
      %v672 = vld [vmem:[%s7 + $0xf0] sm:$0xff]
      %v673 = vld [vmem:[%s7 + $0xf8] sm:$0xff]
      %v706 = vunpack.c.l.b16 %v642
      %v707 = vunpack.c.h.b16 %v642
      %v708 = vunpack.c.l.b16 %v643
      %v709 = vunpack.c.h.b16 %v643
      %v710 = vunpack.c.l.b16 %v644
      %v711 = vunpack.c.h.b16 %v644
      %v712 = vunpack.c.l.b16 %v645
      %v713 = vunpack.c.h.b16 %v645
      %v714 = vunpack.c.l.b16 %v646
      %v715 = vunpack.c.h.b16 %v646
      %v716 = vunpack.c.l.b16 %v647
      %v717 = vunpack.c.h.b16 %v647
      %v718 = vunpack.c.l.b16 %v648
      %v719 = vunpack.c.h.b16 %v648
      %v720 = vunpack.c.l.b16 %v649
      %v721 = vunpack.c.h.b16 %v649
      %v722 = vunpack.c.l.b16 %v650
      %v723 = vunpack.c.h.b16 %v650
      %v724 = vunpack.c.l.b16 %v651
      %v725 = vunpack.c.h.b16 %v651
      %v726 = vunpack.c.l.b16 %v652
      %v727 = vunpack.c.h.b16 %v652
      %v728 = vunpack.c.l.b16 %v653
      %v729 = vunpack.c.h.b16 %v653
      %v730 = vunpack.c.l.b16 %v654
      %v731 = vunpack.c.h.b16 %v654
      %v732 = vunpack.c.l.b16 %v655
      %v733 = vunpack.c.h.b16 %v655
      %v734 = vunpack.c.l.b16 %v656
      %v735 = vunpack.c.h.b16 %v656
      %v736 = vunpack.c.l.b16 %v657
      %v737 = vunpack.c.h.b16 %v657
      %v738 = vunpack.c.l.b16 %v658
      %v739 = vunpack.c.h.b16 %v658
      %v740 = vunpack.c.l.b16 %v659
      %v741 = vunpack.c.h.b16 %v659
      %v742 = vunpack.c.l.b16 %v660
      %v743 = vunpack.c.h.b16 %v660
      %v744 = vunpack.c.l.b16 %v661
      %v745 = vunpack.c.h.b16 %v661
      %v746 = vunpack.c.l.b16 %v662
      %v747 = vunpack.c.h.b16 %v662
      %v748 = vunpack.c.l.b16 %v663
      %v749 = vunpack.c.h.b16 %v663
      %v750 = vunpack.c.l.b16 %v664
      %v751 = vunpack.c.h.b16 %v664
      %v752 = vunpack.c.l.b16 %v665
      %v753 = vunpack.c.h.b16 %v665
      %v754 = vunpack.c.l.b16 %v666
      %v755 = vunpack.c.h.b16 %v666
      %v756 = vunpack.c.l.b16 %v667
      %v757 = vunpack.c.h.b16 %v667
      %v758 = vunpack.c.l.b16 %v668
      %v759 = vunpack.c.h.b16 %v668
      %v760 = vunpack.c.l.b16 %v669
      %v761 = vunpack.c.h.b16 %v669
      %v762 = vunpack.c.l.b16 %v670
      %v763 = vunpack.c.h.b16 %v670
      %v764 = vunpack.c.l.b16 %v671
      %v765 = vunpack.c.h.b16 %v671
      %v766 = vunpack.c.l.b16 %v672
      %v767 = vunpack.c.h.b16 %v672
      %v768 = vunpack.c.l.b16 %v673
      %v769 = vunpack.c.h.b16 %v673
      %v770 = vpack.c.b16 %v708, %v706
      %v771 = vpack.c.b16 %v709, %v707
      %v772 = vpack.c.b16 %v712, %v710
      %v773 = vpack.c.b16 %v713, %v711
      %v774 = vpack.c.b16 %v716, %v714
      %v775 = vpack.c.b16 %v717, %v715
      %v776 = vpack.c.b16 %v720, %v718
      %v777 = vpack.c.b16 %v721, %v719
      %v778 = vpack.c.b16 %v724, %v722
      %v779 = vpack.c.b16 %v725, %v723
      %v780 = vpack.c.b16 %v728, %v726
      %v781 = vpack.c.b16 %v729, %v727
      %v782 = vpack.c.b16 %v732, %v730
      %v783 = vpack.c.b16 %v733, %v731
      %v784 = vpack.c.b16 %v736, %v734
      %v785 = vpack.c.b16 %v737, %v735
      %v786 = vpack.c.b16 %v740, %v738
      %v787 = vpack.c.b16 %v741, %v739
      %v788 = vpack.c.b16 %v744, %v742
      %v789 = vpack.c.b16 %v745, %v743
      %v790 = vpack.c.b16 %v748, %v746
      %v791 = vpack.c.b16 %v749, %v747
      %v792 = vpack.c.b16 %v752, %v750
      %v793 = vpack.c.b16 %v753, %v751
      %v794 = vpack.c.b16 %v756, %v754
      %v795 = vpack.c.b16 %v757, %v755
      %v796 = vpack.c.b16 %v760, %v758
      %v797 = vpack.c.b16 %v761, %v759
      %v798 = vpack.c.b16 %v764, %v762
      %v799 = vpack.c.b16 %v765, %v763
      %v800 = vpack.c.b16 %v768, %v766
      %v801 = vpack.c.b16 %v769, %v767
      %834 = vmatpush.bf16.msra.mxu0 %v784
      %835 = vmatpush.bf16.msra.mxu0 %v782
      %836 = vmatpush.bf16.msra.mxu0 %v780
      %837 = vmatpush.bf16.msra.mxu0 %v778
      %838 = vmatpush.bf16.msra.mxu0 %v776
      %839 = vmatpush.bf16.msra.mxu0 %v774
      %840 = vmatpush.bf16.msra.mxu0 %v772
      %841 = vmatpush.bf16.msra.mxu0 %v770
      %842 = vmatmul.bf16.gmra.mxu0 %v640
      %v843 = vpop.f32.mrf.mxu0
      %v844 = vadd.f32 0.0, %v843
      %v845 = vpop.f32.mrf.mxu0
      %v846 = vadd.f32 0.0, %v845
      %847 = vdwg.mxu0
      %848 = vmatpush.bf16.msra.mxu0 %v800
      %849 = vmatpush.bf16.msra.mxu0 %v798
      %850 = vmatpush.bf16.msra.mxu0 %v796
      %851 = vmatpush.bf16.msra.mxu0 %v794
      %852 = vmatpush.bf16.msra.mxu0 %v792
      %853 = vmatpush.bf16.msra.mxu0 %v790
      %854 = vmatpush.bf16.msra.mxu0 %v788
      %855 = vmatpush.bf16.msra.mxu0 %v786
      %856 = vmatmul.bf16.gmra.mxu0 %v641
      %v857 = vpop.f32.mrf.mxu0
      %v858 = vadd.f32 %v844, %v857
      %v859 = vpop.f32.mrf.mxu0
      %v860 = vadd.f32 %v846, %v859
      %861 = vdwg.mxu0
      %862 = vmatpush.bf16.msra.mxu0 %v785
      %863 = vmatpush.bf16.msra.mxu0 %v783
      %864 = vmatpush.bf16.msra.mxu0 %v781
      %865 = vmatpush.bf16.msra.mxu0 %v779
      %866 = vmatpush.bf16.msra.mxu0 %v777
      %867 = vmatpush.bf16.msra.mxu0 %v775
      %868 = vmatpush.bf16.msra.mxu0 %v773
      %869 = vmatpush.bf16.msra.mxu0 %v771
      %870 = vmatmul.bf16.gmra.mxu0 %v640
      %v871 = vpop.f32.mrf.mxu0
      %v872 = vadd.f32 0.0, %v871
      %v873 = vpop.f32.mrf.mxu0
      %v874 = vadd.f32 0.0, %v873
      %875 = vdwg.mxu0
      %876 = vmatpush.bf16.msra.mxu0 %v801
      %877 = vmatpush.bf16.msra.mxu0 %v799
      %878 = vmatpush.bf16.msra.mxu0 %v797
      %879 = vmatpush.bf16.msra.mxu0 %v795
      %880 = vmatpush.bf16.msra.mxu0 %v793
      %881 = vmatpush.bf16.msra.mxu0 %v791
      %882 = vmatpush.bf16.msra.mxu0 %v789
      %883 = vmatpush.bf16.msra.mxu0 %v787
      %884 = vmatmul.bf16.gmra.mxu0 %v641
      %v885 = vpop.f32.mrf.mxu0
      %v886 = vadd.f32 %v872, %v885
      %v887 = vpop.f32.mrf.mxu0
      %v888 = vadd.f32 %v874, %v887
      %889 = vdwg.mxu0
      %v890 = vxor.u32 %v858, 2147483648
      %v891 = vxor.u32 %v886, 2147483648
      %v892 = vxor.u32 %v860, 2147483648
      %v893 = vxor.u32 %v888, 2147483648
      %v894 = vmul.f32 %v890, 1.442695
      %v895 = vpow.pop %v894
      %v896 = vmul.f32 %v891, 1.442695
      %v897 = vpow.pop %v896
      %v898 = vmul.f32 %v892, 1.442695
      %v899 = vpow.pop %v898
      %v900 = vmul.f32 %v893, 1.442695
      %v901 = vpow.pop %v900
      %v902 = vadd.f32 %v895, 1.0
      %v903 = vadd.f32 %v897, 1.0
      %v904 = vadd.f32 %v899, 1.0
      %v905 = vadd.f32 %v901, 1.0
      %v906 = vrcp.pop %v902
      %v907 = vmul.f32 %v902, %v906
      %v908 = vsub.f32 1.0, %v907
      %v909 = vmul.f32 %v906, %v908
      %v910 = vadd.f32 %v906, %v909
      %vm911 = vweird.f32 %v902
      %vm912 = vweird.f32 %v906
      %vm913 = vmor %vm911, %vm912
      %v914 = vsel %vm913, %v906, %v910
      %v915 = vand.u32 2147483647, %v902
      %vm916 = vcmp.eq.f32.partialorder %v915, 8.507059e+37
      %v917 = vand.u32 %v902, 2147483648
      %v918 = vor.u32 1.1754944e-38, %v917
      %v919 = vsel %vm916, %v918, %v914
      %v920 = vmul.f32 1.0, %v919
      %v921 = vrcp.pop %v903
      %v922 = vmul.f32 %v903, %v921
      %v923 = vsub.f32 1.0, %v922
      %v924 = vmul.f32 %v921, %v923
      %v925 = vadd.f32 %v921, %v924
      %vm926 = vweird.f32 %v903
      %vm927 = vweird.f32 %v921
      %vm928 = vmor %vm926, %vm927
      %v929 = vsel %vm928, %v921, %v925
      %v930 = vand.u32 2147483647, %v903
      %vm931 = vcmp.eq.f32.partialorder %v930, 8.507059e+37
      %v932 = vand.u32 %v903, 2147483648
      %v933 = vor.u32 1.1754944e-38, %v932
      %v934 = vsel %vm931, %v933, %v929
      %v935 = vmul.f32 1.0, %v934
      %v936 = vrcp.pop %v904
      %v937 = vmul.f32 %v904, %v936
      %v938 = vsub.f32 1.0, %v937
      %v939 = vmul.f32 %v936, %v938
      %v940 = vadd.f32 %v936, %v939
      %vm941 = vweird.f32 %v904
      %vm942 = vweird.f32 %v936
      %vm943 = vmor %vm941, %vm942
      %v944 = vsel %vm943, %v936, %v940
      %v945 = vand.u32 2147483647, %v904
      %vm946 = vcmp.eq.f32.partialorder %v945, 8.507059e+37
      %v947 = vand.u32 %v904, 2147483648
      %v948 = vor.u32 1.1754944e-38, %v947
      %v949 = vsel %vm946, %v948, %v944
      %v950 = vmul.f32 1.0, %v949
      %v951 = vrcp.pop %v905
      %v952 = vmul.f32 %v905, %v951
      %v953 = vsub.f32 1.0, %v952
      %v954 = vmul.f32 %v951, %v953
      %v955 = vadd.f32 %v951, %v954
      %vm956 = vweird.f32 %v905
      %vm957 = vweird.f32 %v951
      %vm958 = vmor %vm956, %vm957
      %v959 = vsel %vm958, %v951, %v955
      %v960 = vand.u32 2147483647, %v905
      %vm961 = vcmp.eq.f32.partialorder %v960, 8.507059e+37
      %v962 = vand.u32 %v905, 2147483648
      %v963 = vor.u32 1.1754944e-38, %v962
      %v964 = vsel %vm961, %v963, %v959
      %v965 = vmul.f32 1.0, %v964
      %v966 = vmul.f32 %v920, %v328
      %v967 = vmul.f32 %v935, %v329
      %v968 = vmul.f32 %v950, %v330
      %v969 = vmul.f32 %v965, %v331
      %v970 = vadd.f32 %v966, %v328
      %v971 = vadd.f32 %v967, %v329
      %v972 = vadd.f32 %v968, %v330
      %v973 = vadd.f32 %v969, %v331
      %v974 = vpack.c.bf16 %v971, %v970
      %v975 = vpack.c.bf16 %v973, %v972
      %976 = vst [vmem:[%s325] sm:$0xff] %v974
      %977 = vst [vmem:[%s325 + $0x8] sm:$0xff] %v975
      %p978 = scmp.lt.s32.totalorder %s19, 1
      %s979 = scalar_select %p978, %s19, 1
      %s980 = smul.addr %s979, 4
      %s981 = smul.addr %s980, 4
      %s982 = scalar_lea.vmem %s8, %s981
      // Predicated region
      $region53: #{attention_module_stage1.21} parent=51 // pred_check
        %p983 = pneg %p215
      $region54: #{attention_module_stage1.21} parent=51 // pred_check_branch
        %985 = sbr.rel (%p983) target = $region56
      $region55: #{attention_module_stage1.21} parent=51 // pred_region
        _
      $region56: #{attention_module_stage1.21} parent=51 // pred_fallthru
        _
    $region52: #{attention_module_stage1.21} parent=5 // pred_fallthru
      _
    %p986 = scmp.le.s32.totalorder 2, %s14
    // Predicated region
    $region57: #{attention_module_stage1.21} parent=5 // pred_check
      %p987 = pneg %p986
    $region58: #{attention_module_stage1.21} parent=5 // pred_check_branch
      %989 = sbr.rel (%p987) target = $region60
    $region59: #{attention_module_stage1.21} parent=5 // pred_region
      %s990 = ssub.s32 %s14, 2
      // Predicated region
      $region61: #{attention_module_stage1.21} parent=59 // pred_check
        %p991 = pneg %p221
      $region62: #{attention_module_stage1.21} parent=59 // pred_check_branch
        %993 = sbr.rel (%p991) target = $region64
      $region63: #{attention_module_stage1.21} parent=59 // pred_region
        %p994 = scmp.lt.s32.totalorder %s20, 1
        %s995 = scalar_select %p994, %s20, 1
        %s996 = smul.addr %s995, 4
        %s997 = smul.addr %s996, 4
        %s998 = scalar_lea.vmem %s8, %s997
      $region64: #{attention_module_stage1.21} parent=59 // pred_fallthru
        _
    $region60: #{attention_module_stage1.21} parent=5 // pred_fallthru
      _
  $region6: #{attention_module_stage1.21} parent=0 // loop_footer
    %s18 = sadd.s32 1, %s14
  $region7: #{attention_module_stage1.21} parent=0 // loop_footer_branch
    %13 = sbr.rel target = $region3
  $region8: #{attention_module_stage1.21} parent=0 // loop_exit
    _

</llo_original>
